<compile_context>
chip_gen: v7x
topology: tpu7x:2x2x1
jax: 0.10.0
libtpu: 0.0.40
codegen_flags: <defaults>
</compile_context>

<pallas_src>
import functools

import jax
import jax.numpy as jnp
from jax.experimental import pallas as pl
from jax.experimental.pallas import tpu as pltpu


def _round_up(x, m):
    return ((x + m - 1) // m) * m


def _tensorcores_per_device():
    """Best-effort TensorCores-per-JAX-device: 2 on megacore (v4/v5p) and v7x,
    1 on single-core parts (v5e/v6e). A wrong guess only changes tiling."""
    try:
        kind = jax.devices()[0].device_kind.lower()
    except Exception:
        return 1
    if "lite" in kind or "v5e" in kind or "v6" in kind:
        return 1
    if any(tag in kind for tag in ("v4", "v5", "v7", "7x")):
        return 2
    return 1


def _pick_batch_tile(n, hw):
    """Whole batch in one grid step on single-TC chips (kills per-step overhead,
    doubles matmul M); ~2 batch tiles on 2-TC chips so 'parallel' semantics can
    shard them. Capped so per-step VMEM blocks stay modest."""
    cores = _tensorcores_per_device()
    want = n if cores <= 1 else max(1, (n + cores - 1) // cores)
    cap = max(1, 4096 // hw)
    bt = max(1, min(want, cap, n))
    while n % bt:
        bt -= 1
    return bt


def _emit_taps(src_ref, cols_ref, *, b, lkeep, rkeep, H, W, C, pad, padh):
    """Stage the 9 shifted 3x3 taps of batch element `b` into im2col rows.

    src_ref:  (bt*padh, C) bf16.  Flat rows y*W+x live at
              [b*padh+pad, b*padh+pad+H*W); the >=W+1 halo rows above/below are 0.
    cols_ref: (bt*H*W, 9*C) bf16 im2col scratch; tap t fills lanes [t*C, (t+1)*C).
    lkeep/rkeep: (H*W, C) bf16 {0,1} masks that keep x>0 / x<W-1 rows (the
              flat +/-1 row shift wraps across image rows at the left/right edge).
    All slice offsets are static, and the dy shifts (multiples of W) land on
    sublane-aligned rows when W is a multiple of 8.
    """
    HW = H * W
    base = b * padh + pad
    for t in range(9):
        dy, dx = divmod(t, 3)
        tap = src_ref[pl.ds(base + (dy - 1) * W + (dx - 1), HW), :]
        if dx == 0:
            tap = tap * lkeep       # zero outputs at x == 0
        elif dx == 2:
            tap = tap * rkeep       # zero outputs at x == W-1
        cols_ref[pl.ds(b * HW, HW), pl.ds(t * C, C)] = tap


def fused_classifier_kernel(xflat_ref, lmask_ref, rmask_ref, w1_ref, scale_ref,
                            shift_ref, w2_ref, b2_ref, out_ref,
                            cols1_ref, hbuf_ref, cols2_ref, *, H, W, pad):
    """conv1+BN+ReLU -> (VMEM) -> conv2+bias for one batch tile.

    xflat_ref: (bt*padh, Cin) bf16 flat zero-padded input
    w1_ref:    (9*Cin, C)     bf16 conv1 weight, tap-major K
    scale/shift: (1, C)       f32  folded BN affine
    w2_ref:    (9*C, cp)      bf16 conv2 weight, tap-major K, Cout padded to 128
    b2_ref:    (1, cp)        f32  conv2 bias (padded)
    out_ref:   (bt*H*W, cp)   bf16 lane-dense output slab
    cols1/hbuf/cols2: bf16 VMEM scratches (im2col / flat halo staging / im2col)
    """
    HW = H * W
    cin = xflat_ref.shape[-1]
    c = w1_ref.shape[-1]
    bt = out_ref.shape[0] // HW
    padh = xflat_ref.shape[0] // bt

    # Edge-keep masks broadcast once per staging width (hoisted out of tap loops).
    lk_in = jnp.broadcast_to(lmask_ref[...], (HW, cin))
    rk_in = jnp.broadcast_to(rmask_ref[...], (HW, cin))
    lk_h = jnp.broadcast_to(lmask_ref[...], (HW, c))
    rk_h = jnp.broadcast_to(rmask_ref[...], (HW, c))

    # ---- conv1 im2col straight from the flat-padded input (in-kernel) ----
    for b in range(bt):
        _emit_taps(xflat_ref, cols1_ref, b=b, lkeep=lk_in, rkeep=rk_in,
                   H=H, W=W, C=cin, pad=pad, padh=padh)

    # ---- conv1 + BN(eval) + ReLU: one K-dense MXU matmul (K = 9*Cin) ----
    h = jnp.dot(cols1_ref[...], w1_ref[...], preferred_element_type=jnp.float32)
    h = jnp.maximum(h * scale_ref[...] + shift_ref[...], 0.0)
    h = h.astype(jnp.bfloat16)                               # (bt*HW, C)

    # ---- stage h into the flat halo buffer; zero ONLY the halo strips ----
    tail = padh - pad - HW
    ztop = jnp.zeros((pad, c), jnp.bfloat16)
    ztail = jnp.zeros((tail, c), jnp.bfloat16)
    for b in range(bt):
        r0 = b * padh
        hbuf_ref[pl.ds(r0, pad), :] = ztop
        hbuf_ref[pl.ds(r0 + pad + HW, tail), :] = ztail
        hbuf_ref[pl.ds(r0 + pad, HW), :] = h[b * HW:(b + 1) * HW, :]

    # ---- conv2 im2col from the staged activation ----
    for b in range(bt):
        _emit_taps(hbuf_ref, cols2_ref, b=b, lkeep=lk_h, rkeep=rk_h,
                   H=H, W=W, C=c, pad=pad, padh=padh)

    # ---- conv2 + bias: one K-dense MXU matmul (K = 9*C), lane-dense bf16 store ----
    y = jnp.dot(cols2_ref[...], w2_ref[...], preferred_element_type=jnp.float32)
    out_ref[...] = (y + b2_ref[...]).astype(out_ref.dtype)


def prepare_params(params, eps=1e-5):
    """Hoisted out of the hot path: fold BN, re-layout / pad / cast weights once."""
    w1 = params["w1"]                           # (C, Cin, 3, 3)  PyTorch OIHW
    w2 = params["w2"]                           # (n_class, C, 3, 3)
    C, Cin = w1.shape[0], w1.shape[1]
    ncls = w2.shape[0]
    cp = max(128, _round_up(ncls, 128))          # lane-dense conv2 output width

    scale = params["gamma"] / jnp.sqrt(params["running_var"] + eps)
    shift = params["beta"] - params["running_mean"] * scale

    # Tap-major K layout: weight row (dy*3+dx)*Cin + ci  <->  cols[:, t*Cin + ci].
    w1_col = jnp.transpose(w1, (2, 3, 1, 0)).reshape(9 * Cin, C).astype(jnp.bfloat16)
    w2_col = jnp.transpose(w2, (2, 3, 1, 0)).reshape(9 * C, ncls)
    w2_col = jnp.pad(w2_col, ((0, 0), (0, cp - ncls))).astype(jnp.bfloat16)
    b2_pad = jnp.pad(params["b2"], (0, cp - ncls)).astype(jnp.float32)[None, :]

    return dict(w1_col=w1_col,
                bn_scale=scale.astype(jnp.float32)[None, :],
                bn_shift=shift.astype(jnp.float32)[None, :],
                w2_col=w2_col, b2_pad=b2_pad)


@functools.partial(jax.jit, static_argnames=("n_class",))
def classifier_forward(x_nchw, prepped, *, n_class):
    """Pallas implementation of Classifier.forward; NCHW in / NCHW out like PyTorch."""
    x = jnp.transpose(x_nchw, (0, 2, 3, 1))                  # NCHW -> NHWC
    N, H, W, Cin = x.shape
    C = prepped["w1_col"].shape[1]
    cp = prepped["w2_col"].shape[1]
    HW = H * W
    pad = _round_up(W + 1, 8)        # halo rows (>= W+1), sublane aligned
    padh = 2 * pad + HW              # flat rows per image incl. halos (mult of 8)
    bt = _pick_batch_tile(N, HW)
    grid = (N // bt,)

    # Flat zero-padded bf16 input: rows y*W+x with zero halos above/below.
    xflat = jnp.pad(x.reshape(N, HW, Cin).astype(jnp.bfloat16),
                    ((0, 0), (pad, pad), (0, 0))).reshape(N * padh, Cin)

    # {0,1} edge-keep masks for the dx=0 / dx=2 taps (see kernel).
    xi = jnp.arange(HW, dtype=jnp.int32) % W
    lmask = (xi != 0).astype(jnp.bfloat16).reshape(HW, 1)
    rmask = (xi != W - 1).astype(jnp.bfloat16).reshape(HW, 1)

    kernel = functools.partial(fused_classifier_kernel, H=H, W=W, pad=pad)

    # Rough VMEM budget (double-buffered I/O blocks + scratches + weights),
    # ~2 MiB at these shapes.  TODO(synk): add an H-tile grid axis (halo rows in
    # the index_map) before H*W grows enough to approach v7x's 64 MiB/TC VMEM.
    vmem_needed = (2 * (bt * padh * Cin * 2 + bt * HW * cp * 2)
                   + bt * HW * 9 * Cin * 2 + bt * padh * C * 2
                   + bt * HW * 9 * C * 2
                   + 9 * Cin * C * 2 + 9 * C * cp * 2 + (2 * C + cp + 2 * HW) * 4)
    vmem_limit = int(min(max(2 * vmem_needed, 16 << 20), 32 << 20))

    out = pl.pallas_call(
        kernel,
        out_shape=jax.ShapeDtypeStruct((N * HW, cp), jnp.bfloat16),
        grid_spec=pltpu.PrefetchScalarGridSpec(
            num_scalar_prefetch=0,
            grid=grid,
            in_specs=[
                pl.BlockSpec((bt * padh, Cin), lambda b: (b, 0)),   # flat input
                pl.BlockSpec((HW, 1), lambda b: (0, 0)),            # left-edge mask
                pl.BlockSpec((HW, 1), lambda b: (0, 0)),            # right-edge mask
                pl.BlockSpec((9 * Cin, C), lambda b: (0, 0)),        # conv1 weight
                pl.BlockSpec((1, C), lambda b: (0, 0)),              # BN scale
                pl.BlockSpec((1, C), lambda b: (0, 0)),              # BN shift
                pl.BlockSpec((9 * C, cp), lambda b: (0, 0)),         # conv2 weight
                pl.BlockSpec((1, cp), lambda b: (0, 0)),             # conv2 bias
            ],
            out_specs=pl.BlockSpec((bt * HW, cp), lambda b: (b, 0)),
            scratch_shapes=[
                pltpu.VMEM((bt * HW, 9 * Cin), jnp.bfloat16),   # conv1 im2col
                pltpu.VMEM((bt * padh, C), jnp.bfloat16),       # flat halo staging of h
                pltpu.VMEM((bt * HW, 9 * C), jnp.bfloat16),     # conv2 im2col
            ],
        ),
        compiler_params=pltpu.CompilerParams(
            dimension_semantics=("parallel",),    # shard batch tiles on megacore/v7x
            vmem_limit_bytes=vmem_limit),
    )(xflat, lmask, rmask, prepped["w1_col"], prepped["bn_scale"],
      prepped["bn_shift"], prepped["w2_col"], prepped["b2_pad"])

    out = out.reshape(N, H, W, cp)[..., :n_class].astype(jnp.float32)
    return jnp.transpose(out, (0, 3, 1, 2))                   # NHWC -> NCHW


def init_params(key, in_chan, n_class):
    """Deterministic synthetic parameters matching the PyTorch module shapes."""
    k1, k2, k3, k4, k5, k6, k7 = jax.random.split(key, 7)
    w1 = 0.1 * jax.random.normal(k1, (in_chan, 2 * in_chan, 3, 3), jnp.float32)
    gamma = 1.0 + 0.1 * jax.random.normal(k2, (in_chan,), jnp.float32)
    beta = 0.1 * jax.random.normal(k3, (in_chan,), jnp.float32)
    running_mean = 0.1 * jax.random.normal(k4, (in_chan,), jnp.float32)
    running_var = jnp.abs(jax.random.normal(k5, (in_chan,), jnp.float32)) + 0.5
    w2 = 0.1 * jax.random.normal(k6, (n_class, in_chan, 3, 3), jnp.float32)
    b2 = 0.1 * jax.random.normal(k7, (n_class,), jnp.float32)
    return dict(w1=w1, gamma=gamma, beta=beta, running_mean=running_mean,
                running_var=running_var, w2=w2, b2=b2)


def classifier_reference(x_nchw, params):
    """Pure-JAX f32 reference (lax.conv) for correctness checking."""
    eps = 1e-5
    dn = ("NCHW", "OIHW", "NCHW")
    y = jax.lax.conv_general_dilated(x_nchw, params["w1"], (1, 1), "SAME",
                                     dimension_numbers=dn)
    scale = params["gamma"] / jnp.sqrt(params["running_var"] + eps)
    shift = params["beta"] - params["running_mean"] * scale
    y = jnp.maximum(y * scale[None, :, None, None] + shift[None, :, None, None], 0.0)
    y = jax.lax.conv_general_dilated(y, params["w2"], (1, 1), "SAME",
                                     dimension_numbers=dn)
    return y + params["b2"][None, :, None, None]


if __name__ == "__main__":
    in_chan, n_class = 32, 2          # module default: conv1 input channels = 2*in_chan
    N, H, W = 2, 16, 16

    key = jax.random.PRNGKey(0)
    kx, kp = jax.random.split(key)
    x = jax.random.normal(kx, (N, 2 * in_chan, H, W), jnp.float32)   # NCHW like PyTorch
    params = init_params(kp, in_chan, n_class)
    prepped = prepare_params(params)

    out = classifier_forward(x, prepped, n_class=n_class)
    out = jax.block_until_ready(out)

    ref = classifier_reference(x, params)
    assert out.shape == (N, n_class, H, W), out.shape
    # bf16 MXU inputs / bf16 staging / bf16 output slab with f32 accumulation:
    # tolerance accounts for bf16 rounding on activations, weights and the store.
    max_err = float(jnp.max(jnp.abs(out - ref)))
    assert jnp.allclose(out, ref, rtol=3e-2, atol=1e-1), max_err

    print("KERNEL_OK")
</pallas_src>

<mosaic_0001>
module attributes {stable_mosaic.version = 11 : i64} {
  func.func @fused_classifier_kernel(%arg0: i32, %arg1: memref<608x64xbf16, #tpu.memory_space<vmem>>, %arg2: memref<256x1xbf16, #tpu.memory_space<vmem>>, %arg3: memref<256x1xbf16, #tpu.memory_space<vmem>>, %arg4: memref<576x32xbf16, #tpu.memory_space<vmem>>, %arg5: memref<1x32xf32, #tpu.memory_space<vmem>>, %arg6: memref<1x32xf32, #tpu.memory_space<vmem>>, %arg7: memref<288x128xbf16, #tpu.memory_space<vmem>>, %arg8: memref<1x128xf32, #tpu.memory_space<vmem>>, %arg9: memref<512x128xbf16, #tpu.memory_space<vmem>>, %arg10: memref<512x576xbf16, #tpu.memory_space<vmem>>, %arg11: memref<608x32xbf16, #tpu.memory_space<vmem>>, %arg12: memref<512x288xbf16, #tpu.memory_space<vmem>>) attributes {dimension_semantics = [#tpu.dimension_semantics<parallel>], iteration_bounds = array<i64: 1>, scalar_prefetch = 0 : i64, scratch_operands = 3 : i64, tpu.core_type = #tpu.core_type<tc>, window_params = [{transform_indices = @transform_0, window_bounds = array<i64: 608, 64>}, {pipeline_mode = #tpu.pipeline_mode<synchronous>, transform_indices = @transform_1, window_bounds = array<i64: 256, 1>}, {pipeline_mode = #tpu.pipeline_mode<synchronous>, transform_indices = @transform_2, window_bounds = array<i64: 256, 1>}, {pipeline_mode = #tpu.pipeline_mode<synchronous>, transform_indices = @transform_3, window_bounds = array<i64: 576, 32>}, {pipeline_mode = #tpu.pipeline_mode<synchronous>, transform_indices = @transform_4, window_bounds = array<i64: 1, 32>}, {pipeline_mode = #tpu.pipeline_mode<synchronous>, transform_indices = @transform_5, window_bounds = array<i64: 1, 32>}, {pipeline_mode = #tpu.pipeline_mode<synchronous>, transform_indices = @transform_6, window_bounds = array<i64: 288, 128>}, {pipeline_mode = #tpu.pipeline_mode<synchronous>, transform_indices = @transform_7, window_bounds = array<i64: 1, 128>}, {transform_indices = @transform_8, window_bounds = array<i64: 512, 128>}]} {
    %c0 = arith.constant 0 : index
    %c0_0 = arith.constant 0 : index
    %0 = vector.load %arg2[%c0, %c0_0] : memref<256x1xbf16, #tpu.memory_space<vmem>>, vector<256x1xbf16>
    %1 = vector.shape_cast %0 : vector<256x1xbf16> to vector<256x1xbf16>
    %2 = vector.broadcast %1 : vector<256x1xbf16> to vector<256x64xbf16>
    %c0_1 = arith.constant 0 : index
    %c0_2 = arith.constant 0 : index
    %3 = vector.load %arg3[%c0_1, %c0_2] : memref<256x1xbf16, #tpu.memory_space<vmem>>, vector<256x1xbf16>
    %4 = vector.shape_cast %3 : vector<256x1xbf16> to vector<256x1xbf16>
    %5 = vector.broadcast %4 : vector<256x1xbf16> to vector<256x64xbf16>
    %c0_3 = arith.constant 0 : index
    %c0_4 = arith.constant 0 : index
    %6 = vector.load %arg2[%c0_3, %c0_4] : memref<256x1xbf16, #tpu.memory_space<vmem>>, vector<256x1xbf16>
    %7 = vector.shape_cast %6 : vector<256x1xbf16> to vector<256x1xbf16>
    %8 = vector.broadcast %7 : vector<256x1xbf16> to vector<256x32xbf16>
    %c0_5 = arith.constant 0 : index
    %c0_6 = arith.constant 0 : index
    %9 = vector.load %arg3[%c0_5, %c0_6] : memref<256x1xbf16, #tpu.memory_space<vmem>>, vector<256x1xbf16>
    %10 = vector.shape_cast %9 : vector<256x1xbf16> to vector<256x1xbf16>
    %11 = vector.broadcast %10 : vector<256x1xbf16> to vector<256x32xbf16>
    %c7 = arith.constant 7 : index
    %c0_7 = arith.constant 0 : index
    %12 = vector.load %arg1[%c7, %c0_7] : memref<608x64xbf16, #tpu.memory_space<vmem>>, vector<256x64xbf16>
    %13 = arith.mulf %12, %2 : vector<256x64xbf16>
    %c0_8 = arith.constant 0 : index
    %c0_9 = arith.constant 0 : index
    %14 = vector.load %arg10[%c0_8, %c0_9] : memref<512x576xbf16, #tpu.memory_space<vmem>>, vector<256x64xbf16>
    tpu.vector_store %arg10[%c0_8, %c0_9], %13 {strides = array<i32>} : memref<512x576xbf16, #tpu.memory_space<vmem>>, vector<256x64xbf16>,
    %c8 = arith.constant 8 : index
    %c0_10 = arith.constant 0 : index
    %15 = vector.load %arg1[%c8, %c0_10] : memref<608x64xbf16, #tpu.memory_space<vmem>>, vector<256x64xbf16>
    %c0_11 = arith.constant 0 : index
    %c64 = arith.constant 64 : index
    %16 = vector.load %arg10[%c0_11, %c64] : memref<512x576xbf16, #tpu.memory_space<vmem>>, vector<256x64xbf16>
    tpu.vector_store %arg10[%c0_11, %c64], %15 {strides = array<i32>} : memref<512x576xbf16, #tpu.memory_space<vmem>>, vector<256x64xbf16>,
    %c9 = arith.constant 9 : index
    %c0_12 = arith.constant 0 : index
    %17 = vector.load %arg1[%c9, %c0_12] : memref<608x64xbf16, #tpu.memory_space<vmem>>, vector<256x64xbf16>
    %18 = arith.mulf %17, %5 : vector<256x64xbf16>
    %c0_13 = arith.constant 0 : index
    %c128 = arith.constant 128 : index
    %19 = vector.load %arg10[%c0_13, %c128] : memref<512x576xbf16, #tpu.memory_space<vmem>>, vector<256x64xbf16>
    tpu.vector_store %arg10[%c0_13, %c128], %18 {strides = array<i32>} : memref<512x576xbf16, #tpu.memory_space<vmem>>, vector<256x64xbf16>,
    %c23 = arith.constant 23 : index
    %c0_14 = arith.constant 0 : index
    %20 = vector.load %arg1[%c23, %c0_14] : memref<608x64xbf16, #tpu.memory_space<vmem>>, vector<256x64xbf16>
    %21 = arith.mulf %20, %2 : vector<256x64xbf16>
    %c0_15 = arith.constant 0 : index
    %c192 = arith.constant 192 : index
    %22 = vector.load %arg10[%c0_15, %c192] : memref<512x576xbf16, #tpu.memory_space<vmem>>, vector<256x64xbf16>
    tpu.vector_store %arg10[%c0_15, %c192], %21 {strides = array<i32>} : memref<512x576xbf16, #tpu.memory_space<vmem>>, vector<256x64xbf16>,
    %c24 = arith.constant 24 : index
    %c0_16 = arith.constant 0 : index
    %23 = vector.load %arg1[%c24, %c0_16] : memref<608x64xbf16, #tpu.memory_space<vmem>>, vector<256x64xbf16>
    %c0_17 = arith.constant 0 : index
    %c256 = arith.constant 256 : index
    %24 = vector.load %arg10[%c0_17, %c256] : memref<512x576xbf16, #tpu.memory_space<vmem>>, vector<256x64xbf16>
    tpu.vector_store %arg10[%c0_17, %c256], %23 {strides = array<i32>} : memref<512x576xbf16, #tpu.memory_space<vmem>>, vector<256x64xbf16>,
    %c25 = arith.constant 25 : index
    %c0_18 = arith.constant 0 : index
    %25 = vector.load %arg1[%c25, %c0_18] : memref<608x64xbf16, #tpu.memory_space<vmem>>, vector<256x64xbf16>
    %26 = arith.mulf %25, %5 : vector<256x64xbf16>
    %c0_19 = arith.constant 0 : index
    %c320 = arith.constant 320 : index
    %27 = vector.load %arg10[%c0_19, %c320] : memref<512x576xbf16, #tpu.memory_space<vmem>>, vector<256x64xbf16>
    tpu.vector_store %arg10[%c0_19, %c320], %26 {strides = array<i32>} : memref<512x576xbf16, #tpu.memory_space<vmem>>, vector<256x64xbf16>,
    %c39 = arith.constant 39 : index
    %c0_20 = arith.constant 0 : index
    %28 = vector.load %arg1[%c39, %c0_20] : memref<608x64xbf16, #tpu.memory_space<vmem>>, vector<256x64xbf16>
    %29 = arith.mulf %28, %2 : vector<256x64xbf16>
    %c0_21 = arith.constant 0 : index
    %c384 = arith.constant 384 : index
    %30 = vector.load %arg10[%c0_21, %c384] : memref<512x576xbf16, #tpu.memory_space<vmem>>, vector<256x64xbf16>
    tpu.vector_store %arg10[%c0_21, %c384], %29 {strides = array<i32>} : memref<512x576xbf16, #tpu.memory_space<vmem>>, vector<256x64xbf16>,
    %c40 = arith.constant 40 : index
    %c0_22 = arith.constant 0 : index
    %31 = vector.load %arg1[%c40, %c0_22] : memref<608x64xbf16, #tpu.memory_space<vmem>>, vector<256x64xbf16>
    %c0_23 = arith.constant 0 : index
    %c448 = arith.constant 448 : index
    %32 = vector.load %arg10[%c0_23, %c448] : memref<512x576xbf16, #tpu.memory_space<vmem>>, vector<256x64xbf16>
    tpu.vector_store %arg10[%c0_23, %c448], %31 {strides = array<i32>} : memref<512x576xbf16, #tpu.memory_space<vmem>>, vector<256x64xbf16>,
    %c41 = arith.constant 41 : index
    %c0_24 = arith.constant 0 : index
    %33 = vector.load %arg1[%c41, %c0_24] : memref<608x64xbf16, #tpu.memory_space<vmem>>, vector<256x64xbf16>
    %34 = arith.mulf %33, %5 : vector<256x64xbf16>
    %c0_25 = arith.constant 0 : index
    %c512 = arith.constant 512 : index
    %35 = vector.load %arg10[%c0_25, %c512] : memref<512x576xbf16, #tpu.memory_space<vmem>>, vector<256x64xbf16>
    tpu.vector_store %arg10[%c0_25, %c512], %34 {strides = array<i32>} : memref<512x576xbf16, #tpu.memory_space<vmem>>, vector<256x64xbf16>,
    %c311 = arith.constant 311 : index
    %c0_26 = arith.constant 0 : index
    %36 = vector.load %arg1[%c311, %c0_26] : memref<608x64xbf16, #tpu.memory_space<vmem>>, vector<256x64xbf16>
    %37 = arith.mulf %36, %2 : vector<256x64xbf16>
    %c256_27 = arith.constant 256 : index
    %c0_28 = arith.constant 0 : index
    %38 = vector.load %arg10[%c256_27, %c0_28] : memref<512x576xbf16, #tpu.memory_space<vmem>>, vector<256x64xbf16>
    tpu.vector_store %arg10[%c256_27, %c0_28], %37 {strides = array<i32>} : memref<512x576xbf16, #tpu.memory_space<vmem>>, vector<256x64xbf16>,
    %c312 = arith.constant 312 : index
    %c0_29 = arith.constant 0 : index
    %39 = vector.load %arg1[%c312, %c0_29] : memref<608x64xbf16, #tpu.memory_space<vmem>>, vector<256x64xbf16>
    %c256_30 = arith.constant 256 : index
    %c64_31 = arith.constant 64 : index
    %40 = vector.load %arg10[%c256_30, %c64_31] : memref<512x576xbf16, #tpu.memory_space<vmem>>, vector<256x64xbf16>
    tpu.vector_store %arg10[%c256_30, %c64_31], %39 {strides = array<i32>} : memref<512x576xbf16, #tpu.memory_space<vmem>>, vector<256x64xbf16>,
    %c313 = arith.constant 313 : index
    %c0_32 = arith.constant 0 : index
    %41 = vector.load %arg1[%c313, %c0_32] : memref<608x64xbf16, #tpu.memory_space<vmem>>, vector<256x64xbf16>
    %42 = arith.mulf %41, %5 : vector<256x64xbf16>
    %c256_33 = arith.constant 256 : index
    %c128_34 = arith.constant 128 : index
    %43 = vector.load %arg10[%c256_33, %c128_34] : memref<512x576xbf16, #tpu.memory_space<vmem>>, vector<256x64xbf16>
    tpu.vector_store %arg10[%c256_33, %c128_34], %42 {strides = array<i32>} : memref<512x576xbf16, #tpu.memory_space<vmem>>, vector<256x64xbf16>,
    %c327 = arith.constant 327 : index
    %c0_35 = arith.constant 0 : index
    %44 = vector.load %arg1[%c327, %c0_35] : memref<608x64xbf16, #tpu.memory_space<vmem>>, vector<256x64xbf16>
    %45 = arith.mulf %44, %2 : vector<256x64xbf16>
    %c256_36 = arith.constant 256 : index
    %c192_37 = arith.constant 192 : index
    %46 = vector.load %arg10[%c256_36, %c192_37] : memref<512x576xbf16, #tpu.memory_space<vmem>>, vector<256x64xbf16>
    tpu.vector_store %arg10[%c256_36, %c192_37], %45 {strides = array<i32>} : memref<512x576xbf16, #tpu.memory_space<vmem>>, vector<256x64xbf16>,
    %c328 = arith.constant 328 : index
    %c0_38 = arith.constant 0 : index
    %47 = vector.load %arg1[%c328, %c0_38] : memref<608x64xbf16, #tpu.memory_space<vmem>>, vector<256x64xbf16>
    %c256_39 = arith.constant 256 : index
    %c256_40 = arith.constant 256 : index
    %48 = vector.load %arg10[%c256_39, %c256_40] : memref<512x576xbf16, #tpu.memory_space<vmem>>, vector<256x64xbf16>
    tpu.vector_store %arg10[%c256_39, %c256_40], %47 {strides = array<i32>} : memref<512x576xbf16, #tpu.memory_space<vmem>>, vector<256x64xbf16>,
    %c329 = arith.constant 329 : index
    %c0_41 = arith.constant 0 : index
    %49 = vector.load %arg1[%c329, %c0_41] : memref<608x64xbf16, #tpu.memory_space<vmem>>, vector<256x64xbf16>
    %50 = arith.mulf %49, %5 : vector<256x64xbf16>
    %c256_42 = arith.constant 256 : index
    %c320_43 = arith.constant 320 : index
    %51 = vector.load %arg10[%c256_42, %c320_43] : memref<512x576xbf16, #tpu.memory_space<vmem>>, vector<256x64xbf16>
    tpu.vector_store %arg10[%c256_42, %c320_43], %50 {strides = array<i32>} : memref<512x576xbf16, #tpu.memory_space<vmem>>, vector<256x64xbf16>,
    %c343 = arith.constant 343 : index
    %c0_44 = arith.constant 0 : index
    %52 = vector.load %arg1[%c343, %c0_44] : memref<608x64xbf16, #tpu.memory_space<vmem>>, vector<256x64xbf16>
    %53 = arith.mulf %52, %2 : vector<256x64xbf16>
    %c256_45 = arith.constant 256 : index
    %c384_46 = arith.constant 384 : index
    %54 = vector.load %arg10[%c256_45, %c384_46] : memref<512x576xbf16, #tpu.memory_space<vmem>>, vector<256x64xbf16>
    tpu.vector_store %arg10[%c256_45, %c384_46], %53 {strides = array<i32>} : memref<512x576xbf16, #tpu.memory_space<vmem>>, vector<256x64xbf16>,
    %c344 = arith.constant 344 : index
    %c0_47 = arith.constant 0 : index
    %55 = vector.load %arg1[%c344, %c0_47] : memref<608x64xbf16, #tpu.memory_space<vmem>>, vector<256x64xbf16>
    %c256_48 = arith.constant 256 : index
    %c448_49 = arith.constant 448 : index
    %56 = vector.load %arg10[%c256_48, %c448_49] : memref<512x576xbf16, #tpu.memory_space<vmem>>, vector<256x64xbf16>
    tpu.vector_store %arg10[%c256_48, %c448_49], %55 {strides = array<i32>} : memref<512x576xbf16, #tpu.memory_space<vmem>>, vector<256x64xbf16>,
    %c345 = arith.constant 345 : index
    %c0_50 = arith.constant 0 : index
    %57 = vector.load %arg1[%c345, %c0_50] : memref<608x64xbf16, #tpu.memory_space<vmem>>, vector<256x64xbf16>
    %58 = arith.mulf %57, %5 : vector<256x64xbf16>
    %c256_51 = arith.constant 256 : index
    %c512_52 = arith.constant 512 : index
    %59 = vector.load %arg10[%c256_51, %c512_52] : memref<512x576xbf16, #tpu.memory_space<vmem>>, vector<256x64xbf16>
    tpu.vector_store %arg10[%c256_51, %c512_52], %58 {strides = array<i32>} : memref<512x576xbf16, #tpu.memory_space<vmem>>, vector<256x64xbf16>,
    %c0_53 = arith.constant 0 : index
    %c0_54 = arith.constant 0 : index
    %60 = vector.load %arg10[%c0_53, %c0_54] : memref<512x576xbf16, #tpu.memory_space<vmem>>, vector<512x576xbf16>
    %c0_55 = arith.constant 0 : index
    %c0_56 = arith.constant 0 : index
    %61 = vector.load %arg4[%c0_55, %c0_56] : memref<576x32xbf16, #tpu.memory_space<vmem>>, vector<576x32xbf16>
    %cst = arith.constant dense<0.000000e+00> : vector<512x32xf32>
    %62 = tpu.matmul %60, %61, %cst {dimension_numbers = #tpu.dot_dimension_numbers<[1], [0], [0], [1], [0, 0, 1, 1], [], []>} : vector<512x576xbf16>, vector<576x32xbf16>, vector<512x32xf32> -> vector<512x32xf32>
    %c0_57 = arith.constant 0 : index
    %c0_58 = arith.constant 0 : index
    %63 = vector.load %arg5[%c0_57, %c0_58] : memref<1x32xf32, #tpu.memory_space<vmem>>, vector<1x32xf32>
    %64 = vector.broadcast %63 : vector<1x32xf32> to vector<512x32xf32>
    %65 = arith.mulf %62, %64 : vector<512x32xf32>
    %c0_59 = arith.constant 0 : index
    %c0_60 = arith.constant 0 : index
    %66 = vector.load %arg6[%c0_59, %c0_60] : memref<1x32xf32, #tpu.memory_space<vmem>>, vector<1x32xf32>
    %67 = vector.broadcast %66 : vector<1x32xf32> to vector<512x32xf32>
    %68 = arith.addf %65, %67 : vector<512x32xf32>
    %cst_61 = arith.constant 0.000000e+00 : f32
    %69 = vector.broadcast %cst_61 : f32 to vector<512x32xf32>
    %70 = arith.maximumf %68, %69 : vector<512x32xf32>
    %71 = arith.truncf %70 : vector<512x32xf32> to vector<512x32xbf16>
    %cst_62 = arith.constant 0.000000e+00 : bf16
    %72 = vector.broadcast %cst_62 : bf16 to vector<24x32xbf16>
    %cst_63 = arith.constant 0.000000e+00 : bf16
    %73 = vector.broadcast %cst_63 : bf16 to vector<24x32xbf16>
    %c0_64 = arith.constant 0 : index
    %c0_65 = arith.constant 0 : index
    %74 = vector.load %arg11[%c0_64, %c0_65] : memref<608x32xbf16, #tpu.memory_space<vmem>>, vector<24x32xbf16>
    tpu.vector_store %arg11[%c0_64, %c0_65], %72 {strides = array<i32>} : memref<608x32xbf16, #tpu.memory_space<vmem>>, vector<24x32xbf16>,
    %c280 = arith.constant 280 : index
    %c0_66 = arith.constant 0 : index
    %75 = vector.load %arg11[%c280, %c0_66] : memref<608x32xbf16, #tpu.memory_space<vmem>>, vector<24x32xbf16>
    tpu.vector_store %arg11[%c280, %c0_66], %73 {strides = array<i32>} : memref<608x32xbf16, #tpu.memory_space<vmem>>, vector<24x32xbf16>,
    %76 = vector.extract_strided_slice %71 {offsets = [0, 0], sizes = [256, 32], strides = [1, 1]} : vector<512x32xbf16> to vector<256x32xbf16>
    %c24_67 = arith.constant 24 : index
    %c0_68 = arith.constant 0 : index
    %77 = vector.load %arg11[%c24_67, %c0_68] : memref<608x32xbf16, #tpu.memory_space<vmem>>, vector<256x32xbf16>
    tpu.vector_store %arg11[%c24_67, %c0_68], %76 {strides = array<i32>} : memref<608x32xbf16, #tpu.memory_space<vmem>>, vector<256x32xbf16>,
    %c304 = arith.constant 304 : index
    %c0_69 = arith.constant 0 : index
    %78 = vector.load %arg11[%c304, %c0_69] : memref<608x32xbf16, #tpu.memory_space<vmem>>, vector<24x32xbf16>
    tpu.vector_store %arg11[%c304, %c0_69], %72 {strides = array<i32>} : memref<608x32xbf16, #tpu.memory_space<vmem>>, vector<24x32xbf16>,
    %c584 = arith.constant 584 : index
    %c0_70 = arith.constant 0 : index
    %79 = vector.load %arg11[%c584, %c0_70] : memref<608x32xbf16, #tpu.memory_space<vmem>>, vector<24x32xbf16>
    tpu.vector_store %arg11[%c584, %c0_70], %73 {strides = array<i32>} : memref<608x32xbf16, #tpu.memory_space<vmem>>, vector<24x32xbf16>,
    %80 = vector.extract_strided_slice %71 {offsets = [256, 0], sizes = [256, 32], strides = [1, 1]} : vector<512x32xbf16> to vector<256x32xbf16>
    %c328_71 = arith.constant 328 : index
    %c0_72 = arith.constant 0 : index
    %81 = vector.load %arg11[%c328_71, %c0_72] : memref<608x32xbf16, #tpu.memory_space<vmem>>, vector<256x32xbf16>
    tpu.vector_store %arg11[%c328_71, %c0_72], %80 {strides = array<i32>} : memref<608x32xbf16, #tpu.memory_space<vmem>>, vector<256x32xbf16>,
    %c7_73 = arith.constant 7 : index
    %c0_74 = arith.constant 0 : index
    %82 = vector.load %arg11[%c7_73, %c0_74] : memref<608x32xbf16, #tpu.memory_space<vmem>>, vector<256x32xbf16>
    %83 = arith.mulf %82, %8 : vector<256x32xbf16>
    %c0_75 = arith.constant 0 : index
    %c0_76 = arith.constant 0 : index
    %84 = vector.load %arg12[%c0_75, %c0_76] : memref<512x288xbf16, #tpu.memory_space<vmem>>, vector<256x32xbf16>
    tpu.vector_store %arg12[%c0_75, %c0_76], %83 {strides = array<i32>} : memref<512x288xbf16, #tpu.memory_space<vmem>>, vector<256x32xbf16>,
    %c8_77 = arith.constant 8 : index
    %c0_78 = arith.constant 0 : index
    %85 = vector.load %arg11[%c8_77, %c0_78] : memref<608x32xbf16, #tpu.memory_space<vmem>>, vector<256x32xbf16>
    %c0_79 = arith.constant 0 : index
    %c32 = arith.constant 32 : index
    %86 = vector.load %arg12[%c0_79, %c32] : memref<512x288xbf16, #tpu.memory_space<vmem>>, vector<256x32xbf16>
    tpu.vector_store %arg12[%c0_79, %c32], %85 {strides = array<i32>} : memref<512x288xbf16, #tpu.memory_space<vmem>>, vector<256x32xbf16>,
    %c9_80 = arith.constant 9 : index
    %c0_81 = arith.constant 0 : index
    %87 = vector.load %arg11[%c9_80, %c0_81] : memref<608x32xbf16, #tpu.memory_space<vmem>>, vector<256x32xbf16>
    %88 = arith.mulf %87, %11 : vector<256x32xbf16>
    %c0_82 = arith.constant 0 : index
    %c64_83 = arith.constant 64 : index
    %89 = vector.load %arg12[%c0_82, %c64_83] : memref<512x288xbf16, #tpu.memory_space<vmem>>, vector<256x32xbf16>
    tpu.vector_store %arg12[%c0_82, %c64_83], %88 {strides = array<i32>} : memref<512x288xbf16, #tpu.memory_space<vmem>>, vector<256x32xbf16>,
    %c23_84 = arith.constant 23 : index
    %c0_85 = arith.constant 0 : index
    %90 = vector.load %arg11[%c23_84, %c0_85] : memref<608x32xbf16, #tpu.memory_space<vmem>>, vector<256x32xbf16>
    %91 = arith.mulf %90, %8 : vector<256x32xbf16>
    %c0_86 = arith.constant 0 : index
    %c96 = arith.constant 96 : index
    %92 = vector.load %arg12[%c0_86, %c96] : memref<512x288xbf16, #tpu.memory_space<vmem>>, vector<256x32xbf16>
    tpu.vector_store %arg12[%c0_86, %c96], %91 {strides = array<i32>} : memref<512x288xbf16, #tpu.memory_space<vmem>>, vector<256x32xbf16>,
    %c24_87 = arith.constant 24 : index
    %c0_88 = arith.constant 0 : index
    %93 = vector.load %arg11[%c24_87, %c0_88] : memref<608x32xbf16, #tpu.memory_space<vmem>>, vector<256x32xbf16>
    %c0_89 = arith.constant 0 : index
    %c128_90 = arith.constant 128 : index
    %94 = vector.load %arg12[%c0_89, %c128_90] : memref<512x288xbf16, #tpu.memory_space<vmem>>, vector<256x32xbf16>
    tpu.vector_store %arg12[%c0_89, %c128_90], %93 {strides = array<i32>} : memref<512x288xbf16, #tpu.memory_space<vmem>>, vector<256x32xbf16>,
    %c25_91 = arith.constant 25 : index
    %c0_92 = arith.constant 0 : index
    %95 = vector.load %arg11[%c25_91, %c0_92] : memref<608x32xbf16, #tpu.memory_space<vmem>>, vector<256x32xbf16>
    %96 = arith.mulf %95, %11 : vector<256x32xbf16>
    %c0_93 = arith.constant 0 : index
    %c160 = arith.constant 160 : index
    %97 = vector.load %arg12[%c0_93, %c160] : memref<512x288xbf16, #tpu.memory_space<vmem>>, vector<256x32xbf16>
    tpu.vector_store %arg12[%c0_93, %c160], %96 {strides = array<i32>} : memref<512x288xbf16, #tpu.memory_space<vmem>>, vector<256x32xbf16>,
    %c39_94 = arith.constant 39 : index
    %c0_95 = arith.constant 0 : index
    %98 = vector.load %arg11[%c39_94, %c0_95] : memref<608x32xbf16, #tpu.memory_space<vmem>>, vector<256x32xbf16>
    %99 = arith.mulf %98, %8 : vector<256x32xbf16>
    %c0_96 = arith.constant 0 : index
    %c192_97 = arith.constant 192 : index
    %100 = vector.load %arg12[%c0_96, %c192_97] : memref<512x288xbf16, #tpu.memory_space<vmem>>, vector<256x32xbf16>
    tpu.vector_store %arg12[%c0_96, %c192_97], %99 {strides = array<i32>} : memref<512x288xbf16, #tpu.memory_space<vmem>>, vector<256x32xbf16>,
    %c40_98 = arith.constant 40 : index
    %c0_99 = arith.constant 0 : index
    %101 = vector.load %arg11[%c40_98, %c0_99] : memref<608x32xbf16, #tpu.memory_space<vmem>>, vector<256x32xbf16>
    %c0_100 = arith.constant 0 : index
    %c224 = arith.constant 224 : index
    %102 = vector.load %arg12[%c0_100, %c224] : memref<512x288xbf16, #tpu.memory_space<vmem>>, vector<256x32xbf16>
    tpu.vector_store %arg12[%c0_100, %c224], %101 {strides = array<i32>} : memref<512x288xbf16, #tpu.memory_space<vmem>>, vector<256x32xbf16>,
    %c41_101 = arith.constant 41 : index
    %c0_102 = arith.constant 0 : index
    %103 = vector.load %arg11[%c41_101, %c0_102] : memref<608x32xbf16, #tpu.memory_space<vmem>>, vector<256x32xbf16>
    %104 = arith.mulf %103, %11 : vector<256x32xbf16>
    %c0_103 = arith.constant 0 : index
    %c256_104 = arith.constant 256 : index
    %105 = vector.load %arg12[%c0_103, %c256_104] : memref<512x288xbf16, #tpu.memory_space<vmem>>, vector<256x32xbf16>
    tpu.vector_store %arg12[%c0_103, %c256_104], %104 {strides = array<i32>} : memref<512x288xbf16, #tpu.memory_space<vmem>>, vector<256x32xbf16>,
    %c311_105 = arith.constant 311 : index
    %c0_106 = arith.constant 0 : index
    %106 = vector.load %arg11[%c311_105, %c0_106] : memref<608x32xbf16, #tpu.memory_space<vmem>>, vector<256x32xbf16>
    %107 = arith.mulf %106, %8 : vector<256x32xbf16>
    %c256_107 = arith.constant 256 : index
    %c0_108 = arith.constant 0 : index
    %108 = vector.load %arg12[%c256_107, %c0_108] : memref<512x288xbf16, #tpu.memory_space<vmem>>, vector<256x32xbf16>
    tpu.vector_store %arg12[%c256_107, %c0_108], %107 {strides = array<i32>} : memref<512x288xbf16, #tpu.memory_space<vmem>>, vector<256x32xbf16>,
    %c312_109 = arith.constant 312 : index
    %c0_110 = arith.constant 0 : index
    %109 = vector.load %arg11[%c312_109, %c0_110] : memref<608x32xbf16, #tpu.memory_space<vmem>>, vector<256x32xbf16>
    %c256_111 = arith.constant 256 : index
    %c32_112 = arith.constant 32 : index
    %110 = vector.load %arg12[%c256_111, %c32_112] : memref<512x288xbf16, #tpu.memory_space<vmem>>, vector<256x32xbf16>
    tpu.vector_store %arg12[%c256_111, %c32_112], %109 {strides = array<i32>} : memref<512x288xbf16, #tpu.memory_space<vmem>>, vector<256x32xbf16>,
    %c313_113 = arith.constant 313 : index
    %c0_114 = arith.constant 0 : index
    %111 = vector.load %arg11[%c313_113, %c0_114] : memref<608x32xbf16, #tpu.memory_space<vmem>>, vector<256x32xbf16>
    %112 = arith.mulf %111, %11 : vector<256x32xbf16>
    %c256_115 = arith.constant 256 : index
    %c64_116 = arith.constant 64 : index
    %113 = vector.load %arg12[%c256_115, %c64_116] : memref<512x288xbf16, #tpu.memory_space<vmem>>, vector<256x32xbf16>
    tpu.vector_store %arg12[%c256_115, %c64_116], %112 {strides = array<i32>} : memref<512x288xbf16, #tpu.memory_space<vmem>>, vector<256x32xbf16>,
    %c327_117 = arith.constant 327 : index
    %c0_118 = arith.constant 0 : index
    %114 = vector.load %arg11[%c327_117, %c0_118] : memref<608x32xbf16, #tpu.memory_space<vmem>>, vector<256x32xbf16>
    %115 = arith.mulf %114, %8 : vector<256x32xbf16>
    %c256_119 = arith.constant 256 : index
    %c96_120 = arith.constant 96 : index
    %116 = vector.load %arg12[%c256_119, %c96_120] : memref<512x288xbf16, #tpu.memory_space<vmem>>, vector<256x32xbf16>
    tpu.vector_store %arg12[%c256_119, %c96_120], %115 {strides = array<i32>} : memref<512x288xbf16, #tpu.memory_space<vmem>>, vector<256x32xbf16>,
    %c328_121 = arith.constant 328 : index
    %c0_122 = arith.constant 0 : index
    %117 = vector.load %arg11[%c328_121, %c0_122] : memref<608x32xbf16, #tpu.memory_space<vmem>>, vector<256x32xbf16>
    %c256_123 = arith.constant 256 : index
    %c128_124 = arith.constant 128 : index
    %118 = vector.load %arg12[%c256_123, %c128_124] : memref<512x288xbf16, #tpu.memory_space<vmem>>, vector<256x32xbf16>
    tpu.vector_store %arg12[%c256_123, %c128_124], %117 {strides = array<i32>} : memref<512x288xbf16, #tpu.memory_space<vmem>>, vector<256x32xbf16>,
    %c329_125 = arith.constant 329 : index
    %c0_126 = arith.constant 0 : index
    %119 = vector.load %arg11[%c329_125, %c0_126] : memref<608x32xbf16, #tpu.memory_space<vmem>>, vector<256x32xbf16>
    %120 = arith.mulf %119, %11 : vector<256x32xbf16>
    %c256_127 = arith.constant 256 : index
    %c160_128 = arith.constant 160 : index
    %121 = vector.load %arg12[%c256_127, %c160_128] : memref<512x288xbf16, #tpu.memory_space<vmem>>, vector<256x32xbf16>
    tpu.vector_store %arg12[%c256_127, %c160_128], %120 {strides = array<i32>} : memref<512x288xbf16, #tpu.memory_space<vmem>>, vector<256x32xbf16>,
    %c343_129 = arith.constant 343 : index
    %c0_130 = arith.constant 0 : index
    %122 = vector.load %arg11[%c343_129, %c0_130] : memref<608x32xbf16, #tpu.memory_space<vmem>>, vector<256x32xbf16>
    %123 = arith.mulf %122, %8 : vector<256x32xbf16>
    %c256_131 = arith.constant 256 : index
    %c192_132 = arith.constant 192 : index
    %124 = vector.load %arg12[%c256_131, %c192_132] : memref<512x288xbf16, #tpu.memory_space<vmem>>, vector<256x32xbf16>
    tpu.vector_store %arg12[%c256_131, %c192_132], %123 {strides = array<i32>} : memref<512x288xbf16, #tpu.memory_space<vmem>>, vector<256x32xbf16>,
    %c344_133 = arith.constant 344 : index
    %c0_134 = arith.constant 0 : index
    %125 = vector.load %arg11[%c344_133, %c0_134] : memref<608x32xbf16, #tpu.memory_space<vmem>>, vector<256x32xbf16>
    %c256_135 = arith.constant 256 : index
    %c224_136 = arith.constant 224 : index
    %126 = vector.load %arg12[%c256_135, %c224_136] : memref<512x288xbf16, #tpu.memory_space<vmem>>, vector<256x32xbf16>
    tpu.vector_store %arg12[%c256_135, %c224_136], %125 {strides = array<i32>} : memref<512x288xbf16, #tpu.memory_space<vmem>>, vector<256x32xbf16>,
    %c345_137 = arith.constant 345 : index
    %c0_138 = arith.constant 0 : index
    %127 = vector.load %arg11[%c345_137, %c0_138] : memref<608x32xbf16, #tpu.memory_space<vmem>>, vector<256x32xbf16>
    %128 = arith.mulf %127, %11 : vector<256x32xbf16>
    %c256_139 = arith.constant 256 : index
    %c256_140 = arith.constant 256 : index
    %129 = vector.load %arg12[%c256_139, %c256_140] : memref<512x288xbf16, #tpu.memory_space<vmem>>, vector<256x32xbf16>
    tpu.vector_store %arg12[%c256_139, %c256_140], %128 {strides = array<i32>} : memref<512x288xbf16, #tpu.memory_space<vmem>>, vector<256x32xbf16>,
    %c0_141 = arith.constant 0 : index
    %c0_142 = arith.constant 0 : index
    %130 = vector.load %arg12[%c0_141, %c0_142] : memref<512x288xbf16, #tpu.memory_space<vmem>>, vector<512x288xbf16>
    %c0_143 = arith.constant 0 : index
    %c0_144 = arith.constant 0 : index
    %131 = vector.load %arg7[%c0_143, %c0_144] : memref<288x128xbf16, #tpu.memory_space<vmem>>, vector<288x128xbf16>
    %cst_145 = arith.constant dense<0.000000e+00> : vector<512x128xf32>
    %132 = tpu.matmul %130, %131, %cst_145 {dimension_numbers = #tpu.dot_dimension_numbers<[1], [0], [0], [1], [0, 0, 1, 1], [], []>} : vector<512x288xbf16>, vector<288x128xbf16>, vector<512x128xf32> -> vector<512x128xf32>
    %c0_146 = arith.constant 0 : index
    %c0_147 = arith.constant 0 : index
    %133 = vector.load %arg8[%c0_146, %c0_147] : memref<1x128xf32, #tpu.memory_space<vmem>>, vector<1x128xf32>
    %134 = vector.broadcast %133 : vector<1x128xf32> to vector<512x128xf32>
    %135 = arith.addf %132, %134 : vector<512x128xf32>
    %136 = arith.truncf %135 : vector<512x128xf32> to vector<512x128xbf16>
    %c0_148 = arith.constant 0 : index
    %c0_149 = arith.constant 0 : index
    %137 = vector.load %arg9[%c0_148, %c0_149] : memref<512x128xbf16, #tpu.memory_space<vmem>>, vector<512x128xbf16>
    tpu.vector_store %arg9[%c0_148, %c0_149], %136 {strides = array<i32>} : memref<512x128xbf16, #tpu.memory_space<vmem>>, vector<512x128xbf16>,
    return
  }
  func.func @transform_0(%arg0: i32) -> (i32, i32) {
    %c0_i32 = arith.constant 0 : i32
    %c0_i32_0 = arith.constant 0 : i32
    return %arg0, %c0_i32 : i32, i32
  }
  func.func @transform_1(%arg0: i32) -> (i32, i32) {
    %c0_i32 = arith.constant 0 : i32
    %c0_i32_0 = arith.constant 0 : i32
    %c0_i32_1 = arith.constant 0 : i32
    return %c0_i32, %c0_i32_0 : i32, i32
  }
  func.func @transform_2(%arg0: i32) -> (i32, i32) {
    %c0_i32 = arith.constant 0 : i32
    %c0_i32_0 = arith.constant 0 : i32
    %c0_i32_1 = arith.constant 0 : i32
    return %c0_i32, %c0_i32_0 : i32, i32
  }
  func.func @transform_3(%arg0: i32) -> (i32, i32) {
    %c0_i32 = arith.constant 0 : i32
    %c0_i32_0 = arith.constant 0 : i32
    %c0_i32_1 = arith.constant 0 : i32
    return %c0_i32, %c0_i32_0 : i32, i32
  }
  func.func @transform_4(%arg0: i32) -> (i32, i32) {
    %c0_i32 = arith.constant 0 : i32
    %c0_i32_0 = arith.constant 0 : i32
    %c0_i32_1 = arith.constant 0 : i32
    return %c0_i32, %c0_i32_0 : i32, i32
  }
  func.func @transform_5(%arg0: i32) -> (i32, i32) {
    %c0_i32 = arith.constant 0 : i32
    %c0_i32_0 = arith.constant 0 : i32
    %c0_i32_1 = arith.constant 0 : i32
    return %c0_i32, %c0_i32_0 : i32, i32
  }
  func.func @transform_6(%arg0: i32) -> (i32, i32) {
    %c0_i32 = arith.constant 0 : i32
    %c0_i32_0 = arith.constant 0 : i32
    %c0_i32_1 = arith.constant 0 : i32
    return %c0_i32, %c0_i32_0 : i32, i32
  }
  func.func @transform_7(%arg0: i32) -> (i32, i32) {
    %c0_i32 = arith.constant 0 : i32
    %c0_i32_0 = arith.constant 0 : i32
    %c0_i32_1 = arith.constant 0 : i32
    return %c0_i32, %c0_i32_0 : i32, i32
  }
  func.func @transform_8(%arg0: i32) -> (i32, i32) {
    %c0_i32 = arith.constant 0 : i32
    %c0_i32_0 = arith.constant 0 : i32
    return %arg0, %c0_i32 : i32, i32
  }
}

</mosaic_0001>

<llo_original>
// kernel: classifier_forward.1
$region0: #{classifier_forward.1}
  #allocation0 [shape = 'u32[]', space=smem, size = 0x4, offset = 0x4, fixed_abs, tag = 'smem constant byte address 0x4 - core index']
  #allocation1 [shape = 'u32[144,128]{1,0:T(1,128)}', space=vmem, size = 0x12000, scoped, tag = 'internal scratch']
  #allocation2 [shape = 'bf16[512,576]{1,0:T(16,128)(2,1)}', space=vmem, size = 0xa0000, scoped, tag = 'scratch operand']
  #allocation3 [shape = 'bf16[608,32]{1,0:T(16,128)(2,1)}', space=vmem, size = 0x26000, scoped, tag = 'scratch operand']
  #allocation4 [shape = 'bf16[512,288]{1,0:T(16,128)(2,1)}', space=vmem, size = 0x60000, scoped, tag = 'scratch operand']
  %s0 = inlined_call_operand.vmem [shape: bf16[608,64], index: 0, kind: input, shape index: {}]
  %s1 = inlined_call_operand.vmem [shape: bf16[256,1], index: 1, kind: input, shape index: {}]
  %s2 = inlined_call_operand.vmem [shape: bf16[256,1], index: 2, kind: input, shape index: {}]
  %s3 = inlined_call_operand.vmem [shape: bf16[576,32], index: 3, kind: input, shape index: {}]
  %s4 = inlined_call_operand.vmem [shape: f32[1,32], index: 4, kind: input, shape index: {}]
  %s5 = inlined_call_operand.vmem [shape: f32[1,32], index: 5, kind: input, shape index: {}]
  %s6 = inlined_call_operand.vmem [shape: bf16[288,128], index: 6, kind: input, shape index: {}]
  %s7 = inlined_call_operand.vmem [shape: f32[1,128], index: 7, kind: input, shape index: {}]
  %s8 = inlined_call_operand.vmem [shape: bf16[512,128], index: 8, kind: output, shape index: {}]
  %s9 = sld [smem:[#allocation0]]
  $region42: #{classifier_forward.1} parent=0
    _
  %s11 = ssub.s32 1, %s9
  %s12 = scalar_select 0, %s11, %s9
  // Predicated region
  $region2: #{classifier_forward.1} parent=0 // pred_check
    _
  $region3: #{classifier_forward.1} parent=0 // pred_check_branch
    %14 = sbr.rel (0) target = $region5
  $region4: #{classifier_forward.1} parent=0 // pred_region
    _
  $region5: #{classifier_forward.1} parent=0 // pred_fallthru
    _
  // Predicated region
  $region6: #{classifier_forward.1} parent=0 // pred_check
    _
  $region7: #{classifier_forward.1} parent=0 // pred_check_branch
    %16 = sbr.rel (0) target = $region9
  $region8: #{classifier_forward.1} parent=0 // pred_region
    _
  $region9: #{classifier_forward.1} parent=0 // pred_fallthru
    _
  // Predicated region
  $region10: #{classifier_forward.1} parent=0 // pred_check
    _
  $region11: #{classifier_forward.1} parent=0 // pred_check_branch
    %18 = sbr.rel (0) target = $region13
  $region12: #{classifier_forward.1} parent=0 // pred_region
    _
  $region13: #{classifier_forward.1} parent=0 // pred_fallthru
    _
  // Predicated region
  $region14: #{classifier_forward.1} parent=0 // pred_check
    _
  $region15: #{classifier_forward.1} parent=0 // pred_check_branch
    %20 = sbr.rel (0) target = $region17
  $region16: #{classifier_forward.1} parent=0 // pred_region
    _
  $region17: #{classifier_forward.1} parent=0 // pred_fallthru
    _
  // Predicated region
  $region18: #{classifier_forward.1} parent=0 // pred_check
    _
  $region19: #{classifier_forward.1} parent=0 // pred_check_branch
    %22 = sbr.rel (0) target = $region21
  $region20: #{classifier_forward.1} parent=0 // pred_region
    _
  $region21: #{classifier_forward.1} parent=0 // pred_fallthru
    _
  // Predicated region
  $region22: #{classifier_forward.1} parent=0 // pred_check
    _
  $region23: #{classifier_forward.1} parent=0 // pred_check_branch
    %24 = sbr.rel (0) target = $region25
  $region24: #{classifier_forward.1} parent=0 // pred_region
    _
  $region25: #{classifier_forward.1} parent=0 // pred_fallthru
    _
  // Predicated region
  $region26: #{classifier_forward.1} parent=0 // pred_check
    _
  $region27: #{classifier_forward.1} parent=0 // pred_check_branch
    %26 = sbr.rel (0) target = $region29
  $region28: #{classifier_forward.1} parent=0 // pred_region
    _
  $region29: #{classifier_forward.1} parent=0 // pred_fallthru
    _
  // Predicated region
  $region30: #{classifier_forward.1} parent=0 // pred_check
    _
  $region31: #{classifier_forward.1} parent=0 // pred_check_branch
    %28 = sbr.rel (0) target = $region33
  $region32: #{classifier_forward.1} parent=0 // pred_region
    _
  $region33: #{classifier_forward.1} parent=0 // pred_fallthru
    _
  %v30 = vld [vmem:[%s1] sm:$0xf]
  %v31 = vld [vmem:[%s1 + $0x4] sm:$0xf]
  %v32 = vld [vmem:[%s1 + $0x8] sm:$0xf]
  %v33 = vld [vmem:[%s1 + $0xc] sm:$0xf]
  %v34 = vld [vmem:[%s1 + $0x10] sm:$0xf]
  %v35 = vld [vmem:[%s1 + $0x14] sm:$0xf]
  %v36 = vld [vmem:[%s1 + $0x18] sm:$0xf]
  %v37 = vld [vmem:[%s1 + $0x1c] sm:$0xf]
  %v38 = vld [vmem:[%s1 + $0x20] sm:$0xf]
  %v39 = vld [vmem:[%s1 + $0x24] sm:$0xf]
  %v40 = vld [vmem:[%s1 + $0x28] sm:$0xf]
  %v41 = vld [vmem:[%s1 + $0x2c] sm:$0xf]
  %v42 = vld [vmem:[%s1 + $0x30] sm:$0xf]
  %v43 = vld [vmem:[%s1 + $0x34] sm:$0xf]
  %v44 = vld [vmem:[%s1 + $0x38] sm:$0xf]
  %v45 = vld [vmem:[%s1 + $0x3c] sm:$0xf]
  %v46 = vld [vmem:[%s1 + $0x40] sm:$0xf]
  %v47 = vld [vmem:[%s1 + $0x44] sm:$0xf]
  %v48 = vld [vmem:[%s1 + $0x48] sm:$0xf]
  %v49 = vld [vmem:[%s1 + $0x4c] sm:$0xf]
  %v50 = vld [vmem:[%s1 + $0x50] sm:$0xf]
  %v51 = vld [vmem:[%s1 + $0x54] sm:$0xf]
  %v52 = vld [vmem:[%s1 + $0x58] sm:$0xf]
  %v53 = vld [vmem:[%s1 + $0x5c] sm:$0xf]
  %v54 = vld [vmem:[%s1 + $0x60] sm:$0xf]
  %v55 = vld [vmem:[%s1 + $0x64] sm:$0xf]
  %v56 = vld [vmem:[%s1 + $0x68] sm:$0xf]
  %v57 = vld [vmem:[%s1 + $0x6c] sm:$0xf]
  %v58 = vld [vmem:[%s1 + $0x70] sm:$0xf]
  %v59 = vld [vmem:[%s1 + $0x74] sm:$0xf]
  %v60 = vld [vmem:[%s1 + $0x78] sm:$0xf]
  %v61 = vld [vmem:[%s1 + $0x7c] sm:$0xf]
  %63 = vset.pattern.permute.xlu0 0
  %64 = vperm.xlu0 %63, %v30
  %v65 = vpop.permute.xlu0 %64
  %v68 = vunpack.c.l.s4 839922192
  %v69 = vunpack.c.0.s8 %v68
  %v70 = vlaneseq
  %v71 = vshrl.u32 %v70, 7
  %v72 = vsub.s32 %v69, %v71
  %v73 = vrot.slane %v65, %v72
  %75 = vset.pattern.permute.xlu0 0
  %76 = vperm.xlu0 %75, %v31
  %v77 = vpop.permute.xlu0 %76
  %v80 = vunpack.c.l.s4 839922192
  %v81 = vunpack.c.0.s8 %v80
  %v82 = vlaneseq
  %v83 = vshrl.u32 %v82, 7
  %v84 = vsub.s32 %v81, %v83
  %v85 = vrot.slane %v77, %v84
  %87 = vset.pattern.permute.xlu0 0
  %88 = vperm.xlu0 %87, %v32
  %v89 = vpop.permute.xlu0 %88
  %v92 = vunpack.c.l.s4 839922192
  %v93 = vunpack.c.0.s8 %v92
  %v94 = vlaneseq
  %v95 = vshrl.u32 %v94, 7
  %v96 = vsub.s32 %v93, %v95
  %v97 = vrot.slane %v89, %v96
  %99 = vset.pattern.permute.xlu0 0
  %100 = vperm.xlu0 %99, %v33
  %v101 = vpop.permute.xlu0 %100
  %v104 = vunpack.c.l.s4 839922192
  %v105 = vunpack.c.0.s8 %v104
  %v106 = vlaneseq
  %v107 = vshrl.u32 %v106, 7
  %v108 = vsub.s32 %v105, %v107
  %v109 = vrot.slane %v101, %v108
  %111 = vset.pattern.permute.xlu0 0
  %112 = vperm.xlu0 %111, %v34
  %v113 = vpop.permute.xlu0 %112
  %v116 = vunpack.c.l.s4 839922192
  %v117 = vunpack.c.0.s8 %v116
  %v118 = vlaneseq
  %v119 = vshrl.u32 %v118, 7
  %v120 = vsub.s32 %v117, %v119
  %v121 = vrot.slane %v113, %v120
  %123 = vset.pattern.permute.xlu0 0
  %124 = vperm.xlu0 %123, %v35
  %v125 = vpop.permute.xlu0 %124
  %v128 = vunpack.c.l.s4 839922192
  %v129 = vunpack.c.0.s8 %v128
  %v130 = vlaneseq
  %v131 = vshrl.u32 %v130, 7
  %v132 = vsub.s32 %v129, %v131
  %v133 = vrot.slane %v125, %v132
  %135 = vset.pattern.permute.xlu0 0
  %136 = vperm.xlu0 %135, %v36
  %v137 = vpop.permute.xlu0 %136
  %v140 = vunpack.c.l.s4 839922192
  %v141 = vunpack.c.0.s8 %v140
  %v142 = vlaneseq
  %v143 = vshrl.u32 %v142, 7
  %v144 = vsub.s32 %v141, %v143
  %v145 = vrot.slane %v137, %v144
  %147 = vset.pattern.permute.xlu0 0
  %148 = vperm.xlu0 %147, %v37
  %v149 = vpop.permute.xlu0 %148
  %v152 = vunpack.c.l.s4 839922192
  %v153 = vunpack.c.0.s8 %v152
  %v154 = vlaneseq
  %v155 = vshrl.u32 %v154, 7
  %v156 = vsub.s32 %v153, %v155
  %v157 = vrot.slane %v149, %v156
  %159 = vset.pattern.permute.xlu0 0
  %160 = vperm.xlu0 %159, %v38
  %v161 = vpop.permute.xlu0 %160
  %v164 = vunpack.c.l.s4 839922192
  %v165 = vunpack.c.0.s8 %v164
  %v166 = vlaneseq
  %v167 = vshrl.u32 %v166, 7
  %v168 = vsub.s32 %v165, %v167
  %v169 = vrot.slane %v161, %v168
  %171 = vset.pattern.permute.xlu0 0
  %172 = vperm.xlu0 %171, %v39
  %v173 = vpop.permute.xlu0 %172
  %v176 = vunpack.c.l.s4 839922192
  %v177 = vunpack.c.0.s8 %v176
  %v178 = vlaneseq
  %v179 = vshrl.u32 %v178, 7
  %v180 = vsub.s32 %v177, %v179
  %v181 = vrot.slane %v173, %v180
  %183 = vset.pattern.permute.xlu0 0
  %184 = vperm.xlu0 %183, %v40
  %v185 = vpop.permute.xlu0 %184
  %v188 = vunpack.c.l.s4 839922192
  %v189 = vunpack.c.0.s8 %v188
  %v190 = vlaneseq
  %v191 = vshrl.u32 %v190, 7
  %v192 = vsub.s32 %v189, %v191
  %v193 = vrot.slane %v185, %v192
  %195 = vset.pattern.permute.xlu0 0
  %196 = vperm.xlu0 %195, %v41
  %v197 = vpop.permute.xlu0 %196
  %v200 = vunpack.c.l.s4 839922192
  %v201 = vunpack.c.0.s8 %v200
  %v202 = vlaneseq
  %v203 = vshrl.u32 %v202, 7
  %v204 = vsub.s32 %v201, %v203
  %v205 = vrot.slane %v197, %v204
  %207 = vset.pattern.permute.xlu0 0
  %208 = vperm.xlu0 %207, %v42
  %v209 = vpop.permute.xlu0 %208
  %v212 = vunpack.c.l.s4 839922192
  %v213 = vunpack.c.0.s8 %v212
  %v214 = vlaneseq
  %v215 = vshrl.u32 %v214, 7
  %v216 = vsub.s32 %v213, %v215
  %v217 = vrot.slane %v209, %v216
  %219 = vset.pattern.permute.xlu0 0
  %220 = vperm.xlu0 %219, %v43
  %v221 = vpop.permute.xlu0 %220
  %v224 = vunpack.c.l.s4 839922192
  %v225 = vunpack.c.0.s8 %v224
  %v226 = vlaneseq
  %v227 = vshrl.u32 %v226, 7
  %v228 = vsub.s32 %v225, %v227
  %v229 = vrot.slane %v221, %v228
  %231 = vset.pattern.permute.xlu0 0
  %232 = vperm.xlu0 %231, %v44
  %v233 = vpop.permute.xlu0 %232
  %v236 = vunpack.c.l.s4 839922192
  %v237 = vunpack.c.0.s8 %v236
  %v238 = vlaneseq
  %v239 = vshrl.u32 %v238, 7
  %v240 = vsub.s32 %v237, %v239
  %v241 = vrot.slane %v233, %v240
  %243 = vset.pattern.permute.xlu0 0
  %244 = vperm.xlu0 %243, %v45
  %v245 = vpop.permute.xlu0 %244
  %v248 = vunpack.c.l.s4 839922192
  %v249 = vunpack.c.0.s8 %v248
  %v250 = vlaneseq
  %v251 = vshrl.u32 %v250, 7
  %v252 = vsub.s32 %v249, %v251
  %v253 = vrot.slane %v245, %v252
  %255 = vset.pattern.permute.xlu0 0
  %256 = vperm.xlu0 %255, %v46
  %v257 = vpop.permute.xlu0 %256
  %v260 = vunpack.c.l.s4 839922192
  %v261 = vunpack.c.0.s8 %v260
  %v262 = vlaneseq
  %v263 = vshrl.u32 %v262, 7
  %v264 = vsub.s32 %v261, %v263
  %v265 = vrot.slane %v257, %v264
  %267 = vset.pattern.permute.xlu0 0
  %268 = vperm.xlu0 %267, %v47
  %v269 = vpop.permute.xlu0 %268
  %v272 = vunpack.c.l.s4 839922192
  %v273 = vunpack.c.0.s8 %v272
  %v274 = vlaneseq
  %v275 = vshrl.u32 %v274, 7
  %v276 = vsub.s32 %v273, %v275
  %v277 = vrot.slane %v269, %v276
  %279 = vset.pattern.permute.xlu0 0
  %280 = vperm.xlu0 %279, %v48
  %v281 = vpop.permute.xlu0 %280
  %v284 = vunpack.c.l.s4 839922192
  %v285 = vunpack.c.0.s8 %v284
  %v286 = vlaneseq
  %v287 = vshrl.u32 %v286, 7
  %v288 = vsub.s32 %v285, %v287
  %v289 = vrot.slane %v281, %v288
  %291 = vset.pattern.permute.xlu0 0
  %292 = vperm.xlu0 %291, %v49
  %v293 = vpop.permute.xlu0 %292
  %v296 = vunpack.c.l.s4 839922192
  %v297 = vunpack.c.0.s8 %v296
  %v298 = vlaneseq
  %v299 = vshrl.u32 %v298, 7
  %v300 = vsub.s32 %v297, %v299
  %v301 = vrot.slane %v293, %v300
  %303 = vset.pattern.permute.xlu0 0
  %304 = vperm.xlu0 %303, %v50
  %v305 = vpop.permute.xlu0 %304
  %v308 = vunpack.c.l.s4 839922192
  %v309 = vunpack.c.0.s8 %v308
  %v310 = vlaneseq
  %v311 = vshrl.u32 %v310, 7
  %v312 = vsub.s32 %v309, %v311
  %v313 = vrot.slane %v305, %v312
  %315 = vset.pattern.permute.xlu0 0
  %316 = vperm.xlu0 %315, %v51
  %v317 = vpop.permute.xlu0 %316
  %v320 = vunpack.c.l.s4 839922192
  %v321 = vunpack.c.0.s8 %v320
  %v322 = vlaneseq
  %v323 = vshrl.u32 %v322, 7
  %v324 = vsub.s32 %v321, %v323
  %v325 = vrot.slane %v317, %v324
  %327 = vset.pattern.permute.xlu0 0
  %328 = vperm.xlu0 %327, %v52
  %v329 = vpop.permute.xlu0 %328
  %v332 = vunpack.c.l.s4 839922192
  %v333 = vunpack.c.0.s8 %v332
  %v334 = vlaneseq
  %v335 = vshrl.u32 %v334, 7
  %v336 = vsub.s32 %v333, %v335
  %v337 = vrot.slane %v329, %v336
  %339 = vset.pattern.permute.xlu0 0
  %340 = vperm.xlu0 %339, %v53
  %v341 = vpop.permute.xlu0 %340
  %v344 = vunpack.c.l.s4 839922192
  %v345 = vunpack.c.0.s8 %v344
  %v346 = vlaneseq
  %v347 = vshrl.u32 %v346, 7
  %v348 = vsub.s32 %v345, %v347
  %v349 = vrot.slane %v341, %v348
  %351 = vset.pattern.permute.xlu0 0
  %352 = vperm.xlu0 %351, %v54
  %v353 = vpop.permute.xlu0 %352
  %v356 = vunpack.c.l.s4 839922192
  %v357 = vunpack.c.0.s8 %v356
  %v358 = vlaneseq
  %v359 = vshrl.u32 %v358, 7
  %v360 = vsub.s32 %v357, %v359
  %v361 = vrot.slane %v353, %v360
  %363 = vset.pattern.permute.xlu0 0
  %364 = vperm.xlu0 %363, %v55
  %v365 = vpop.permute.xlu0 %364
  %v368 = vunpack.c.l.s4 839922192
  %v369 = vunpack.c.0.s8 %v368
  %v370 = vlaneseq
  %v371 = vshrl.u32 %v370, 7
  %v372 = vsub.s32 %v369, %v371
  %v373 = vrot.slane %v365, %v372
  %375 = vset.pattern.permute.xlu0 0
  %376 = vperm.xlu0 %375, %v56
  %v377 = vpop.permute.xlu0 %376
  %v380 = vunpack.c.l.s4 839922192
  %v381 = vunpack.c.0.s8 %v380
  %v382 = vlaneseq
  %v383 = vshrl.u32 %v382, 7
  %v384 = vsub.s32 %v381, %v383
  %v385 = vrot.slane %v377, %v384
  %387 = vset.pattern.permute.xlu0 0
  %388 = vperm.xlu0 %387, %v57
  %v389 = vpop.permute.xlu0 %388
  %v392 = vunpack.c.l.s4 839922192
  %v393 = vunpack.c.0.s8 %v392
  %v394 = vlaneseq
  %v395 = vshrl.u32 %v394, 7
  %v396 = vsub.s32 %v393, %v395
  %v397 = vrot.slane %v389, %v396
  %399 = vset.pattern.permute.xlu0 0
  %400 = vperm.xlu0 %399, %v58
  %v401 = vpop.permute.xlu0 %400
  %v404 = vunpack.c.l.s4 839922192
  %v405 = vunpack.c.0.s8 %v404
  %v406 = vlaneseq
  %v407 = vshrl.u32 %v406, 7
  %v408 = vsub.s32 %v405, %v407
  %v409 = vrot.slane %v401, %v408
  %411 = vset.pattern.permute.xlu0 0
  %412 = vperm.xlu0 %411, %v59
  %v413 = vpop.permute.xlu0 %412
  %v416 = vunpack.c.l.s4 839922192
  %v417 = vunpack.c.0.s8 %v416
  %v418 = vlaneseq
  %v419 = vshrl.u32 %v418, 7
  %v420 = vsub.s32 %v417, %v419
  %v421 = vrot.slane %v413, %v420
  %423 = vset.pattern.permute.xlu0 0
  %424 = vperm.xlu0 %423, %v60
  %v425 = vpop.permute.xlu0 %424
  %v428 = vunpack.c.l.s4 839922192
  %v429 = vunpack.c.0.s8 %v428
  %v430 = vlaneseq
  %v431 = vshrl.u32 %v430, 7
  %v432 = vsub.s32 %v429, %v431
  %v433 = vrot.slane %v425, %v432
  %435 = vset.pattern.permute.xlu0 0
  %436 = vperm.xlu0 %435, %v61
  %v437 = vpop.permute.xlu0 %436
  %v440 = vunpack.c.l.s4 839922192
  %v441 = vunpack.c.0.s8 %v440
  %v442 = vlaneseq
  %v443 = vshrl.u32 %v442, 7
  %v444 = vsub.s32 %v441, %v443
  %v445 = vrot.slane %v437, %v444
  %v446 = vld [vmem:[%s2] sm:$0xf]
  %v447 = vld [vmem:[%s2 + $0x4] sm:$0xf]
  %v448 = vld [vmem:[%s2 + $0x8] sm:$0xf]
  %v449 = vld [vmem:[%s2 + $0xc] sm:$0xf]
  %v450 = vld [vmem:[%s2 + $0x10] sm:$0xf]
  %v451 = vld [vmem:[%s2 + $0x14] sm:$0xf]
  %v452 = vld [vmem:[%s2 + $0x18] sm:$0xf]
  %v453 = vld [vmem:[%s2 + $0x1c] sm:$0xf]
  %v454 = vld [vmem:[%s2 + $0x20] sm:$0xf]
  %v455 = vld [vmem:[%s2 + $0x24] sm:$0xf]
  %v456 = vld [vmem:[%s2 + $0x28] sm:$0xf]
  %v457 = vld [vmem:[%s2 + $0x2c] sm:$0xf]
  %v458 = vld [vmem:[%s2 + $0x30] sm:$0xf]
  %v459 = vld [vmem:[%s2 + $0x34] sm:$0xf]
  %v460 = vld [vmem:[%s2 + $0x38] sm:$0xf]
  %v461 = vld [vmem:[%s2 + $0x3c] sm:$0xf]
  %v462 = vld [vmem:[%s2 + $0x40] sm:$0xf]
  %v463 = vld [vmem:[%s2 + $0x44] sm:$0xf]
  %v464 = vld [vmem:[%s2 + $0x48] sm:$0xf]
  %v465 = vld [vmem:[%s2 + $0x4c] sm:$0xf]
  %v466 = vld [vmem:[%s2 + $0x50] sm:$0xf]
  %v467 = vld [vmem:[%s2 + $0x54] sm:$0xf]
  %v468 = vld [vmem:[%s2 + $0x58] sm:$0xf]
  %v469 = vld [vmem:[%s2 + $0x5c] sm:$0xf]
  %v470 = vld [vmem:[%s2 + $0x60] sm:$0xf]
  %v471 = vld [vmem:[%s2 + $0x64] sm:$0xf]
  %v472 = vld [vmem:[%s2 + $0x68] sm:$0xf]
  %v473 = vld [vmem:[%s2 + $0x6c] sm:$0xf]
  %v474 = vld [vmem:[%s2 + $0x70] sm:$0xf]
  %v475 = vld [vmem:[%s2 + $0x74] sm:$0xf]
  %v476 = vld [vmem:[%s2 + $0x78] sm:$0xf]
  %v477 = vld [vmem:[%s2 + $0x7c] sm:$0xf]
  %479 = vset.pattern.permute.xlu0 0
  %480 = vperm.xlu0 %479, %v446
  %v481 = vpop.permute.xlu0 %480
  %v484 = vunpack.c.l.s4 839922192
  %v485 = vunpack.c.0.s8 %v484
  %v486 = vlaneseq
  %v487 = vshrl.u32 %v486, 7
  %v488 = vsub.s32 %v485, %v487
  %v489 = vrot.slane %v481, %v488
  %491 = vset.pattern.permute.xlu0 0
  %492 = vperm.xlu0 %491, %v447
  %v493 = vpop.permute.xlu0 %492
  %v496 = vunpack.c.l.s4 839922192
  %v497 = vunpack.c.0.s8 %v496
  %v498 = vlaneseq
  %v499 = vshrl.u32 %v498, 7
  %v500 = vsub.s32 %v497, %v499
  %v501 = vrot.slane %v493, %v500
  %503 = vset.pattern.permute.xlu0 0
  %504 = vperm.xlu0 %503, %v448
  %v505 = vpop.permute.xlu0 %504
  %v508 = vunpack.c.l.s4 839922192
  %v509 = vunpack.c.0.s8 %v508
  %v510 = vlaneseq
  %v511 = vshrl.u32 %v510, 7
  %v512 = vsub.s32 %v509, %v511
  %v513 = vrot.slane %v505, %v512
  %515 = vset.pattern.permute.xlu0 0
  %516 = vperm.xlu0 %515, %v449
  %v517 = vpop.permute.xlu0 %516
  %v520 = vunpack.c.l.s4 839922192
  %v521 = vunpack.c.0.s8 %v520
  %v522 = vlaneseq
  %v523 = vshrl.u32 %v522, 7
  %v524 = vsub.s32 %v521, %v523
  %v525 = vrot.slane %v517, %v524
  %527 = vset.pattern.permute.xlu0 0
  %528 = vperm.xlu0 %527, %v450
  %v529 = vpop.permute.xlu0 %528
  %v532 = vunpack.c.l.s4 839922192
  %v533 = vunpack.c.0.s8 %v532
  %v534 = vlaneseq
  %v535 = vshrl.u32 %v534, 7
  %v536 = vsub.s32 %v533, %v535
  %v537 = vrot.slane %v529, %v536
  %539 = vset.pattern.permute.xlu0 0
  %540 = vperm.xlu0 %539, %v451
  %v541 = vpop.permute.xlu0 %540
  %v544 = vunpack.c.l.s4 839922192
  %v545 = vunpack.c.0.s8 %v544
  %v546 = vlaneseq
  %v547 = vshrl.u32 %v546, 7
  %v548 = vsub.s32 %v545, %v547
  %v549 = vrot.slane %v541, %v548
  %551 = vset.pattern.permute.xlu0 0
  %552 = vperm.xlu0 %551, %v452
  %v553 = vpop.permute.xlu0 %552
  %v556 = vunpack.c.l.s4 839922192
  %v557 = vunpack.c.0.s8 %v556
  %v558 = vlaneseq
  %v559 = vshrl.u32 %v558, 7
  %v560 = vsub.s32 %v557, %v559
  %v561 = vrot.slane %v553, %v560
  %563 = vset.pattern.permute.xlu0 0
  %564 = vperm.xlu0 %563, %v453
  %v565 = vpop.permute.xlu0 %564
  %v568 = vunpack.c.l.s4 839922192
  %v569 = vunpack.c.0.s8 %v568
  %v570 = vlaneseq
  %v571 = vshrl.u32 %v570, 7
  %v572 = vsub.s32 %v569, %v571
  %v573 = vrot.slane %v565, %v572
  %575 = vset.pattern.permute.xlu0 0
  %576 = vperm.xlu0 %575, %v454
  %v577 = vpop.permute.xlu0 %576
  %v580 = vunpack.c.l.s4 839922192
  %v581 = vunpack.c.0.s8 %v580
  %v582 = vlaneseq
  %v583 = vshrl.u32 %v582, 7
  %v584 = vsub.s32 %v581, %v583
  %v585 = vrot.slane %v577, %v584
  %587 = vset.pattern.permute.xlu0 0
  %588 = vperm.xlu0 %587, %v455
  %v589 = vpop.permute.xlu0 %588
  %v592 = vunpack.c.l.s4 839922192
  %v593 = vunpack.c.0.s8 %v592
  %v594 = vlaneseq
  %v595 = vshrl.u32 %v594, 7
  %v596 = vsub.s32 %v593, %v595
  %v597 = vrot.slane %v589, %v596
  %599 = vset.pattern.permute.xlu0 0
  %600 = vperm.xlu0 %599, %v456
  %v601 = vpop.permute.xlu0 %600
  %v604 = vunpack.c.l.s4 839922192
  %v605 = vunpack.c.0.s8 %v604
  %v606 = vlaneseq
  %v607 = vshrl.u32 %v606, 7
  %v608 = vsub.s32 %v605, %v607
  %v609 = vrot.slane %v601, %v608
  %611 = vset.pattern.permute.xlu0 0
  %612 = vperm.xlu0 %611, %v457
  %v613 = vpop.permute.xlu0 %612
  %v616 = vunpack.c.l.s4 839922192
  %v617 = vunpack.c.0.s8 %v616
  %v618 = vlaneseq
  %v619 = vshrl.u32 %v618, 7
  %v620 = vsub.s32 %v617, %v619
  %v621 = vrot.slane %v613, %v620
  %623 = vset.pattern.permute.xlu0 0
  %624 = vperm.xlu0 %623, %v458
  %v625 = vpop.permute.xlu0 %624
  %v628 = vunpack.c.l.s4 839922192
  %v629 = vunpack.c.0.s8 %v628
  %v630 = vlaneseq
  %v631 = vshrl.u32 %v630, 7
  %v632 = vsub.s32 %v629, %v631
  %v633 = vrot.slane %v625, %v632
  %635 = vset.pattern.permute.xlu0 0
  %636 = vperm.xlu0 %635, %v459
  %v637 = vpop.permute.xlu0 %636
  %v640 = vunpack.c.l.s4 839922192
  %v641 = vunpack.c.0.s8 %v640
  %v642 = vlaneseq
  %v643 = vshrl.u32 %v642, 7
  %v644 = vsub.s32 %v641, %v643
  %v645 = vrot.slane %v637, %v644
  %647 = vset.pattern.permute.xlu0 0
  %648 = vperm.xlu0 %647, %v460
  %v649 = vpop.permute.xlu0 %648
  %v652 = vunpack.c.l.s4 839922192
  %v653 = vunpack.c.0.s8 %v652
  %v654 = vlaneseq
  %v655 = vshrl.u32 %v654, 7
  %v656 = vsub.s32 %v653, %v655
  %v657 = vrot.slane %v649, %v656
  %659 = vset.pattern.permute.xlu0 0
  %660 = vperm.xlu0 %659, %v461
  %v661 = vpop.permute.xlu0 %660
  %v664 = vunpack.c.l.s4 839922192
  %v665 = vunpack.c.0.s8 %v664
  %v666 = vlaneseq
  %v667 = vshrl.u32 %v666, 7
  %v668 = vsub.s32 %v665, %v667
  %v669 = vrot.slane %v661, %v668
  %671 = vset.pattern.permute.xlu0 0
  %672 = vperm.xlu0 %671, %v462
  %v673 = vpop.permute.xlu0 %672
  %v676 = vunpack.c.l.s4 839922192
  %v677 = vunpack.c.0.s8 %v676
  %v678 = vlaneseq
  %v679 = vshrl.u32 %v678, 7
  %v680 = vsub.s32 %v677, %v679
  %v681 = vrot.slane %v673, %v680
  %683 = vset.pattern.permute.xlu0 0
  %684 = vperm.xlu0 %683, %v463
  %v685 = vpop.permute.xlu0 %684
  %v688 = vunpack.c.l.s4 839922192
  %v689 = vunpack.c.0.s8 %v688
  %v690 = vlaneseq
  %v691 = vshrl.u32 %v690, 7
  %v692 = vsub.s32 %v689, %v691
  %v693 = vrot.slane %v685, %v692
  %695 = vset.pattern.permute.xlu0 0
  %696 = vperm.xlu0 %695, %v464
  %v697 = vpop.permute.xlu0 %696
  %v700 = vunpack.c.l.s4 839922192
  %v701 = vunpack.c.0.s8 %v700
  %v702 = vlaneseq
  %v703 = vshrl.u32 %v702, 7
  %v704 = vsub.s32 %v701, %v703
  %v705 = vrot.slane %v697, %v704
  %707 = vset.pattern.permute.xlu0 0
  %708 = vperm.xlu0 %707, %v465
  %v709 = vpop.permute.xlu0 %708
  %v712 = vunpack.c.l.s4 839922192
  %v713 = vunpack.c.0.s8 %v712
  %v714 = vlaneseq
  %v715 = vshrl.u32 %v714, 7
  %v716 = vsub.s32 %v713, %v715
  %v717 = vrot.slane %v709, %v716
  %719 = vset.pattern.permute.xlu0 0
  %720 = vperm.xlu0 %719, %v466
  %v721 = vpop.permute.xlu0 %720
  %v724 = vunpack.c.l.s4 839922192
  %v725 = vunpack.c.0.s8 %v724
  %v726 = vlaneseq
  %v727 = vshrl.u32 %v726, 7
  %v728 = vsub.s32 %v725, %v727
  %v729 = vrot.slane %v721, %v728
  %731 = vset.pattern.permute.xlu0 0
  %732 = vperm.xlu0 %731, %v467
  %v733 = vpop.permute.xlu0 %732
  %v736 = vunpack.c.l.s4 839922192
  %v737 = vunpack.c.0.s8 %v736
  %v738 = vlaneseq
  %v739 = vshrl.u32 %v738, 7
  %v740 = vsub.s32 %v737, %v739
  %v741 = vrot.slane %v733, %v740
  %743 = vset.pattern.permute.xlu0 0
  %744 = vperm.xlu0 %743, %v468
  %v745 = vpop.permute.xlu0 %744
  %v748 = vunpack.c.l.s4 839922192
  %v749 = vunpack.c.0.s8 %v748
  %v750 = vlaneseq
  %v751 = vshrl.u32 %v750, 7
  %v752 = vsub.s32 %v749, %v751
  %v753 = vrot.slane %v745, %v752
  %755 = vset.pattern.permute.xlu0 0
  %756 = vperm.xlu0 %755, %v469
  %v757 = vpop.permute.xlu0 %756
  %v760 = vunpack.c.l.s4 839922192
  %v761 = vunpack.c.0.s8 %v760
  %v762 = vlaneseq
  %v763 = vshrl.u32 %v762, 7
  %v764 = vsub.s32 %v761, %v763
  %v765 = vrot.slane %v757, %v764
  %767 = vset.pattern.permute.xlu0 0
  %768 = vperm.xlu0 %767, %v470
  %v769 = vpop.permute.xlu0 %768
  %v772 = vunpack.c.l.s4 839922192
  %v773 = vunpack.c.0.s8 %v772
  %v774 = vlaneseq
  %v775 = vshrl.u32 %v774, 7
  %v776 = vsub.s32 %v773, %v775
  %v777 = vrot.slane %v769, %v776
  %779 = vset.pattern.permute.xlu0 0
  %780 = vperm.xlu0 %779, %v471
  %v781 = vpop.permute.xlu0 %780
  %v784 = vunpack.c.l.s4 839922192
  %v785 = vunpack.c.0.s8 %v784
  %v786 = vlaneseq
  %v787 = vshrl.u32 %v786, 7
  %v788 = vsub.s32 %v785, %v787
  %v789 = vrot.slane %v781, %v788
  %791 = vset.pattern.permute.xlu0 0
  %792 = vperm.xlu0 %791, %v472
  %v793 = vpop.permute.xlu0 %792
  %v796 = vunpack.c.l.s4 839922192
  %v797 = vunpack.c.0.s8 %v796
  %v798 = vlaneseq
  %v799 = vshrl.u32 %v798, 7
  %v800 = vsub.s32 %v797, %v799
  %v801 = vrot.slane %v793, %v800
  %803 = vset.pattern.permute.xlu0 0
  %804 = vperm.xlu0 %803, %v473
  %v805 = vpop.permute.xlu0 %804
  %v808 = vunpack.c.l.s4 839922192
  %v809 = vunpack.c.0.s8 %v808
  %v810 = vlaneseq
  %v811 = vshrl.u32 %v810, 7
  %v812 = vsub.s32 %v809, %v811
  %v813 = vrot.slane %v805, %v812
  %815 = vset.pattern.permute.xlu0 0
  %816 = vperm.xlu0 %815, %v474
  %v817 = vpop.permute.xlu0 %816
  %v820 = vunpack.c.l.s4 839922192
  %v821 = vunpack.c.0.s8 %v820
  %v822 = vlaneseq
  %v823 = vshrl.u32 %v822, 7
  %v824 = vsub.s32 %v821, %v823
  %v825 = vrot.slane %v817, %v824
  %827 = vset.pattern.permute.xlu0 0
  %828 = vperm.xlu0 %827, %v475
  %v829 = vpop.permute.xlu0 %828
  %v832 = vunpack.c.l.s4 839922192
  %v833 = vunpack.c.0.s8 %v832
  %v834 = vlaneseq
  %v835 = vshrl.u32 %v834, 7
  %v836 = vsub.s32 %v833, %v835
  %v837 = vrot.slane %v829, %v836
  %839 = vset.pattern.permute.xlu0 0
  %840 = vperm.xlu0 %839, %v476
  %v841 = vpop.permute.xlu0 %840
  %v844 = vunpack.c.l.s4 839922192
  %v845 = vunpack.c.0.s8 %v844
  %v846 = vlaneseq
  %v847 = vshrl.u32 %v846, 7
  %v848 = vsub.s32 %v845, %v847
  %v849 = vrot.slane %v841, %v848
  %851 = vset.pattern.permute.xlu0 0
  %852 = vperm.xlu0 %851, %v477
  %v853 = vpop.permute.xlu0 %852
  %v856 = vunpack.c.l.s4 839922192
  %v857 = vunpack.c.0.s8 %v856
  %v858 = vlaneseq
  %v859 = vshrl.u32 %v858, 7
  %v860 = vsub.s32 %v857, %v859
  %v861 = vrot.slane %v853, %v860
  %v862 = vld [vmem:[%s0] sm:$0x8]
  %v863 = vld [vmem:[%s0 + $0x4] sm:$0xf]
  %v864 = vld [vmem:[%s0 + $0x8] sm:$0xf]
  %v865 = vld [vmem:[%s0 + $0xc] sm:$0xf]
  %v866 = vld [vmem:[%s0 + $0x10] sm:$0xf]
  %v867 = vld [vmem:[%s0 + $0x14] sm:$0xf]
  %v868 = vld [vmem:[%s0 + $0x18] sm:$0xf]
  %v869 = vld [vmem:[%s0 + $0x1c] sm:$0xf]
  %v870 = vld [vmem:[%s0 + $0x20] sm:$0xf]
  %v871 = vld [vmem:[%s0 + $0x24] sm:$0xf]
  %v872 = vld [vmem:[%s0 + $0x28] sm:$0xf]
  %v873 = vld [vmem:[%s0 + $0x2c] sm:$0xf]
  %v874 = vld [vmem:[%s0 + $0x30] sm:$0xf]
  %v875 = vld [vmem:[%s0 + $0x34] sm:$0xf]
  %v876 = vld [vmem:[%s0 + $0x38] sm:$0xf]
  %v877 = vld [vmem:[%s0 + $0x3c] sm:$0xf]
  %v878 = vld [vmem:[%s0 + $0x40] sm:$0xf]
  %v879 = vld [vmem:[%s0 + $0x44] sm:$0xf]
  %v880 = vld [vmem:[%s0 + $0x48] sm:$0xf]
  %v881 = vld [vmem:[%s0 + $0x4c] sm:$0xf]
  %v882 = vld [vmem:[%s0 + $0x50] sm:$0xf]
  %v883 = vld [vmem:[%s0 + $0x54] sm:$0xf]
  %v884 = vld [vmem:[%s0 + $0x58] sm:$0xf]
  %v885 = vld [vmem:[%s0 + $0x5c] sm:$0xf]
  %v886 = vld [vmem:[%s0 + $0x60] sm:$0xf]
  %v887 = vld [vmem:[%s0 + $0x64] sm:$0xf]
  %v888 = vld [vmem:[%s0 + $0x68] sm:$0xf]
  %v889 = vld [vmem:[%s0 + $0x6c] sm:$0xf]
  %v890 = vld [vmem:[%s0 + $0x70] sm:$0xf]
  %v891 = vld [vmem:[%s0 + $0x74] sm:$0xf]
  %v892 = vld [vmem:[%s0 + $0x78] sm:$0xf]
  %v893 = vld [vmem:[%s0 + $0x7c] sm:$0xf]
  %v894 = vld [vmem:[%s0 + $0x80] sm:$0xf]
  %vm895 = vsmask.f32 3328
  %vm896 = vsmask.f32 7440
  %vm897 = vmor %vm895, %vm896
  %v899 = vshll.u32 %v73, 16
  %v901 = vrot.slane %v899, 5
  %v902 = vshrl.u32 %v73, 16
  %v904 = vrot.slane %v902, 4
  %v905 = vor.u32 %v904, %v901
  %v906 = vrot.slane %v905, 4
  %v908 = vshll.u32 %v85, 16
  %v910 = vrot.slane %v908, 5
  %v911 = vsel %vm897, %v906, %v910
  %v912 = vshrl.u32 %v85, 16
  %v914 = vrot.slane %v912, 4
  %v915 = vor.u32 %v914, %v910
  %v916 = vrot.slane %v915, 4
  %v918 = vshll.u32 %v97, 16
  %v920 = vrot.slane %v918, 5
  %v921 = vsel %vm897, %v916, %v920
  %v922 = vshrl.u32 %v97, 16
  %v924 = vrot.slane %v922, 4
  %v925 = vor.u32 %v924, %v920
  %v926 = vrot.slane %v925, 4
  %v928 = vshll.u32 %v109, 16
  %v930 = vrot.slane %v928, 5
  %v931 = vsel %vm897, %v926, %v930
  %v932 = vshrl.u32 %v109, 16
  %v934 = vrot.slane %v932, 4
  %v935 = vor.u32 %v934, %v930
  %v936 = vrot.slane %v935, 4
  %v938 = vshll.u32 %v121, 16
  %v940 = vrot.slane %v938, 5
  %v941 = vsel %vm897, %v936, %v940
  %v942 = vshrl.u32 %v121, 16
  %v944 = vrot.slane %v942, 4
  %v945 = vor.u32 %v944, %v940
  %v946 = vrot.slane %v945, 4
  %v948 = vshll.u32 %v133, 16
  %v950 = vrot.slane %v948, 5
  %v951 = vsel %vm897, %v946, %v950
  %v952 = vshrl.u32 %v133, 16
  %v954 = vrot.slane %v952, 4
  %v955 = vor.u32 %v954, %v950
  %v956 = vrot.slane %v955, 4
  %v958 = vshll.u32 %v145, 16
  %v960 = vrot.slane %v958, 5
  %v961 = vsel %vm897, %v956, %v960
  %v962 = vshrl.u32 %v145, 16
  %v964 = vrot.slane %v962, 4
  %v965 = vor.u32 %v964, %v960
  %v966 = vrot.slane %v965, 4
  %v968 = vshll.u32 %v157, 16
  %v970 = vrot.slane %v968, 5
  %v971 = vsel %vm897, %v966, %v970
  %v972 = vshrl.u32 %v157, 16
  %v974 = vrot.slane %v972, 4
  %v975 = vor.u32 %v974, %v970
  %v976 = vrot.slane %v975, 4
  %v978 = vshll.u32 %v169, 16
  %v980 = vrot.slane %v978, 5
  %v981 = vsel %vm897, %v976, %v980
  %v982 = vshrl.u32 %v169, 16
  %v984 = vrot.slane %v982, 4
  %v985 = vor.u32 %v984, %v980
  %v986 = vrot.slane %v985, 4
  %v988 = vshll.u32 %v181, 16
  %v990 = vrot.slane %v988, 5
  %v991 = vsel %vm897, %v986, %v990
  %v992 = vshrl.u32 %v181, 16
  %v994 = vrot.slane %v992, 4
  %v995 = vor.u32 %v994, %v990
  %v996 = vrot.slane %v995, 4
  %v998 = vshll.u32 %v193, 16
  %v1000 = vrot.slane %v998, 5
  %v1001 = vsel %vm897, %v996, %v1000
  %v1002 = vshrl.u32 %v193, 16
  %v1004 = vrot.slane %v1002, 4
  %v1005 = vor.u32 %v1004, %v1000
  %v1006 = vrot.slane %v1005, 4
  %v1008 = vshll.u32 %v205, 16
  %v1010 = vrot.slane %v1008, 5
  %v1011 = vsel %vm897, %v1006, %v1010
  %v1012 = vshrl.u32 %v205, 16
  %v1014 = vrot.slane %v1012, 4
  %v1015 = vor.u32 %v1014, %v1010
  %v1016 = vrot.slane %v1015, 4
  %v1018 = vshll.u32 %v217, 16
  %v1020 = vrot.slane %v1018, 5
  %v1021 = vsel %vm897, %v1016, %v1020
  %v1022 = vshrl.u32 %v217, 16
  %v1024 = vrot.slane %v1022, 4
  %v1025 = vor.u32 %v1024, %v1020
  %v1026 = vrot.slane %v1025, 4
  %v1028 = vshll.u32 %v229, 16
  %v1030 = vrot.slane %v1028, 5
  %v1031 = vsel %vm897, %v1026, %v1030
  %v1032 = vshrl.u32 %v229, 16
  %v1034 = vrot.slane %v1032, 4
  %v1035 = vor.u32 %v1034, %v1030
  %v1036 = vrot.slane %v1035, 4
  %v1038 = vshll.u32 %v241, 16
  %v1040 = vrot.slane %v1038, 5
  %v1041 = vsel %vm897, %v1036, %v1040
  %v1042 = vshrl.u32 %v241, 16
  %v1044 = vrot.slane %v1042, 4
  %v1045 = vor.u32 %v1044, %v1040
  %v1046 = vrot.slane %v1045, 4
  %v1048 = vshll.u32 %v253, 16
  %v1050 = vrot.slane %v1048, 5
  %v1051 = vsel %vm897, %v1046, %v1050
  %v1052 = vshrl.u32 %v253, 16
  %v1054 = vrot.slane %v1052, 4
  %v1055 = vor.u32 %v1054, %v1050
  %v1056 = vrot.slane %v1055, 4
  %v1058 = vshll.u32 %v265, 16
  %v1060 = vrot.slane %v1058, 5
  %v1061 = vsel %vm897, %v1056, %v1060
  %v1062 = vshrl.u32 %v265, 16
  %v1064 = vrot.slane %v1062, 4
  %v1065 = vor.u32 %v1064, %v1060
  %v1066 = vrot.slane %v1065, 4
  %v1068 = vshll.u32 %v277, 16
  %v1070 = vrot.slane %v1068, 5
  %v1071 = vsel %vm897, %v1066, %v1070
  %v1072 = vshrl.u32 %v277, 16
  %v1074 = vrot.slane %v1072, 4
  %v1075 = vor.u32 %v1074, %v1070
  %v1076 = vrot.slane %v1075, 4
  %v1078 = vshll.u32 %v289, 16
  %v1080 = vrot.slane %v1078, 5
  %v1081 = vsel %vm897, %v1076, %v1080
  %v1082 = vshrl.u32 %v289, 16
  %v1084 = vrot.slane %v1082, 4
  %v1085 = vor.u32 %v1084, %v1080
  %v1086 = vrot.slane %v1085, 4
  %v1088 = vshll.u32 %v301, 16
  %v1090 = vrot.slane %v1088, 5
  %v1091 = vsel %vm897, %v1086, %v1090
  %v1092 = vshrl.u32 %v301, 16
  %v1094 = vrot.slane %v1092, 4
  %v1095 = vor.u32 %v1094, %v1090
  %v1096 = vrot.slane %v1095, 4
  %v1098 = vshll.u32 %v313, 16
  %v1100 = vrot.slane %v1098, 5
  %v1101 = vsel %vm897, %v1096, %v1100
  %v1102 = vshrl.u32 %v313, 16
  %v1104 = vrot.slane %v1102, 4
  %v1105 = vor.u32 %v1104, %v1100
  %v1106 = vrot.slane %v1105, 4
  %v1108 = vshll.u32 %v325, 16
  %v1110 = vrot.slane %v1108, 5
  %v1111 = vsel %vm897, %v1106, %v1110
  %v1112 = vshrl.u32 %v325, 16
  %v1114 = vrot.slane %v1112, 4
  %v1115 = vor.u32 %v1114, %v1110
  %v1116 = vrot.slane %v1115, 4
  %v1118 = vshll.u32 %v337, 16
  %v1120 = vrot.slane %v1118, 5
  %v1121 = vsel %vm897, %v1116, %v1120
  %v1122 = vshrl.u32 %v337, 16
  %v1124 = vrot.slane %v1122, 4
  %v1125 = vor.u32 %v1124, %v1120
  %v1126 = vrot.slane %v1125, 4
  %v1128 = vshll.u32 %v349, 16
  %v1130 = vrot.slane %v1128, 5
  %v1131 = vsel %vm897, %v1126, %v1130
  %v1132 = vshrl.u32 %v349, 16
  %v1134 = vrot.slane %v1132, 4
  %v1135 = vor.u32 %v1134, %v1130
  %v1136 = vrot.slane %v1135, 4
  %v1138 = vshll.u32 %v361, 16
  %v1140 = vrot.slane %v1138, 5
  %v1141 = vsel %vm897, %v1136, %v1140
  %v1142 = vshrl.u32 %v361, 16
  %v1144 = vrot.slane %v1142, 4
  %v1145 = vor.u32 %v1144, %v1140
  %v1146 = vrot.slane %v1145, 4
  %v1148 = vshll.u32 %v373, 16
  %v1150 = vrot.slane %v1148, 5
  %v1151 = vsel %vm897, %v1146, %v1150
  %v1152 = vshrl.u32 %v373, 16
  %v1154 = vrot.slane %v1152, 4
  %v1155 = vor.u32 %v1154, %v1150
  %v1156 = vrot.slane %v1155, 4
  %v1158 = vshll.u32 %v385, 16
  %v1160 = vrot.slane %v1158, 5
  %v1161 = vsel %vm897, %v1156, %v1160
  %v1162 = vshrl.u32 %v385, 16
  %v1164 = vrot.slane %v1162, 4
  %v1165 = vor.u32 %v1164, %v1160
  %v1166 = vrot.slane %v1165, 4
  %v1168 = vshll.u32 %v397, 16
  %v1170 = vrot.slane %v1168, 5
  %v1171 = vsel %vm897, %v1166, %v1170
  %v1172 = vshrl.u32 %v397, 16
  %v1174 = vrot.slane %v1172, 4
  %v1175 = vor.u32 %v1174, %v1170
  %v1176 = vrot.slane %v1175, 4
  %v1178 = vshll.u32 %v409, 16
  %v1180 = vrot.slane %v1178, 5
  %v1181 = vsel %vm897, %v1176, %v1180
  %v1182 = vshrl.u32 %v409, 16
  %v1184 = vrot.slane %v1182, 4
  %v1185 = vor.u32 %v1184, %v1180
  %v1186 = vrot.slane %v1185, 4
  %v1188 = vshll.u32 %v421, 16
  %v1190 = vrot.slane %v1188, 5
  %v1191 = vsel %vm897, %v1186, %v1190
  %v1192 = vshrl.u32 %v421, 16
  %v1194 = vrot.slane %v1192, 4
  %v1195 = vor.u32 %v1194, %v1190
  %v1196 = vrot.slane %v1195, 4
  %v1198 = vshll.u32 %v433, 16
  %v1200 = vrot.slane %v1198, 5
  %v1201 = vsel %vm897, %v1196, %v1200
  %v1202 = vshrl.u32 %v433, 16
  %v1204 = vrot.slane %v1202, 4
  %v1205 = vor.u32 %v1204, %v1200
  %v1206 = vrot.slane %v1205, 4
  %v1208 = vshll.u32 %v445, 16
  %v1210 = vrot.slane %v1208, 5
  %v1211 = vsel %vm897, %v1206, %v1210
  %v1212 = vshrl.u32 %v445, 16
  %v1214 = vrot.slane %v1212, 4
  %v1215 = vor.u32 %v1214, %v1210
  %v1216 = vrot.slane %v1215, 4
  %v1250 = vmul.bf16 %v862, %v901
  %v1251 = vmul.bf16 %v863, %v911
  %v1252 = vmul.bf16 %v864, %v921
  %v1253 = vmul.bf16 %v865, %v931
  %v1254 = vmul.bf16 %v866, %v941
  %v1255 = vmul.bf16 %v867, %v951
  %v1256 = vmul.bf16 %v868, %v961
  %v1257 = vmul.bf16 %v869, %v971
  %v1258 = vmul.bf16 %v870, %v981
  %v1259 = vmul.bf16 %v871, %v991
  %v1260 = vmul.bf16 %v872, %v1001
  %v1261 = vmul.bf16 %v873, %v1011
  %v1262 = vmul.bf16 %v874, %v1021
  %v1263 = vmul.bf16 %v875, %v1031
  %v1264 = vmul.bf16 %v876, %v1041
  %v1265 = vmul.bf16 %v877, %v1051
  %v1266 = vmul.bf16 %v878, %v1061
  %v1267 = vmul.bf16 %v879, %v1071
  %v1268 = vmul.bf16 %v880, %v1081
  %v1269 = vmul.bf16 %v881, %v1091
  %v1270 = vmul.bf16 %v882, %v1101
  %v1271 = vmul.bf16 %v883, %v1111
  %v1272 = vmul.bf16 %v884, %v1121
  %v1273 = vmul.bf16 %v885, %v1131
  %v1274 = vmul.bf16 %v886, %v1141
  %v1275 = vmul.bf16 %v887, %v1151
  %v1276 = vmul.bf16 %v888, %v1161
  %v1277 = vmul.bf16 %v889, %v1171
  %v1278 = vmul.bf16 %v890, %v1181
  %v1279 = vmul.bf16 %v891, %v1191
  %v1280 = vmul.bf16 %v892, %v1201
  %v1281 = vmul.bf16 %v893, %v1211
  %v1282 = vmul.bf16 %v894, %v1216
  %v1316 = vunpack.c.l.b16 %v1250
  %v1317 = vunpack.c.l.b16 %v1251
  %v1318 = vunpack.c.l.b16 %v1252
  %v1319 = vunpack.c.l.b16 %v1253
  %v1320 = vunpack.c.l.b16 %v1254
  %v1321 = vunpack.c.l.b16 %v1255
  %v1322 = vunpack.c.l.b16 %v1256
  %v1323 = vunpack.c.l.b16 %v1257
  %v1324 = vunpack.c.l.b16 %v1258
  %v1325 = vunpack.c.l.b16 %v1259
  %v1326 = vunpack.c.l.b16 %v1260
  %v1327 = vunpack.c.l.b16 %v1261
  %v1328 = vunpack.c.l.b16 %v1262
  %v1329 = vunpack.c.l.b16 %v1263
  %v1330 = vunpack.c.l.b16 %v1264
  %v1331 = vunpack.c.l.b16 %v1265
  %v1332 = vunpack.c.l.b16 %v1266
  %v1333 = vunpack.c.l.b16 %v1267
  %v1334 = vunpack.c.l.b16 %v1268
  %v1335 = vunpack.c.l.b16 %v1269
  %v1336 = vunpack.c.l.b16 %v1270
  %v1337 = vunpack.c.l.b16 %v1271
  %v1338 = vunpack.c.l.b16 %v1272
  %v1339 = vunpack.c.l.b16 %v1273
  %v1340 = vunpack.c.l.b16 %v1274
  %v1341 = vunpack.c.l.b16 %v1275
  %v1342 = vunpack.c.l.b16 %v1276
  %v1343 = vunpack.c.l.b16 %v1277
  %v1344 = vunpack.c.l.b16 %v1278
  %v1345 = vunpack.c.l.b16 %v1279
  %v1346 = vunpack.c.l.b16 %v1280
  %v1347 = vunpack.c.l.b16 %v1281
  %v1348 = vunpack.c.l.b16 %v1282
  %v1349 = vpack.c.b16 %v1317, %v1316
  %v1350 = vpack.c.b16 %v1319, %v1318
  %v1351 = vpack.c.b16 %v1321, %v1320
  %v1352 = vpack.c.b16 %v1323, %v1322
  %v1353 = vpack.c.b16 %v1325, %v1324
  %v1354 = vpack.c.b16 %v1327, %v1326
  %v1355 = vpack.c.b16 %v1329, %v1328
  %v1356 = vpack.c.b16 %v1331, %v1330
  %v1357 = vpack.c.b16 %v1333, %v1332
  %v1358 = vpack.c.b16 %v1335, %v1334
  %v1359 = vpack.c.b16 %v1337, %v1336
  %v1360 = vpack.c.b16 %v1339, %v1338
  %v1361 = vpack.c.b16 %v1341, %v1340
  %v1362 = vpack.c.b16 %v1343, %v1342
  %v1363 = vpack.c.b16 %v1345, %v1344
  %v1364 = vpack.c.b16 %v1347, %v1346
  %v1365 = vpack.c.b16 %v1348, %v1348
  %vm1366 = vsmask.f32 4352
  %v1368 = vshrl.u32 %v1349, 16
  %v1370 = vrot.slane %v1368, 3
  %v1371 = vshll.u32 %v1349, 16
  %v1373 = vrot.slane %v1371, 4
  %v1374 = vor.u32 %v1370, %v1373
  %v1376 = vshrl.u32 %v1350, 16
  %v1378 = vrot.slane %v1376, 3
  %v1379 = vshll.u32 %v1350, 16
  %v1381 = vrot.slane %v1379, 4
  %v1382 = vor.u32 %v1378, %v1381
  %v1383 = vsel %vm1366, %v1374, %v1382
  %v1385 = vshrl.u32 %v1351, 16
  %v1387 = vrot.slane %v1385, 3
  %v1388 = vshll.u32 %v1351, 16
  %v1390 = vrot.slane %v1388, 4
  %v1391 = vor.u32 %v1387, %v1390
  %v1392 = vsel %vm1366, %v1382, %v1391
  %v1394 = vshrl.u32 %v1352, 16
  %v1396 = vrot.slane %v1394, 3
  %v1397 = vshll.u32 %v1352, 16
  %v1399 = vrot.slane %v1397, 4
  %v1400 = vor.u32 %v1396, %v1399
  %v1401 = vsel %vm1366, %v1391, %v1400
  %v1403 = vshrl.u32 %v1353, 16
  %v1405 = vrot.slane %v1403, 3
  %v1406 = vshll.u32 %v1353, 16
  %v1408 = vrot.slane %v1406, 4
  %v1409 = vor.u32 %v1405, %v1408
  %v1410 = vsel %vm1366, %v1400, %v1409
  %v1412 = vshrl.u32 %v1354, 16
  %v1414 = vrot.slane %v1412, 3
  %v1415 = vshll.u32 %v1354, 16
  %v1417 = vrot.slane %v1415, 4
  %v1418 = vor.u32 %v1414, %v1417
  %v1419 = vsel %vm1366, %v1409, %v1418
  %v1421 = vshrl.u32 %v1355, 16
  %v1423 = vrot.slane %v1421, 3
  %v1424 = vshll.u32 %v1355, 16
  %v1426 = vrot.slane %v1424, 4
  %v1427 = vor.u32 %v1423, %v1426
  %v1428 = vsel %vm1366, %v1418, %v1427
  %v1430 = vshrl.u32 %v1356, 16
  %v1432 = vrot.slane %v1430, 3
  %v1433 = vshll.u32 %v1356, 16
  %v1435 = vrot.slane %v1433, 4
  %v1436 = vor.u32 %v1432, %v1435
  %v1437 = vsel %vm1366, %v1427, %v1436
  %v1439 = vshrl.u32 %v1357, 16
  %v1441 = vrot.slane %v1439, 3
  %v1442 = vshll.u32 %v1357, 16
  %v1444 = vrot.slane %v1442, 4
  %v1445 = vor.u32 %v1441, %v1444
  %v1446 = vsel %vm1366, %v1436, %v1445
  %v1448 = vshrl.u32 %v1358, 16
  %v1450 = vrot.slane %v1448, 3
  %v1451 = vshll.u32 %v1358, 16
  %v1453 = vrot.slane %v1451, 4
  %v1454 = vor.u32 %v1450, %v1453
  %v1455 = vsel %vm1366, %v1445, %v1454
  %v1457 = vshrl.u32 %v1359, 16
  %v1459 = vrot.slane %v1457, 3
  %v1460 = vshll.u32 %v1359, 16
  %v1462 = vrot.slane %v1460, 4
  %v1463 = vor.u32 %v1459, %v1462
  %v1464 = vsel %vm1366, %v1454, %v1463
  %v1466 = vshrl.u32 %v1360, 16
  %v1468 = vrot.slane %v1466, 3
  %v1469 = vshll.u32 %v1360, 16
  %v1471 = vrot.slane %v1469, 4
  %v1472 = vor.u32 %v1468, %v1471
  %v1473 = vsel %vm1366, %v1463, %v1472
  %v1475 = vshrl.u32 %v1361, 16
  %v1477 = vrot.slane %v1475, 3
  %v1478 = vshll.u32 %v1361, 16
  %v1480 = vrot.slane %v1478, 4
  %v1481 = vor.u32 %v1477, %v1480
  %v1482 = vsel %vm1366, %v1472, %v1481
  %v1484 = vshrl.u32 %v1362, 16
  %v1486 = vrot.slane %v1484, 3
  %v1487 = vshll.u32 %v1362, 16
  %v1489 = vrot.slane %v1487, 4
  %v1490 = vor.u32 %v1486, %v1489
  %v1491 = vsel %vm1366, %v1481, %v1490
  %v1493 = vshrl.u32 %v1363, 16
  %v1495 = vrot.slane %v1493, 3
  %v1496 = vshll.u32 %v1363, 16
  %v1498 = vrot.slane %v1496, 4
  %v1499 = vor.u32 %v1495, %v1498
  %v1500 = vsel %vm1366, %v1490, %v1499
  %v1502 = vshrl.u32 %v1364, 16
  %v1504 = vrot.slane %v1502, 3
  %v1505 = vshll.u32 %v1364, 16
  %v1507 = vrot.slane %v1505, 4
  %v1508 = vor.u32 %v1504, %v1507
  %v1509 = vsel %vm1366, %v1499, %v1508
  %v1511 = vshrl.u32 %v1365, 16
  %v1513 = vrot.slane %v1511, 3
  %v1514 = vshll.u32 %v1365, 16
  %v1516 = vrot.slane %v1514, 4
  %v1517 = vor.u32 %v1513, %v1516
  %v1518 = vsel %vm1366, %v1508, %v1517
  %vm1535 = vcmask 523264
  %1536 = vst.msk [vmem:[#allocation2] sm:$0xff] %vm1535, %v1383
  %1537 = vst.msk [vmem:[#allocation2 + $0x28] sm:$0xff] %vm1535, %v1392
  %1538 = vst.msk [vmem:[#allocation2 + $0x50] sm:$0xff] %vm1535, %v1401
  %1539 = vst.msk [vmem:[#allocation2 + $0x78] sm:$0xff] %vm1535, %v1410
  %1540 = vst.msk [vmem:[#allocation2 + $0xa0] sm:$0xff] %vm1535, %v1419
  %1541 = vst.msk [vmem:[#allocation2 + $0xc8] sm:$0xff] %vm1535, %v1428
  %1542 = vst.msk [vmem:[#allocation2 + $0xf0] sm:$0xff] %vm1535, %v1437
  %1543 = vst.msk [vmem:[#allocation2 + $0x118] sm:$0xff] %vm1535, %v1446
  %1544 = vst.msk [vmem:[#allocation2 + $0x140] sm:$0xff] %vm1535, %v1455
  %1545 = vst.msk [vmem:[#allocation2 + $0x168] sm:$0xff] %vm1535, %v1464
  %1546 = vst.msk [vmem:[#allocation2 + $0x190] sm:$0xff] %vm1535, %v1473
  %1547 = vst.msk [vmem:[#allocation2 + $0x1b8] sm:$0xff] %vm1535, %v1482
  %1548 = vst.msk [vmem:[#allocation2 + $0x1e0] sm:$0xff] %vm1535, %v1491
  %1549 = vst.msk [vmem:[#allocation2 + $0x208] sm:$0xff] %vm1535, %v1500
  %1550 = vst.msk [vmem:[#allocation2 + $0x230] sm:$0xff] %vm1535, %v1509
  %1551 = vst.msk [vmem:[#allocation2 + $0x258] sm:$0xff] %vm1535, %v1518
  %v1552 = vld [vmem:[%s0 + $0x4] sm:$0xf]
  %v1553 = vld [vmem:[%s0 + $0x8] sm:$0xf]
  %v1554 = vld [vmem:[%s0 + $0xc] sm:$0xf]
  %v1555 = vld [vmem:[%s0 + $0x10] sm:$0xf]
  %v1556 = vld [vmem:[%s0 + $0x14] sm:$0xf]
  %v1557 = vld [vmem:[%s0 + $0x18] sm:$0xf]
  %v1558 = vld [vmem:[%s0 + $0x1c] sm:$0xf]
  %v1559 = vld [vmem:[%s0 + $0x20] sm:$0xf]
  %v1560 = vld [vmem:[%s0 + $0x24] sm:$0xf]
  %v1561 = vld [vmem:[%s0 + $0x28] sm:$0xf]
  %v1562 = vld [vmem:[%s0 + $0x2c] sm:$0xf]
  %v1563 = vld [vmem:[%s0 + $0x30] sm:$0xf]
  %v1564 = vld [vmem:[%s0 + $0x34] sm:$0xf]
  %v1565 = vld [vmem:[%s0 + $0x38] sm:$0xf]
  %v1566 = vld [vmem:[%s0 + $0x3c] sm:$0xf]
  %v1567 = vld [vmem:[%s0 + $0x40] sm:$0xf]
  %v1568 = vld [vmem:[%s0 + $0x44] sm:$0xf]
  %v1569 = vld [vmem:[%s0 + $0x48] sm:$0xf]
  %v1570 = vld [vmem:[%s0 + $0x4c] sm:$0xf]
  %v1571 = vld [vmem:[%s0 + $0x50] sm:$0xf]
  %v1572 = vld [vmem:[%s0 + $0x54] sm:$0xf]
  %v1573 = vld [vmem:[%s0 + $0x58] sm:$0xf]
  %v1574 = vld [vmem:[%s0 + $0x5c] sm:$0xf]
  %v1575 = vld [vmem:[%s0 + $0x60] sm:$0xf]
  %v1576 = vld [vmem:[%s0 + $0x64] sm:$0xf]
  %v1577 = vld [vmem:[%s0 + $0x68] sm:$0xf]
  %v1578 = vld [vmem:[%s0 + $0x6c] sm:$0xf]
  %v1579 = vld [vmem:[%s0 + $0x70] sm:$0xf]
  %v1580 = vld [vmem:[%s0 + $0x74] sm:$0xf]
  %v1581 = vld [vmem:[%s0 + $0x78] sm:$0xf]
  %v1582 = vld [vmem:[%s0 + $0x7c] sm:$0xf]
  %v1583 = vld [vmem:[%s0 + $0x80] sm:$0xf]
  %v1616 = vunpack.c.l.b16 %v1552
  %v1617 = vunpack.c.l.b16 %v1553
  %v1618 = vunpack.c.l.b16 %v1554
  %v1619 = vunpack.c.l.b16 %v1555
  %v1620 = vunpack.c.l.b16 %v1556
  %v1621 = vunpack.c.l.b16 %v1557
  %v1622 = vunpack.c.l.b16 %v1558
  %v1623 = vunpack.c.l.b16 %v1559
  %v1624 = vunpack.c.l.b16 %v1560
  %v1625 = vunpack.c.l.b16 %v1561
  %v1626 = vunpack.c.l.b16 %v1562
  %v1627 = vunpack.c.l.b16 %v1563
  %v1628 = vunpack.c.l.b16 %v1564
  %v1629 = vunpack.c.l.b16 %v1565
  %v1630 = vunpack.c.l.b16 %v1566
  %v1631 = vunpack.c.l.b16 %v1567
  %v1632 = vunpack.c.l.b16 %v1568
  %v1633 = vunpack.c.l.b16 %v1569
  %v1634 = vunpack.c.l.b16 %v1570
  %v1635 = vunpack.c.l.b16 %v1571
  %v1636 = vunpack.c.l.b16 %v1572
  %v1637 = vunpack.c.l.b16 %v1573
  %v1638 = vunpack.c.l.b16 %v1574
  %v1639 = vunpack.c.l.b16 %v1575
  %v1640 = vunpack.c.l.b16 %v1576
  %v1641 = vunpack.c.l.b16 %v1577
  %v1642 = vunpack.c.l.b16 %v1578
  %v1643 = vunpack.c.l.b16 %v1579
  %v1644 = vunpack.c.l.b16 %v1580
  %v1645 = vunpack.c.l.b16 %v1581
  %v1646 = vunpack.c.l.b16 %v1582
  %v1647 = vunpack.c.l.b16 %v1583
  %v1648 = vpack.c.b16 %v1617, %v1616
  %v1649 = vpack.c.b16 %v1619, %v1618
  %v1650 = vpack.c.b16 %v1621, %v1620
  %v1651 = vpack.c.b16 %v1623, %v1622
  %v1652 = vpack.c.b16 %v1625, %v1624
  %v1653 = vpack.c.b16 %v1627, %v1626
  %v1654 = vpack.c.b16 %v1629, %v1628
  %v1655 = vpack.c.b16 %v1631, %v1630
  %v1656 = vpack.c.b16 %v1633, %v1632
  %v1657 = vpack.c.b16 %v1635, %v1634
  %v1658 = vpack.c.b16 %v1637, %v1636
  %v1659 = vpack.c.b16 %v1639, %v1638
  %v1660 = vpack.c.b16 %v1641, %v1640
  %v1661 = vpack.c.b16 %v1643, %v1642
  %v1662 = vpack.c.b16 %v1645, %v1644
  %v1663 = vpack.c.b16 %v1647, %v1646
  %1664 = vrot.lane.b32.xlu0 %v1648, 64
  %v1665 = vpop.permute.xlu0 %1664
  %1666 = vrot.lane.b32.xlu0 %v1649, 64
  %v1667 = vpop.permute.xlu0 %1666
  %1668 = vrot.lane.b32.xlu0 %v1650, 64
  %v1669 = vpop.permute.xlu0 %1668
  %1670 = vrot.lane.b32.xlu0 %v1651, 64
  %v1671 = vpop.permute.xlu0 %1670
  %1672 = vrot.lane.b32.xlu0 %v1652, 64
  %v1673 = vpop.permute.xlu0 %1672
  %1674 = vrot.lane.b32.xlu0 %v1653, 64
  %v1675 = vpop.permute.xlu0 %1674
  %1676 = vrot.lane.b32.xlu0 %v1654, 64
  %v1677 = vpop.permute.xlu0 %1676
  %1678 = vrot.lane.b32.xlu0 %v1655, 64
  %v1679 = vpop.permute.xlu0 %1678
  %1680 = vrot.lane.b32.xlu0 %v1656, 64
  %v1681 = vpop.permute.xlu0 %1680
  %1682 = vrot.lane.b32.xlu0 %v1657, 64
  %v1683 = vpop.permute.xlu0 %1682
  %1684 = vrot.lane.b32.xlu0 %v1658, 64
  %v1685 = vpop.permute.xlu0 %1684
  %1686 = vrot.lane.b32.xlu0 %v1659, 64
  %v1687 = vpop.permute.xlu0 %1686
  %1688 = vrot.lane.b32.xlu0 %v1660, 64
  %v1689 = vpop.permute.xlu0 %1688
  %1690 = vrot.lane.b32.xlu0 %v1661, 64
  %v1691 = vpop.permute.xlu0 %1690
  %1692 = vrot.lane.b32.xlu0 %v1662, 64
  %v1693 = vpop.permute.xlu0 %1692
  %1694 = vrot.lane.b32.xlu0 %v1663, 64
  %v1695 = vpop.permute.xlu0 %1694
  %vm1712 = vcmask 1048064
  %1713 = vst.msk [vmem:[#allocation2] sm:$0xff] %vm1712, %v1665
  %1714 = vst.msk [vmem:[#allocation2 + $0x28] sm:$0xff] %vm1712, %v1667
  %1715 = vst.msk [vmem:[#allocation2 + $0x50] sm:$0xff] %vm1712, %v1669
  %1716 = vst.msk [vmem:[#allocation2 + $0x78] sm:$0xff] %vm1712, %v1671
  %1717 = vst.msk [vmem:[#allocation2 + $0xa0] sm:$0xff] %vm1712, %v1673
  %1718 = vst.msk [vmem:[#allocation2 + $0xc8] sm:$0xff] %vm1712, %v1675
  %1719 = vst.msk [vmem:[#allocation2 + $0xf0] sm:$0xff] %vm1712, %v1677
  %1720 = vst.msk [vmem:[#allocation2 + $0x118] sm:$0xff] %vm1712, %v1679
  %1721 = vst.msk [vmem:[#allocation2 + $0x140] sm:$0xff] %vm1712, %v1681
  %1722 = vst.msk [vmem:[#allocation2 + $0x168] sm:$0xff] %vm1712, %v1683
  %1723 = vst.msk [vmem:[#allocation2 + $0x190] sm:$0xff] %vm1712, %v1685
  %1724 = vst.msk [vmem:[#allocation2 + $0x1b8] sm:$0xff] %vm1712, %v1687
  %1725 = vst.msk [vmem:[#allocation2 + $0x1e0] sm:$0xff] %vm1712, %v1689
  %1726 = vst.msk [vmem:[#allocation2 + $0x208] sm:$0xff] %vm1712, %v1691
  %1727 = vst.msk [vmem:[#allocation2 + $0x230] sm:$0xff] %vm1712, %v1693
  %1728 = vst.msk [vmem:[#allocation2 + $0x258] sm:$0xff] %vm1712, %v1695
  %v1729 = vld [vmem:[%s0 + $0x4] sm:$0xf]
  %v1730 = vld [vmem:[%s0 + $0x8] sm:$0xf]
  %v1731 = vld [vmem:[%s0 + $0xc] sm:$0xf]
  %v1732 = vld [vmem:[%s0 + $0x10] sm:$0xf]
  %v1733 = vld [vmem:[%s0 + $0x14] sm:$0xf]
  %v1734 = vld [vmem:[%s0 + $0x18] sm:$0xf]
  %v1735 = vld [vmem:[%s0 + $0x1c] sm:$0xf]
  %v1736 = vld [vmem:[%s0 + $0x20] sm:$0xf]
  %v1737 = vld [vmem:[%s0 + $0x24] sm:$0xf]
  %v1738 = vld [vmem:[%s0 + $0x28] sm:$0xf]
  %v1739 = vld [vmem:[%s0 + $0x2c] sm:$0xf]
  %v1740 = vld [vmem:[%s0 + $0x30] sm:$0xf]
  %v1741 = vld [vmem:[%s0 + $0x34] sm:$0xf]
  %v1742 = vld [vmem:[%s0 + $0x38] sm:$0xf]
  %v1743 = vld [vmem:[%s0 + $0x3c] sm:$0xf]
  %v1744 = vld [vmem:[%s0 + $0x40] sm:$0xf]
  %v1745 = vld [vmem:[%s0 + $0x44] sm:$0xf]
  %v1746 = vld [vmem:[%s0 + $0x48] sm:$0xf]
  %v1747 = vld [vmem:[%s0 + $0x4c] sm:$0xf]
  %v1748 = vld [vmem:[%s0 + $0x50] sm:$0xf]
  %v1749 = vld [vmem:[%s0 + $0x54] sm:$0xf]
  %v1750 = vld [vmem:[%s0 + $0x58] sm:$0xf]
  %v1751 = vld [vmem:[%s0 + $0x5c] sm:$0xf]
  %v1752 = vld [vmem:[%s0 + $0x60] sm:$0xf]
  %v1753 = vld [vmem:[%s0 + $0x64] sm:$0xf]
  %v1754 = vld [vmem:[%s0 + $0x68] sm:$0xf]
  %v1755 = vld [vmem:[%s0 + $0x6c] sm:$0xf]
  %v1756 = vld [vmem:[%s0 + $0x70] sm:$0xf]
  %v1757 = vld [vmem:[%s0 + $0x74] sm:$0xf]
  %v1758 = vld [vmem:[%s0 + $0x78] sm:$0xf]
  %v1759 = vld [vmem:[%s0 + $0x7c] sm:$0xf]
  %v1760 = vld [vmem:[%s0 + $0x80] sm:$0xf]
  %v1761 = vld [vmem:[%s0 + $0x84] sm:$0x1]
  %vm1762 = vsmask.f32 256
  %vm1763 = vsmask.f32 4368
  %vm1764 = vmor %vm1762, %vm1763
  %v1766 = vshrl.u32 %v489, 16
  %v1768 = vrot.slane %v1766, 7
  %v1769 = vshll.u32 %v489, 16
  %v1771 = vor.u32 %v1768, %v1769
  %v1772 = vrot.slane %v1768, 4
  %v1774 = vshrl.u32 %v501, 16
  %v1776 = vrot.slane %v1774, 7
  %v1777 = vshll.u32 %v501, 16
  %v1779 = vor.u32 %v1776, %v1777
  %v1780 = vsel %vm1764, %v1772, %v1779
  %v1781 = vrot.slane %v1776, 4
  %v1783 = vshrl.u32 %v513, 16
  %v1785 = vrot.slane %v1783, 7
  %v1786 = vshll.u32 %v513, 16
  %v1788 = vor.u32 %v1785, %v1786
  %v1789 = vsel %vm1764, %v1781, %v1788
  %v1790 = vrot.slane %v1785, 4
  %v1792 = vshrl.u32 %v525, 16
  %v1794 = vrot.slane %v1792, 7
  %v1795 = vshll.u32 %v525, 16
  %v1797 = vor.u32 %v1794, %v1795
  %v1798 = vsel %vm1764, %v1790, %v1797
  %v1799 = vrot.slane %v1794, 4
  %v1801 = vshrl.u32 %v537, 16
  %v1803 = vrot.slane %v1801, 7
  %v1804 = vshll.u32 %v537, 16
  %v1806 = vor.u32 %v1803, %v1804
  %v1807 = vsel %vm1764, %v1799, %v1806
  %v1808 = vrot.slane %v1803, 4
  %v1810 = vshrl.u32 %v549, 16
  %v1812 = vrot.slane %v1810, 7
  %v1813 = vshll.u32 %v549, 16
  %v1815 = vor.u32 %v1812, %v1813
  %v1816 = vsel %vm1764, %v1808, %v1815
  %v1817 = vrot.slane %v1812, 4
  %v1819 = vshrl.u32 %v561, 16
  %v1821 = vrot.slane %v1819, 7
  %v1822 = vshll.u32 %v561, 16
  %v1824 = vor.u32 %v1821, %v1822
  %v1825 = vsel %vm1764, %v1817, %v1824
  %v1826 = vrot.slane %v1821, 4
  %v1828 = vshrl.u32 %v573, 16
  %v1830 = vrot.slane %v1828, 7
  %v1831 = vshll.u32 %v573, 16
  %v1833 = vor.u32 %v1830, %v1831
  %v1834 = vsel %vm1764, %v1826, %v1833
  %v1835 = vrot.slane %v1830, 4
  %v1837 = vshrl.u32 %v585, 16
  %v1839 = vrot.slane %v1837, 7
  %v1840 = vshll.u32 %v585, 16
  %v1842 = vor.u32 %v1839, %v1840
  %v1843 = vsel %vm1764, %v1835, %v1842
  %v1844 = vrot.slane %v1839, 4
  %v1846 = vshrl.u32 %v597, 16
  %v1848 = vrot.slane %v1846, 7
  %v1849 = vshll.u32 %v597, 16
  %v1851 = vor.u32 %v1848, %v1849
  %v1852 = vsel %vm1764, %v1844, %v1851
  %v1853 = vrot.slane %v1848, 4
  %v1855 = vshrl.u32 %v609, 16
  %v1857 = vrot.slane %v1855, 7
  %v1858 = vshll.u32 %v609, 16
  %v1860 = vor.u32 %v1857, %v1858
  %v1861 = vsel %vm1764, %v1853, %v1860
  %v1862 = vrot.slane %v1857, 4
  %v1864 = vshrl.u32 %v621, 16
  %v1866 = vrot.slane %v1864, 7
  %v1867 = vshll.u32 %v621, 16
  %v1869 = vor.u32 %v1866, %v1867
  %v1870 = vsel %vm1764, %v1862, %v1869
  %v1871 = vrot.slane %v1866, 4
  %v1873 = vshrl.u32 %v633, 16
  %v1875 = vrot.slane %v1873, 7
  %v1876 = vshll.u32 %v633, 16
  %v1878 = vor.u32 %v1875, %v1876
  %v1879 = vsel %vm1764, %v1871, %v1878
  %v1880 = vrot.slane %v1875, 4
  %v1882 = vshrl.u32 %v645, 16
  %v1884 = vrot.slane %v1882, 7
  %v1885 = vshll.u32 %v645, 16
  %v1887 = vor.u32 %v1884, %v1885
  %v1888 = vsel %vm1764, %v1880, %v1887
  %v1889 = vrot.slane %v1884, 4
  %v1891 = vshrl.u32 %v657, 16
  %v1893 = vrot.slane %v1891, 7
  %v1894 = vshll.u32 %v657, 16
  %v1896 = vor.u32 %v1893, %v1894
  %v1897 = vsel %vm1764, %v1889, %v1896
  %v1898 = vrot.slane %v1893, 4
  %v1900 = vshrl.u32 %v669, 16
  %v1902 = vrot.slane %v1900, 7
  %v1903 = vshll.u32 %v669, 16
  %v1905 = vor.u32 %v1902, %v1903
  %v1906 = vsel %vm1764, %v1898, %v1905
  %v1907 = vrot.slane %v1902, 4
  %v1909 = vshrl.u32 %v681, 16
  %v1911 = vrot.slane %v1909, 7
  %v1912 = vshll.u32 %v681, 16
  %v1914 = vor.u32 %v1911, %v1912
  %v1915 = vsel %vm1764, %v1907, %v1914
  %v1916 = vrot.slane %v1911, 4
  %v1918 = vshrl.u32 %v693, 16
  %v1920 = vrot.slane %v1918, 7
  %v1921 = vshll.u32 %v693, 16
  %v1923 = vor.u32 %v1920, %v1921
  %v1924 = vsel %vm1764, %v1916, %v1923
  %v1925 = vrot.slane %v1920, 4
  %v1927 = vshrl.u32 %v705, 16
  %v1929 = vrot.slane %v1927, 7
  %v1930 = vshll.u32 %v705, 16
  %v1932 = vor.u32 %v1929, %v1930
  %v1933 = vsel %vm1764, %v1925, %v1932
  %v1934 = vrot.slane %v1929, 4
  %v1936 = vshrl.u32 %v717, 16
  %v1938 = vrot.slane %v1936, 7
  %v1939 = vshll.u32 %v717, 16
  %v1941 = vor.u32 %v1938, %v1939
  %v1942 = vsel %vm1764, %v1934, %v1941
  %v1943 = vrot.slane %v1938, 4
  %v1945 = vshrl.u32 %v729, 16
  %v1947 = vrot.slane %v1945, 7
  %v1948 = vshll.u32 %v729, 16
  %v1950 = vor.u32 %v1947, %v1948
  %v1951 = vsel %vm1764, %v1943, %v1950
  %v1952 = vrot.slane %v1947, 4
  %v1954 = vshrl.u32 %v741, 16
  %v1956 = vrot.slane %v1954, 7
  %v1957 = vshll.u32 %v741, 16
  %v1959 = vor.u32 %v1956, %v1957
  %v1960 = vsel %vm1764, %v1952, %v1959
  %v1961 = vrot.slane %v1956, 4
  %v1963 = vshrl.u32 %v753, 16
  %v1965 = vrot.slane %v1963, 7
  %v1966 = vshll.u32 %v753, 16
  %v1968 = vor.u32 %v1965, %v1966
  %v1969 = vsel %vm1764, %v1961, %v1968
  %v1970 = vrot.slane %v1965, 4
  %v1972 = vshrl.u32 %v765, 16
  %v1974 = vrot.slane %v1972, 7
  %v1975 = vshll.u32 %v765, 16
  %v1977 = vor.u32 %v1974, %v1975
  %v1978 = vsel %vm1764, %v1970, %v1977
  %v1979 = vrot.slane %v1974, 4
  %v1981 = vshrl.u32 %v777, 16
  %v1983 = vrot.slane %v1981, 7
  %v1984 = vshll.u32 %v777, 16
  %v1986 = vor.u32 %v1983, %v1984
  %v1987 = vsel %vm1764, %v1979, %v1986
  %v1988 = vrot.slane %v1983, 4
  %v1990 = vshrl.u32 %v789, 16
  %v1992 = vrot.slane %v1990, 7
  %v1993 = vshll.u32 %v789, 16
  %v1995 = vor.u32 %v1992, %v1993
  %v1996 = vsel %vm1764, %v1988, %v1995
  %v1997 = vrot.slane %v1992, 4
  %v1999 = vshrl.u32 %v801, 16
  %v2001 = vrot.slane %v1999, 7
  %v2002 = vshll.u32 %v801, 16
  %v2004 = vor.u32 %v2001, %v2002
  %v2005 = vsel %vm1764, %v1997, %v2004
  %v2006 = vrot.slane %v2001, 4
  %v2008 = vshrl.u32 %v813, 16
  %v2010 = vrot.slane %v2008, 7
  %v2011 = vshll.u32 %v813, 16
  %v2013 = vor.u32 %v2010, %v2011
  %v2014 = vsel %vm1764, %v2006, %v2013
  %v2015 = vrot.slane %v2010, 4
  %v2017 = vshrl.u32 %v825, 16
  %v2019 = vrot.slane %v2017, 7
  %v2020 = vshll.u32 %v825, 16
  %v2022 = vor.u32 %v2019, %v2020
  %v2023 = vsel %vm1764, %v2015, %v2022
  %v2024 = vrot.slane %v2019, 4
  %v2026 = vshrl.u32 %v837, 16
  %v2028 = vrot.slane %v2026, 7
  %v2029 = vshll.u32 %v837, 16
  %v2031 = vor.u32 %v2028, %v2029
  %v2032 = vsel %vm1764, %v2024, %v2031
  %v2033 = vrot.slane %v2028, 4
  %v2035 = vshrl.u32 %v849, 16
  %v2037 = vrot.slane %v2035, 7
  %v2038 = vshll.u32 %v849, 16
  %v2040 = vor.u32 %v2037, %v2038
  %v2041 = vsel %vm1764, %v2033, %v2040
  %v2042 = vrot.slane %v2037, 4
  %v2044 = vshrl.u32 %v861, 16
  %v2046 = vrot.slane %v2044, 7
  %v2047 = vshll.u32 %v861, 16
  %v2049 = vor.u32 %v2046, %v2047
  %v2050 = vsel %vm1764, %v2042, %v2049
  %v2051 = vrot.slane %v2046, 4
  %v2085 = vmul.bf16 %v1729, %v1771
  %v2086 = vmul.bf16 %v1730, %v1780
  %v2087 = vmul.bf16 %v1731, %v1789
  %v2088 = vmul.bf16 %v1732, %v1798
  %v2089 = vmul.bf16 %v1733, %v1807
  %v2090 = vmul.bf16 %v1734, %v1816
  %v2091 = vmul.bf16 %v1735, %v1825
  %v2092 = vmul.bf16 %v1736, %v1834
  %v2093 = vmul.bf16 %v1737, %v1843
  %v2094 = vmul.bf16 %v1738, %v1852
  %v2095 = vmul.bf16 %v1739, %v1861
  %v2096 = vmul.bf16 %v1740, %v1870
  %v2097 = vmul.bf16 %v1741, %v1879
  %v2098 = vmul.bf16 %v1742, %v1888
  %v2099 = vmul.bf16 %v1743, %v1897
  %v2100 = vmul.bf16 %v1744, %v1906
  %v2101 = vmul.bf16 %v1745, %v1915
  %v2102 = vmul.bf16 %v1746, %v1924
  %v2103 = vmul.bf16 %v1747, %v1933
  %v2104 = vmul.bf16 %v1748, %v1942
  %v2105 = vmul.bf16 %v1749, %v1951
  %v2106 = vmul.bf16 %v1750, %v1960
  %v2107 = vmul.bf16 %v1751, %v1969
  %v2108 = vmul.bf16 %v1752, %v1978
  %v2109 = vmul.bf16 %v1753, %v1987
  %v2110 = vmul.bf16 %v1754, %v1996
  %v2111 = vmul.bf16 %v1755, %v2005
  %v2112 = vmul.bf16 %v1756, %v2014
  %v2113 = vmul.bf16 %v1757, %v2023
  %v2114 = vmul.bf16 %v1758, %v2032
  %v2115 = vmul.bf16 %v1759, %v2041
  %v2116 = vmul.bf16 %v1760, %v2050
  %v2117 = vmul.bf16 %v1761, %v2051
  %v2151 = vunpack.c.l.b16 %v2085
  %v2152 = vunpack.c.l.b16 %v2086
  %v2153 = vunpack.c.l.b16 %v2087
  %v2154 = vunpack.c.l.b16 %v2088
  %v2155 = vunpack.c.l.b16 %v2089
  %v2156 = vunpack.c.l.b16 %v2090
  %v2157 = vunpack.c.l.b16 %v2091
  %v2158 = vunpack.c.l.b16 %v2092
  %v2159 = vunpack.c.l.b16 %v2093
  %v2160 = vunpack.c.l.b16 %v2094
  %v2161 = vunpack.c.l.b16 %v2095
  %v2162 = vunpack.c.l.b16 %v2096
  %v2163 = vunpack.c.l.b16 %v2097
  %v2164 = vunpack.c.l.b16 %v2098
  %v2165 = vunpack.c.l.b16 %v2099
  %v2166 = vunpack.c.l.b16 %v2100
  %v2167 = vunpack.c.l.b16 %v2101
  %v2168 = vunpack.c.l.b16 %v2102
  %v2169 = vunpack.c.l.b16 %v2103
  %v2170 = vunpack.c.l.b16 %v2104
  %v2171 = vunpack.c.l.b16 %v2105
  %v2172 = vunpack.c.l.b16 %v2106
  %v2173 = vunpack.c.l.b16 %v2107
  %v2174 = vunpack.c.l.b16 %v2108
  %v2175 = vunpack.c.l.b16 %v2109
  %v2176 = vunpack.c.l.b16 %v2110
  %v2177 = vunpack.c.l.b16 %v2111
  %v2178 = vunpack.c.l.b16 %v2112
  %v2179 = vunpack.c.l.b16 %v2113
  %v2180 = vunpack.c.l.b16 %v2114
  %v2181 = vunpack.c.l.b16 %v2115
  %v2182 = vunpack.c.l.b16 %v2116
  %v2183 = vunpack.c.l.b16 %v2117
  %v2184 = vpack.c.b16 %v2152, %v2151
  %v2185 = vpack.c.b16 %v2154, %v2153
  %v2186 = vpack.c.b16 %v2156, %v2155
  %v2187 = vpack.c.b16 %v2158, %v2157
  %v2188 = vpack.c.b16 %v2160, %v2159
  %v2189 = vpack.c.b16 %v2162, %v2161
  %v2190 = vpack.c.b16 %v2164, %v2163
  %v2191 = vpack.c.b16 %v2166, %v2165
  %v2192 = vpack.c.b16 %v2168, %v2167
  %v2193 = vpack.c.b16 %v2170, %v2169
  %v2194 = vpack.c.b16 %v2172, %v2171
  %v2195 = vpack.c.b16 %v2174, %v2173
  %v2196 = vpack.c.b16 %v2176, %v2175
  %v2197 = vpack.c.b16 %v2178, %v2177
  %v2198 = vpack.c.b16 %v2180, %v2179
  %v2199 = vpack.c.b16 %v2182, %v2181
  %v2200 = vpack.c.b16 %v2183, %v2183
  %vm2201 = vsmask.f32 7424
  %v2203 = vshrl.u32 %v2184, 16
  %v2205 = vshll.u32 %v2184, 16
  %v2207 = vrot.slane %v2205, 1
  %v2208 = vor.u32 %v2203, %v2207
  %v2210 = vshll.u32 %v2185, 16
  %v2212 = vrot.slane %v2210, 1
  %v2213 = vsel %vm2201, %v2208, %v2212
  %v2214 = vshrl.u32 %v2185, 16
  %v2216 = vor.u32 %v2214, %v2212
  %v2218 = vshll.u32 %v2186, 16
  %v2220 = vrot.slane %v2218, 1
  %v2221 = vsel %vm2201, %v2216, %v2220
  %v2222 = vshrl.u32 %v2186, 16
  %v2224 = vor.u32 %v2222, %v2220
  %v2226 = vshll.u32 %v2187, 16
  %v2228 = vrot.slane %v2226, 1
  %v2229 = vsel %vm2201, %v2224, %v2228
  %v2230 = vshrl.u32 %v2187, 16
  %v2232 = vor.u32 %v2230, %v2228
  %v2234 = vshll.u32 %v2188, 16
  %v2236 = vrot.slane %v2234, 1
  %v2237 = vsel %vm2201, %v2232, %v2236
  %v2238 = vshrl.u32 %v2188, 16
  %v2240 = vor.u32 %v2238, %v2236
  %v2242 = vshll.u32 %v2189, 16
  %v2244 = vrot.slane %v2242, 1
  %v2245 = vsel %vm2201, %v2240, %v2244
  %v2246 = vshrl.u32 %v2189, 16
  %v2248 = vor.u32 %v2246, %v2244
  %v2250 = vshll.u32 %v2190, 16
  %v2252 = vrot.slane %v2250, 1
  %v2253 = vsel %vm2201, %v2248, %v2252
  %v2254 = vshrl.u32 %v2190, 16
  %v2256 = vor.u32 %v2254, %v2252
  %v2258 = vshll.u32 %v2191, 16
  %v2260 = vrot.slane %v2258, 1
  %v2261 = vsel %vm2201, %v2256, %v2260
  %v2262 = vshrl.u32 %v2191, 16
  %v2264 = vor.u32 %v2262, %v2260
  %v2266 = vshll.u32 %v2192, 16
  %v2268 = vrot.slane %v2266, 1
  %v2269 = vsel %vm2201, %v2264, %v2268
  %v2270 = vshrl.u32 %v2192, 16
  %v2272 = vor.u32 %v2270, %v2268
  %v2274 = vshll.u32 %v2193, 16
  %v2276 = vrot.slane %v2274, 1
  %v2277 = vsel %vm2201, %v2272, %v2276
  %v2278 = vshrl.u32 %v2193, 16
  %v2280 = vor.u32 %v2278, %v2276
  %v2282 = vshll.u32 %v2194, 16
  %v2284 = vrot.slane %v2282, 1
  %v2285 = vsel %vm2201, %v2280, %v2284
  %v2286 = vshrl.u32 %v2194, 16
  %v2288 = vor.u32 %v2286, %v2284
  %v2290 = vshll.u32 %v2195, 16
  %v2292 = vrot.slane %v2290, 1
  %v2293 = vsel %vm2201, %v2288, %v2292
  %v2294 = vshrl.u32 %v2195, 16
  %v2296 = vor.u32 %v2294, %v2292
  %v2298 = vshll.u32 %v2196, 16
  %v2300 = vrot.slane %v2298, 1
  %v2301 = vsel %vm2201, %v2296, %v2300
  %v2302 = vshrl.u32 %v2196, 16
  %v2304 = vor.u32 %v2302, %v2300
  %v2306 = vshll.u32 %v2197, 16
  %v2308 = vrot.slane %v2306, 1
  %v2309 = vsel %vm2201, %v2304, %v2308
  %v2310 = vshrl.u32 %v2197, 16
  %v2312 = vor.u32 %v2310, %v2308
  %v2314 = vshll.u32 %v2198, 16
  %v2316 = vrot.slane %v2314, 1
  %v2317 = vsel %vm2201, %v2312, %v2316
  %v2318 = vshrl.u32 %v2198, 16
  %v2320 = vor.u32 %v2318, %v2316
  %v2322 = vshll.u32 %v2199, 16
  %v2324 = vrot.slane %v2322, 1
  %v2325 = vsel %vm2201, %v2320, %v2324
  %v2326 = vshrl.u32 %v2199, 16
  %v2328 = vor.u32 %v2326, %v2324
  %v2330 = vshll.u32 %v2200, 16
  %v2332 = vrot.slane %v2330, 1
  %v2333 = vsel %vm2201, %v2328, %v2332
  %2350 = vst.msk [vmem:[#allocation2 + $0x8] sm:$0xff] %vm1535, %v2213
  %2351 = vst.msk [vmem:[#allocation2 + $0x30] sm:$0xff] %vm1535, %v2221
  %2352 = vst.msk [vmem:[#allocation2 + $0x58] sm:$0xff] %vm1535, %v2229
  %2353 = vst.msk [vmem:[#allocation2 + $0x80] sm:$0xff] %vm1535, %v2237
  %2354 = vst.msk [vmem:[#allocation2 + $0xa8] sm:$0xff] %vm1535, %v2245
  %2355 = vst.msk [vmem:[#allocation2 + $0xd0] sm:$0xff] %vm1535, %v2253
  %2356 = vst.msk [vmem:[#allocation2 + $0xf8] sm:$0xff] %vm1535, %v2261
  %2357 = vst.msk [vmem:[#allocation2 + $0x120] sm:$0xff] %vm1535, %v2269
  %2358 = vst.msk [vmem:[#allocation2 + $0x148] sm:$0xff] %vm1535, %v2277
  %2359 = vst.msk [vmem:[#allocation2 + $0x170] sm:$0xff] %vm1535, %v2285
  %2360 = vst.msk [vmem:[#allocation2 + $0x198] sm:$0xff] %vm1535, %v2293
  %2361 = vst.msk [vmem:[#allocation2 + $0x1c0] sm:$0xff] %vm1535, %v2301
  %2362 = vst.msk [vmem:[#allocation2 + $0x1e8] sm:$0xff] %vm1535, %v2309
  %2363 = vst.msk [vmem:[#allocation2 + $0x210] sm:$0xff] %vm1535, %v2317
  %2364 = vst.msk [vmem:[#allocation2 + $0x238] sm:$0xff] %vm1535, %v2325
  %2365 = vst.msk [vmem:[#allocation2 + $0x260] sm:$0xff] %vm1535, %v2333
  %v2366 = vld [vmem:[%s0 + $0x8] sm:$0x8]
  %v2367 = vld [vmem:[%s0 + $0xc] sm:$0xf]
  %v2368 = vld [vmem:[%s0 + $0x10] sm:$0xf]
  %v2369 = vld [vmem:[%s0 + $0x14] sm:$0xf]
  %v2370 = vld [vmem:[%s0 + $0x18] sm:$0xf]
  %v2371 = vld [vmem:[%s0 + $0x1c] sm:$0xf]
  %v2372 = vld [vmem:[%s0 + $0x20] sm:$0xf]
  %v2373 = vld [vmem:[%s0 + $0x24] sm:$0xf]
  %v2374 = vld [vmem:[%s0 + $0x28] sm:$0xf]
  %v2375 = vld [vmem:[%s0 + $0x2c] sm:$0xf]
  %v2376 = vld [vmem:[%s0 + $0x30] sm:$0xf]
  %v2377 = vld [vmem:[%s0 + $0x34] sm:$0xf]
  %v2378 = vld [vmem:[%s0 + $0x38] sm:$0xf]
  %v2379 = vld [vmem:[%s0 + $0x3c] sm:$0xf]
  %v2380 = vld [vmem:[%s0 + $0x40] sm:$0xf]
  %v2381 = vld [vmem:[%s0 + $0x44] sm:$0xf]
  %v2382 = vld [vmem:[%s0 + $0x48] sm:$0xf]
  %v2383 = vld [vmem:[%s0 + $0x4c] sm:$0xf]
  %v2384 = vld [vmem:[%s0 + $0x50] sm:$0xf]
  %v2385 = vld [vmem:[%s0 + $0x54] sm:$0xf]
  %v2386 = vld [vmem:[%s0 + $0x58] sm:$0xf]
  %v2387 = vld [vmem:[%s0 + $0x5c] sm:$0xf]
  %v2388 = vld [vmem:[%s0 + $0x60] sm:$0xf]
  %v2389 = vld [vmem:[%s0 + $0x64] sm:$0xf]
  %v2390 = vld [vmem:[%s0 + $0x68] sm:$0xf]
  %v2391 = vld [vmem:[%s0 + $0x6c] sm:$0xf]
  %v2392 = vld [vmem:[%s0 + $0x70] sm:$0xf]
  %v2393 = vld [vmem:[%s0 + $0x74] sm:$0xf]
  %v2394 = vld [vmem:[%s0 + $0x78] sm:$0xf]
  %v2395 = vld [vmem:[%s0 + $0x7c] sm:$0xf]
  %v2396 = vld [vmem:[%s0 + $0x80] sm:$0xf]
  %v2397 = vld [vmem:[%s0 + $0x84] sm:$0xf]
  %v2398 = vld [vmem:[%s0 + $0x88] sm:$0xf]
  %v2399 = vmul.bf16 %v2366, %v901
  %v2400 = vmul.bf16 %v2367, %v911
  %v2401 = vmul.bf16 %v2368, %v921
  %v2402 = vmul.bf16 %v2369, %v931
  %v2403 = vmul.bf16 %v2370, %v941
  %v2404 = vmul.bf16 %v2371, %v951
  %v2405 = vmul.bf16 %v2372, %v961
  %v2406 = vmul.bf16 %v2373, %v971
  %v2407 = vmul.bf16 %v2374, %v981
  %v2408 = vmul.bf16 %v2375, %v991
  %v2409 = vmul.bf16 %v2376, %v1001
  %v2410 = vmul.bf16 %v2377, %v1011
  %v2411 = vmul.bf16 %v2378, %v1021
  %v2412 = vmul.bf16 %v2379, %v1031
  %v2413 = vmul.bf16 %v2380, %v1041
  %v2414 = vmul.bf16 %v2381, %v1051
  %v2415 = vmul.bf16 %v2382, %v1061
  %v2416 = vmul.bf16 %v2383, %v1071
  %v2417 = vmul.bf16 %v2384, %v1081
  %v2418 = vmul.bf16 %v2385, %v1091
  %v2419 = vmul.bf16 %v2386, %v1101
  %v2420 = vmul.bf16 %v2387, %v1111
  %v2421 = vmul.bf16 %v2388, %v1121
  %v2422 = vmul.bf16 %v2389, %v1131
  %v2423 = vmul.bf16 %v2390, %v1141
  %v2424 = vmul.bf16 %v2391, %v1151
  %v2425 = vmul.bf16 %v2392, %v1161
  %v2426 = vmul.bf16 %v2393, %v1171
  %v2427 = vmul.bf16 %v2394, %v1181
  %v2428 = vmul.bf16 %v2395, %v1191
  %v2429 = vmul.bf16 %v2396, %v1201
  %v2430 = vmul.bf16 %v2397, %v1211
  %v2431 = vmul.bf16 %v2398, %v1216
  %v2465 = vunpack.c.l.b16 %v2399
  %v2466 = vunpack.c.l.b16 %v2400
  %v2467 = vunpack.c.l.b16 %v2401
  %v2468 = vunpack.c.l.b16 %v2402
  %v2469 = vunpack.c.l.b16 %v2403
  %v2470 = vunpack.c.l.b16 %v2404
  %v2471 = vunpack.c.l.b16 %v2405
  %v2472 = vunpack.c.l.b16 %v2406
  %v2473 = vunpack.c.l.b16 %v2407
  %v2474 = vunpack.c.l.b16 %v2408
  %v2475 = vunpack.c.l.b16 %v2409
  %v2476 = vunpack.c.l.b16 %v2410
  %v2477 = vunpack.c.l.b16 %v2411
  %v2478 = vunpack.c.l.b16 %v2412
  %v2479 = vunpack.c.l.b16 %v2413
  %v2480 = vunpack.c.l.b16 %v2414
  %v2481 = vunpack.c.l.b16 %v2415
  %v2482 = vunpack.c.l.b16 %v2416
  %v2483 = vunpack.c.l.b16 %v2417
  %v2484 = vunpack.c.l.b16 %v2418
  %v2485 = vunpack.c.l.b16 %v2419
  %v2486 = vunpack.c.l.b16 %v2420
  %v2487 = vunpack.c.l.b16 %v2421
  %v2488 = vunpack.c.l.b16 %v2422
  %v2489 = vunpack.c.l.b16 %v2423
  %v2490 = vunpack.c.l.b16 %v2424
  %v2491 = vunpack.c.l.b16 %v2425
  %v2492 = vunpack.c.l.b16 %v2426
  %v2493 = vunpack.c.l.b16 %v2427
  %v2494 = vunpack.c.l.b16 %v2428
  %v2495 = vunpack.c.l.b16 %v2429
  %v2496 = vunpack.c.l.b16 %v2430
  %v2497 = vunpack.c.l.b16 %v2431
  %v2498 = vpack.c.b16 %v2466, %v2465
  %v2499 = vpack.c.b16 %v2468, %v2467
  %v2500 = vpack.c.b16 %v2470, %v2469
  %v2501 = vpack.c.b16 %v2472, %v2471
  %v2502 = vpack.c.b16 %v2474, %v2473
  %v2503 = vpack.c.b16 %v2476, %v2475
  %v2504 = vpack.c.b16 %v2478, %v2477
  %v2505 = vpack.c.b16 %v2480, %v2479
  %v2506 = vpack.c.b16 %v2482, %v2481
  %v2507 = vpack.c.b16 %v2484, %v2483
  %v2508 = vpack.c.b16 %v2486, %v2485
  %v2509 = vpack.c.b16 %v2488, %v2487
  %v2510 = vpack.c.b16 %v2490, %v2489
  %v2511 = vpack.c.b16 %v2492, %v2491
  %v2512 = vpack.c.b16 %v2494, %v2493
  %v2513 = vpack.c.b16 %v2496, %v2495
  %v2514 = vpack.c.b16 %v2497, %v2497
  %v2516 = vshrl.u32 %v2498, 16
  %v2518 = vrot.slane %v2516, 3
  %v2519 = vshll.u32 %v2498, 16
  %v2521 = vrot.slane %v2519, 4
  %v2522 = vor.u32 %v2518, %v2521
  %v2524 = vshrl.u32 %v2499, 16
  %v2526 = vrot.slane %v2524, 3
  %v2527 = vshll.u32 %v2499, 16
  %v2529 = vrot.slane %v2527, 4
  %v2530 = vor.u32 %v2526, %v2529
  %v2531 = vsel %vm1366, %v2522, %v2530
  %v2533 = vshrl.u32 %v2500, 16
  %v2535 = vrot.slane %v2533, 3
  %v2536 = vshll.u32 %v2500, 16
  %v2538 = vrot.slane %v2536, 4
  %v2539 = vor.u32 %v2535, %v2538
  %v2540 = vsel %vm1366, %v2530, %v2539
  %v2542 = vshrl.u32 %v2501, 16
  %v2544 = vrot.slane %v2542, 3
  %v2545 = vshll.u32 %v2501, 16
  %v2547 = vrot.slane %v2545, 4
  %v2548 = vor.u32 %v2544, %v2547
  %v2549 = vsel %vm1366, %v2539, %v2548
  %v2551 = vshrl.u32 %v2502, 16
  %v2553 = vrot.slane %v2551, 3
  %v2554 = vshll.u32 %v2502, 16
  %v2556 = vrot.slane %v2554, 4
  %v2557 = vor.u32 %v2553, %v2556
  %v2558 = vsel %vm1366, %v2548, %v2557
  %v2560 = vshrl.u32 %v2503, 16
  %v2562 = vrot.slane %v2560, 3
  %v2563 = vshll.u32 %v2503, 16
  %v2565 = vrot.slane %v2563, 4
  %v2566 = vor.u32 %v2562, %v2565
  %v2567 = vsel %vm1366, %v2557, %v2566
  %v2569 = vshrl.u32 %v2504, 16
  %v2571 = vrot.slane %v2569, 3
  %v2572 = vshll.u32 %v2504, 16
  %v2574 = vrot.slane %v2572, 4
  %v2575 = vor.u32 %v2571, %v2574
  %v2576 = vsel %vm1366, %v2566, %v2575
  %v2578 = vshrl.u32 %v2505, 16
  %v2580 = vrot.slane %v2578, 3
  %v2581 = vshll.u32 %v2505, 16
  %v2583 = vrot.slane %v2581, 4
  %v2584 = vor.u32 %v2580, %v2583
  %v2585 = vsel %vm1366, %v2575, %v2584
  %v2587 = vshrl.u32 %v2506, 16
  %v2589 = vrot.slane %v2587, 3
  %v2590 = vshll.u32 %v2506, 16
  %v2592 = vrot.slane %v2590, 4
  %v2593 = vor.u32 %v2589, %v2592
  %v2594 = vsel %vm1366, %v2584, %v2593
  %v2596 = vshrl.u32 %v2507, 16
  %v2598 = vrot.slane %v2596, 3
  %v2599 = vshll.u32 %v2507, 16
  %v2601 = vrot.slane %v2599, 4
  %v2602 = vor.u32 %v2598, %v2601
  %v2603 = vsel %vm1366, %v2593, %v2602
  %v2605 = vshrl.u32 %v2508, 16
  %v2607 = vrot.slane %v2605, 3
  %v2608 = vshll.u32 %v2508, 16
  %v2610 = vrot.slane %v2608, 4
  %v2611 = vor.u32 %v2607, %v2610
  %v2612 = vsel %vm1366, %v2602, %v2611
  %v2614 = vshrl.u32 %v2509, 16
  %v2616 = vrot.slane %v2614, 3
  %v2617 = vshll.u32 %v2509, 16
  %v2619 = vrot.slane %v2617, 4
  %v2620 = vor.u32 %v2616, %v2619
  %v2621 = vsel %vm1366, %v2611, %v2620
  %v2623 = vshrl.u32 %v2510, 16
  %v2625 = vrot.slane %v2623, 3
  %v2626 = vshll.u32 %v2510, 16
  %v2628 = vrot.slane %v2626, 4
  %v2629 = vor.u32 %v2625, %v2628
  %v2630 = vsel %vm1366, %v2620, %v2629
  %v2632 = vshrl.u32 %v2511, 16
  %v2634 = vrot.slane %v2632, 3
  %v2635 = vshll.u32 %v2511, 16
  %v2637 = vrot.slane %v2635, 4
  %v2638 = vor.u32 %v2634, %v2637
  %v2639 = vsel %vm1366, %v2629, %v2638
  %v2641 = vshrl.u32 %v2512, 16
  %v2643 = vrot.slane %v2641, 3
  %v2644 = vshll.u32 %v2512, 16
  %v2646 = vrot.slane %v2644, 4
  %v2647 = vor.u32 %v2643, %v2646
  %v2648 = vsel %vm1366, %v2638, %v2647
  %v2650 = vshrl.u32 %v2513, 16
  %v2652 = vrot.slane %v2650, 3
  %v2653 = vshll.u32 %v2513, 16
  %v2655 = vrot.slane %v2653, 4
  %v2656 = vor.u32 %v2652, %v2655
  %v2657 = vsel %vm1366, %v2647, %v2656
  %v2659 = vshrl.u32 %v2514, 16
  %v2661 = vrot.slane %v2659, 3
  %v2662 = vshll.u32 %v2514, 16
  %v2664 = vrot.slane %v2662, 4
  %v2665 = vor.u32 %v2661, %v2664
  %v2666 = vsel %vm1366, %v2656, %v2665
  %2667 = vrot.lane.b32.xlu0 %v2531, 64
  %v2668 = vpop.permute.xlu0 %2667
  %2669 = vrot.lane.b32.xlu0 %v2540, 64
  %v2670 = vpop.permute.xlu0 %2669
  %2671 = vrot.lane.b32.xlu0 %v2549, 64
  %v2672 = vpop.permute.xlu0 %2671
  %2673 = vrot.lane.b32.xlu0 %v2558, 64
  %v2674 = vpop.permute.xlu0 %2673
  %2675 = vrot.lane.b32.xlu0 %v2567, 64
  %v2676 = vpop.permute.xlu0 %2675
  %2677 = vrot.lane.b32.xlu0 %v2576, 64
  %v2678 = vpop.permute.xlu0 %2677
  %2679 = vrot.lane.b32.xlu0 %v2585, 64
  %v2680 = vpop.permute.xlu0 %2679
  %2681 = vrot.lane.b32.xlu0 %v2594, 64
  %v2682 = vpop.permute.xlu0 %2681
  %2683 = vrot.lane.b32.xlu0 %v2603, 64
  %v2684 = vpop.permute.xlu0 %2683
  %2685 = vrot.lane.b32.xlu0 %v2612, 64
  %v2686 = vpop.permute.xlu0 %2685
  %2687 = vrot.lane.b32.xlu0 %v2621, 64
  %v2688 = vpop.permute.xlu0 %2687
  %2689 = vrot.lane.b32.xlu0 %v2630, 64
  %v2690 = vpop.permute.xlu0 %2689
  %2691 = vrot.lane.b32.xlu0 %v2639, 64
  %v2692 = vpop.permute.xlu0 %2691
  %2693 = vrot.lane.b32.xlu0 %v2648, 64
  %v2694 = vpop.permute.xlu0 %2693
  %2695 = vrot.lane.b32.xlu0 %v2657, 64
  %v2696 = vpop.permute.xlu0 %2695
  %2697 = vrot.lane.b32.xlu0 %v2666, 64
  %v2698 = vpop.permute.xlu0 %2697
  %2715 = vst.msk [vmem:[#allocation2 + $0x8] sm:$0xff] %vm1712, %v2668
  %2716 = vst.msk [vmem:[#allocation2 + $0x30] sm:$0xff] %vm1712, %v2670
  %2717 = vst.msk [vmem:[#allocation2 + $0x58] sm:$0xff] %vm1712, %v2672
  %2718 = vst.msk [vmem:[#allocation2 + $0x80] sm:$0xff] %vm1712, %v2674
  %2719 = vst.msk [vmem:[#allocation2 + $0xa8] sm:$0xff] %vm1712, %v2676
  %2720 = vst.msk [vmem:[#allocation2 + $0xd0] sm:$0xff] %vm1712, %v2678
  %2721 = vst.msk [vmem:[#allocation2 + $0xf8] sm:$0xff] %vm1712, %v2680
  %2722 = vst.msk [vmem:[#allocation2 + $0x120] sm:$0xff] %vm1712, %v2682
  %2723 = vst.msk [vmem:[#allocation2 + $0x148] sm:$0xff] %vm1712, %v2684
  %2724 = vst.msk [vmem:[#allocation2 + $0x170] sm:$0xff] %vm1712, %v2686
  %2725 = vst.msk [vmem:[#allocation2 + $0x198] sm:$0xff] %vm1712, %v2688
  %2726 = vst.msk [vmem:[#allocation2 + $0x1c0] sm:$0xff] %vm1712, %v2690
  %2727 = vst.msk [vmem:[#allocation2 + $0x1e8] sm:$0xff] %vm1712, %v2692
  %2728 = vst.msk [vmem:[#allocation2 + $0x210] sm:$0xff] %vm1712, %v2694
  %2729 = vst.msk [vmem:[#allocation2 + $0x238] sm:$0xff] %vm1712, %v2696
  %2730 = vst.msk [vmem:[#allocation2 + $0x260] sm:$0xff] %vm1712, %v2698
  %v2731 = vld [vmem:[%s0 + $0xc] sm:$0xf]
  %v2732 = vld [vmem:[%s0 + $0x10] sm:$0xf]
  %v2733 = vld [vmem:[%s0 + $0x14] sm:$0xf]
  %v2734 = vld [vmem:[%s0 + $0x18] sm:$0xf]
  %v2735 = vld [vmem:[%s0 + $0x1c] sm:$0xf]
  %v2736 = vld [vmem:[%s0 + $0x20] sm:$0xf]
  %v2737 = vld [vmem:[%s0 + $0x24] sm:$0xf]
  %v2738 = vld [vmem:[%s0 + $0x28] sm:$0xf]
  %v2739 = vld [vmem:[%s0 + $0x2c] sm:$0xf]
  %v2740 = vld [vmem:[%s0 + $0x30] sm:$0xf]
  %v2741 = vld [vmem:[%s0 + $0x34] sm:$0xf]
  %v2742 = vld [vmem:[%s0 + $0x38] sm:$0xf]
  %v2743 = vld [vmem:[%s0 + $0x3c] sm:$0xf]
  %v2744 = vld [vmem:[%s0 + $0x40] sm:$0xf]
  %v2745 = vld [vmem:[%s0 + $0x44] sm:$0xf]
  %v2746 = vld [vmem:[%s0 + $0x48] sm:$0xf]
  %v2747 = vld [vmem:[%s0 + $0x4c] sm:$0xf]
  %v2748 = vld [vmem:[%s0 + $0x50] sm:$0xf]
  %v2749 = vld [vmem:[%s0 + $0x54] sm:$0xf]
  %v2750 = vld [vmem:[%s0 + $0x58] sm:$0xf]
  %v2751 = vld [vmem:[%s0 + $0x5c] sm:$0xf]
  %v2752 = vld [vmem:[%s0 + $0x60] sm:$0xf]
  %v2753 = vld [vmem:[%s0 + $0x64] sm:$0xf]
  %v2754 = vld [vmem:[%s0 + $0x68] sm:$0xf]
  %v2755 = vld [vmem:[%s0 + $0x6c] sm:$0xf]
  %v2756 = vld [vmem:[%s0 + $0x70] sm:$0xf]
  %v2757 = vld [vmem:[%s0 + $0x74] sm:$0xf]
  %v2758 = vld [vmem:[%s0 + $0x78] sm:$0xf]
  %v2759 = vld [vmem:[%s0 + $0x7c] sm:$0xf]
  %v2760 = vld [vmem:[%s0 + $0x80] sm:$0xf]
  %v2761 = vld [vmem:[%s0 + $0x84] sm:$0xf]
  %v2762 = vld [vmem:[%s0 + $0x88] sm:$0xf]
  %v2795 = vunpack.c.l.b16 %v2731
  %v2796 = vunpack.c.l.b16 %v2732
  %v2797 = vunpack.c.l.b16 %v2733
  %v2798 = vunpack.c.l.b16 %v2734
  %v2799 = vunpack.c.l.b16 %v2735
  %v2800 = vunpack.c.l.b16 %v2736
  %v2801 = vunpack.c.l.b16 %v2737
  %v2802 = vunpack.c.l.b16 %v2738
  %v2803 = vunpack.c.l.b16 %v2739
  %v2804 = vunpack.c.l.b16 %v2740
  %v2805 = vunpack.c.l.b16 %v2741
  %v2806 = vunpack.c.l.b16 %v2742
  %v2807 = vunpack.c.l.b16 %v2743
  %v2808 = vunpack.c.l.b16 %v2744
  %v2809 = vunpack.c.l.b16 %v2745
  %v2810 = vunpack.c.l.b16 %v2746
  %v2811 = vunpack.c.l.b16 %v2747
  %v2812 = vunpack.c.l.b16 %v2748
  %v2813 = vunpack.c.l.b16 %v2749
  %v2814 = vunpack.c.l.b16 %v2750
  %v2815 = vunpack.c.l.b16 %v2751
  %v2816 = vunpack.c.l.b16 %v2752
  %v2817 = vunpack.c.l.b16 %v2753
  %v2818 = vunpack.c.l.b16 %v2754
  %v2819 = vunpack.c.l.b16 %v2755
  %v2820 = vunpack.c.l.b16 %v2756
  %v2821 = vunpack.c.l.b16 %v2757
  %v2822 = vunpack.c.l.b16 %v2758
  %v2823 = vunpack.c.l.b16 %v2759
  %v2824 = vunpack.c.l.b16 %v2760
  %v2825 = vunpack.c.l.b16 %v2761
  %v2826 = vunpack.c.l.b16 %v2762
  %v2827 = vpack.c.b16 %v2796, %v2795
  %v2828 = vpack.c.b16 %v2798, %v2797
  %v2829 = vpack.c.b16 %v2800, %v2799
  %v2830 = vpack.c.b16 %v2802, %v2801
  %v2831 = vpack.c.b16 %v2804, %v2803
  %v2832 = vpack.c.b16 %v2806, %v2805
  %v2833 = vpack.c.b16 %v2808, %v2807
  %v2834 = vpack.c.b16 %v2810, %v2809
  %v2835 = vpack.c.b16 %v2812, %v2811
  %v2836 = vpack.c.b16 %v2814, %v2813
  %v2837 = vpack.c.b16 %v2816, %v2815
  %v2838 = vpack.c.b16 %v2818, %v2817
  %v2839 = vpack.c.b16 %v2820, %v2819
  %v2840 = vpack.c.b16 %v2822, %v2821
  %v2841 = vpack.c.b16 %v2824, %v2823
  %v2842 = vpack.c.b16 %v2826, %v2825
  %2859 = vst.msk [vmem:[#allocation2 + $0x10] sm:$0xff] %vm1535, %v2827
  %2860 = vst.msk [vmem:[#allocation2 + $0x38] sm:$0xff] %vm1535, %v2828
  %2861 = vst.msk [vmem:[#allocation2 + $0x60] sm:$0xff] %vm1535, %v2829
  %2862 = vst.msk [vmem:[#allocation2 + $0x88] sm:$0xff] %vm1535, %v2830
  %2863 = vst.msk [vmem:[#allocation2 + $0xb0] sm:$0xff] %vm1535, %v2831
  %2864 = vst.msk [vmem:[#allocation2 + $0xd8] sm:$0xff] %vm1535, %v2832
  %2865 = vst.msk [vmem:[#allocation2 + $0x100] sm:$0xff] %vm1535, %v2833
  %2866 = vst.msk [vmem:[#allocation2 + $0x128] sm:$0xff] %vm1535, %v2834
  %2867 = vst.msk [vmem:[#allocation2 + $0x150] sm:$0xff] %vm1535, %v2835
  %2868 = vst.msk [vmem:[#allocation2 + $0x178] sm:$0xff] %vm1535, %v2836
  %2869 = vst.msk [vmem:[#allocation2 + $0x1a0] sm:$0xff] %vm1535, %v2837
  %2870 = vst.msk [vmem:[#allocation2 + $0x1c8] sm:$0xff] %vm1535, %v2838
  %2871 = vst.msk [vmem:[#allocation2 + $0x1f0] sm:$0xff] %vm1535, %v2839
  %2872 = vst.msk [vmem:[#allocation2 + $0x218] sm:$0xff] %vm1535, %v2840
  %2873 = vst.msk [vmem:[#allocation2 + $0x240] sm:$0xff] %vm1535, %v2841
  %2874 = vst.msk [vmem:[#allocation2 + $0x268] sm:$0xff] %vm1535, %v2842
  %v2875 = vld [vmem:[%s0 + $0xc] sm:$0xf]
  %v2876 = vld [vmem:[%s0 + $0x10] sm:$0xf]
  %v2877 = vld [vmem:[%s0 + $0x14] sm:$0xf]
  %v2878 = vld [vmem:[%s0 + $0x18] sm:$0xf]
  %v2879 = vld [vmem:[%s0 + $0x1c] sm:$0xf]
  %v2880 = vld [vmem:[%s0 + $0x20] sm:$0xf]
  %v2881 = vld [vmem:[%s0 + $0x24] sm:$0xf]
  %v2882 = vld [vmem:[%s0 + $0x28] sm:$0xf]
  %v2883 = vld [vmem:[%s0 + $0x2c] sm:$0xf]
  %v2884 = vld [vmem:[%s0 + $0x30] sm:$0xf]
  %v2885 = vld [vmem:[%s0 + $0x34] sm:$0xf]
  %v2886 = vld [vmem:[%s0 + $0x38] sm:$0xf]
  %v2887 = vld [vmem:[%s0 + $0x3c] sm:$0xf]
  %v2888 = vld [vmem:[%s0 + $0x40] sm:$0xf]
  %v2889 = vld [vmem:[%s0 + $0x44] sm:$0xf]
  %v2890 = vld [vmem:[%s0 + $0x48] sm:$0xf]
  %v2891 = vld [vmem:[%s0 + $0x4c] sm:$0xf]
  %v2892 = vld [vmem:[%s0 + $0x50] sm:$0xf]
  %v2893 = vld [vmem:[%s0 + $0x54] sm:$0xf]
  %v2894 = vld [vmem:[%s0 + $0x58] sm:$0xf]
  %v2895 = vld [vmem:[%s0 + $0x5c] sm:$0xf]
  %v2896 = vld [vmem:[%s0 + $0x60] sm:$0xf]
  %v2897 = vld [vmem:[%s0 + $0x64] sm:$0xf]
  %v2898 = vld [vmem:[%s0 + $0x68] sm:$0xf]
  %v2899 = vld [vmem:[%s0 + $0x6c] sm:$0xf]
  %v2900 = vld [vmem:[%s0 + $0x70] sm:$0xf]
  %v2901 = vld [vmem:[%s0 + $0x74] sm:$0xf]
  %v2902 = vld [vmem:[%s0 + $0x78] sm:$0xf]
  %v2903 = vld [vmem:[%s0 + $0x7c] sm:$0xf]
  %v2904 = vld [vmem:[%s0 + $0x80] sm:$0xf]
  %v2905 = vld [vmem:[%s0 + $0x84] sm:$0xf]
  %v2906 = vld [vmem:[%s0 + $0x88] sm:$0xf]
  %v2907 = vld [vmem:[%s0 + $0x8c] sm:$0x1]
  %v2908 = vmul.bf16 %v2875, %v1771
  %v2909 = vmul.bf16 %v2876, %v1780
  %v2910 = vmul.bf16 %v2877, %v1789
  %v2911 = vmul.bf16 %v2878, %v1798
  %v2912 = vmul.bf16 %v2879, %v1807
  %v2913 = vmul.bf16 %v2880, %v1816
  %v2914 = vmul.bf16 %v2881, %v1825
  %v2915 = vmul.bf16 %v2882, %v1834
  %v2916 = vmul.bf16 %v2883, %v1843
  %v2917 = vmul.bf16 %v2884, %v1852
  %v2918 = vmul.bf16 %v2885, %v1861
  %v2919 = vmul.bf16 %v2886, %v1870
  %v2920 = vmul.bf16 %v2887, %v1879
  %v2921 = vmul.bf16 %v2888, %v1888
  %v2922 = vmul.bf16 %v2889, %v1897
  %v2923 = vmul.bf16 %v2890, %v1906
  %v2924 = vmul.bf16 %v2891, %v1915
  %v2925 = vmul.bf16 %v2892, %v1924
  %v2926 = vmul.bf16 %v2893, %v1933
  %v2927 = vmul.bf16 %v2894, %v1942
  %v2928 = vmul.bf16 %v2895, %v1951
  %v2929 = vmul.bf16 %v2896, %v1960
  %v2930 = vmul.bf16 %v2897, %v1969
  %v2931 = vmul.bf16 %v2898, %v1978
  %v2932 = vmul.bf16 %v2899, %v1987
  %v2933 = vmul.bf16 %v2900, %v1996
  %v2934 = vmul.bf16 %v2901, %v2005
  %v2935 = vmul.bf16 %v2902, %v2014
  %v2936 = vmul.bf16 %v2903, %v2023
  %v2937 = vmul.bf16 %v2904, %v2032
  %v2938 = vmul.bf16 %v2905, %v2041
  %v2939 = vmul.bf16 %v2906, %v2050
  %v2940 = vmul.bf16 %v2907, %v2051
  %v2974 = vunpack.c.l.b16 %v2908
  %v2975 = vunpack.c.l.b16 %v2909
  %v2976 = vunpack.c.l.b16 %v2910
  %v2977 = vunpack.c.l.b16 %v2911
  %v2978 = vunpack.c.l.b16 %v2912
  %v2979 = vunpack.c.l.b16 %v2913
  %v2980 = vunpack.c.l.b16 %v2914
  %v2981 = vunpack.c.l.b16 %v2915
  %v2982 = vunpack.c.l.b16 %v2916
  %v2983 = vunpack.c.l.b16 %v2917
  %v2984 = vunpack.c.l.b16 %v2918
  %v2985 = vunpack.c.l.b16 %v2919
  %v2986 = vunpack.c.l.b16 %v2920
  %v2987 = vunpack.c.l.b16 %v2921
  %v2988 = vunpack.c.l.b16 %v2922
  %v2989 = vunpack.c.l.b16 %v2923
  %v2990 = vunpack.c.l.b16 %v2924
  %v2991 = vunpack.c.l.b16 %v2925
  %v2992 = vunpack.c.l.b16 %v2926
  %v2993 = vunpack.c.l.b16 %v2927
  %v2994 = vunpack.c.l.b16 %v2928
  %v2995 = vunpack.c.l.b16 %v2929
  %v2996 = vunpack.c.l.b16 %v2930
  %v2997 = vunpack.c.l.b16 %v2931
  %v2998 = vunpack.c.l.b16 %v2932
  %v2999 = vunpack.c.l.b16 %v2933
  %v3000 = vunpack.c.l.b16 %v2934
  %v3001 = vunpack.c.l.b16 %v2935
  %v3002 = vunpack.c.l.b16 %v2936
  %v3003 = vunpack.c.l.b16 %v2937
  %v3004 = vunpack.c.l.b16 %v2938
  %v3005 = vunpack.c.l.b16 %v2939
  %v3006 = vunpack.c.l.b16 %v2940
  %v3007 = vpack.c.b16 %v2975, %v2974
  %v3008 = vpack.c.b16 %v2977, %v2976
  %v3009 = vpack.c.b16 %v2979, %v2978
  %v3010 = vpack.c.b16 %v2981, %v2980
  %v3011 = vpack.c.b16 %v2983, %v2982
  %v3012 = vpack.c.b16 %v2985, %v2984
  %v3013 = vpack.c.b16 %v2987, %v2986
  %v3014 = vpack.c.b16 %v2989, %v2988
  %v3015 = vpack.c.b16 %v2991, %v2990
  %v3016 = vpack.c.b16 %v2993, %v2992
  %v3017 = vpack.c.b16 %v2995, %v2994
  %v3018 = vpack.c.b16 %v2997, %v2996
  %v3019 = vpack.c.b16 %v2999, %v2998
  %v3020 = vpack.c.b16 %v3001, %v3000
  %v3021 = vpack.c.b16 %v3003, %v3002
  %v3022 = vpack.c.b16 %v3005, %v3004
  %v3023 = vpack.c.b16 %v3006, %v3006
  %v3025 = vshrl.u32 %v3007, 16
  %v3027 = vshll.u32 %v3007, 16
  %v3029 = vrot.slane %v3027, 1
  %v3030 = vor.u32 %v3025, %v3029
  %v3032 = vshll.u32 %v3008, 16
  %v3034 = vrot.slane %v3032, 1
  %v3035 = vsel %vm2201, %v3030, %v3034
  %v3036 = vshrl.u32 %v3008, 16
  %v3038 = vor.u32 %v3036, %v3034
  %v3040 = vshll.u32 %v3009, 16
  %v3042 = vrot.slane %v3040, 1
  %v3043 = vsel %vm2201, %v3038, %v3042
  %v3044 = vshrl.u32 %v3009, 16
  %v3046 = vor.u32 %v3044, %v3042
  %v3048 = vshll.u32 %v3010, 16
  %v3050 = vrot.slane %v3048, 1
  %v3051 = vsel %vm2201, %v3046, %v3050
  %v3052 = vshrl.u32 %v3010, 16
  %v3054 = vor.u32 %v3052, %v3050
  %v3056 = vshll.u32 %v3011, 16
  %v3058 = vrot.slane %v3056, 1
  %v3059 = vsel %vm2201, %v3054, %v3058
  %v3060 = vshrl.u32 %v3011, 16
  %v3062 = vor.u32 %v3060, %v3058
  %v3064 = vshll.u32 %v3012, 16
  %v3066 = vrot.slane %v3064, 1
  %v3067 = vsel %vm2201, %v3062, %v3066
  %v3068 = vshrl.u32 %v3012, 16
  %v3070 = vor.u32 %v3068, %v3066
  %v3072 = vshll.u32 %v3013, 16
  %v3074 = vrot.slane %v3072, 1
  %v3075 = vsel %vm2201, %v3070, %v3074
  %v3076 = vshrl.u32 %v3013, 16
  %v3078 = vor.u32 %v3076, %v3074
  %v3080 = vshll.u32 %v3014, 16
  %v3082 = vrot.slane %v3080, 1
  %v3083 = vsel %vm2201, %v3078, %v3082
  %v3084 = vshrl.u32 %v3014, 16
  %v3086 = vor.u32 %v3084, %v3082
  %v3088 = vshll.u32 %v3015, 16
  %v3090 = vrot.slane %v3088, 1
  %v3091 = vsel %vm2201, %v3086, %v3090
  %v3092 = vshrl.u32 %v3015, 16
  %v3094 = vor.u32 %v3092, %v3090
  %v3096 = vshll.u32 %v3016, 16
  %v3098 = vrot.slane %v3096, 1
  %v3099 = vsel %vm2201, %v3094, %v3098
  %v3100 = vshrl.u32 %v3016, 16
  %v3102 = vor.u32 %v3100, %v3098
  %v3104 = vshll.u32 %v3017, 16
  %v3106 = vrot.slane %v3104, 1
  %v3107 = vsel %vm2201, %v3102, %v3106
  %v3108 = vshrl.u32 %v3017, 16
  %v3110 = vor.u32 %v3108, %v3106
  %v3112 = vshll.u32 %v3018, 16
  %v3114 = vrot.slane %v3112, 1
  %v3115 = vsel %vm2201, %v3110, %v3114
  %v3116 = vshrl.u32 %v3018, 16
  %v3118 = vor.u32 %v3116, %v3114
  %v3120 = vshll.u32 %v3019, 16
  %v3122 = vrot.slane %v3120, 1
  %v3123 = vsel %vm2201, %v3118, %v3122
  %v3124 = vshrl.u32 %v3019, 16
  %v3126 = vor.u32 %v3124, %v3122
  %v3128 = vshll.u32 %v3020, 16
  %v3130 = vrot.slane %v3128, 1
  %v3131 = vsel %vm2201, %v3126, %v3130
  %v3132 = vshrl.u32 %v3020, 16
  %v3134 = vor.u32 %v3132, %v3130
  %v3136 = vshll.u32 %v3021, 16
  %v3138 = vrot.slane %v3136, 1
  %v3139 = vsel %vm2201, %v3134, %v3138
  %v3140 = vshrl.u32 %v3021, 16
  %v3142 = vor.u32 %v3140, %v3138
  %v3144 = vshll.u32 %v3022, 16
  %v3146 = vrot.slane %v3144, 1
  %v3147 = vsel %vm2201, %v3142, %v3146
  %v3148 = vshrl.u32 %v3022, 16
  %v3150 = vor.u32 %v3148, %v3146
  %v3152 = vshll.u32 %v3023, 16
  %v3154 = vrot.slane %v3152, 1
  %v3155 = vsel %vm2201, %v3150, %v3154
  %3156 = vrot.lane.b32.xlu0 %v3035, 64
  %v3157 = vpop.permute.xlu0 %3156
  %3158 = vrot.lane.b32.xlu0 %v3043, 64
  %v3159 = vpop.permute.xlu0 %3158
  %3160 = vrot.lane.b32.xlu0 %v3051, 64
  %v3161 = vpop.permute.xlu0 %3160
  %3162 = vrot.lane.b32.xlu0 %v3059, 64
  %v3163 = vpop.permute.xlu0 %3162
  %3164 = vrot.lane.b32.xlu0 %v3067, 64
  %v3165 = vpop.permute.xlu0 %3164
  %3166 = vrot.lane.b32.xlu0 %v3075, 64
  %v3167 = vpop.permute.xlu0 %3166
  %3168 = vrot.lane.b32.xlu0 %v3083, 64
  %v3169 = vpop.permute.xlu0 %3168
  %3170 = vrot.lane.b32.xlu0 %v3091, 64
  %v3171 = vpop.permute.xlu0 %3170
  %3172 = vrot.lane.b32.xlu0 %v3099, 64
  %v3173 = vpop.permute.xlu0 %3172
  %3174 = vrot.lane.b32.xlu0 %v3107, 64
  %v3175 = vpop.permute.xlu0 %3174
  %3176 = vrot.lane.b32.xlu0 %v3115, 64
  %v3177 = vpop.permute.xlu0 %3176
  %3178 = vrot.lane.b32.xlu0 %v3123, 64
  %v3179 = vpop.permute.xlu0 %3178
  %3180 = vrot.lane.b32.xlu0 %v3131, 64
  %v3181 = vpop.permute.xlu0 %3180
  %3182 = vrot.lane.b32.xlu0 %v3139, 64
  %v3183 = vpop.permute.xlu0 %3182
  %3184 = vrot.lane.b32.xlu0 %v3147, 64
  %v3185 = vpop.permute.xlu0 %3184
  %3186 = vrot.lane.b32.xlu0 %v3155, 64
  %v3187 = vpop.permute.xlu0 %3186
  %3204 = vst.msk [vmem:[#allocation2 + $0x10] sm:$0xff] %vm1712, %v3157
  %3205 = vst.msk [vmem:[#allocation2 + $0x38] sm:$0xff] %vm1712, %v3159
  %3206 = vst.msk [vmem:[#allocation2 + $0x60] sm:$0xff] %vm1712, %v3161
  %3207 = vst.msk [vmem:[#allocation2 + $0x88] sm:$0xff] %vm1712, %v3163
  %3208 = vst.msk [vmem:[#allocation2 + $0xb0] sm:$0xff] %vm1712, %v3165
  %3209 = vst.msk [vmem:[#allocation2 + $0xd8] sm:$0xff] %vm1712, %v3167
  %3210 = vst.msk [vmem:[#allocation2 + $0x100] sm:$0xff] %vm1712, %v3169
  %3211 = vst.msk [vmem:[#allocation2 + $0x128] sm:$0xff] %vm1712, %v3171
  %3212 = vst.msk [vmem:[#allocation2 + $0x150] sm:$0xff] %vm1712, %v3173
  %3213 = vst.msk [vmem:[#allocation2 + $0x178] sm:$0xff] %vm1712, %v3175
  %3214 = vst.msk [vmem:[#allocation2 + $0x1a0] sm:$0xff] %vm1712, %v3177
  %3215 = vst.msk [vmem:[#allocation2 + $0x1c8] sm:$0xff] %vm1712, %v3179
  %3216 = vst.msk [vmem:[#allocation2 + $0x1f0] sm:$0xff] %vm1712, %v3181
  %3217 = vst.msk [vmem:[#allocation2 + $0x218] sm:$0xff] %vm1712, %v3183
  %3218 = vst.msk [vmem:[#allocation2 + $0x240] sm:$0xff] %vm1712, %v3185
  %3219 = vst.msk [vmem:[#allocation2 + $0x268] sm:$0xff] %vm1712, %v3187
  %v3220 = vld [vmem:[%s0 + $0x10] sm:$0x8]
  %v3221 = vld [vmem:[%s0 + $0x14] sm:$0xf]
  %v3222 = vld [vmem:[%s0 + $0x18] sm:$0xf]
  %v3223 = vld [vmem:[%s0 + $0x1c] sm:$0xf]
  %v3224 = vld [vmem:[%s0 + $0x20] sm:$0xf]
  %v3225 = vld [vmem:[%s0 + $0x24] sm:$0xf]
  %v3226 = vld [vmem:[%s0 + $0x28] sm:$0xf]
  %v3227 = vld [vmem:[%s0 + $0x2c] sm:$0xf]
  %v3228 = vld [vmem:[%s0 + $0x30] sm:$0xf]
  %v3229 = vld [vmem:[%s0 + $0x34] sm:$0xf]
  %v3230 = vld [vmem:[%s0 + $0x38] sm:$0xf]
  %v3231 = vld [vmem:[%s0 + $0x3c] sm:$0xf]
  %v3232 = vld [vmem:[%s0 + $0x40] sm:$0xf]
  %v3233 = vld [vmem:[%s0 + $0x44] sm:$0xf]
  %v3234 = vld [vmem:[%s0 + $0x48] sm:$0xf]
  %v3235 = vld [vmem:[%s0 + $0x4c] sm:$0xf]
  %v3236 = vld [vmem:[%s0 + $0x50] sm:$0xf]
  %v3237 = vld [vmem:[%s0 + $0x54] sm:$0xf]
  %v3238 = vld [vmem:[%s0 + $0x58] sm:$0xf]
  %v3239 = vld [vmem:[%s0 + $0x5c] sm:$0xf]
  %v3240 = vld [vmem:[%s0 + $0x60] sm:$0xf]
  %v3241 = vld [vmem:[%s0 + $0x64] sm:$0xf]
  %v3242 = vld [vmem:[%s0 + $0x68] sm:$0xf]
  %v3243 = vld [vmem:[%s0 + $0x6c] sm:$0xf]
  %v3244 = vld [vmem:[%s0 + $0x70] sm:$0xf]
  %v3245 = vld [vmem:[%s0 + $0x74] sm:$0xf]
  %v3246 = vld [vmem:[%s0 + $0x78] sm:$0xf]
  %v3247 = vld [vmem:[%s0 + $0x7c] sm:$0xf]
  %v3248 = vld [vmem:[%s0 + $0x80] sm:$0xf]
  %v3249 = vld [vmem:[%s0 + $0x84] sm:$0xf]
  %v3250 = vld [vmem:[%s0 + $0x88] sm:$0xf]
  %v3251 = vld [vmem:[%s0 + $0x8c] sm:$0xf]
  %v3252 = vld [vmem:[%s0 + $0x90] sm:$0xf]
  %v3253 = vmul.bf16 %v3220, %v901
  %v3254 = vmul.bf16 %v3221, %v911
  %v3255 = vmul.bf16 %v3222, %v921
  %v3256 = vmul.bf16 %v3223, %v931
  %v3257 = vmul.bf16 %v3224, %v941
  %v3258 = vmul.bf16 %v3225, %v951
  %v3259 = vmul.bf16 %v3226, %v961
  %v3260 = vmul.bf16 %v3227, %v971
  %v3261 = vmul.bf16 %v3228, %v981
  %v3262 = vmul.bf16 %v3229, %v991
  %v3263 = vmul.bf16 %v3230, %v1001
  %v3264 = vmul.bf16 %v3231, %v1011
  %v3265 = vmul.bf16 %v3232, %v1021
  %v3266 = vmul.bf16 %v3233, %v1031
  %v3267 = vmul.bf16 %v3234, %v1041
  %v3268 = vmul.bf16 %v3235, %v1051
  %v3269 = vmul.bf16 %v3236, %v1061
  %v3270 = vmul.bf16 %v3237, %v1071
  %v3271 = vmul.bf16 %v3238, %v1081
  %v3272 = vmul.bf16 %v3239, %v1091
  %v3273 = vmul.bf16 %v3240, %v1101
  %v3274 = vmul.bf16 %v3241, %v1111
  %v3275 = vmul.bf16 %v3242, %v1121
  %v3276 = vmul.bf16 %v3243, %v1131
  %v3277 = vmul.bf16 %v3244, %v1141
  %v3278 = vmul.bf16 %v3245, %v1151
  %v3279 = vmul.bf16 %v3246, %v1161
  %v3280 = vmul.bf16 %v3247, %v1171
  %v3281 = vmul.bf16 %v3248, %v1181
  %v3282 = vmul.bf16 %v3249, %v1191
  %v3283 = vmul.bf16 %v3250, %v1201
  %v3284 = vmul.bf16 %v3251, %v1211
  %v3285 = vmul.bf16 %v3252, %v1216
  %v3319 = vunpack.c.l.b16 %v3253
  %v3320 = vunpack.c.l.b16 %v3254
  %v3321 = vunpack.c.l.b16 %v3255
  %v3322 = vunpack.c.l.b16 %v3256
  %v3323 = vunpack.c.l.b16 %v3257
  %v3324 = vunpack.c.l.b16 %v3258
  %v3325 = vunpack.c.l.b16 %v3259
  %v3326 = vunpack.c.l.b16 %v3260
  %v3327 = vunpack.c.l.b16 %v3261
  %v3328 = vunpack.c.l.b16 %v3262
  %v3329 = vunpack.c.l.b16 %v3263
  %v3330 = vunpack.c.l.b16 %v3264
  %v3331 = vunpack.c.l.b16 %v3265
  %v3332 = vunpack.c.l.b16 %v3266
  %v3333 = vunpack.c.l.b16 %v3267
  %v3334 = vunpack.c.l.b16 %v3268
  %v3335 = vunpack.c.l.b16 %v3269
  %v3336 = vunpack.c.l.b16 %v3270
  %v3337 = vunpack.c.l.b16 %v3271
  %v3338 = vunpack.c.l.b16 %v3272
  %v3339 = vunpack.c.l.b16 %v3273
  %v3340 = vunpack.c.l.b16 %v3274
  %v3341 = vunpack.c.l.b16 %v3275
  %v3342 = vunpack.c.l.b16 %v3276
  %v3343 = vunpack.c.l.b16 %v3277
  %v3344 = vunpack.c.l.b16 %v3278
  %v3345 = vunpack.c.l.b16 %v3279
  %v3346 = vunpack.c.l.b16 %v3280
  %v3347 = vunpack.c.l.b16 %v3281
  %v3348 = vunpack.c.l.b16 %v3282
  %v3349 = vunpack.c.l.b16 %v3283
  %v3350 = vunpack.c.l.b16 %v3284
  %v3351 = vunpack.c.l.b16 %v3285
  %v3352 = vpack.c.b16 %v3320, %v3319
  %v3353 = vpack.c.b16 %v3322, %v3321
  %v3354 = vpack.c.b16 %v3324, %v3323
  %v3355 = vpack.c.b16 %v3326, %v3325
  %v3356 = vpack.c.b16 %v3328, %v3327
  %v3357 = vpack.c.b16 %v3330, %v3329
  %v3358 = vpack.c.b16 %v3332, %v3331
  %v3359 = vpack.c.b16 %v3334, %v3333
  %v3360 = vpack.c.b16 %v3336, %v3335
  %v3361 = vpack.c.b16 %v3338, %v3337
  %v3362 = vpack.c.b16 %v3340, %v3339
  %v3363 = vpack.c.b16 %v3342, %v3341
  %v3364 = vpack.c.b16 %v3344, %v3343
  %v3365 = vpack.c.b16 %v3346, %v3345
  %v3366 = vpack.c.b16 %v3348, %v3347
  %v3367 = vpack.c.b16 %v3350, %v3349
  %v3368 = vpack.c.b16 %v3351, %v3351
  %v3370 = vshrl.u32 %v3352, 16
  %v3372 = vrot.slane %v3370, 3
  %v3373 = vshll.u32 %v3352, 16
  %v3375 = vrot.slane %v3373, 4
  %v3376 = vor.u32 %v3372, %v3375
  %v3378 = vshrl.u32 %v3353, 16
  %v3380 = vrot.slane %v3378, 3
  %v3381 = vshll.u32 %v3353, 16
  %v3383 = vrot.slane %v3381, 4
  %v3384 = vor.u32 %v3380, %v3383
  %v3385 = vsel %vm1366, %v3376, %v3384
  %v3387 = vshrl.u32 %v3354, 16
  %v3389 = vrot.slane %v3387, 3
  %v3390 = vshll.u32 %v3354, 16
  %v3392 = vrot.slane %v3390, 4
  %v3393 = vor.u32 %v3389, %v3392
  %v3394 = vsel %vm1366, %v3384, %v3393
  %v3396 = vshrl.u32 %v3355, 16
  %v3398 = vrot.slane %v3396, 3
  %v3399 = vshll.u32 %v3355, 16
  %v3401 = vrot.slane %v3399, 4
  %v3402 = vor.u32 %v3398, %v3401
  %v3403 = vsel %vm1366, %v3393, %v3402
  %v3405 = vshrl.u32 %v3356, 16
  %v3407 = vrot.slane %v3405, 3
  %v3408 = vshll.u32 %v3356, 16
  %v3410 = vrot.slane %v3408, 4
  %v3411 = vor.u32 %v3407, %v3410
  %v3412 = vsel %vm1366, %v3402, %v3411
  %v3414 = vshrl.u32 %v3357, 16
  %v3416 = vrot.slane %v3414, 3
  %v3417 = vshll.u32 %v3357, 16
  %v3419 = vrot.slane %v3417, 4
  %v3420 = vor.u32 %v3416, %v3419
  %v3421 = vsel %vm1366, %v3411, %v3420
  %v3423 = vshrl.u32 %v3358, 16
  %v3425 = vrot.slane %v3423, 3
  %v3426 = vshll.u32 %v3358, 16
  %v3428 = vrot.slane %v3426, 4
  %v3429 = vor.u32 %v3425, %v3428
  %v3430 = vsel %vm1366, %v3420, %v3429
  %v3432 = vshrl.u32 %v3359, 16
  %v3434 = vrot.slane %v3432, 3
  %v3435 = vshll.u32 %v3359, 16
  %v3437 = vrot.slane %v3435, 4
  %v3438 = vor.u32 %v3434, %v3437
  %v3439 = vsel %vm1366, %v3429, %v3438
  %v3441 = vshrl.u32 %v3360, 16
  %v3443 = vrot.slane %v3441, 3
  %v3444 = vshll.u32 %v3360, 16
  %v3446 = vrot.slane %v3444, 4
  %v3447 = vor.u32 %v3443, %v3446
  %v3448 = vsel %vm1366, %v3438, %v3447
  %v3450 = vshrl.u32 %v3361, 16
  %v3452 = vrot.slane %v3450, 3
  %v3453 = vshll.u32 %v3361, 16
  %v3455 = vrot.slane %v3453, 4
  %v3456 = vor.u32 %v3452, %v3455
  %v3457 = vsel %vm1366, %v3447, %v3456
  %v3459 = vshrl.u32 %v3362, 16
  %v3461 = vrot.slane %v3459, 3
  %v3462 = vshll.u32 %v3362, 16
  %v3464 = vrot.slane %v3462, 4
  %v3465 = vor.u32 %v3461, %v3464
  %v3466 = vsel %vm1366, %v3456, %v3465
  %v3468 = vshrl.u32 %v3363, 16
  %v3470 = vrot.slane %v3468, 3
  %v3471 = vshll.u32 %v3363, 16
  %v3473 = vrot.slane %v3471, 4
  %v3474 = vor.u32 %v3470, %v3473
  %v3475 = vsel %vm1366, %v3465, %v3474
  %v3477 = vshrl.u32 %v3364, 16
  %v3479 = vrot.slane %v3477, 3
  %v3480 = vshll.u32 %v3364, 16
  %v3482 = vrot.slane %v3480, 4
  %v3483 = vor.u32 %v3479, %v3482
  %v3484 = vsel %vm1366, %v3474, %v3483
  %v3486 = vshrl.u32 %v3365, 16
  %v3488 = vrot.slane %v3486, 3
  %v3489 = vshll.u32 %v3365, 16
  %v3491 = vrot.slane %v3489, 4
  %v3492 = vor.u32 %v3488, %v3491
  %v3493 = vsel %vm1366, %v3483, %v3492
  %v3495 = vshrl.u32 %v3366, 16
  %v3497 = vrot.slane %v3495, 3
  %v3498 = vshll.u32 %v3366, 16
  %v3500 = vrot.slane %v3498, 4
  %v3501 = vor.u32 %v3497, %v3500
  %v3502 = vsel %vm1366, %v3492, %v3501
  %v3504 = vshrl.u32 %v3367, 16
  %v3506 = vrot.slane %v3504, 3
  %v3507 = vshll.u32 %v3367, 16
  %v3509 = vrot.slane %v3507, 4
  %v3510 = vor.u32 %v3506, %v3509
  %v3511 = vsel %vm1366, %v3501, %v3510
  %v3513 = vshrl.u32 %v3368, 16
  %v3515 = vrot.slane %v3513, 3
  %v3516 = vshll.u32 %v3368, 16
  %v3518 = vrot.slane %v3516, 4
  %v3519 = vor.u32 %v3515, %v3518
  %v3520 = vsel %vm1366, %v3510, %v3519
  %3537 = vst.msk [vmem:[#allocation2 + $0x18] sm:$0xff] %vm1535, %v3385
  %3538 = vst.msk [vmem:[#allocation2 + $0x40] sm:$0xff] %vm1535, %v3394
  %3539 = vst.msk [vmem:[#allocation2 + $0x68] sm:$0xff] %vm1535, %v3403
  %3540 = vst.msk [vmem:[#allocation2 + $0x90] sm:$0xff] %vm1535, %v3412
  %3541 = vst.msk [vmem:[#allocation2 + $0xb8] sm:$0xff] %vm1535, %v3421
  %3542 = vst.msk [vmem:[#allocation2 + $0xe0] sm:$0xff] %vm1535, %v3430
  %3543 = vst.msk [vmem:[#allocation2 + $0x108] sm:$0xff] %vm1535, %v3439
  %3544 = vst.msk [vmem:[#allocation2 + $0x130] sm:$0xff] %vm1535, %v3448
  %3545 = vst.msk [vmem:[#allocation2 + $0x158] sm:$0xff] %vm1535, %v3457
  %3546 = vst.msk [vmem:[#allocation2 + $0x180] sm:$0xff] %vm1535, %v3466
  %3547 = vst.msk [vmem:[#allocation2 + $0x1a8] sm:$0xff] %vm1535, %v3475
  %3548 = vst.msk [vmem:[#allocation2 + $0x1d0] sm:$0xff] %vm1535, %v3484
  %3549 = vst.msk [vmem:[#allocation2 + $0x1f8] sm:$0xff] %vm1535, %v3493
  %3550 = vst.msk [vmem:[#allocation2 + $0x220] sm:$0xff] %vm1535, %v3502
  %3551 = vst.msk [vmem:[#allocation2 + $0x248] sm:$0xff] %vm1535, %v3511
  %3552 = vst.msk [vmem:[#allocation2 + $0x270] sm:$0xff] %vm1535, %v3520
  %v3553 = vld [vmem:[%s0 + $0x14] sm:$0xf]
  %v3554 = vld [vmem:[%s0 + $0x18] sm:$0xf]
  %v3555 = vld [vmem:[%s0 + $0x1c] sm:$0xf]
  %v3556 = vld [vmem:[%s0 + $0x20] sm:$0xf]
  %v3557 = vld [vmem:[%s0 + $0x24] sm:$0xf]
  %v3558 = vld [vmem:[%s0 + $0x28] sm:$0xf]
  %v3559 = vld [vmem:[%s0 + $0x2c] sm:$0xf]
  %v3560 = vld [vmem:[%s0 + $0x30] sm:$0xf]
  %v3561 = vld [vmem:[%s0 + $0x34] sm:$0xf]
  %v3562 = vld [vmem:[%s0 + $0x38] sm:$0xf]
  %v3563 = vld [vmem:[%s0 + $0x3c] sm:$0xf]
  %v3564 = vld [vmem:[%s0 + $0x40] sm:$0xf]
  %v3565 = vld [vmem:[%s0 + $0x44] sm:$0xf]
  %v3566 = vld [vmem:[%s0 + $0x48] sm:$0xf]
  %v3567 = vld [vmem:[%s0 + $0x4c] sm:$0xf]
  %v3568 = vld [vmem:[%s0 + $0x50] sm:$0xf]
  %v3569 = vld [vmem:[%s0 + $0x54] sm:$0xf]
  %v3570 = vld [vmem:[%s0 + $0x58] sm:$0xf]
  %v3571 = vld [vmem:[%s0 + $0x5c] sm:$0xf]
  %v3572 = vld [vmem:[%s0 + $0x60] sm:$0xf]
  %v3573 = vld [vmem:[%s0 + $0x64] sm:$0xf]
  %v3574 = vld [vmem:[%s0 + $0x68] sm:$0xf]
  %v3575 = vld [vmem:[%s0 + $0x6c] sm:$0xf]
  %v3576 = vld [vmem:[%s0 + $0x70] sm:$0xf]
  %v3577 = vld [vmem:[%s0 + $0x74] sm:$0xf]
  %v3578 = vld [vmem:[%s0 + $0x78] sm:$0xf]
  %v3579 = vld [vmem:[%s0 + $0x7c] sm:$0xf]
  %v3580 = vld [vmem:[%s0 + $0x80] sm:$0xf]
  %v3581 = vld [vmem:[%s0 + $0x84] sm:$0xf]
  %v3582 = vld [vmem:[%s0 + $0x88] sm:$0xf]
  %v3583 = vld [vmem:[%s0 + $0x8c] sm:$0xf]
  %v3584 = vld [vmem:[%s0 + $0x90] sm:$0xf]
  %v3617 = vunpack.c.l.b16 %v3553
  %v3618 = vunpack.c.l.b16 %v3554
  %v3619 = vunpack.c.l.b16 %v3555
  %v3620 = vunpack.c.l.b16 %v3556
  %v3621 = vunpack.c.l.b16 %v3557
  %v3622 = vunpack.c.l.b16 %v3558
  %v3623 = vunpack.c.l.b16 %v3559
  %v3624 = vunpack.c.l.b16 %v3560
  %v3625 = vunpack.c.l.b16 %v3561
  %v3626 = vunpack.c.l.b16 %v3562
  %v3627 = vunpack.c.l.b16 %v3563
  %v3628 = vunpack.c.l.b16 %v3564
  %v3629 = vunpack.c.l.b16 %v3565
  %v3630 = vunpack.c.l.b16 %v3566
  %v3631 = vunpack.c.l.b16 %v3567
  %v3632 = vunpack.c.l.b16 %v3568
  %v3633 = vunpack.c.l.b16 %v3569
  %v3634 = vunpack.c.l.b16 %v3570
  %v3635 = vunpack.c.l.b16 %v3571
  %v3636 = vunpack.c.l.b16 %v3572
  %v3637 = vunpack.c.l.b16 %v3573
  %v3638 = vunpack.c.l.b16 %v3574
  %v3639 = vunpack.c.l.b16 %v3575
  %v3640 = vunpack.c.l.b16 %v3576
  %v3641 = vunpack.c.l.b16 %v3577
  %v3642 = vunpack.c.l.b16 %v3578
  %v3643 = vunpack.c.l.b16 %v3579
  %v3644 = vunpack.c.l.b16 %v3580
  %v3645 = vunpack.c.l.b16 %v3581
  %v3646 = vunpack.c.l.b16 %v3582
  %v3647 = vunpack.c.l.b16 %v3583
  %v3648 = vunpack.c.l.b16 %v3584
  %v3649 = vpack.c.b16 %v3618, %v3617
  %v3650 = vpack.c.b16 %v3620, %v3619
  %v3651 = vpack.c.b16 %v3622, %v3621
  %v3652 = vpack.c.b16 %v3624, %v3623
  %v3653 = vpack.c.b16 %v3626, %v3625
  %v3654 = vpack.c.b16 %v3628, %v3627
  %v3655 = vpack.c.b16 %v3630, %v3629
  %v3656 = vpack.c.b16 %v3632, %v3631
  %v3657 = vpack.c.b16 %v3634, %v3633
  %v3658 = vpack.c.b16 %v3636, %v3635
  %v3659 = vpack.c.b16 %v3638, %v3637
  %v3660 = vpack.c.b16 %v3640, %v3639
  %v3661 = vpack.c.b16 %v3642, %v3641
  %v3662 = vpack.c.b16 %v3644, %v3643
  %v3663 = vpack.c.b16 %v3646, %v3645
  %v3664 = vpack.c.b16 %v3648, %v3647
  %3665 = vrot.lane.b32.xlu0 %v3649, 64
  %v3666 = vpop.permute.xlu0 %3665
  %3667 = vrot.lane.b32.xlu0 %v3650, 64
  %v3668 = vpop.permute.xlu0 %3667
  %3669 = vrot.lane.b32.xlu0 %v3651, 64
  %v3670 = vpop.permute.xlu0 %3669
  %3671 = vrot.lane.b32.xlu0 %v3652, 64
  %v3672 = vpop.permute.xlu0 %3671
  %3673 = vrot.lane.b32.xlu0 %v3653, 64
  %v3674 = vpop.permute.xlu0 %3673
  %3675 = vrot.lane.b32.xlu0 %v3654, 64
  %v3676 = vpop.permute.xlu0 %3675
  %3677 = vrot.lane.b32.xlu0 %v3655, 64
  %v3678 = vpop.permute.xlu0 %3677
  %3679 = vrot.lane.b32.xlu0 %v3656, 64
  %v3680 = vpop.permute.xlu0 %3679
  %3681 = vrot.lane.b32.xlu0 %v3657, 64
  %v3682 = vpop.permute.xlu0 %3681
  %3683 = vrot.lane.b32.xlu0 %v3658, 64
  %v3684 = vpop.permute.xlu0 %3683
  %3685 = vrot.lane.b32.xlu0 %v3659, 64
  %v3686 = vpop.permute.xlu0 %3685
  %3687 = vrot.lane.b32.xlu0 %v3660, 64
  %v3688 = vpop.permute.xlu0 %3687
  %3689 = vrot.lane.b32.xlu0 %v3661, 64
  %v3690 = vpop.permute.xlu0 %3689
  %3691 = vrot.lane.b32.xlu0 %v3662, 64
  %v3692 = vpop.permute.xlu0 %3691
  %3693 = vrot.lane.b32.xlu0 %v3663, 64
  %v3694 = vpop.permute.xlu0 %3693
  %3695 = vrot.lane.b32.xlu0 %v3664, 64
  %v3696 = vpop.permute.xlu0 %3695
  %3713 = vst.msk [vmem:[#allocation2 + $0x18] sm:$0xff] %vm1712, %v3666
  %3714 = vst.msk [vmem:[#allocation2 + $0x40] sm:$0xff] %vm1712, %v3668
  %3715 = vst.msk [vmem:[#allocation2 + $0x68] sm:$0xff] %vm1712, %v3670
  %3716 = vst.msk [vmem:[#allocation2 + $0x90] sm:$0xff] %vm1712, %v3672
  %3717 = vst.msk [vmem:[#allocation2 + $0xb8] sm:$0xff] %vm1712, %v3674
  %3718 = vst.msk [vmem:[#allocation2 + $0xe0] sm:$0xff] %vm1712, %v3676
  %3719 = vst.msk [vmem:[#allocation2 + $0x108] sm:$0xff] %vm1712, %v3678
  %3720 = vst.msk [vmem:[#allocation2 + $0x130] sm:$0xff] %vm1712, %v3680
  %3721 = vst.msk [vmem:[#allocation2 + $0x158] sm:$0xff] %vm1712, %v3682
  %3722 = vst.msk [vmem:[#allocation2 + $0x180] sm:$0xff] %vm1712, %v3684
  %3723 = vst.msk [vmem:[#allocation2 + $0x1a8] sm:$0xff] %vm1712, %v3686
  %3724 = vst.msk [vmem:[#allocation2 + $0x1d0] sm:$0xff] %vm1712, %v3688
  %3725 = vst.msk [vmem:[#allocation2 + $0x1f8] sm:$0xff] %vm1712, %v3690
  %3726 = vst.msk [vmem:[#allocation2 + $0x220] sm:$0xff] %vm1712, %v3692
  %3727 = vst.msk [vmem:[#allocation2 + $0x248] sm:$0xff] %vm1712, %v3694
  %3728 = vst.msk [vmem:[#allocation2 + $0x270] sm:$0xff] %vm1712, %v3696
  %v3729 = vld [vmem:[%s0 + $0x14] sm:$0xf]
  %v3730 = vld [vmem:[%s0 + $0x18] sm:$0xf]
  %v3731 = vld [vmem:[%s0 + $0x1c] sm:$0xf]
  %v3732 = vld [vmem:[%s0 + $0x20] sm:$0xf]
  %v3733 = vld [vmem:[%s0 + $0x24] sm:$0xf]
  %v3734 = vld [vmem:[%s0 + $0x28] sm:$0xf]
  %v3735 = vld [vmem:[%s0 + $0x2c] sm:$0xf]
  %v3736 = vld [vmem:[%s0 + $0x30] sm:$0xf]
  %v3737 = vld [vmem:[%s0 + $0x34] sm:$0xf]
  %v3738 = vld [vmem:[%s0 + $0x38] sm:$0xf]
  %v3739 = vld [vmem:[%s0 + $0x3c] sm:$0xf]
  %v3740 = vld [vmem:[%s0 + $0x40] sm:$0xf]
  %v3741 = vld [vmem:[%s0 + $0x44] sm:$0xf]
  %v3742 = vld [vmem:[%s0 + $0x48] sm:$0xf]
  %v3743 = vld [vmem:[%s0 + $0x4c] sm:$0xf]
  %v3744 = vld [vmem:[%s0 + $0x50] sm:$0xf]
  %v3745 = vld [vmem:[%s0 + $0x54] sm:$0xf]
  %v3746 = vld [vmem:[%s0 + $0x58] sm:$0xf]
  %v3747 = vld [vmem:[%s0 + $0x5c] sm:$0xf]
  %v3748 = vld [vmem:[%s0 + $0x60] sm:$0xf]
  %v3749 = vld [vmem:[%s0 + $0x64] sm:$0xf]
  %v3750 = vld [vmem:[%s0 + $0x68] sm:$0xf]
  %v3751 = vld [vmem:[%s0 + $0x6c] sm:$0xf]
  %v3752 = vld [vmem:[%s0 + $0x70] sm:$0xf]
  %v3753 = vld [vmem:[%s0 + $0x74] sm:$0xf]
  %v3754 = vld [vmem:[%s0 + $0x78] sm:$0xf]
  %v3755 = vld [vmem:[%s0 + $0x7c] sm:$0xf]
  %v3756 = vld [vmem:[%s0 + $0x80] sm:$0xf]
  %v3757 = vld [vmem:[%s0 + $0x84] sm:$0xf]
  %v3758 = vld [vmem:[%s0 + $0x88] sm:$0xf]
  %v3759 = vld [vmem:[%s0 + $0x8c] sm:$0xf]
  %v3760 = vld [vmem:[%s0 + $0x90] sm:$0xf]
  %v3761 = vld [vmem:[%s0 + $0x94] sm:$0x1]
  %v3762 = vmul.bf16 %v3729, %v1771
  %v3763 = vmul.bf16 %v3730, %v1780
  %v3764 = vmul.bf16 %v3731, %v1789
  %v3765 = vmul.bf16 %v3732, %v1798
  %v3766 = vmul.bf16 %v3733, %v1807
  %v3767 = vmul.bf16 %v3734, %v1816
  %v3768 = vmul.bf16 %v3735, %v1825
  %v3769 = vmul.bf16 %v3736, %v1834
  %v3770 = vmul.bf16 %v3737, %v1843
  %v3771 = vmul.bf16 %v3738, %v1852
  %v3772 = vmul.bf16 %v3739, %v1861
  %v3773 = vmul.bf16 %v3740, %v1870
  %v3774 = vmul.bf16 %v3741, %v1879
  %v3775 = vmul.bf16 %v3742, %v1888
  %v3776 = vmul.bf16 %v3743, %v1897
  %v3777 = vmul.bf16 %v3744, %v1906
  %v3778 = vmul.bf16 %v3745, %v1915
  %v3779 = vmul.bf16 %v3746, %v1924
  %v3780 = vmul.bf16 %v3747, %v1933
  %v3781 = vmul.bf16 %v3748, %v1942
  %v3782 = vmul.bf16 %v3749, %v1951
  %v3783 = vmul.bf16 %v3750, %v1960
  %v3784 = vmul.bf16 %v3751, %v1969
  %v3785 = vmul.bf16 %v3752, %v1978
  %v3786 = vmul.bf16 %v3753, %v1987
  %v3787 = vmul.bf16 %v3754, %v1996
  %v3788 = vmul.bf16 %v3755, %v2005
  %v3789 = vmul.bf16 %v3756, %v2014
  %v3790 = vmul.bf16 %v3757, %v2023
  %v3791 = vmul.bf16 %v3758, %v2032
  %v3792 = vmul.bf16 %v3759, %v2041
  %v3793 = vmul.bf16 %v3760, %v2050
  %v3794 = vmul.bf16 %v3761, %v2051
  %v3828 = vunpack.c.l.b16 %v3762
  %v3829 = vunpack.c.l.b16 %v3763
  %v3830 = vunpack.c.l.b16 %v3764
  %v3831 = vunpack.c.l.b16 %v3765
  %v3832 = vunpack.c.l.b16 %v3766
  %v3833 = vunpack.c.l.b16 %v3767
  %v3834 = vunpack.c.l.b16 %v3768
  %v3835 = vunpack.c.l.b16 %v3769
  %v3836 = vunpack.c.l.b16 %v3770
  %v3837 = vunpack.c.l.b16 %v3771
  %v3838 = vunpack.c.l.b16 %v3772
  %v3839 = vunpack.c.l.b16 %v3773
  %v3840 = vunpack.c.l.b16 %v3774
  %v3841 = vunpack.c.l.b16 %v3775
  %v3842 = vunpack.c.l.b16 %v3776
  %v3843 = vunpack.c.l.b16 %v3777
  %v3844 = vunpack.c.l.b16 %v3778
  %v3845 = vunpack.c.l.b16 %v3779
  %v3846 = vunpack.c.l.b16 %v3780
  %v3847 = vunpack.c.l.b16 %v3781
  %v3848 = vunpack.c.l.b16 %v3782
  %v3849 = vunpack.c.l.b16 %v3783
  %v3850 = vunpack.c.l.b16 %v3784
  %v3851 = vunpack.c.l.b16 %v3785
  %v3852 = vunpack.c.l.b16 %v3786
  %v3853 = vunpack.c.l.b16 %v3787
  %v3854 = vunpack.c.l.b16 %v3788
  %v3855 = vunpack.c.l.b16 %v3789
  %v3856 = vunpack.c.l.b16 %v3790
  %v3857 = vunpack.c.l.b16 %v3791
  %v3858 = vunpack.c.l.b16 %v3792
  %v3859 = vunpack.c.l.b16 %v3793
  %v3860 = vunpack.c.l.b16 %v3794
  %v3861 = vpack.c.b16 %v3829, %v3828
  %v3862 = vpack.c.b16 %v3831, %v3830
  %v3863 = vpack.c.b16 %v3833, %v3832
  %v3864 = vpack.c.b16 %v3835, %v3834
  %v3865 = vpack.c.b16 %v3837, %v3836
  %v3866 = vpack.c.b16 %v3839, %v3838
  %v3867 = vpack.c.b16 %v3841, %v3840
  %v3868 = vpack.c.b16 %v3843, %v3842
  %v3869 = vpack.c.b16 %v3845, %v3844
  %v3870 = vpack.c.b16 %v3847, %v3846
  %v3871 = vpack.c.b16 %v3849, %v3848
  %v3872 = vpack.c.b16 %v3851, %v3850
  %v3873 = vpack.c.b16 %v3853, %v3852
  %v3874 = vpack.c.b16 %v3855, %v3854
  %v3875 = vpack.c.b16 %v3857, %v3856
  %v3876 = vpack.c.b16 %v3859, %v3858
  %v3877 = vpack.c.b16 %v3860, %v3860
  %v3879 = vshrl.u32 %v3861, 16
  %v3881 = vshll.u32 %v3861, 16
  %v3883 = vrot.slane %v3881, 1
  %v3884 = vor.u32 %v3879, %v3883
  %v3886 = vshll.u32 %v3862, 16
  %v3888 = vrot.slane %v3886, 1
  %v3889 = vsel %vm2201, %v3884, %v3888
  %v3890 = vshrl.u32 %v3862, 16
  %v3892 = vor.u32 %v3890, %v3888
  %v3894 = vshll.u32 %v3863, 16
  %v3896 = vrot.slane %v3894, 1
  %v3897 = vsel %vm2201, %v3892, %v3896
  %v3898 = vshrl.u32 %v3863, 16
  %v3900 = vor.u32 %v3898, %v3896
  %v3902 = vshll.u32 %v3864, 16
  %v3904 = vrot.slane %v3902, 1
  %v3905 = vsel %vm2201, %v3900, %v3904
  %v3906 = vshrl.u32 %v3864, 16
  %v3908 = vor.u32 %v3906, %v3904
  %v3910 = vshll.u32 %v3865, 16
  %v3912 = vrot.slane %v3910, 1
  %v3913 = vsel %vm2201, %v3908, %v3912
  %v3914 = vshrl.u32 %v3865, 16
  %v3916 = vor.u32 %v3914, %v3912
  %v3918 = vshll.u32 %v3866, 16
  %v3920 = vrot.slane %v3918, 1
  %v3921 = vsel %vm2201, %v3916, %v3920
  %v3922 = vshrl.u32 %v3866, 16
  %v3924 = vor.u32 %v3922, %v3920
  %v3926 = vshll.u32 %v3867, 16
  %v3928 = vrot.slane %v3926, 1
  %v3929 = vsel %vm2201, %v3924, %v3928
  %v3930 = vshrl.u32 %v3867, 16
  %v3932 = vor.u32 %v3930, %v3928
  %v3934 = vshll.u32 %v3868, 16
  %v3936 = vrot.slane %v3934, 1
  %v3937 = vsel %vm2201, %v3932, %v3936
  %v3938 = vshrl.u32 %v3868, 16
  %v3940 = vor.u32 %v3938, %v3936
  %v3942 = vshll.u32 %v3869, 16
  %v3944 = vrot.slane %v3942, 1
  %v3945 = vsel %vm2201, %v3940, %v3944
  %v3946 = vshrl.u32 %v3869, 16
  %v3948 = vor.u32 %v3946, %v3944
  %v3950 = vshll.u32 %v3870, 16
  %v3952 = vrot.slane %v3950, 1
  %v3953 = vsel %vm2201, %v3948, %v3952
  %v3954 = vshrl.u32 %v3870, 16
  %v3956 = vor.u32 %v3954, %v3952
  %v3958 = vshll.u32 %v3871, 16
  %v3960 = vrot.slane %v3958, 1
  %v3961 = vsel %vm2201, %v3956, %v3960
  %v3962 = vshrl.u32 %v3871, 16
  %v3964 = vor.u32 %v3962, %v3960
  %v3966 = vshll.u32 %v3872, 16
  %v3968 = vrot.slane %v3966, 1
  %v3969 = vsel %vm2201, %v3964, %v3968
  %v3970 = vshrl.u32 %v3872, 16
  %v3972 = vor.u32 %v3970, %v3968
  %v3974 = vshll.u32 %v3873, 16
  %v3976 = vrot.slane %v3974, 1
  %v3977 = vsel %vm2201, %v3972, %v3976
  %v3978 = vshrl.u32 %v3873, 16
  %v3980 = vor.u32 %v3978, %v3976
  %v3982 = vshll.u32 %v3874, 16
  %v3984 = vrot.slane %v3982, 1
  %v3985 = vsel %vm2201, %v3980, %v3984
  %v3986 = vshrl.u32 %v3874, 16
  %v3988 = vor.u32 %v3986, %v3984
  %v3990 = vshll.u32 %v3875, 16
  %v3992 = vrot.slane %v3990, 1
  %v3993 = vsel %vm2201, %v3988, %v3992
  %v3994 = vshrl.u32 %v3875, 16
  %v3996 = vor.u32 %v3994, %v3992
  %v3998 = vshll.u32 %v3876, 16
  %v4000 = vrot.slane %v3998, 1
  %v4001 = vsel %vm2201, %v3996, %v4000
  %v4002 = vshrl.u32 %v3876, 16
  %v4004 = vor.u32 %v4002, %v4000
  %v4006 = vshll.u32 %v3877, 16
  %v4008 = vrot.slane %v4006, 1
  %v4009 = vsel %vm2201, %v4004, %v4008
  %4026 = vst.msk [vmem:[#allocation2 + $0x20] sm:$0xff] %vm1535, %v3889
  %4027 = vst.msk [vmem:[#allocation2 + $0x48] sm:$0xff] %vm1535, %v3897
  %4028 = vst.msk [vmem:[#allocation2 + $0x70] sm:$0xff] %vm1535, %v3905
  %4029 = vst.msk [vmem:[#allocation2 + $0x98] sm:$0xff] %vm1535, %v3913
  %4030 = vst.msk [vmem:[#allocation2 + $0xc0] sm:$0xff] %vm1535, %v3921
  %4031 = vst.msk [vmem:[#allocation2 + $0xe8] sm:$0xff] %vm1535, %v3929
  %4032 = vst.msk [vmem:[#allocation2 + $0x110] sm:$0xff] %vm1535, %v3937
  %4033 = vst.msk [vmem:[#allocation2 + $0x138] sm:$0xff] %vm1535, %v3945
  %4034 = vst.msk [vmem:[#allocation2 + $0x160] sm:$0xff] %vm1535, %v3953
  %4035 = vst.msk [vmem:[#allocation2 + $0x188] sm:$0xff] %vm1535, %v3961
  %4036 = vst.msk [vmem:[#allocation2 + $0x1b0] sm:$0xff] %vm1535, %v3969
  %4037 = vst.msk [vmem:[#allocation2 + $0x1d8] sm:$0xff] %vm1535, %v3977
  %4038 = vst.msk [vmem:[#allocation2 + $0x200] sm:$0xff] %vm1535, %v3985
  %4039 = vst.msk [vmem:[#allocation2 + $0x228] sm:$0xff] %vm1535, %v3993
  %4040 = vst.msk [vmem:[#allocation2 + $0x250] sm:$0xff] %vm1535, %v4001
  %4041 = vst.msk [vmem:[#allocation2 + $0x278] sm:$0xff] %vm1535, %v4009
  %v4042 = vld [vmem:[%s0 + $0x98] sm:$0x8]
  %v4043 = vld [vmem:[%s0 + $0x9c] sm:$0xf]
  %v4044 = vld [vmem:[%s0 + $0xa0] sm:$0xf]
  %v4045 = vld [vmem:[%s0 + $0xa4] sm:$0xf]
  %v4046 = vld [vmem:[%s0 + $0xa8] sm:$0xf]
  %v4047 = vld [vmem:[%s0 + $0xac] sm:$0xf]
  %v4048 = vld [vmem:[%s0 + $0xb0] sm:$0xf]
  %v4049 = vld [vmem:[%s0 + $0xb4] sm:$0xf]
  %v4050 = vld [vmem:[%s0 + $0xb8] sm:$0xf]
  %v4051 = vld [vmem:[%s0 + $0xbc] sm:$0xf]
  %v4052 = vld [vmem:[%s0 + $0xc0] sm:$0xf]
  %v4053 = vld [vmem:[%s0 + $0xc4] sm:$0xf]
  %v4054 = vld [vmem:[%s0 + $0xc8] sm:$0xf]
  %v4055 = vld [vmem:[%s0 + $0xcc] sm:$0xf]
  %v4056 = vld [vmem:[%s0 + $0xd0] sm:$0xf]
  %v4057 = vld [vmem:[%s0 + $0xd4] sm:$0xf]
  %v4058 = vld [vmem:[%s0 + $0xd8] sm:$0xf]
  %v4059 = vld [vmem:[%s0 + $0xdc] sm:$0xf]
  %v4060 = vld [vmem:[%s0 + $0xe0] sm:$0xf]
  %v4061 = vld [vmem:[%s0 + $0xe4] sm:$0xf]
  %v4062 = vld [vmem:[%s0 + $0xe8] sm:$0xf]
  %v4063 = vld [vmem:[%s0 + $0xec] sm:$0xf]
  %v4064 = vld [vmem:[%s0 + $0xf0] sm:$0xf]
  %v4065 = vld [vmem:[%s0 + $0xf4] sm:$0xf]
  %v4066 = vld [vmem:[%s0 + $0xf8] sm:$0xf]
  %v4067 = vld [vmem:[%s0 + $0xfc] sm:$0xf]
  %v4068 = vld [vmem:[%s0 + $0x100] sm:$0xf]
  %v4069 = vld [vmem:[%s0 + $0x104] sm:$0xf]
  %v4070 = vld [vmem:[%s0 + $0x108] sm:$0xf]
  %v4071 = vld [vmem:[%s0 + $0x10c] sm:$0xf]
  %v4072 = vld [vmem:[%s0 + $0x110] sm:$0xf]
  %v4073 = vld [vmem:[%s0 + $0x114] sm:$0xf]
  %v4074 = vld [vmem:[%s0 + $0x118] sm:$0xf]
  %v4075 = vmul.bf16 %v4042, %v901
  %v4076 = vmul.bf16 %v4043, %v911
  %v4077 = vmul.bf16 %v4044, %v921
  %v4078 = vmul.bf16 %v4045, %v931
  %v4079 = vmul.bf16 %v4046, %v941
  %v4080 = vmul.bf16 %v4047, %v951
  %v4081 = vmul.bf16 %v4048, %v961
  %v4082 = vmul.bf16 %v4049, %v971
  %v4083 = vmul.bf16 %v4050, %v981
  %v4084 = vmul.bf16 %v4051, %v991
  %v4085 = vmul.bf16 %v4052, %v1001
  %v4086 = vmul.bf16 %v4053, %v1011
  %v4087 = vmul.bf16 %v4054, %v1021
  %v4088 = vmul.bf16 %v4055, %v1031
  %v4089 = vmul.bf16 %v4056, %v1041
  %v4090 = vmul.bf16 %v4057, %v1051
  %v4091 = vmul.bf16 %v4058, %v1061
  %v4092 = vmul.bf16 %v4059, %v1071
  %v4093 = vmul.bf16 %v4060, %v1081
  %v4094 = vmul.bf16 %v4061, %v1091
  %v4095 = vmul.bf16 %v4062, %v1101
  %v4096 = vmul.bf16 %v4063, %v1111
  %v4097 = vmul.bf16 %v4064, %v1121
  %v4098 = vmul.bf16 %v4065, %v1131
  %v4099 = vmul.bf16 %v4066, %v1141
  %v4100 = vmul.bf16 %v4067, %v1151
  %v4101 = vmul.bf16 %v4068, %v1161
  %v4102 = vmul.bf16 %v4069, %v1171
  %v4103 = vmul.bf16 %v4070, %v1181
  %v4104 = vmul.bf16 %v4071, %v1191
  %v4105 = vmul.bf16 %v4072, %v1201
  %v4106 = vmul.bf16 %v4073, %v1211
  %v4107 = vmul.bf16 %v4074, %v1216
  %v4141 = vunpack.c.l.b16 %v4075
  %v4142 = vunpack.c.l.b16 %v4076
  %v4143 = vunpack.c.l.b16 %v4077
  %v4144 = vunpack.c.l.b16 %v4078
  %v4145 = vunpack.c.l.b16 %v4079
  %v4146 = vunpack.c.l.b16 %v4080
  %v4147 = vunpack.c.l.b16 %v4081
  %v4148 = vunpack.c.l.b16 %v4082
  %v4149 = vunpack.c.l.b16 %v4083
  %v4150 = vunpack.c.l.b16 %v4084
  %v4151 = vunpack.c.l.b16 %v4085
  %v4152 = vunpack.c.l.b16 %v4086
  %v4153 = vunpack.c.l.b16 %v4087
  %v4154 = vunpack.c.l.b16 %v4088
  %v4155 = vunpack.c.l.b16 %v4089
  %v4156 = vunpack.c.l.b16 %v4090
  %v4157 = vunpack.c.l.b16 %v4091
  %v4158 = vunpack.c.l.b16 %v4092
  %v4159 = vunpack.c.l.b16 %v4093
  %v4160 = vunpack.c.l.b16 %v4094
  %v4161 = vunpack.c.l.b16 %v4095
  %v4162 = vunpack.c.l.b16 %v4096
  %v4163 = vunpack.c.l.b16 %v4097
  %v4164 = vunpack.c.l.b16 %v4098
  %v4165 = vunpack.c.l.b16 %v4099
  %v4166 = vunpack.c.l.b16 %v4100
  %v4167 = vunpack.c.l.b16 %v4101
  %v4168 = vunpack.c.l.b16 %v4102
  %v4169 = vunpack.c.l.b16 %v4103
  %v4170 = vunpack.c.l.b16 %v4104
  %v4171 = vunpack.c.l.b16 %v4105
  %v4172 = vunpack.c.l.b16 %v4106
  %v4173 = vunpack.c.l.b16 %v4107
  %v4174 = vpack.c.b16 %v4142, %v4141
  %v4175 = vpack.c.b16 %v4144, %v4143
  %v4176 = vpack.c.b16 %v4146, %v4145
  %v4177 = vpack.c.b16 %v4148, %v4147
  %v4178 = vpack.c.b16 %v4150, %v4149
  %v4179 = vpack.c.b16 %v4152, %v4151
  %v4180 = vpack.c.b16 %v4154, %v4153
  %v4181 = vpack.c.b16 %v4156, %v4155
  %v4182 = vpack.c.b16 %v4158, %v4157
  %v4183 = vpack.c.b16 %v4160, %v4159
  %v4184 = vpack.c.b16 %v4162, %v4161
  %v4185 = vpack.c.b16 %v4164, %v4163
  %v4186 = vpack.c.b16 %v4166, %v4165
  %v4187 = vpack.c.b16 %v4168, %v4167
  %v4188 = vpack.c.b16 %v4170, %v4169
  %v4189 = vpack.c.b16 %v4172, %v4171
  %v4190 = vpack.c.b16 %v4173, %v4173
  %v4192 = vshrl.u32 %v4174, 16
  %v4194 = vrot.slane %v4192, 3
  %v4195 = vshll.u32 %v4174, 16
  %v4197 = vrot.slane %v4195, 4
  %v4198 = vor.u32 %v4194, %v4197
  %v4200 = vshrl.u32 %v4175, 16
  %v4202 = vrot.slane %v4200, 3
  %v4203 = vshll.u32 %v4175, 16
  %v4205 = vrot.slane %v4203, 4
  %v4206 = vor.u32 %v4202, %v4205
  %v4207 = vsel %vm1366, %v4198, %v4206
  %v4209 = vshrl.u32 %v4176, 16
  %v4211 = vrot.slane %v4209, 3
  %v4212 = vshll.u32 %v4176, 16
  %v4214 = vrot.slane %v4212, 4
  %v4215 = vor.u32 %v4211, %v4214
  %v4216 = vsel %vm1366, %v4206, %v4215
  %v4218 = vshrl.u32 %v4177, 16
  %v4220 = vrot.slane %v4218, 3
  %v4221 = vshll.u32 %v4177, 16
  %v4223 = vrot.slane %v4221, 4
  %v4224 = vor.u32 %v4220, %v4223
  %v4225 = vsel %vm1366, %v4215, %v4224
  %v4227 = vshrl.u32 %v4178, 16
  %v4229 = vrot.slane %v4227, 3
  %v4230 = vshll.u32 %v4178, 16
  %v4232 = vrot.slane %v4230, 4
  %v4233 = vor.u32 %v4229, %v4232
  %v4234 = vsel %vm1366, %v4224, %v4233
  %v4236 = vshrl.u32 %v4179, 16
  %v4238 = vrot.slane %v4236, 3
  %v4239 = vshll.u32 %v4179, 16
  %v4241 = vrot.slane %v4239, 4
  %v4242 = vor.u32 %v4238, %v4241
  %v4243 = vsel %vm1366, %v4233, %v4242
  %v4245 = vshrl.u32 %v4180, 16
  %v4247 = vrot.slane %v4245, 3
  %v4248 = vshll.u32 %v4180, 16
  %v4250 = vrot.slane %v4248, 4
  %v4251 = vor.u32 %v4247, %v4250
  %v4252 = vsel %vm1366, %v4242, %v4251
  %v4254 = vshrl.u32 %v4181, 16
  %v4256 = vrot.slane %v4254, 3
  %v4257 = vshll.u32 %v4181, 16
  %v4259 = vrot.slane %v4257, 4
  %v4260 = vor.u32 %v4256, %v4259
  %v4261 = vsel %vm1366, %v4251, %v4260
  %v4263 = vshrl.u32 %v4182, 16
  %v4265 = vrot.slane %v4263, 3
  %v4266 = vshll.u32 %v4182, 16
  %v4268 = vrot.slane %v4266, 4
  %v4269 = vor.u32 %v4265, %v4268
  %v4270 = vsel %vm1366, %v4260, %v4269
  %v4272 = vshrl.u32 %v4183, 16
  %v4274 = vrot.slane %v4272, 3
  %v4275 = vshll.u32 %v4183, 16
  %v4277 = vrot.slane %v4275, 4
  %v4278 = vor.u32 %v4274, %v4277
  %v4279 = vsel %vm1366, %v4269, %v4278
  %v4281 = vshrl.u32 %v4184, 16
  %v4283 = vrot.slane %v4281, 3
  %v4284 = vshll.u32 %v4184, 16
  %v4286 = vrot.slane %v4284, 4
  %v4287 = vor.u32 %v4283, %v4286
  %v4288 = vsel %vm1366, %v4278, %v4287
  %v4290 = vshrl.u32 %v4185, 16
  %v4292 = vrot.slane %v4290, 3
  %v4293 = vshll.u32 %v4185, 16
  %v4295 = vrot.slane %v4293, 4
  %v4296 = vor.u32 %v4292, %v4295
  %v4297 = vsel %vm1366, %v4287, %v4296
  %v4299 = vshrl.u32 %v4186, 16
  %v4301 = vrot.slane %v4299, 3
  %v4302 = vshll.u32 %v4186, 16
  %v4304 = vrot.slane %v4302, 4
  %v4305 = vor.u32 %v4301, %v4304
  %v4306 = vsel %vm1366, %v4296, %v4305
  %v4308 = vshrl.u32 %v4187, 16
  %v4310 = vrot.slane %v4308, 3
  %v4311 = vshll.u32 %v4187, 16
  %v4313 = vrot.slane %v4311, 4
  %v4314 = vor.u32 %v4310, %v4313
  %v4315 = vsel %vm1366, %v4305, %v4314
  %v4317 = vshrl.u32 %v4188, 16
  %v4319 = vrot.slane %v4317, 3
  %v4320 = vshll.u32 %v4188, 16
  %v4322 = vrot.slane %v4320, 4
  %v4323 = vor.u32 %v4319, %v4322
  %v4324 = vsel %vm1366, %v4314, %v4323
  %v4326 = vshrl.u32 %v4189, 16
  %v4328 = vrot.slane %v4326, 3
  %v4329 = vshll.u32 %v4189, 16
  %v4331 = vrot.slane %v4329, 4
  %v4332 = vor.u32 %v4328, %v4331
  %v4333 = vsel %vm1366, %v4323, %v4332
  %v4335 = vshrl.u32 %v4190, 16
  %v4337 = vrot.slane %v4335, 3
  %v4338 = vshll.u32 %v4190, 16
  %v4340 = vrot.slane %v4338, 4
  %v4341 = vor.u32 %v4337, %v4340
  %v4342 = vsel %vm1366, %v4332, %v4341
  %4359 = vst.msk [vmem:[#allocation2 + $0x280] sm:$0xff] %vm1535, %v4207
  %4360 = vst.msk [vmem:[#allocation2 + $0x2a8] sm:$0xff] %vm1535, %v4216
  %4361 = vst.msk [vmem:[#allocation2 + $0x2d0] sm:$0xff] %vm1535, %v4225
  %4362 = vst.msk [vmem:[#allocation2 + $0x2f8] sm:$0xff] %vm1535, %v4234
  %4363 = vst.msk [vmem:[#allocation2 + $0x320] sm:$0xff] %vm1535, %v4243
  %4364 = vst.msk [vmem:[#allocation2 + $0x348] sm:$0xff] %vm1535, %v4252
  %4365 = vst.msk [vmem:[#allocation2 + $0x370] sm:$0xff] %vm1535, %v4261
  %4366 = vst.msk [vmem:[#allocation2 + $0x398] sm:$0xff] %vm1535, %v4270
  %4367 = vst.msk [vmem:[#allocation2 + $0x3c0] sm:$0xff] %vm1535, %v4279
  %4368 = vst.msk [vmem:[#allocation2 + $0x3e8] sm:$0xff] %vm1535, %v4288
  %4369 = vst.msk [vmem:[#allocation2 + $0x410] sm:$0xff] %vm1535, %v4297
  %4370 = vst.msk [vmem:[#allocation2 + $0x438] sm:$0xff] %vm1535, %v4306
  %4371 = vst.msk [vmem:[#allocation2 + $0x460] sm:$0xff] %vm1535, %v4315
  %4372 = vst.msk [vmem:[#allocation2 + $0x488] sm:$0xff] %vm1535, %v4324
  %4373 = vst.msk [vmem:[#allocation2 + $0x4b0] sm:$0xff] %vm1535, %v4333
  %4374 = vst.msk [vmem:[#allocation2 + $0x4d8] sm:$0xff] %vm1535, %v4342
  %v4375 = vld [vmem:[%s0 + $0x9c] sm:$0xf]
  %v4376 = vld [vmem:[%s0 + $0xa0] sm:$0xf]
  %v4377 = vld [vmem:[%s0 + $0xa4] sm:$0xf]
  %v4378 = vld [vmem:[%s0 + $0xa8] sm:$0xf]
  %v4379 = vld [vmem:[%s0 + $0xac] sm:$0xf]
  %v4380 = vld [vmem:[%s0 + $0xb0] sm:$0xf]
  %v4381 = vld [vmem:[%s0 + $0xb4] sm:$0xf]
  %v4382 = vld [vmem:[%s0 + $0xb8] sm:$0xf]
  %v4383 = vld [vmem:[%s0 + $0xbc] sm:$0xf]
  %v4384 = vld [vmem:[%s0 + $0xc0] sm:$0xf]
  %v4385 = vld [vmem:[%s0 + $0xc4] sm:$0xf]
  %v4386 = vld [vmem:[%s0 + $0xc8] sm:$0xf]
  %v4387 = vld [vmem:[%s0 + $0xcc] sm:$0xf]
  %v4388 = vld [vmem:[%s0 + $0xd0] sm:$0xf]
  %v4389 = vld [vmem:[%s0 + $0xd4] sm:$0xf]
  %v4390 = vld [vmem:[%s0 + $0xd8] sm:$0xf]
  %v4391 = vld [vmem:[%s0 + $0xdc] sm:$0xf]
  %v4392 = vld [vmem:[%s0 + $0xe0] sm:$0xf]
  %v4393 = vld [vmem:[%s0 + $0xe4] sm:$0xf]
  %v4394 = vld [vmem:[%s0 + $0xe8] sm:$0xf]
  %v4395 = vld [vmem:[%s0 + $0xec] sm:$0xf]
  %v4396 = vld [vmem:[%s0 + $0xf0] sm:$0xf]
  %v4397 = vld [vmem:[%s0 + $0xf4] sm:$0xf]
  %v4398 = vld [vmem:[%s0 + $0xf8] sm:$0xf]
  %v4399 = vld [vmem:[%s0 + $0xfc] sm:$0xf]
  %v4400 = vld [vmem:[%s0 + $0x100] sm:$0xf]
  %v4401 = vld [vmem:[%s0 + $0x104] sm:$0xf]
  %v4402 = vld [vmem:[%s0 + $0x108] sm:$0xf]
  %v4403 = vld [vmem:[%s0 + $0x10c] sm:$0xf]
  %v4404 = vld [vmem:[%s0 + $0x110] sm:$0xf]
  %v4405 = vld [vmem:[%s0 + $0x114] sm:$0xf]
  %v4406 = vld [vmem:[%s0 + $0x118] sm:$0xf]
  %v4439 = vunpack.c.l.b16 %v4375
  %v4440 = vunpack.c.l.b16 %v4376
  %v4441 = vunpack.c.l.b16 %v4377
  %v4442 = vunpack.c.l.b16 %v4378
  %v4443 = vunpack.c.l.b16 %v4379
  %v4444 = vunpack.c.l.b16 %v4380
  %v4445 = vunpack.c.l.b16 %v4381
  %v4446 = vunpack.c.l.b16 %v4382
  %v4447 = vunpack.c.l.b16 %v4383
  %v4448 = vunpack.c.l.b16 %v4384
  %v4449 = vunpack.c.l.b16 %v4385
  %v4450 = vunpack.c.l.b16 %v4386
  %v4451 = vunpack.c.l.b16 %v4387
  %v4452 = vunpack.c.l.b16 %v4388
  %v4453 = vunpack.c.l.b16 %v4389
  %v4454 = vunpack.c.l.b16 %v4390
  %v4455 = vunpack.c.l.b16 %v4391
  %v4456 = vunpack.c.l.b16 %v4392
  %v4457 = vunpack.c.l.b16 %v4393
  %v4458 = vunpack.c.l.b16 %v4394
  %v4459 = vunpack.c.l.b16 %v4395
  %v4460 = vunpack.c.l.b16 %v4396
  %v4461 = vunpack.c.l.b16 %v4397
  %v4462 = vunpack.c.l.b16 %v4398
  %v4463 = vunpack.c.l.b16 %v4399
  %v4464 = vunpack.c.l.b16 %v4400
  %v4465 = vunpack.c.l.b16 %v4401
  %v4466 = vunpack.c.l.b16 %v4402
  %v4467 = vunpack.c.l.b16 %v4403
  %v4468 = vunpack.c.l.b16 %v4404
  %v4469 = vunpack.c.l.b16 %v4405
  %v4470 = vunpack.c.l.b16 %v4406
  %v4471 = vpack.c.b16 %v4440, %v4439
  %v4472 = vpack.c.b16 %v4442, %v4441
  %v4473 = vpack.c.b16 %v4444, %v4443
  %v4474 = vpack.c.b16 %v4446, %v4445
  %v4475 = vpack.c.b16 %v4448, %v4447
  %v4476 = vpack.c.b16 %v4450, %v4449
  %v4477 = vpack.c.b16 %v4452, %v4451
  %v4478 = vpack.c.b16 %v4454, %v4453
  %v4479 = vpack.c.b16 %v4456, %v4455
  %v4480 = vpack.c.b16 %v4458, %v4457
  %v4481 = vpack.c.b16 %v4460, %v4459
  %v4482 = vpack.c.b16 %v4462, %v4461
  %v4483 = vpack.c.b16 %v4464, %v4463
  %v4484 = vpack.c.b16 %v4466, %v4465
  %v4485 = vpack.c.b16 %v4468, %v4467
  %v4486 = vpack.c.b16 %v4470, %v4469
  %4487 = vrot.lane.b32.xlu0 %v4471, 64
  %v4488 = vpop.permute.xlu0 %4487
  %4489 = vrot.lane.b32.xlu0 %v4472, 64
  %v4490 = vpop.permute.xlu0 %4489
  %4491 = vrot.lane.b32.xlu0 %v4473, 64
  %v4492 = vpop.permute.xlu0 %4491
  %4493 = vrot.lane.b32.xlu0 %v4474, 64
  %v4494 = vpop.permute.xlu0 %4493
  %4495 = vrot.lane.b32.xlu0 %v4475, 64
  %v4496 = vpop.permute.xlu0 %4495
  %4497 = vrot.lane.b32.xlu0 %v4476, 64
  %v4498 = vpop.permute.xlu0 %4497
  %4499 = vrot.lane.b32.xlu0 %v4477, 64
  %v4500 = vpop.permute.xlu0 %4499
  %4501 = vrot.lane.b32.xlu0 %v4478, 64
  %v4502 = vpop.permute.xlu0 %4501
  %4503 = vrot.lane.b32.xlu0 %v4479, 64
  %v4504 = vpop.permute.xlu0 %4503
  %4505 = vrot.lane.b32.xlu0 %v4480, 64
  %v4506 = vpop.permute.xlu0 %4505
  %4507 = vrot.lane.b32.xlu0 %v4481, 64
  %v4508 = vpop.permute.xlu0 %4507
  %4509 = vrot.lane.b32.xlu0 %v4482, 64
  %v4510 = vpop.permute.xlu0 %4509
  %4511 = vrot.lane.b32.xlu0 %v4483, 64
  %v4512 = vpop.permute.xlu0 %4511
  %4513 = vrot.lane.b32.xlu0 %v4484, 64
  %v4514 = vpop.permute.xlu0 %4513
  %4515 = vrot.lane.b32.xlu0 %v4485, 64
  %v4516 = vpop.permute.xlu0 %4515
  %4517 = vrot.lane.b32.xlu0 %v4486, 64
  %v4518 = vpop.permute.xlu0 %4517
  %4535 = vst.msk [vmem:[#allocation2 + $0x280] sm:$0xff] %vm1712, %v4488
  %4536 = vst.msk [vmem:[#allocation2 + $0x2a8] sm:$0xff] %vm1712, %v4490
  %4537 = vst.msk [vmem:[#allocation2 + $0x2d0] sm:$0xff] %vm1712, %v4492
  %4538 = vst.msk [vmem:[#allocation2 + $0x2f8] sm:$0xff] %vm1712, %v4494
  %4539 = vst.msk [vmem:[#allocation2 + $0x320] sm:$0xff] %vm1712, %v4496
  %4540 = vst.msk [vmem:[#allocation2 + $0x348] sm:$0xff] %vm1712, %v4498
  %4541 = vst.msk [vmem:[#allocation2 + $0x370] sm:$0xff] %vm1712, %v4500
  %4542 = vst.msk [vmem:[#allocation2 + $0x398] sm:$0xff] %vm1712, %v4502
  %4543 = vst.msk [vmem:[#allocation2 + $0x3c0] sm:$0xff] %vm1712, %v4504
  %4544 = vst.msk [vmem:[#allocation2 + $0x3e8] sm:$0xff] %vm1712, %v4506
  %4545 = vst.msk [vmem:[#allocation2 + $0x410] sm:$0xff] %vm1712, %v4508
  %4546 = vst.msk [vmem:[#allocation2 + $0x438] sm:$0xff] %vm1712, %v4510
  %4547 = vst.msk [vmem:[#allocation2 + $0x460] sm:$0xff] %vm1712, %v4512
  %4548 = vst.msk [vmem:[#allocation2 + $0x488] sm:$0xff] %vm1712, %v4514
  %4549 = vst.msk [vmem:[#allocation2 + $0x4b0] sm:$0xff] %vm1712, %v4516
  %4550 = vst.msk [vmem:[#allocation2 + $0x4d8] sm:$0xff] %vm1712, %v4518
  %v4551 = vld [vmem:[%s0 + $0x9c] sm:$0xf]
  %v4552 = vld [vmem:[%s0 + $0xa0] sm:$0xf]
  %v4553 = vld [vmem:[%s0 + $0xa4] sm:$0xf]
  %v4554 = vld [vmem:[%s0 + $0xa8] sm:$0xf]
  %v4555 = vld [vmem:[%s0 + $0xac] sm:$0xf]
  %v4556 = vld [vmem:[%s0 + $0xb0] sm:$0xf]
  %v4557 = vld [vmem:[%s0 + $0xb4] sm:$0xf]
  %v4558 = vld [vmem:[%s0 + $0xb8] sm:$0xf]
  %v4559 = vld [vmem:[%s0 + $0xbc] sm:$0xf]
  %v4560 = vld [vmem:[%s0 + $0xc0] sm:$0xf]
  %v4561 = vld [vmem:[%s0 + $0xc4] sm:$0xf]
  %v4562 = vld [vmem:[%s0 + $0xc8] sm:$0xf]
  %v4563 = vld [vmem:[%s0 + $0xcc] sm:$0xf]
  %v4564 = vld [vmem:[%s0 + $0xd0] sm:$0xf]
  %v4565 = vld [vmem:[%s0 + $0xd4] sm:$0xf]
  %v4566 = vld [vmem:[%s0 + $0xd8] sm:$0xf]
  %v4567 = vld [vmem:[%s0 + $0xdc] sm:$0xf]
  %v4568 = vld [vmem:[%s0 + $0xe0] sm:$0xf]
  %v4569 = vld [vmem:[%s0 + $0xe4] sm:$0xf]
  %v4570 = vld [vmem:[%s0 + $0xe8] sm:$0xf]
  %v4571 = vld [vmem:[%s0 + $0xec] sm:$0xf]
  %v4572 = vld [vmem:[%s0 + $0xf0] sm:$0xf]
  %v4573 = vld [vmem:[%s0 + $0xf4] sm:$0xf]
  %v4574 = vld [vmem:[%s0 + $0xf8] sm:$0xf]
  %v4575 = vld [vmem:[%s0 + $0xfc] sm:$0xf]
  %v4576 = vld [vmem:[%s0 + $0x100] sm:$0xf]
  %v4577 = vld [vmem:[%s0 + $0x104] sm:$0xf]
  %v4578 = vld [vmem:[%s0 + $0x108] sm:$0xf]
  %v4579 = vld [vmem:[%s0 + $0x10c] sm:$0xf]
  %v4580 = vld [vmem:[%s0 + $0x110] sm:$0xf]
  %v4581 = vld [vmem:[%s0 + $0x114] sm:$0xf]
  %v4582 = vld [vmem:[%s0 + $0x118] sm:$0xf]
  %v4583 = vld [vmem:[%s0 + $0x11c] sm:$0x1]
  %v4584 = vmul.bf16 %v4551, %v1771
  %v4585 = vmul.bf16 %v4552, %v1780
  %v4586 = vmul.bf16 %v4553, %v1789
  %v4587 = vmul.bf16 %v4554, %v1798
  %v4588 = vmul.bf16 %v4555, %v1807
  %v4589 = vmul.bf16 %v4556, %v1816
  %v4590 = vmul.bf16 %v4557, %v1825
  %v4591 = vmul.bf16 %v4558, %v1834
  %v4592 = vmul.bf16 %v4559, %v1843
  %v4593 = vmul.bf16 %v4560, %v1852
  %v4594 = vmul.bf16 %v4561, %v1861
  %v4595 = vmul.bf16 %v4562, %v1870
  %v4596 = vmul.bf16 %v4563, %v1879
  %v4597 = vmul.bf16 %v4564, %v1888
  %v4598 = vmul.bf16 %v4565, %v1897
  %v4599 = vmul.bf16 %v4566, %v1906
  %v4600 = vmul.bf16 %v4567, %v1915
  %v4601 = vmul.bf16 %v4568, %v1924
  %v4602 = vmul.bf16 %v4569, %v1933
  %v4603 = vmul.bf16 %v4570, %v1942
  %v4604 = vmul.bf16 %v4571, %v1951
  %v4605 = vmul.bf16 %v4572, %v1960
  %v4606 = vmul.bf16 %v4573, %v1969
  %v4607 = vmul.bf16 %v4574, %v1978
  %v4608 = vmul.bf16 %v4575, %v1987
  %v4609 = vmul.bf16 %v4576, %v1996
  %v4610 = vmul.bf16 %v4577, %v2005
  %v4611 = vmul.bf16 %v4578, %v2014
  %v4612 = vmul.bf16 %v4579, %v2023
  %v4613 = vmul.bf16 %v4580, %v2032
  %v4614 = vmul.bf16 %v4581, %v2041
  %v4615 = vmul.bf16 %v4582, %v2050
  %v4616 = vmul.bf16 %v4583, %v2051
  %v4650 = vunpack.c.l.b16 %v4584
  %v4651 = vunpack.c.l.b16 %v4585
  %v4652 = vunpack.c.l.b16 %v4586
  %v4653 = vunpack.c.l.b16 %v4587
  %v4654 = vunpack.c.l.b16 %v4588
  %v4655 = vunpack.c.l.b16 %v4589
  %v4656 = vunpack.c.l.b16 %v4590
  %v4657 = vunpack.c.l.b16 %v4591
  %v4658 = vunpack.c.l.b16 %v4592
  %v4659 = vunpack.c.l.b16 %v4593
  %v4660 = vunpack.c.l.b16 %v4594
  %v4661 = vunpack.c.l.b16 %v4595
  %v4662 = vunpack.c.l.b16 %v4596
  %v4663 = vunpack.c.l.b16 %v4597
  %v4664 = vunpack.c.l.b16 %v4598
  %v4665 = vunpack.c.l.b16 %v4599
  %v4666 = vunpack.c.l.b16 %v4600
  %v4667 = vunpack.c.l.b16 %v4601
  %v4668 = vunpack.c.l.b16 %v4602
  %v4669 = vunpack.c.l.b16 %v4603
  %v4670 = vunpack.c.l.b16 %v4604
  %v4671 = vunpack.c.l.b16 %v4605
  %v4672 = vunpack.c.l.b16 %v4606
  %v4673 = vunpack.c.l.b16 %v4607
  %v4674 = vunpack.c.l.b16 %v4608
  %v4675 = vunpack.c.l.b16 %v4609
  %v4676 = vunpack.c.l.b16 %v4610
  %v4677 = vunpack.c.l.b16 %v4611
  %v4678 = vunpack.c.l.b16 %v4612
  %v4679 = vunpack.c.l.b16 %v4613
  %v4680 = vunpack.c.l.b16 %v4614
  %v4681 = vunpack.c.l.b16 %v4615
  %v4682 = vunpack.c.l.b16 %v4616
  %v4683 = vpack.c.b16 %v4651, %v4650
  %v4684 = vpack.c.b16 %v4653, %v4652
  %v4685 = vpack.c.b16 %v4655, %v4654
  %v4686 = vpack.c.b16 %v4657, %v4656
  %v4687 = vpack.c.b16 %v4659, %v4658
  %v4688 = vpack.c.b16 %v4661, %v4660
  %v4689 = vpack.c.b16 %v4663, %v4662
  %v4690 = vpack.c.b16 %v4665, %v4664
  %v4691 = vpack.c.b16 %v4667, %v4666
  %v4692 = vpack.c.b16 %v4669, %v4668
  %v4693 = vpack.c.b16 %v4671, %v4670
  %v4694 = vpack.c.b16 %v4673, %v4672
  %v4695 = vpack.c.b16 %v4675, %v4674
  %v4696 = vpack.c.b16 %v4677, %v4676
  %v4697 = vpack.c.b16 %v4679, %v4678
  %v4698 = vpack.c.b16 %v4681, %v4680
  %v4699 = vpack.c.b16 %v4682, %v4682
  %v4701 = vshrl.u32 %v4683, 16
  %v4703 = vshll.u32 %v4683, 16
  %v4705 = vrot.slane %v4703, 1
  %v4706 = vor.u32 %v4701, %v4705
  %v4708 = vshll.u32 %v4684, 16
  %v4710 = vrot.slane %v4708, 1
  %v4711 = vsel %vm2201, %v4706, %v4710
  %v4712 = vshrl.u32 %v4684, 16
  %v4714 = vor.u32 %v4712, %v4710
  %v4716 = vshll.u32 %v4685, 16
  %v4718 = vrot.slane %v4716, 1
  %v4719 = vsel %vm2201, %v4714, %v4718
  %v4720 = vshrl.u32 %v4685, 16
  %v4722 = vor.u32 %v4720, %v4718
  %v4724 = vshll.u32 %v4686, 16
  %v4726 = vrot.slane %v4724, 1
  %v4727 = vsel %vm2201, %v4722, %v4726
  %v4728 = vshrl.u32 %v4686, 16
  %v4730 = vor.u32 %v4728, %v4726
  %v4732 = vshll.u32 %v4687, 16
  %v4734 = vrot.slane %v4732, 1
  %v4735 = vsel %vm2201, %v4730, %v4734
  %v4736 = vshrl.u32 %v4687, 16
  %v4738 = vor.u32 %v4736, %v4734
  %v4740 = vshll.u32 %v4688, 16
  %v4742 = vrot.slane %v4740, 1
  %v4743 = vsel %vm2201, %v4738, %v4742
  %v4744 = vshrl.u32 %v4688, 16
  %v4746 = vor.u32 %v4744, %v4742
  %v4748 = vshll.u32 %v4689, 16
  %v4750 = vrot.slane %v4748, 1
  %v4751 = vsel %vm2201, %v4746, %v4750
  %v4752 = vshrl.u32 %v4689, 16
  %v4754 = vor.u32 %v4752, %v4750
  %v4756 = vshll.u32 %v4690, 16
  %v4758 = vrot.slane %v4756, 1
  %v4759 = vsel %vm2201, %v4754, %v4758
  %v4760 = vshrl.u32 %v4690, 16
  %v4762 = vor.u32 %v4760, %v4758
  %v4764 = vshll.u32 %v4691, 16
  %v4766 = vrot.slane %v4764, 1
  %v4767 = vsel %vm2201, %v4762, %v4766
  %v4768 = vshrl.u32 %v4691, 16
  %v4770 = vor.u32 %v4768, %v4766
  %v4772 = vshll.u32 %v4692, 16
  %v4774 = vrot.slane %v4772, 1
  %v4775 = vsel %vm2201, %v4770, %v4774
  %v4776 = vshrl.u32 %v4692, 16
  %v4778 = vor.u32 %v4776, %v4774
  %v4780 = vshll.u32 %v4693, 16
  %v4782 = vrot.slane %v4780, 1
  %v4783 = vsel %vm2201, %v4778, %v4782
  %v4784 = vshrl.u32 %v4693, 16
  %v4786 = vor.u32 %v4784, %v4782
  %v4788 = vshll.u32 %v4694, 16
  %v4790 = vrot.slane %v4788, 1
  %v4791 = vsel %vm2201, %v4786, %v4790
  %v4792 = vshrl.u32 %v4694, 16
  %v4794 = vor.u32 %v4792, %v4790
  %v4796 = vshll.u32 %v4695, 16
  %v4798 = vrot.slane %v4796, 1
  %v4799 = vsel %vm2201, %v4794, %v4798
  %v4800 = vshrl.u32 %v4695, 16
  %v4802 = vor.u32 %v4800, %v4798
  %v4804 = vshll.u32 %v4696, 16
  %v4806 = vrot.slane %v4804, 1
  %v4807 = vsel %vm2201, %v4802, %v4806
  %v4808 = vshrl.u32 %v4696, 16
  %v4810 = vor.u32 %v4808, %v4806
  %v4812 = vshll.u32 %v4697, 16
  %v4814 = vrot.slane %v4812, 1
  %v4815 = vsel %vm2201, %v4810, %v4814
  %v4816 = vshrl.u32 %v4697, 16
  %v4818 = vor.u32 %v4816, %v4814
  %v4820 = vshll.u32 %v4698, 16
  %v4822 = vrot.slane %v4820, 1
  %v4823 = vsel %vm2201, %v4818, %v4822
  %v4824 = vshrl.u32 %v4698, 16
  %v4826 = vor.u32 %v4824, %v4822
  %v4828 = vshll.u32 %v4699, 16
  %v4830 = vrot.slane %v4828, 1
  %v4831 = vsel %vm2201, %v4826, %v4830
  %4848 = vst.msk [vmem:[#allocation2 + $0x288] sm:$0xff] %vm1535, %v4711
  %4849 = vst.msk [vmem:[#allocation2 + $0x2b0] sm:$0xff] %vm1535, %v4719
  %4850 = vst.msk [vmem:[#allocation2 + $0x2d8] sm:$0xff] %vm1535, %v4727
  %4851 = vst.msk [vmem:[#allocation2 + $0x300] sm:$0xff] %vm1535, %v4735
  %4852 = vst.msk [vmem:[#allocation2 + $0x328] sm:$0xff] %vm1535, %v4743
  %4853 = vst.msk [vmem:[#allocation2 + $0x350] sm:$0xff] %vm1535, %v4751
  %4854 = vst.msk [vmem:[#allocation2 + $0x378] sm:$0xff] %vm1535, %v4759
  %4855 = vst.msk [vmem:[#allocation2 + $0x3a0] sm:$0xff] %vm1535, %v4767
  %4856 = vst.msk [vmem:[#allocation2 + $0x3c8] sm:$0xff] %vm1535, %v4775
  %4857 = vst.msk [vmem:[#allocation2 + $0x3f0] sm:$0xff] %vm1535, %v4783
  %4858 = vst.msk [vmem:[#allocation2 + $0x418] sm:$0xff] %vm1535, %v4791
  %4859 = vst.msk [vmem:[#allocation2 + $0x440] sm:$0xff] %vm1535, %v4799
  %4860 = vst.msk [vmem:[#allocation2 + $0x468] sm:$0xff] %vm1535, %v4807
  %4861 = vst.msk [vmem:[#allocation2 + $0x490] sm:$0xff] %vm1535, %v4815
  %4862 = vst.msk [vmem:[#allocation2 + $0x4b8] sm:$0xff] %vm1535, %v4823
  %4863 = vst.msk [vmem:[#allocation2 + $0x4e0] sm:$0xff] %vm1535, %v4831
  %v4864 = vld [vmem:[%s0 + $0xa0] sm:$0x8]
  %v4865 = vld [vmem:[%s0 + $0xa4] sm:$0xf]
  %v4866 = vld [vmem:[%s0 + $0xa8] sm:$0xf]
  %v4867 = vld [vmem:[%s0 + $0xac] sm:$0xf]
  %v4868 = vld [vmem:[%s0 + $0xb0] sm:$0xf]
  %v4869 = vld [vmem:[%s0 + $0xb4] sm:$0xf]
  %v4870 = vld [vmem:[%s0 + $0xb8] sm:$0xf]
  %v4871 = vld [vmem:[%s0 + $0xbc] sm:$0xf]
  %v4872 = vld [vmem:[%s0 + $0xc0] sm:$0xf]
  %v4873 = vld [vmem:[%s0 + $0xc4] sm:$0xf]
  %v4874 = vld [vmem:[%s0 + $0xc8] sm:$0xf]
  %v4875 = vld [vmem:[%s0 + $0xcc] sm:$0xf]
  %v4876 = vld [vmem:[%s0 + $0xd0] sm:$0xf]
  %v4877 = vld [vmem:[%s0 + $0xd4] sm:$0xf]
  %v4878 = vld [vmem:[%s0 + $0xd8] sm:$0xf]
  %v4879 = vld [vmem:[%s0 + $0xdc] sm:$0xf]
  %v4880 = vld [vmem:[%s0 + $0xe0] sm:$0xf]
  %v4881 = vld [vmem:[%s0 + $0xe4] sm:$0xf]
  %v4882 = vld [vmem:[%s0 + $0xe8] sm:$0xf]
  %v4883 = vld [vmem:[%s0 + $0xec] sm:$0xf]
  %v4884 = vld [vmem:[%s0 + $0xf0] sm:$0xf]
  %v4885 = vld [vmem:[%s0 + $0xf4] sm:$0xf]
  %v4886 = vld [vmem:[%s0 + $0xf8] sm:$0xf]
  %v4887 = vld [vmem:[%s0 + $0xfc] sm:$0xf]
  %v4888 = vld [vmem:[%s0 + $0x100] sm:$0xf]
  %v4889 = vld [vmem:[%s0 + $0x104] sm:$0xf]
  %v4890 = vld [vmem:[%s0 + $0x108] sm:$0xf]
  %v4891 = vld [vmem:[%s0 + $0x10c] sm:$0xf]
  %v4892 = vld [vmem:[%s0 + $0x110] sm:$0xf]
  %v4893 = vld [vmem:[%s0 + $0x114] sm:$0xf]
  %v4894 = vld [vmem:[%s0 + $0x118] sm:$0xf]
  %v4895 = vld [vmem:[%s0 + $0x11c] sm:$0xf]
  %v4896 = vld [vmem:[%s0 + $0x120] sm:$0xf]
  %v4897 = vmul.bf16 %v4864, %v901
  %v4898 = vmul.bf16 %v4865, %v911
  %v4899 = vmul.bf16 %v4866, %v921
  %v4900 = vmul.bf16 %v4867, %v931
  %v4901 = vmul.bf16 %v4868, %v941
  %v4902 = vmul.bf16 %v4869, %v951
  %v4903 = vmul.bf16 %v4870, %v961
  %v4904 = vmul.bf16 %v4871, %v971
  %v4905 = vmul.bf16 %v4872, %v981
  %v4906 = vmul.bf16 %v4873, %v991
  %v4907 = vmul.bf16 %v4874, %v1001
  %v4908 = vmul.bf16 %v4875, %v1011
  %v4909 = vmul.bf16 %v4876, %v1021
  %v4910 = vmul.bf16 %v4877, %v1031
  %v4911 = vmul.bf16 %v4878, %v1041
  %v4912 = vmul.bf16 %v4879, %v1051
  %v4913 = vmul.bf16 %v4880, %v1061
  %v4914 = vmul.bf16 %v4881, %v1071
  %v4915 = vmul.bf16 %v4882, %v1081
  %v4916 = vmul.bf16 %v4883, %v1091
  %v4917 = vmul.bf16 %v4884, %v1101
  %v4918 = vmul.bf16 %v4885, %v1111
  %v4919 = vmul.bf16 %v4886, %v1121
  %v4920 = vmul.bf16 %v4887, %v1131
  %v4921 = vmul.bf16 %v4888, %v1141
  %v4922 = vmul.bf16 %v4889, %v1151
  %v4923 = vmul.bf16 %v4890, %v1161
  %v4924 = vmul.bf16 %v4891, %v1171
  %v4925 = vmul.bf16 %v4892, %v1181
  %v4926 = vmul.bf16 %v4893, %v1191
  %v4927 = vmul.bf16 %v4894, %v1201
  %v4928 = vmul.bf16 %v4895, %v1211
  %v4929 = vmul.bf16 %v4896, %v1216
  %v4963 = vunpack.c.l.b16 %v4897
  %v4964 = vunpack.c.l.b16 %v4898
  %v4965 = vunpack.c.l.b16 %v4899
  %v4966 = vunpack.c.l.b16 %v4900
  %v4967 = vunpack.c.l.b16 %v4901
  %v4968 = vunpack.c.l.b16 %v4902
  %v4969 = vunpack.c.l.b16 %v4903
  %v4970 = vunpack.c.l.b16 %v4904
  %v4971 = vunpack.c.l.b16 %v4905
  %v4972 = vunpack.c.l.b16 %v4906
  %v4973 = vunpack.c.l.b16 %v4907
  %v4974 = vunpack.c.l.b16 %v4908
  %v4975 = vunpack.c.l.b16 %v4909
  %v4976 = vunpack.c.l.b16 %v4910
  %v4977 = vunpack.c.l.b16 %v4911
  %v4978 = vunpack.c.l.b16 %v4912
  %v4979 = vunpack.c.l.b16 %v4913
  %v4980 = vunpack.c.l.b16 %v4914
  %v4981 = vunpack.c.l.b16 %v4915
  %v4982 = vunpack.c.l.b16 %v4916
  %v4983 = vunpack.c.l.b16 %v4917
  %v4984 = vunpack.c.l.b16 %v4918
  %v4985 = vunpack.c.l.b16 %v4919
  %v4986 = vunpack.c.l.b16 %v4920
  %v4987 = vunpack.c.l.b16 %v4921
  %v4988 = vunpack.c.l.b16 %v4922
  %v4989 = vunpack.c.l.b16 %v4923
  %v4990 = vunpack.c.l.b16 %v4924
  %v4991 = vunpack.c.l.b16 %v4925
  %v4992 = vunpack.c.l.b16 %v4926
  %v4993 = vunpack.c.l.b16 %v4927
  %v4994 = vunpack.c.l.b16 %v4928
  %v4995 = vunpack.c.l.b16 %v4929
  %v4996 = vpack.c.b16 %v4964, %v4963
  %v4997 = vpack.c.b16 %v4966, %v4965
  %v4998 = vpack.c.b16 %v4968, %v4967
  %v4999 = vpack.c.b16 %v4970, %v4969
  %v5000 = vpack.c.b16 %v4972, %v4971
  %v5001 = vpack.c.b16 %v4974, %v4973
  %v5002 = vpack.c.b16 %v4976, %v4975
  %v5003 = vpack.c.b16 %v4978, %v4977
  %v5004 = vpack.c.b16 %v4980, %v4979
  %v5005 = vpack.c.b16 %v4982, %v4981
  %v5006 = vpack.c.b16 %v4984, %v4983
  %v5007 = vpack.c.b16 %v4986, %v4985
  %v5008 = vpack.c.b16 %v4988, %v4987
  %v5009 = vpack.c.b16 %v4990, %v4989
  %v5010 = vpack.c.b16 %v4992, %v4991
  %v5011 = vpack.c.b16 %v4994, %v4993
  %v5012 = vpack.c.b16 %v4995, %v4995
  %v5014 = vshrl.u32 %v4996, 16
  %v5016 = vrot.slane %v5014, 3
  %v5017 = vshll.u32 %v4996, 16
  %v5019 = vrot.slane %v5017, 4
  %v5020 = vor.u32 %v5016, %v5019
  %v5022 = vshrl.u32 %v4997, 16
  %v5024 = vrot.slane %v5022, 3
  %v5025 = vshll.u32 %v4997, 16
  %v5027 = vrot.slane %v5025, 4
  %v5028 = vor.u32 %v5024, %v5027
  %v5029 = vsel %vm1366, %v5020, %v5028
  %v5031 = vshrl.u32 %v4998, 16
  %v5033 = vrot.slane %v5031, 3
  %v5034 = vshll.u32 %v4998, 16
  %v5036 = vrot.slane %v5034, 4
  %v5037 = vor.u32 %v5033, %v5036
  %v5038 = vsel %vm1366, %v5028, %v5037
  %v5040 = vshrl.u32 %v4999, 16
  %v5042 = vrot.slane %v5040, 3
  %v5043 = vshll.u32 %v4999, 16
  %v5045 = vrot.slane %v5043, 4
  %v5046 = vor.u32 %v5042, %v5045
  %v5047 = vsel %vm1366, %v5037, %v5046
  %v5049 = vshrl.u32 %v5000, 16
  %v5051 = vrot.slane %v5049, 3
  %v5052 = vshll.u32 %v5000, 16
  %v5054 = vrot.slane %v5052, 4
  %v5055 = vor.u32 %v5051, %v5054
  %v5056 = vsel %vm1366, %v5046, %v5055
  %v5058 = vshrl.u32 %v5001, 16
  %v5060 = vrot.slane %v5058, 3
  %v5061 = vshll.u32 %v5001, 16
  %v5063 = vrot.slane %v5061, 4
  %v5064 = vor.u32 %v5060, %v5063
  %v5065 = vsel %vm1366, %v5055, %v5064
  %v5067 = vshrl.u32 %v5002, 16
  %v5069 = vrot.slane %v5067, 3
  %v5070 = vshll.u32 %v5002, 16
  %v5072 = vrot.slane %v5070, 4
  %v5073 = vor.u32 %v5069, %v5072
  %v5074 = vsel %vm1366, %v5064, %v5073
  %v5076 = vshrl.u32 %v5003, 16
  %v5078 = vrot.slane %v5076, 3
  %v5079 = vshll.u32 %v5003, 16
  %v5081 = vrot.slane %v5079, 4
  %v5082 = vor.u32 %v5078, %v5081
  %v5083 = vsel %vm1366, %v5073, %v5082
  %v5085 = vshrl.u32 %v5004, 16
  %v5087 = vrot.slane %v5085, 3
  %v5088 = vshll.u32 %v5004, 16
  %v5090 = vrot.slane %v5088, 4
  %v5091 = vor.u32 %v5087, %v5090
  %v5092 = vsel %vm1366, %v5082, %v5091
  %v5094 = vshrl.u32 %v5005, 16
  %v5096 = vrot.slane %v5094, 3
  %v5097 = vshll.u32 %v5005, 16
  %v5099 = vrot.slane %v5097, 4
  %v5100 = vor.u32 %v5096, %v5099
  %v5101 = vsel %vm1366, %v5091, %v5100
  %v5103 = vshrl.u32 %v5006, 16
  %v5105 = vrot.slane %v5103, 3
  %v5106 = vshll.u32 %v5006, 16
  %v5108 = vrot.slane %v5106, 4
  %v5109 = vor.u32 %v5105, %v5108
  %v5110 = vsel %vm1366, %v5100, %v5109
  %v5112 = vshrl.u32 %v5007, 16
  %v5114 = vrot.slane %v5112, 3
  %v5115 = vshll.u32 %v5007, 16
  %v5117 = vrot.slane %v5115, 4
  %v5118 = vor.u32 %v5114, %v5117
  %v5119 = vsel %vm1366, %v5109, %v5118
  %v5121 = vshrl.u32 %v5008, 16
  %v5123 = vrot.slane %v5121, 3
  %v5124 = vshll.u32 %v5008, 16
  %v5126 = vrot.slane %v5124, 4
  %v5127 = vor.u32 %v5123, %v5126
  %v5128 = vsel %vm1366, %v5118, %v5127
  %v5130 = vshrl.u32 %v5009, 16
  %v5132 = vrot.slane %v5130, 3
  %v5133 = vshll.u32 %v5009, 16
  %v5135 = vrot.slane %v5133, 4
  %v5136 = vor.u32 %v5132, %v5135
  %v5137 = vsel %vm1366, %v5127, %v5136
  %v5139 = vshrl.u32 %v5010, 16
  %v5141 = vrot.slane %v5139, 3
  %v5142 = vshll.u32 %v5010, 16
  %v5144 = vrot.slane %v5142, 4
  %v5145 = vor.u32 %v5141, %v5144
  %v5146 = vsel %vm1366, %v5136, %v5145
  %v5148 = vshrl.u32 %v5011, 16
  %v5150 = vrot.slane %v5148, 3
  %v5151 = vshll.u32 %v5011, 16
  %v5153 = vrot.slane %v5151, 4
  %v5154 = vor.u32 %v5150, %v5153
  %v5155 = vsel %vm1366, %v5145, %v5154
  %v5157 = vshrl.u32 %v5012, 16
  %v5159 = vrot.slane %v5157, 3
  %v5160 = vshll.u32 %v5012, 16
  %v5162 = vrot.slane %v5160, 4
  %v5163 = vor.u32 %v5159, %v5162
  %v5164 = vsel %vm1366, %v5154, %v5163
  %5165 = vrot.lane.b32.xlu0 %v5029, 64
  %v5166 = vpop.permute.xlu0 %5165
  %5167 = vrot.lane.b32.xlu0 %v5038, 64
  %v5168 = vpop.permute.xlu0 %5167
  %5169 = vrot.lane.b32.xlu0 %v5047, 64
  %v5170 = vpop.permute.xlu0 %5169
  %5171 = vrot.lane.b32.xlu0 %v5056, 64
  %v5172 = vpop.permute.xlu0 %5171
  %5173 = vrot.lane.b32.xlu0 %v5065, 64
  %v5174 = vpop.permute.xlu0 %5173
  %5175 = vrot.lane.b32.xlu0 %v5074, 64
  %v5176 = vpop.permute.xlu0 %5175
  %5177 = vrot.lane.b32.xlu0 %v5083, 64
  %v5178 = vpop.permute.xlu0 %5177
  %5179 = vrot.lane.b32.xlu0 %v5092, 64
  %v5180 = vpop.permute.xlu0 %5179
  %5181 = vrot.lane.b32.xlu0 %v5101, 64
  %v5182 = vpop.permute.xlu0 %5181
  %5183 = vrot.lane.b32.xlu0 %v5110, 64
  %v5184 = vpop.permute.xlu0 %5183
  %5185 = vrot.lane.b32.xlu0 %v5119, 64
  %v5186 = vpop.permute.xlu0 %5185
  %5187 = vrot.lane.b32.xlu0 %v5128, 64
  %v5188 = vpop.permute.xlu0 %5187
  %5189 = vrot.lane.b32.xlu0 %v5137, 64
  %v5190 = vpop.permute.xlu0 %5189
  %5191 = vrot.lane.b32.xlu0 %v5146, 64
  %v5192 = vpop.permute.xlu0 %5191
  %5193 = vrot.lane.b32.xlu0 %v5155, 64
  %v5194 = vpop.permute.xlu0 %5193
  %5195 = vrot.lane.b32.xlu0 %v5164, 64
  %v5196 = vpop.permute.xlu0 %5195
  %5213 = vst.msk [vmem:[#allocation2 + $0x288] sm:$0xff] %vm1712, %v5166
  %5214 = vst.msk [vmem:[#allocation2 + $0x2b0] sm:$0xff] %vm1712, %v5168
  %5215 = vst.msk [vmem:[#allocation2 + $0x2d8] sm:$0xff] %vm1712, %v5170
  %5216 = vst.msk [vmem:[#allocation2 + $0x300] sm:$0xff] %vm1712, %v5172
  %5217 = vst.msk [vmem:[#allocation2 + $0x328] sm:$0xff] %vm1712, %v5174
  %5218 = vst.msk [vmem:[#allocation2 + $0x350] sm:$0xff] %vm1712, %v5176
  %5219 = vst.msk [vmem:[#allocation2 + $0x378] sm:$0xff] %vm1712, %v5178
  %5220 = vst.msk [vmem:[#allocation2 + $0x3a0] sm:$0xff] %vm1712, %v5180
  %5221 = vst.msk [vmem:[#allocation2 + $0x3c8] sm:$0xff] %vm1712, %v5182
  %5222 = vst.msk [vmem:[#allocation2 + $0x3f0] sm:$0xff] %vm1712, %v5184
  %5223 = vst.msk [vmem:[#allocation2 + $0x418] sm:$0xff] %vm1712, %v5186
  %5224 = vst.msk [vmem:[#allocation2 + $0x440] sm:$0xff] %vm1712, %v5188
  %5225 = vst.msk [vmem:[#allocation2 + $0x468] sm:$0xff] %vm1712, %v5190
  %5226 = vst.msk [vmem:[#allocation2 + $0x490] sm:$0xff] %vm1712, %v5192
  %5227 = vst.msk [vmem:[#allocation2 + $0x4b8] sm:$0xff] %vm1712, %v5194
  %5228 = vst.msk [vmem:[#allocation2 + $0x4e0] sm:$0xff] %vm1712, %v5196
  %v5229 = vld [vmem:[%s0 + $0xa4] sm:$0xf]
  %v5230 = vld [vmem:[%s0 + $0xa8] sm:$0xf]
  %v5231 = vld [vmem:[%s0 + $0xac] sm:$0xf]
  %v5232 = vld [vmem:[%s0 + $0xb0] sm:$0xf]
  %v5233 = vld [vmem:[%s0 + $0xb4] sm:$0xf]
  %v5234 = vld [vmem:[%s0 + $0xb8] sm:$0xf]
  %v5235 = vld [vmem:[%s0 + $0xbc] sm:$0xf]
  %v5236 = vld [vmem:[%s0 + $0xc0] sm:$0xf]
  %v5237 = vld [vmem:[%s0 + $0xc4] sm:$0xf]
  %v5238 = vld [vmem:[%s0 + $0xc8] sm:$0xf]
  %v5239 = vld [vmem:[%s0 + $0xcc] sm:$0xf]
  %v5240 = vld [vmem:[%s0 + $0xd0] sm:$0xf]
  %v5241 = vld [vmem:[%s0 + $0xd4] sm:$0xf]
  %v5242 = vld [vmem:[%s0 + $0xd8] sm:$0xf]
  %v5243 = vld [vmem:[%s0 + $0xdc] sm:$0xf]
  %v5244 = vld [vmem:[%s0 + $0xe0] sm:$0xf]
  %v5245 = vld [vmem:[%s0 + $0xe4] sm:$0xf]
  %v5246 = vld [vmem:[%s0 + $0xe8] sm:$0xf]
  %v5247 = vld [vmem:[%s0 + $0xec] sm:$0xf]
  %v5248 = vld [vmem:[%s0 + $0xf0] sm:$0xf]
  %v5249 = vld [vmem:[%s0 + $0xf4] sm:$0xf]
  %v5250 = vld [vmem:[%s0 + $0xf8] sm:$0xf]
  %v5251 = vld [vmem:[%s0 + $0xfc] sm:$0xf]
  %v5252 = vld [vmem:[%s0 + $0x100] sm:$0xf]
  %v5253 = vld [vmem:[%s0 + $0x104] sm:$0xf]
  %v5254 = vld [vmem:[%s0 + $0x108] sm:$0xf]
  %v5255 = vld [vmem:[%s0 + $0x10c] sm:$0xf]
  %v5256 = vld [vmem:[%s0 + $0x110] sm:$0xf]
  %v5257 = vld [vmem:[%s0 + $0x114] sm:$0xf]
  %v5258 = vld [vmem:[%s0 + $0x118] sm:$0xf]
  %v5259 = vld [vmem:[%s0 + $0x11c] sm:$0xf]
  %v5260 = vld [vmem:[%s0 + $0x120] sm:$0xf]
  %v5293 = vunpack.c.l.b16 %v5229
  %v5294 = vunpack.c.l.b16 %v5230
  %v5295 = vunpack.c.l.b16 %v5231
  %v5296 = vunpack.c.l.b16 %v5232
  %v5297 = vunpack.c.l.b16 %v5233
  %v5298 = vunpack.c.l.b16 %v5234
  %v5299 = vunpack.c.l.b16 %v5235
  %v5300 = vunpack.c.l.b16 %v5236
  %v5301 = vunpack.c.l.b16 %v5237
  %v5302 = vunpack.c.l.b16 %v5238
  %v5303 = vunpack.c.l.b16 %v5239
  %v5304 = vunpack.c.l.b16 %v5240
  %v5305 = vunpack.c.l.b16 %v5241
  %v5306 = vunpack.c.l.b16 %v5242
  %v5307 = vunpack.c.l.b16 %v5243
  %v5308 = vunpack.c.l.b16 %v5244
  %v5309 = vunpack.c.l.b16 %v5245
  %v5310 = vunpack.c.l.b16 %v5246
  %v5311 = vunpack.c.l.b16 %v5247
  %v5312 = vunpack.c.l.b16 %v5248
  %v5313 = vunpack.c.l.b16 %v5249
  %v5314 = vunpack.c.l.b16 %v5250
  %v5315 = vunpack.c.l.b16 %v5251
  %v5316 = vunpack.c.l.b16 %v5252
  %v5317 = vunpack.c.l.b16 %v5253
  %v5318 = vunpack.c.l.b16 %v5254
  %v5319 = vunpack.c.l.b16 %v5255
  %v5320 = vunpack.c.l.b16 %v5256
  %v5321 = vunpack.c.l.b16 %v5257
  %v5322 = vunpack.c.l.b16 %v5258
  %v5323 = vunpack.c.l.b16 %v5259
  %v5324 = vunpack.c.l.b16 %v5260
  %v5325 = vpack.c.b16 %v5294, %v5293
  %v5326 = vpack.c.b16 %v5296, %v5295
  %v5327 = vpack.c.b16 %v5298, %v5297
  %v5328 = vpack.c.b16 %v5300, %v5299
  %v5329 = vpack.c.b16 %v5302, %v5301
  %v5330 = vpack.c.b16 %v5304, %v5303
  %v5331 = vpack.c.b16 %v5306, %v5305
  %v5332 = vpack.c.b16 %v5308, %v5307
  %v5333 = vpack.c.b16 %v5310, %v5309
  %v5334 = vpack.c.b16 %v5312, %v5311
  %v5335 = vpack.c.b16 %v5314, %v5313
  %v5336 = vpack.c.b16 %v5316, %v5315
  %v5337 = vpack.c.b16 %v5318, %v5317
  %v5338 = vpack.c.b16 %v5320, %v5319
  %v5339 = vpack.c.b16 %v5322, %v5321
  %v5340 = vpack.c.b16 %v5324, %v5323
  %5357 = vst.msk [vmem:[#allocation2 + $0x290] sm:$0xff] %vm1535, %v5325
  %5358 = vst.msk [vmem:[#allocation2 + $0x2b8] sm:$0xff] %vm1535, %v5326
  %5359 = vst.msk [vmem:[#allocation2 + $0x2e0] sm:$0xff] %vm1535, %v5327
  %5360 = vst.msk [vmem:[#allocation2 + $0x308] sm:$0xff] %vm1535, %v5328
  %5361 = vst.msk [vmem:[#allocation2 + $0x330] sm:$0xff] %vm1535, %v5329
  %5362 = vst.msk [vmem:[#allocation2 + $0x358] sm:$0xff] %vm1535, %v5330
  %5363 = vst.msk [vmem:[#allocation2 + $0x380] sm:$0xff] %vm1535, %v5331
  %5364 = vst.msk [vmem:[#allocation2 + $0x3a8] sm:$0xff] %vm1535, %v5332
  %5365 = vst.msk [vmem:[#allocation2 + $0x3d0] sm:$0xff] %vm1535, %v5333
  %5366 = vst.msk [vmem:[#allocation2 + $0x3f8] sm:$0xff] %vm1535, %v5334
  %5367 = vst.msk [vmem:[#allocation2 + $0x420] sm:$0xff] %vm1535, %v5335
  %5368 = vst.msk [vmem:[#allocation2 + $0x448] sm:$0xff] %vm1535, %v5336
  %5369 = vst.msk [vmem:[#allocation2 + $0x470] sm:$0xff] %vm1535, %v5337
  %5370 = vst.msk [vmem:[#allocation2 + $0x498] sm:$0xff] %vm1535, %v5338
  %5371 = vst.msk [vmem:[#allocation2 + $0x4c0] sm:$0xff] %vm1535, %v5339
  %5372 = vst.msk [vmem:[#allocation2 + $0x4e8] sm:$0xff] %vm1535, %v5340
  %v5373 = vld [vmem:[%s0 + $0xa4] sm:$0xf]
  %v5374 = vld [vmem:[%s0 + $0xa8] sm:$0xf]
  %v5375 = vld [vmem:[%s0 + $0xac] sm:$0xf]
  %v5376 = vld [vmem:[%s0 + $0xb0] sm:$0xf]
  %v5377 = vld [vmem:[%s0 + $0xb4] sm:$0xf]
  %v5378 = vld [vmem:[%s0 + $0xb8] sm:$0xf]
  %v5379 = vld [vmem:[%s0 + $0xbc] sm:$0xf]
  %v5380 = vld [vmem:[%s0 + $0xc0] sm:$0xf]
  %v5381 = vld [vmem:[%s0 + $0xc4] sm:$0xf]
  %v5382 = vld [vmem:[%s0 + $0xc8] sm:$0xf]
  %v5383 = vld [vmem:[%s0 + $0xcc] sm:$0xf]
  %v5384 = vld [vmem:[%s0 + $0xd0] sm:$0xf]
  %v5385 = vld [vmem:[%s0 + $0xd4] sm:$0xf]
  %v5386 = vld [vmem:[%s0 + $0xd8] sm:$0xf]
  %v5387 = vld [vmem:[%s0 + $0xdc] sm:$0xf]
  %v5388 = vld [vmem:[%s0 + $0xe0] sm:$0xf]
  %v5389 = vld [vmem:[%s0 + $0xe4] sm:$0xf]
  %v5390 = vld [vmem:[%s0 + $0xe8] sm:$0xf]
  %v5391 = vld [vmem:[%s0 + $0xec] sm:$0xf]
  %v5392 = vld [vmem:[%s0 + $0xf0] sm:$0xf]
  %v5393 = vld [vmem:[%s0 + $0xf4] sm:$0xf]
  %v5394 = vld [vmem:[%s0 + $0xf8] sm:$0xf]
  %v5395 = vld [vmem:[%s0 + $0xfc] sm:$0xf]
  %v5396 = vld [vmem:[%s0 + $0x100] sm:$0xf]
  %v5397 = vld [vmem:[%s0 + $0x104] sm:$0xf]
  %v5398 = vld [vmem:[%s0 + $0x108] sm:$0xf]
  %v5399 = vld [vmem:[%s0 + $0x10c] sm:$0xf]
  %v5400 = vld [vmem:[%s0 + $0x110] sm:$0xf]
  %v5401 = vld [vmem:[%s0 + $0x114] sm:$0xf]
  %v5402 = vld [vmem:[%s0 + $0x118] sm:$0xf]
  %v5403 = vld [vmem:[%s0 + $0x11c] sm:$0xf]
  %v5404 = vld [vmem:[%s0 + $0x120] sm:$0xf]
  %v5405 = vld [vmem:[%s0 + $0x124] sm:$0x1]
  %v5406 = vmul.bf16 %v5373, %v1771
  %v5407 = vmul.bf16 %v5374, %v1780
  %v5408 = vmul.bf16 %v5375, %v1789
  %v5409 = vmul.bf16 %v5376, %v1798
  %v5410 = vmul.bf16 %v5377, %v1807
  %v5411 = vmul.bf16 %v5378, %v1816
  %v5412 = vmul.bf16 %v5379, %v1825
  %v5413 = vmul.bf16 %v5380, %v1834
  %v5414 = vmul.bf16 %v5381, %v1843
  %v5415 = vmul.bf16 %v5382, %v1852
  %v5416 = vmul.bf16 %v5383, %v1861
  %v5417 = vmul.bf16 %v5384, %v1870
  %v5418 = vmul.bf16 %v5385, %v1879
  %v5419 = vmul.bf16 %v5386, %v1888
  %v5420 = vmul.bf16 %v5387, %v1897
  %v5421 = vmul.bf16 %v5388, %v1906
  %v5422 = vmul.bf16 %v5389, %v1915
  %v5423 = vmul.bf16 %v5390, %v1924
  %v5424 = vmul.bf16 %v5391, %v1933
  %v5425 = vmul.bf16 %v5392, %v1942
  %v5426 = vmul.bf16 %v5393, %v1951
  %v5427 = vmul.bf16 %v5394, %v1960
  %v5428 = vmul.bf16 %v5395, %v1969
  %v5429 = vmul.bf16 %v5396, %v1978
  %v5430 = vmul.bf16 %v5397, %v1987
  %v5431 = vmul.bf16 %v5398, %v1996
  %v5432 = vmul.bf16 %v5399, %v2005
  %v5433 = vmul.bf16 %v5400, %v2014
  %v5434 = vmul.bf16 %v5401, %v2023
  %v5435 = vmul.bf16 %v5402, %v2032
  %v5436 = vmul.bf16 %v5403, %v2041
  %v5437 = vmul.bf16 %v5404, %v2050
  %v5438 = vmul.bf16 %v5405, %v2051
  %v5472 = vunpack.c.l.b16 %v5406
  %v5473 = vunpack.c.l.b16 %v5407
  %v5474 = vunpack.c.l.b16 %v5408
  %v5475 = vunpack.c.l.b16 %v5409
  %v5476 = vunpack.c.l.b16 %v5410
  %v5477 = vunpack.c.l.b16 %v5411
  %v5478 = vunpack.c.l.b16 %v5412
  %v5479 = vunpack.c.l.b16 %v5413
  %v5480 = vunpack.c.l.b16 %v5414
  %v5481 = vunpack.c.l.b16 %v5415
  %v5482 = vunpack.c.l.b16 %v5416
  %v5483 = vunpack.c.l.b16 %v5417
  %v5484 = vunpack.c.l.b16 %v5418
  %v5485 = vunpack.c.l.b16 %v5419
  %v5486 = vunpack.c.l.b16 %v5420
  %v5487 = vunpack.c.l.b16 %v5421
  %v5488 = vunpack.c.l.b16 %v5422
  %v5489 = vunpack.c.l.b16 %v5423
  %v5490 = vunpack.c.l.b16 %v5424
  %v5491 = vunpack.c.l.b16 %v5425
  %v5492 = vunpack.c.l.b16 %v5426
  %v5493 = vunpack.c.l.b16 %v5427
  %v5494 = vunpack.c.l.b16 %v5428
  %v5495 = vunpack.c.l.b16 %v5429
  %v5496 = vunpack.c.l.b16 %v5430
  %v5497 = vunpack.c.l.b16 %v5431
  %v5498 = vunpack.c.l.b16 %v5432
  %v5499 = vunpack.c.l.b16 %v5433
  %v5500 = vunpack.c.l.b16 %v5434
  %v5501 = vunpack.c.l.b16 %v5435
  %v5502 = vunpack.c.l.b16 %v5436
  %v5503 = vunpack.c.l.b16 %v5437
  %v5504 = vunpack.c.l.b16 %v5438
  %v5505 = vpack.c.b16 %v5473, %v5472
  %v5506 = vpack.c.b16 %v5475, %v5474
  %v5507 = vpack.c.b16 %v5477, %v5476
  %v5508 = vpack.c.b16 %v5479, %v5478
  %v5509 = vpack.c.b16 %v5481, %v5480
  %v5510 = vpack.c.b16 %v5483, %v5482
  %v5511 = vpack.c.b16 %v5485, %v5484
  %v5512 = vpack.c.b16 %v5487, %v5486
  %v5513 = vpack.c.b16 %v5489, %v5488
  %v5514 = vpack.c.b16 %v5491, %v5490
  %v5515 = vpack.c.b16 %v5493, %v5492
  %v5516 = vpack.c.b16 %v5495, %v5494
  %v5517 = vpack.c.b16 %v5497, %v5496
  %v5518 = vpack.c.b16 %v5499, %v5498
  %v5519 = vpack.c.b16 %v5501, %v5500
  %v5520 = vpack.c.b16 %v5503, %v5502
  %v5521 = vpack.c.b16 %v5504, %v5504
  %v5523 = vshrl.u32 %v5505, 16
  %v5525 = vshll.u32 %v5505, 16
  %v5527 = vrot.slane %v5525, 1
  %v5528 = vor.u32 %v5523, %v5527
  %v5530 = vshll.u32 %v5506, 16
  %v5532 = vrot.slane %v5530, 1
  %v5533 = vsel %vm2201, %v5528, %v5532
  %v5534 = vshrl.u32 %v5506, 16
  %v5536 = vor.u32 %v5534, %v5532
  %v5538 = vshll.u32 %v5507, 16
  %v5540 = vrot.slane %v5538, 1
  %v5541 = vsel %vm2201, %v5536, %v5540
  %v5542 = vshrl.u32 %v5507, 16
  %v5544 = vor.u32 %v5542, %v5540
  %v5546 = vshll.u32 %v5508, 16
  %v5548 = vrot.slane %v5546, 1
  %v5549 = vsel %vm2201, %v5544, %v5548
  %v5550 = vshrl.u32 %v5508, 16
  %v5552 = vor.u32 %v5550, %v5548
  %v5554 = vshll.u32 %v5509, 16
  %v5556 = vrot.slane %v5554, 1
  %v5557 = vsel %vm2201, %v5552, %v5556
  %v5558 = vshrl.u32 %v5509, 16
  %v5560 = vor.u32 %v5558, %v5556
  %v5562 = vshll.u32 %v5510, 16
  %v5564 = vrot.slane %v5562, 1
  %v5565 = vsel %vm2201, %v5560, %v5564
  %v5566 = vshrl.u32 %v5510, 16
  %v5568 = vor.u32 %v5566, %v5564
  %v5570 = vshll.u32 %v5511, 16
  %v5572 = vrot.slane %v5570, 1
  %v5573 = vsel %vm2201, %v5568, %v5572
  %v5574 = vshrl.u32 %v5511, 16
  %v5576 = vor.u32 %v5574, %v5572
  %v5578 = vshll.u32 %v5512, 16
  %v5580 = vrot.slane %v5578, 1
  %v5581 = vsel %vm2201, %v5576, %v5580
  %v5582 = vshrl.u32 %v5512, 16
  %v5584 = vor.u32 %v5582, %v5580
  %v5586 = vshll.u32 %v5513, 16
  %v5588 = vrot.slane %v5586, 1
  %v5589 = vsel %vm2201, %v5584, %v5588
  %v5590 = vshrl.u32 %v5513, 16
  %v5592 = vor.u32 %v5590, %v5588
  %v5594 = vshll.u32 %v5514, 16
  %v5596 = vrot.slane %v5594, 1
  %v5597 = vsel %vm2201, %v5592, %v5596
  %v5598 = vshrl.u32 %v5514, 16
  %v5600 = vor.u32 %v5598, %v5596
  %v5602 = vshll.u32 %v5515, 16
  %v5604 = vrot.slane %v5602, 1
  %v5605 = vsel %vm2201, %v5600, %v5604
  %v5606 = vshrl.u32 %v5515, 16
  %v5608 = vor.u32 %v5606, %v5604
  %v5610 = vshll.u32 %v5516, 16
  %v5612 = vrot.slane %v5610, 1
  %v5613 = vsel %vm2201, %v5608, %v5612
  %v5614 = vshrl.u32 %v5516, 16
  %v5616 = vor.u32 %v5614, %v5612
  %v5618 = vshll.u32 %v5517, 16
  %v5620 = vrot.slane %v5618, 1
  %v5621 = vsel %vm2201, %v5616, %v5620
  %v5622 = vshrl.u32 %v5517, 16
  %v5624 = vor.u32 %v5622, %v5620
  %v5626 = vshll.u32 %v5518, 16
  %v5628 = vrot.slane %v5626, 1
  %v5629 = vsel %vm2201, %v5624, %v5628
  %v5630 = vshrl.u32 %v5518, 16
  %v5632 = vor.u32 %v5630, %v5628
  %v5634 = vshll.u32 %v5519, 16
  %v5636 = vrot.slane %v5634, 1
  %v5637 = vsel %vm2201, %v5632, %v5636
  %v5638 = vshrl.u32 %v5519, 16
  %v5640 = vor.u32 %v5638, %v5636
  %v5642 = vshll.u32 %v5520, 16
  %v5644 = vrot.slane %v5642, 1
  %v5645 = vsel %vm2201, %v5640, %v5644
  %v5646 = vshrl.u32 %v5520, 16
  %v5648 = vor.u32 %v5646, %v5644
  %v5650 = vshll.u32 %v5521, 16
  %v5652 = vrot.slane %v5650, 1
  %v5653 = vsel %vm2201, %v5648, %v5652
  %5654 = vrot.lane.b32.xlu0 %v5533, 64
  %v5655 = vpop.permute.xlu0 %5654
  %5656 = vrot.lane.b32.xlu0 %v5541, 64
  %v5657 = vpop.permute.xlu0 %5656
  %5658 = vrot.lane.b32.xlu0 %v5549, 64
  %v5659 = vpop.permute.xlu0 %5658
  %5660 = vrot.lane.b32.xlu0 %v5557, 64
  %v5661 = vpop.permute.xlu0 %5660
  %5662 = vrot.lane.b32.xlu0 %v5565, 64
  %v5663 = vpop.permute.xlu0 %5662
  %5664 = vrot.lane.b32.xlu0 %v5573, 64
  %v5665 = vpop.permute.xlu0 %5664
  %5666 = vrot.lane.b32.xlu0 %v5581, 64
  %v5667 = vpop.permute.xlu0 %5666
  %5668 = vrot.lane.b32.xlu0 %v5589, 64
  %v5669 = vpop.permute.xlu0 %5668
  %5670 = vrot.lane.b32.xlu0 %v5597, 64
  %v5671 = vpop.permute.xlu0 %5670
  %5672 = vrot.lane.b32.xlu0 %v5605, 64
  %v5673 = vpop.permute.xlu0 %5672
  %5674 = vrot.lane.b32.xlu0 %v5613, 64
  %v5675 = vpop.permute.xlu0 %5674
  %5676 = vrot.lane.b32.xlu0 %v5621, 64
  %v5677 = vpop.permute.xlu0 %5676
  %5678 = vrot.lane.b32.xlu0 %v5629, 64
  %v5679 = vpop.permute.xlu0 %5678
  %5680 = vrot.lane.b32.xlu0 %v5637, 64
  %v5681 = vpop.permute.xlu0 %5680
  %5682 = vrot.lane.b32.xlu0 %v5645, 64
  %v5683 = vpop.permute.xlu0 %5682
  %5684 = vrot.lane.b32.xlu0 %v5653, 64
  %v5685 = vpop.permute.xlu0 %5684
  %5702 = vst.msk [vmem:[#allocation2 + $0x290] sm:$0xff] %vm1712, %v5655
  %5703 = vst.msk [vmem:[#allocation2 + $0x2b8] sm:$0xff] %vm1712, %v5657
  %5704 = vst.msk [vmem:[#allocation2 + $0x2e0] sm:$0xff] %vm1712, %v5659
  %5705 = vst.msk [vmem:[#allocation2 + $0x308] sm:$0xff] %vm1712, %v5661
  %5706 = vst.msk [vmem:[#allocation2 + $0x330] sm:$0xff] %vm1712, %v5663
  %5707 = vst.msk [vmem:[#allocation2 + $0x358] sm:$0xff] %vm1712, %v5665
  %5708 = vst.msk [vmem:[#allocation2 + $0x380] sm:$0xff] %vm1712, %v5667
  %5709 = vst.msk [vmem:[#allocation2 + $0x3a8] sm:$0xff] %vm1712, %v5669
  %5710 = vst.msk [vmem:[#allocation2 + $0x3d0] sm:$0xff] %vm1712, %v5671
  %5711 = vst.msk [vmem:[#allocation2 + $0x3f8] sm:$0xff] %vm1712, %v5673
  %5712 = vst.msk [vmem:[#allocation2 + $0x420] sm:$0xff] %vm1712, %v5675
  %5713 = vst.msk [vmem:[#allocation2 + $0x448] sm:$0xff] %vm1712, %v5677
  %5714 = vst.msk [vmem:[#allocation2 + $0x470] sm:$0xff] %vm1712, %v5679
  %5715 = vst.msk [vmem:[#allocation2 + $0x498] sm:$0xff] %vm1712, %v5681
  %5716 = vst.msk [vmem:[#allocation2 + $0x4c0] sm:$0xff] %vm1712, %v5683
  %5717 = vst.msk [vmem:[#allocation2 + $0x4e8] sm:$0xff] %vm1712, %v5685
  %v5718 = vld [vmem:[%s0 + $0xa8] sm:$0x8]
  %v5719 = vld [vmem:[%s0 + $0xac] sm:$0xf]
  %v5720 = vld [vmem:[%s0 + $0xb0] sm:$0xf]
  %v5721 = vld [vmem:[%s0 + $0xb4] sm:$0xf]
  %v5722 = vld [vmem:[%s0 + $0xb8] sm:$0xf]
  %v5723 = vld [vmem:[%s0 + $0xbc] sm:$0xf]
  %v5724 = vld [vmem:[%s0 + $0xc0] sm:$0xf]
  %v5725 = vld [vmem:[%s0 + $0xc4] sm:$0xf]
  %v5726 = vld [vmem:[%s0 + $0xc8] sm:$0xf]
  %v5727 = vld [vmem:[%s0 + $0xcc] sm:$0xf]
  %v5728 = vld [vmem:[%s0 + $0xd0] sm:$0xf]
  %v5729 = vld [vmem:[%s0 + $0xd4] sm:$0xf]
  %v5730 = vld [vmem:[%s0 + $0xd8] sm:$0xf]
  %v5731 = vld [vmem:[%s0 + $0xdc] sm:$0xf]
  %v5732 = vld [vmem:[%s0 + $0xe0] sm:$0xf]
  %v5733 = vld [vmem:[%s0 + $0xe4] sm:$0xf]
  %v5734 = vld [vmem:[%s0 + $0xe8] sm:$0xf]
  %v5735 = vld [vmem:[%s0 + $0xec] sm:$0xf]
  %v5736 = vld [vmem:[%s0 + $0xf0] sm:$0xf]
  %v5737 = vld [vmem:[%s0 + $0xf4] sm:$0xf]
  %v5738 = vld [vmem:[%s0 + $0xf8] sm:$0xf]
  %v5739 = vld [vmem:[%s0 + $0xfc] sm:$0xf]
  %v5740 = vld [vmem:[%s0 + $0x100] sm:$0xf]
  %v5741 = vld [vmem:[%s0 + $0x104] sm:$0xf]
  %v5742 = vld [vmem:[%s0 + $0x108] sm:$0xf]
  %v5743 = vld [vmem:[%s0 + $0x10c] sm:$0xf]
  %v5744 = vld [vmem:[%s0 + $0x110] sm:$0xf]
  %v5745 = vld [vmem:[%s0 + $0x114] sm:$0xf]
  %v5746 = vld [vmem:[%s0 + $0x118] sm:$0xf]
  %v5747 = vld [vmem:[%s0 + $0x11c] sm:$0xf]
  %v5748 = vld [vmem:[%s0 + $0x120] sm:$0xf]
  %v5749 = vld [vmem:[%s0 + $0x124] sm:$0xf]
  %v5750 = vld [vmem:[%s0 + $0x128] sm:$0xf]
  %v5751 = vmul.bf16 %v5718, %v901
  %v5752 = vmul.bf16 %v5719, %v911
  %v5753 = vmul.bf16 %v5720, %v921
  %v5754 = vmul.bf16 %v5721, %v931
  %v5755 = vmul.bf16 %v5722, %v941
  %v5756 = vmul.bf16 %v5723, %v951
  %v5757 = vmul.bf16 %v5724, %v961
  %v5758 = vmul.bf16 %v5725, %v971
  %v5759 = vmul.bf16 %v5726, %v981
  %v5760 = vmul.bf16 %v5727, %v991
  %v5761 = vmul.bf16 %v5728, %v1001
  %v5762 = vmul.bf16 %v5729, %v1011
  %v5763 = vmul.bf16 %v5730, %v1021
  %v5764 = vmul.bf16 %v5731, %v1031
  %v5765 = vmul.bf16 %v5732, %v1041
  %v5766 = vmul.bf16 %v5733, %v1051
  %v5767 = vmul.bf16 %v5734, %v1061
  %v5768 = vmul.bf16 %v5735, %v1071
  %v5769 = vmul.bf16 %v5736, %v1081
  %v5770 = vmul.bf16 %v5737, %v1091
  %v5771 = vmul.bf16 %v5738, %v1101
  %v5772 = vmul.bf16 %v5739, %v1111
  %v5773 = vmul.bf16 %v5740, %v1121
  %v5774 = vmul.bf16 %v5741, %v1131
  %v5775 = vmul.bf16 %v5742, %v1141
  %v5776 = vmul.bf16 %v5743, %v1151
  %v5777 = vmul.bf16 %v5744, %v1161
  %v5778 = vmul.bf16 %v5745, %v1171
  %v5779 = vmul.bf16 %v5746, %v1181
  %v5780 = vmul.bf16 %v5747, %v1191
  %v5781 = vmul.bf16 %v5748, %v1201
  %v5782 = vmul.bf16 %v5749, %v1211
  %v5783 = vmul.bf16 %v5750, %v1216
  %v5817 = vunpack.c.l.b16 %v5751
  %v5818 = vunpack.c.l.b16 %v5752
  %v5819 = vunpack.c.l.b16 %v5753
  %v5820 = vunpack.c.l.b16 %v5754
  %v5821 = vunpack.c.l.b16 %v5755
  %v5822 = vunpack.c.l.b16 %v5756
  %v5823 = vunpack.c.l.b16 %v5757
  %v5824 = vunpack.c.l.b16 %v5758
  %v5825 = vunpack.c.l.b16 %v5759
  %v5826 = vunpack.c.l.b16 %v5760
  %v5827 = vunpack.c.l.b16 %v5761
  %v5828 = vunpack.c.l.b16 %v5762
  %v5829 = vunpack.c.l.b16 %v5763
  %v5830 = vunpack.c.l.b16 %v5764
  %v5831 = vunpack.c.l.b16 %v5765
  %v5832 = vunpack.c.l.b16 %v5766
  %v5833 = vunpack.c.l.b16 %v5767
  %v5834 = vunpack.c.l.b16 %v5768
  %v5835 = vunpack.c.l.b16 %v5769
  %v5836 = vunpack.c.l.b16 %v5770
  %v5837 = vunpack.c.l.b16 %v5771
  %v5838 = vunpack.c.l.b16 %v5772
  %v5839 = vunpack.c.l.b16 %v5773
  %v5840 = vunpack.c.l.b16 %v5774
  %v5841 = vunpack.c.l.b16 %v5775
  %v5842 = vunpack.c.l.b16 %v5776
  %v5843 = vunpack.c.l.b16 %v5777
  %v5844 = vunpack.c.l.b16 %v5778
  %v5845 = vunpack.c.l.b16 %v5779
  %v5846 = vunpack.c.l.b16 %v5780
  %v5847 = vunpack.c.l.b16 %v5781
  %v5848 = vunpack.c.l.b16 %v5782
  %v5849 = vunpack.c.l.b16 %v5783
  %v5850 = vpack.c.b16 %v5818, %v5817
  %v5851 = vpack.c.b16 %v5820, %v5819
  %v5852 = vpack.c.b16 %v5822, %v5821
  %v5853 = vpack.c.b16 %v5824, %v5823
  %v5854 = vpack.c.b16 %v5826, %v5825
  %v5855 = vpack.c.b16 %v5828, %v5827
  %v5856 = vpack.c.b16 %v5830, %v5829
  %v5857 = vpack.c.b16 %v5832, %v5831
  %v5858 = vpack.c.b16 %v5834, %v5833
  %v5859 = vpack.c.b16 %v5836, %v5835
  %v5860 = vpack.c.b16 %v5838, %v5837
  %v5861 = vpack.c.b16 %v5840, %v5839
  %v5862 = vpack.c.b16 %v5842, %v5841
  %v5863 = vpack.c.b16 %v5844, %v5843
  %v5864 = vpack.c.b16 %v5846, %v5845
  %v5865 = vpack.c.b16 %v5848, %v5847
  %v5866 = vpack.c.b16 %v5849, %v5849
  %v5868 = vshrl.u32 %v5850, 16
  %v5870 = vrot.slane %v5868, 3
  %v5871 = vshll.u32 %v5850, 16
  %v5873 = vrot.slane %v5871, 4
  %v5874 = vor.u32 %v5870, %v5873
  %v5876 = vshrl.u32 %v5851, 16
  %v5878 = vrot.slane %v5876, 3
  %v5879 = vshll.u32 %v5851, 16
  %v5881 = vrot.slane %v5879, 4
  %v5882 = vor.u32 %v5878, %v5881
  %v5883 = vsel %vm1366, %v5874, %v5882
  %v5885 = vshrl.u32 %v5852, 16
  %v5887 = vrot.slane %v5885, 3
  %v5888 = vshll.u32 %v5852, 16
  %v5890 = vrot.slane %v5888, 4
  %v5891 = vor.u32 %v5887, %v5890
  %v5892 = vsel %vm1366, %v5882, %v5891
  %v5894 = vshrl.u32 %v5853, 16
  %v5896 = vrot.slane %v5894, 3
  %v5897 = vshll.u32 %v5853, 16
  %v5899 = vrot.slane %v5897, 4
  %v5900 = vor.u32 %v5896, %v5899
  %v5901 = vsel %vm1366, %v5891, %v5900
  %v5903 = vshrl.u32 %v5854, 16
  %v5905 = vrot.slane %v5903, 3
  %v5906 = vshll.u32 %v5854, 16
  %v5908 = vrot.slane %v5906, 4
  %v5909 = vor.u32 %v5905, %v5908
  %v5910 = vsel %vm1366, %v5900, %v5909
  %v5912 = vshrl.u32 %v5855, 16
  %v5914 = vrot.slane %v5912, 3
  %v5915 = vshll.u32 %v5855, 16
  %v5917 = vrot.slane %v5915, 4
  %v5918 = vor.u32 %v5914, %v5917
  %v5919 = vsel %vm1366, %v5909, %v5918
  %v5921 = vshrl.u32 %v5856, 16
  %v5923 = vrot.slane %v5921, 3
  %v5924 = vshll.u32 %v5856, 16
  %v5926 = vrot.slane %v5924, 4
  %v5927 = vor.u32 %v5923, %v5926
  %v5928 = vsel %vm1366, %v5918, %v5927
  %v5930 = vshrl.u32 %v5857, 16
  %v5932 = vrot.slane %v5930, 3
  %v5933 = vshll.u32 %v5857, 16
  %v5935 = vrot.slane %v5933, 4
  %v5936 = vor.u32 %v5932, %v5935
  %v5937 = vsel %vm1366, %v5927, %v5936
  %v5939 = vshrl.u32 %v5858, 16
  %v5941 = vrot.slane %v5939, 3
  %v5942 = vshll.u32 %v5858, 16
  %v5944 = vrot.slane %v5942, 4
  %v5945 = vor.u32 %v5941, %v5944
  %v5946 = vsel %vm1366, %v5936, %v5945
  %v5948 = vshrl.u32 %v5859, 16
  %v5950 = vrot.slane %v5948, 3
  %v5951 = vshll.u32 %v5859, 16
  %v5953 = vrot.slane %v5951, 4
  %v5954 = vor.u32 %v5950, %v5953
  %v5955 = vsel %vm1366, %v5945, %v5954
  %v5957 = vshrl.u32 %v5860, 16
  %v5959 = vrot.slane %v5957, 3
  %v5960 = vshll.u32 %v5860, 16
  %v5962 = vrot.slane %v5960, 4
  %v5963 = vor.u32 %v5959, %v5962
  %v5964 = vsel %vm1366, %v5954, %v5963
  %v5966 = vshrl.u32 %v5861, 16
  %v5968 = vrot.slane %v5966, 3
  %v5969 = vshll.u32 %v5861, 16
  %v5971 = vrot.slane %v5969, 4
  %v5972 = vor.u32 %v5968, %v5971
  %v5973 = vsel %vm1366, %v5963, %v5972
  %v5975 = vshrl.u32 %v5862, 16
  %v5977 = vrot.slane %v5975, 3
  %v5978 = vshll.u32 %v5862, 16
  %v5980 = vrot.slane %v5978, 4
  %v5981 = vor.u32 %v5977, %v5980
  %v5982 = vsel %vm1366, %v5972, %v5981
  %v5984 = vshrl.u32 %v5863, 16
  %v5986 = vrot.slane %v5984, 3
  %v5987 = vshll.u32 %v5863, 16
  %v5989 = vrot.slane %v5987, 4
  %v5990 = vor.u32 %v5986, %v5989
  %v5991 = vsel %vm1366, %v5981, %v5990
  %v5993 = vshrl.u32 %v5864, 16
  %v5995 = vrot.slane %v5993, 3
  %v5996 = vshll.u32 %v5864, 16
  %v5998 = vrot.slane %v5996, 4
  %v5999 = vor.u32 %v5995, %v5998
  %v6000 = vsel %vm1366, %v5990, %v5999
  %v6002 = vshrl.u32 %v5865, 16
  %v6004 = vrot.slane %v6002, 3
  %v6005 = vshll.u32 %v5865, 16
  %v6007 = vrot.slane %v6005, 4
  %v6008 = vor.u32 %v6004, %v6007
  %v6009 = vsel %vm1366, %v5999, %v6008
  %v6011 = vshrl.u32 %v5866, 16
  %v6013 = vrot.slane %v6011, 3
  %v6014 = vshll.u32 %v5866, 16
  %v6016 = vrot.slane %v6014, 4
  %v6017 = vor.u32 %v6013, %v6016
  %v6018 = vsel %vm1366, %v6008, %v6017
  %6035 = vst.msk [vmem:[#allocation2 + $0x298] sm:$0xff] %vm1535, %v5883
  %6036 = vst.msk [vmem:[#allocation2 + $0x2c0] sm:$0xff] %vm1535, %v5892
  %6037 = vst.msk [vmem:[#allocation2 + $0x2e8] sm:$0xff] %vm1535, %v5901
  %6038 = vst.msk [vmem:[#allocation2 + $0x310] sm:$0xff] %vm1535, %v5910
  %6039 = vst.msk [vmem:[#allocation2 + $0x338] sm:$0xff] %vm1535, %v5919
  %6040 = vst.msk [vmem:[#allocation2 + $0x360] sm:$0xff] %vm1535, %v5928
  %6041 = vst.msk [vmem:[#allocation2 + $0x388] sm:$0xff] %vm1535, %v5937
  %6042 = vst.msk [vmem:[#allocation2 + $0x3b0] sm:$0xff] %vm1535, %v5946
  %6043 = vst.msk [vmem:[#allocation2 + $0x3d8] sm:$0xff] %vm1535, %v5955
  %6044 = vst.msk [vmem:[#allocation2 + $0x400] sm:$0xff] %vm1535, %v5964
  %6045 = vst.msk [vmem:[#allocation2 + $0x428] sm:$0xff] %vm1535, %v5973
  %6046 = vst.msk [vmem:[#allocation2 + $0x450] sm:$0xff] %vm1535, %v5982
  %6047 = vst.msk [vmem:[#allocation2 + $0x478] sm:$0xff] %vm1535, %v5991
  %6048 = vst.msk [vmem:[#allocation2 + $0x4a0] sm:$0xff] %vm1535, %v6000
  %6049 = vst.msk [vmem:[#allocation2 + $0x4c8] sm:$0xff] %vm1535, %v6009
  %6050 = vst.msk [vmem:[#allocation2 + $0x4f0] sm:$0xff] %vm1535, %v6018
  %v6051 = vld [vmem:[%s0 + $0xac] sm:$0xf]
  %v6052 = vld [vmem:[%s0 + $0xb0] sm:$0xf]
  %v6053 = vld [vmem:[%s0 + $0xb4] sm:$0xf]
  %v6054 = vld [vmem:[%s0 + $0xb8] sm:$0xf]
  %v6055 = vld [vmem:[%s0 + $0xbc] sm:$0xf]
  %v6056 = vld [vmem:[%s0 + $0xc0] sm:$0xf]
  %v6057 = vld [vmem:[%s0 + $0xc4] sm:$0xf]
  %v6058 = vld [vmem:[%s0 + $0xc8] sm:$0xf]
  %v6059 = vld [vmem:[%s0 + $0xcc] sm:$0xf]
  %v6060 = vld [vmem:[%s0 + $0xd0] sm:$0xf]
  %v6061 = vld [vmem:[%s0 + $0xd4] sm:$0xf]
  %v6062 = vld [vmem:[%s0 + $0xd8] sm:$0xf]
  %v6063 = vld [vmem:[%s0 + $0xdc] sm:$0xf]
  %v6064 = vld [vmem:[%s0 + $0xe0] sm:$0xf]
  %v6065 = vld [vmem:[%s0 + $0xe4] sm:$0xf]
  %v6066 = vld [vmem:[%s0 + $0xe8] sm:$0xf]
  %v6067 = vld [vmem:[%s0 + $0xec] sm:$0xf]
  %v6068 = vld [vmem:[%s0 + $0xf0] sm:$0xf]
  %v6069 = vld [vmem:[%s0 + $0xf4] sm:$0xf]
  %v6070 = vld [vmem:[%s0 + $0xf8] sm:$0xf]
  %v6071 = vld [vmem:[%s0 + $0xfc] sm:$0xf]
  %v6072 = vld [vmem:[%s0 + $0x100] sm:$0xf]
  %v6073 = vld [vmem:[%s0 + $0x104] sm:$0xf]
  %v6074 = vld [vmem:[%s0 + $0x108] sm:$0xf]
  %v6075 = vld [vmem:[%s0 + $0x10c] sm:$0xf]
  %v6076 = vld [vmem:[%s0 + $0x110] sm:$0xf]
  %v6077 = vld [vmem:[%s0 + $0x114] sm:$0xf]
  %v6078 = vld [vmem:[%s0 + $0x118] sm:$0xf]
  %v6079 = vld [vmem:[%s0 + $0x11c] sm:$0xf]
  %v6080 = vld [vmem:[%s0 + $0x120] sm:$0xf]
  %v6081 = vld [vmem:[%s0 + $0x124] sm:$0xf]
  %v6082 = vld [vmem:[%s0 + $0x128] sm:$0xf]
  %v6115 = vunpack.c.l.b16 %v6051
  %v6116 = vunpack.c.l.b16 %v6052
  %v6117 = vunpack.c.l.b16 %v6053
  %v6118 = vunpack.c.l.b16 %v6054
  %v6119 = vunpack.c.l.b16 %v6055
  %v6120 = vunpack.c.l.b16 %v6056
  %v6121 = vunpack.c.l.b16 %v6057
  %v6122 = vunpack.c.l.b16 %v6058
  %v6123 = vunpack.c.l.b16 %v6059
  %v6124 = vunpack.c.l.b16 %v6060
  %v6125 = vunpack.c.l.b16 %v6061
  %v6126 = vunpack.c.l.b16 %v6062
  %v6127 = vunpack.c.l.b16 %v6063
  %v6128 = vunpack.c.l.b16 %v6064
  %v6129 = vunpack.c.l.b16 %v6065
  %v6130 = vunpack.c.l.b16 %v6066
  %v6131 = vunpack.c.l.b16 %v6067
  %v6132 = vunpack.c.l.b16 %v6068
  %v6133 = vunpack.c.l.b16 %v6069
  %v6134 = vunpack.c.l.b16 %v6070
  %v6135 = vunpack.c.l.b16 %v6071
  %v6136 = vunpack.c.l.b16 %v6072
  %v6137 = vunpack.c.l.b16 %v6073
  %v6138 = vunpack.c.l.b16 %v6074
  %v6139 = vunpack.c.l.b16 %v6075
  %v6140 = vunpack.c.l.b16 %v6076
  %v6141 = vunpack.c.l.b16 %v6077
  %v6142 = vunpack.c.l.b16 %v6078
  %v6143 = vunpack.c.l.b16 %v6079
  %v6144 = vunpack.c.l.b16 %v6080
  %v6145 = vunpack.c.l.b16 %v6081
  %v6146 = vunpack.c.l.b16 %v6082
  %v6147 = vpack.c.b16 %v6116, %v6115
  %v6148 = vpack.c.b16 %v6118, %v6117
  %v6149 = vpack.c.b16 %v6120, %v6119
  %v6150 = vpack.c.b16 %v6122, %v6121
  %v6151 = vpack.c.b16 %v6124, %v6123
  %v6152 = vpack.c.b16 %v6126, %v6125
  %v6153 = vpack.c.b16 %v6128, %v6127
  %v6154 = vpack.c.b16 %v6130, %v6129
  %v6155 = vpack.c.b16 %v6132, %v6131
  %v6156 = vpack.c.b16 %v6134, %v6133
  %v6157 = vpack.c.b16 %v6136, %v6135
  %v6158 = vpack.c.b16 %v6138, %v6137
  %v6159 = vpack.c.b16 %v6140, %v6139
  %v6160 = vpack.c.b16 %v6142, %v6141
  %v6161 = vpack.c.b16 %v6144, %v6143
  %v6162 = vpack.c.b16 %v6146, %v6145
  %6163 = vrot.lane.b32.xlu0 %v6147, 64
  %v6164 = vpop.permute.xlu0 %6163
  %6165 = vrot.lane.b32.xlu0 %v6148, 64
  %v6166 = vpop.permute.xlu0 %6165
  %6167 = vrot.lane.b32.xlu0 %v6149, 64
  %v6168 = vpop.permute.xlu0 %6167
  %6169 = vrot.lane.b32.xlu0 %v6150, 64
  %v6170 = vpop.permute.xlu0 %6169
  %6171 = vrot.lane.b32.xlu0 %v6151, 64
  %v6172 = vpop.permute.xlu0 %6171
  %6173 = vrot.lane.b32.xlu0 %v6152, 64
  %v6174 = vpop.permute.xlu0 %6173
  %6175 = vrot.lane.b32.xlu0 %v6153, 64
  %v6176 = vpop.permute.xlu0 %6175
  %6177 = vrot.lane.b32.xlu0 %v6154, 64
  %v6178 = vpop.permute.xlu0 %6177
  %6179 = vrot.lane.b32.xlu0 %v6155, 64
  %v6180 = vpop.permute.xlu0 %6179
  %6181 = vrot.lane.b32.xlu0 %v6156, 64
  %v6182 = vpop.permute.xlu0 %6181
  %6183 = vrot.lane.b32.xlu0 %v6157, 64
  %v6184 = vpop.permute.xlu0 %6183
  %6185 = vrot.lane.b32.xlu0 %v6158, 64
  %v6186 = vpop.permute.xlu0 %6185
  %6187 = vrot.lane.b32.xlu0 %v6159, 64
  %v6188 = vpop.permute.xlu0 %6187
  %6189 = vrot.lane.b32.xlu0 %v6160, 64
  %v6190 = vpop.permute.xlu0 %6189
  %6191 = vrot.lane.b32.xlu0 %v6161, 64
  %v6192 = vpop.permute.xlu0 %6191
  %6193 = vrot.lane.b32.xlu0 %v6162, 64
  %v6194 = vpop.permute.xlu0 %6193
  %6211 = vst.msk [vmem:[#allocation2 + $0x298] sm:$0xff] %vm1712, %v6164
  %6212 = vst.msk [vmem:[#allocation2 + $0x2c0] sm:$0xff] %vm1712, %v6166
  %6213 = vst.msk [vmem:[#allocation2 + $0x2e8] sm:$0xff] %vm1712, %v6168
  %6214 = vst.msk [vmem:[#allocation2 + $0x310] sm:$0xff] %vm1712, %v6170
  %6215 = vst.msk [vmem:[#allocation2 + $0x338] sm:$0xff] %vm1712, %v6172
  %6216 = vst.msk [vmem:[#allocation2 + $0x360] sm:$0xff] %vm1712, %v6174
  %6217 = vst.msk [vmem:[#allocation2 + $0x388] sm:$0xff] %vm1712, %v6176
  %6218 = vst.msk [vmem:[#allocation2 + $0x3b0] sm:$0xff] %vm1712, %v6178
  %6219 = vst.msk [vmem:[#allocation2 + $0x3d8] sm:$0xff] %vm1712, %v6180
  %6220 = vst.msk [vmem:[#allocation2 + $0x400] sm:$0xff] %vm1712, %v6182
  %6221 = vst.msk [vmem:[#allocation2 + $0x428] sm:$0xff] %vm1712, %v6184
  %6222 = vst.msk [vmem:[#allocation2 + $0x450] sm:$0xff] %vm1712, %v6186
  %6223 = vst.msk [vmem:[#allocation2 + $0x478] sm:$0xff] %vm1712, %v6188
  %6224 = vst.msk [vmem:[#allocation2 + $0x4a0] sm:$0xff] %vm1712, %v6190
  %6225 = vst.msk [vmem:[#allocation2 + $0x4c8] sm:$0xff] %vm1712, %v6192
  %6226 = vst.msk [vmem:[#allocation2 + $0x4f0] sm:$0xff] %vm1712, %v6194
  %v6227 = vld [vmem:[%s0 + $0xac] sm:$0xf]
  %v6228 = vld [vmem:[%s0 + $0xb0] sm:$0xf]
  %v6229 = vld [vmem:[%s0 + $0xb4] sm:$0xf]
  %v6230 = vld [vmem:[%s0 + $0xb8] sm:$0xf]
  %v6231 = vld [vmem:[%s0 + $0xbc] sm:$0xf]
  %v6232 = vld [vmem:[%s0 + $0xc0] sm:$0xf]
  %v6233 = vld [vmem:[%s0 + $0xc4] sm:$0xf]
  %v6234 = vld [vmem:[%s0 + $0xc8] sm:$0xf]
  %v6235 = vld [vmem:[%s0 + $0xcc] sm:$0xf]
  %v6236 = vld [vmem:[%s0 + $0xd0] sm:$0xf]
  %v6237 = vld [vmem:[%s0 + $0xd4] sm:$0xf]
  %v6238 = vld [vmem:[%s0 + $0xd8] sm:$0xf]
  %v6239 = vld [vmem:[%s0 + $0xdc] sm:$0xf]
  %v6240 = vld [vmem:[%s0 + $0xe0] sm:$0xf]
  %v6241 = vld [vmem:[%s0 + $0xe4] sm:$0xf]
  %v6242 = vld [vmem:[%s0 + $0xe8] sm:$0xf]
  %v6243 = vld [vmem:[%s0 + $0xec] sm:$0xf]
  %v6244 = vld [vmem:[%s0 + $0xf0] sm:$0xf]
  %v6245 = vld [vmem:[%s0 + $0xf4] sm:$0xf]
  %v6246 = vld [vmem:[%s0 + $0xf8] sm:$0xf]
  %v6247 = vld [vmem:[%s0 + $0xfc] sm:$0xf]
  %v6248 = vld [vmem:[%s0 + $0x100] sm:$0xf]
  %v6249 = vld [vmem:[%s0 + $0x104] sm:$0xf]
  %v6250 = vld [vmem:[%s0 + $0x108] sm:$0xf]
  %v6251 = vld [vmem:[%s0 + $0x10c] sm:$0xf]
  %v6252 = vld [vmem:[%s0 + $0x110] sm:$0xf]
  %v6253 = vld [vmem:[%s0 + $0x114] sm:$0xf]
  %v6254 = vld [vmem:[%s0 + $0x118] sm:$0xf]
  %v6255 = vld [vmem:[%s0 + $0x11c] sm:$0xf]
  %v6256 = vld [vmem:[%s0 + $0x120] sm:$0xf]
  %v6257 = vld [vmem:[%s0 + $0x124] sm:$0xf]
  %v6258 = vld [vmem:[%s0 + $0x128] sm:$0xf]
  %v6259 = vld [vmem:[%s0 + $0x12c] sm:$0x1]
  %v6260 = vmul.bf16 %v6227, %v1771
  %v6261 = vmul.bf16 %v6228, %v1780
  %v6262 = vmul.bf16 %v6229, %v1789
  %v6263 = vmul.bf16 %v6230, %v1798
  %v6264 = vmul.bf16 %v6231, %v1807
  %v6265 = vmul.bf16 %v6232, %v1816
  %v6266 = vmul.bf16 %v6233, %v1825
  %v6267 = vmul.bf16 %v6234, %v1834
  %v6268 = vmul.bf16 %v6235, %v1843
  %v6269 = vmul.bf16 %v6236, %v1852
  %v6270 = vmul.bf16 %v6237, %v1861
  %v6271 = vmul.bf16 %v6238, %v1870
  %v6272 = vmul.bf16 %v6239, %v1879
  %v6273 = vmul.bf16 %v6240, %v1888
  %v6274 = vmul.bf16 %v6241, %v1897
  %v6275 = vmul.bf16 %v6242, %v1906
  %v6276 = vmul.bf16 %v6243, %v1915
  %v6277 = vmul.bf16 %v6244, %v1924
  %v6278 = vmul.bf16 %v6245, %v1933
  %v6279 = vmul.bf16 %v6246, %v1942
  %v6280 = vmul.bf16 %v6247, %v1951
  %v6281 = vmul.bf16 %v6248, %v1960
  %v6282 = vmul.bf16 %v6249, %v1969
  %v6283 = vmul.bf16 %v6250, %v1978
  %v6284 = vmul.bf16 %v6251, %v1987
  %v6285 = vmul.bf16 %v6252, %v1996
  %v6286 = vmul.bf16 %v6253, %v2005
  %v6287 = vmul.bf16 %v6254, %v2014
  %v6288 = vmul.bf16 %v6255, %v2023
  %v6289 = vmul.bf16 %v6256, %v2032
  %v6290 = vmul.bf16 %v6257, %v2041
  %v6291 = vmul.bf16 %v6258, %v2050
  %v6292 = vmul.bf16 %v6259, %v2051
  %v6326 = vunpack.c.l.b16 %v6260
  %v6327 = vunpack.c.l.b16 %v6261
  %v6328 = vunpack.c.l.b16 %v6262
  %v6329 = vunpack.c.l.b16 %v6263
  %v6330 = vunpack.c.l.b16 %v6264
  %v6331 = vunpack.c.l.b16 %v6265
  %v6332 = vunpack.c.l.b16 %v6266
  %v6333 = vunpack.c.l.b16 %v6267
  %v6334 = vunpack.c.l.b16 %v6268
  %v6335 = vunpack.c.l.b16 %v6269
  %v6336 = vunpack.c.l.b16 %v6270
  %v6337 = vunpack.c.l.b16 %v6271
  %v6338 = vunpack.c.l.b16 %v6272
  %v6339 = vunpack.c.l.b16 %v6273
  %v6340 = vunpack.c.l.b16 %v6274
  %v6341 = vunpack.c.l.b16 %v6275
  %v6342 = vunpack.c.l.b16 %v6276
  %v6343 = vunpack.c.l.b16 %v6277
  %v6344 = vunpack.c.l.b16 %v6278
  %v6345 = vunpack.c.l.b16 %v6279
  %v6346 = vunpack.c.l.b16 %v6280
  %v6347 = vunpack.c.l.b16 %v6281
  %v6348 = vunpack.c.l.b16 %v6282
  %v6349 = vunpack.c.l.b16 %v6283
  %v6350 = vunpack.c.l.b16 %v6284
  %v6351 = vunpack.c.l.b16 %v6285
  %v6352 = vunpack.c.l.b16 %v6286
  %v6353 = vunpack.c.l.b16 %v6287
  %v6354 = vunpack.c.l.b16 %v6288
  %v6355 = vunpack.c.l.b16 %v6289
  %v6356 = vunpack.c.l.b16 %v6290
  %v6357 = vunpack.c.l.b16 %v6291
  %v6358 = vunpack.c.l.b16 %v6292
  %v6359 = vpack.c.b16 %v6327, %v6326
  %v6360 = vpack.c.b16 %v6329, %v6328
  %v6361 = vpack.c.b16 %v6331, %v6330
  %v6362 = vpack.c.b16 %v6333, %v6332
  %v6363 = vpack.c.b16 %v6335, %v6334
  %v6364 = vpack.c.b16 %v6337, %v6336
  %v6365 = vpack.c.b16 %v6339, %v6338
  %v6366 = vpack.c.b16 %v6341, %v6340
  %v6367 = vpack.c.b16 %v6343, %v6342
  %v6368 = vpack.c.b16 %v6345, %v6344
  %v6369 = vpack.c.b16 %v6347, %v6346
  %v6370 = vpack.c.b16 %v6349, %v6348
  %v6371 = vpack.c.b16 %v6351, %v6350
  %v6372 = vpack.c.b16 %v6353, %v6352
  %v6373 = vpack.c.b16 %v6355, %v6354
  %v6374 = vpack.c.b16 %v6357, %v6356
  %v6375 = vpack.c.b16 %v6358, %v6358
  %v6377 = vshrl.u32 %v6359, 16
  %v6379 = vshll.u32 %v6359, 16
  %v6381 = vrot.slane %v6379, 1
  %v6382 = vor.u32 %v6377, %v6381
  %v6384 = vshll.u32 %v6360, 16
  %v6386 = vrot.slane %v6384, 1
  %v6387 = vsel %vm2201, %v6382, %v6386
  %v6388 = vshrl.u32 %v6360, 16
  %v6390 = vor.u32 %v6388, %v6386
  %v6392 = vshll.u32 %v6361, 16
  %v6394 = vrot.slane %v6392, 1
  %v6395 = vsel %vm2201, %v6390, %v6394
  %v6396 = vshrl.u32 %v6361, 16
  %v6398 = vor.u32 %v6396, %v6394
  %v6400 = vshll.u32 %v6362, 16
  %v6402 = vrot.slane %v6400, 1
  %v6403 = vsel %vm2201, %v6398, %v6402
  %v6404 = vshrl.u32 %v6362, 16
  %v6406 = vor.u32 %v6404, %v6402
  %v6408 = vshll.u32 %v6363, 16
  %v6410 = vrot.slane %v6408, 1
  %v6411 = vsel %vm2201, %v6406, %v6410
  %v6412 = vshrl.u32 %v6363, 16
  %v6414 = vor.u32 %v6412, %v6410
  %v6416 = vshll.u32 %v6364, 16
  %v6418 = vrot.slane %v6416, 1
  %v6419 = vsel %vm2201, %v6414, %v6418
  %v6420 = vshrl.u32 %v6364, 16
  %v6422 = vor.u32 %v6420, %v6418
  %v6424 = vshll.u32 %v6365, 16
  %v6426 = vrot.slane %v6424, 1
  %v6427 = vsel %vm2201, %v6422, %v6426
  %v6428 = vshrl.u32 %v6365, 16
  %v6430 = vor.u32 %v6428, %v6426
  %v6432 = vshll.u32 %v6366, 16
  %v6434 = vrot.slane %v6432, 1
  %v6435 = vsel %vm2201, %v6430, %v6434
  %v6436 = vshrl.u32 %v6366, 16
  %v6438 = vor.u32 %v6436, %v6434
  %v6440 = vshll.u32 %v6367, 16
  %v6442 = vrot.slane %v6440, 1
  %v6443 = vsel %vm2201, %v6438, %v6442
  %v6444 = vshrl.u32 %v6367, 16
  %v6446 = vor.u32 %v6444, %v6442
  %v6448 = vshll.u32 %v6368, 16
  %v6450 = vrot.slane %v6448, 1
  %v6451 = vsel %vm2201, %v6446, %v6450
  %v6452 = vshrl.u32 %v6368, 16
  %v6454 = vor.u32 %v6452, %v6450
  %v6456 = vshll.u32 %v6369, 16
  %v6458 = vrot.slane %v6456, 1
  %v6459 = vsel %vm2201, %v6454, %v6458
  %v6460 = vshrl.u32 %v6369, 16
  %v6462 = vor.u32 %v6460, %v6458
  %v6464 = vshll.u32 %v6370, 16
  %v6466 = vrot.slane %v6464, 1
  %v6467 = vsel %vm2201, %v6462, %v6466
  %v6468 = vshrl.u32 %v6370, 16
  %v6470 = vor.u32 %v6468, %v6466
  %v6472 = vshll.u32 %v6371, 16
  %v6474 = vrot.slane %v6472, 1
  %v6475 = vsel %vm2201, %v6470, %v6474
  %v6476 = vshrl.u32 %v6371, 16
  %v6478 = vor.u32 %v6476, %v6474
  %v6480 = vshll.u32 %v6372, 16
  %v6482 = vrot.slane %v6480, 1
  %v6483 = vsel %vm2201, %v6478, %v6482
  %v6484 = vshrl.u32 %v6372, 16
  %v6486 = vor.u32 %v6484, %v6482
  %v6488 = vshll.u32 %v6373, 16
  %v6490 = vrot.slane %v6488, 1
  %v6491 = vsel %vm2201, %v6486, %v6490
  %v6492 = vshrl.u32 %v6373, 16
  %v6494 = vor.u32 %v6492, %v6490
  %v6496 = vshll.u32 %v6374, 16
  %v6498 = vrot.slane %v6496, 1
  %v6499 = vsel %vm2201, %v6494, %v6498
  %v6500 = vshrl.u32 %v6374, 16
  %v6502 = vor.u32 %v6500, %v6498
  %v6504 = vshll.u32 %v6375, 16
  %v6506 = vrot.slane %v6504, 1
  %v6507 = vsel %vm2201, %v6502, %v6506
  %6524 = vst.msk [vmem:[#allocation2 + $0x2a0] sm:$0xff] %vm1535, %v6387
  %6525 = vst.msk [vmem:[#allocation2 + $0x2c8] sm:$0xff] %vm1535, %v6395
  %6526 = vst.msk [vmem:[#allocation2 + $0x2f0] sm:$0xff] %vm1535, %v6403
  %6527 = vst.msk [vmem:[#allocation2 + $0x318] sm:$0xff] %vm1535, %v6411
  %6528 = vst.msk [vmem:[#allocation2 + $0x340] sm:$0xff] %vm1535, %v6419
  %6529 = vst.msk [vmem:[#allocation2 + $0x368] sm:$0xff] %vm1535, %v6427
  %6530 = vst.msk [vmem:[#allocation2 + $0x390] sm:$0xff] %vm1535, %v6435
  %6531 = vst.msk [vmem:[#allocation2 + $0x3b8] sm:$0xff] %vm1535, %v6443
  %6532 = vst.msk [vmem:[#allocation2 + $0x3e0] sm:$0xff] %vm1535, %v6451
  %6533 = vst.msk [vmem:[#allocation2 + $0x408] sm:$0xff] %vm1535, %v6459
  %6534 = vst.msk [vmem:[#allocation2 + $0x430] sm:$0xff] %vm1535, %v6467
  %6535 = vst.msk [vmem:[#allocation2 + $0x458] sm:$0xff] %vm1535, %v6475
  %6536 = vst.msk [vmem:[#allocation2 + $0x480] sm:$0xff] %vm1535, %v6483
  %6537 = vst.msk [vmem:[#allocation2 + $0x4a8] sm:$0xff] %vm1535, %v6491
  %6538 = vst.msk [vmem:[#allocation2 + $0x4d0] sm:$0xff] %vm1535, %v6499
  %6539 = vst.msk [vmem:[#allocation2 + $0x4f8] sm:$0xff] %vm1535, %v6507
  %v6540 = vld [vmem:[#allocation2] sm:$0xff]
  %v6541 = vld [vmem:[#allocation2 + $0x8] sm:$0xff]
  %v6542 = vld [vmem:[#allocation2 + $0x10] sm:$0xff]
  %v6543 = vld [vmem:[#allocation2 + $0x18] sm:$0xff]
  %v6544 = vld [vmem:[#allocation2 + $0x20] sm:$0xff]
  %v6545 = vld [vmem:[#allocation2 + $0x28] sm:$0xff]
  %v6546 = vld [vmem:[#allocation2 + $0x30] sm:$0xff]
  %v6547 = vld [vmem:[#allocation2 + $0x38] sm:$0xff]
  %v6548 = vld [vmem:[#allocation2 + $0x40] sm:$0xff]
  %v6549 = vld [vmem:[#allocation2 + $0x48] sm:$0xff]
  %v6550 = vld [vmem:[#allocation2 + $0x50] sm:$0xff]
  %v6551 = vld [vmem:[#allocation2 + $0x58] sm:$0xff]
  %v6552 = vld [vmem:[#allocation2 + $0x60] sm:$0xff]
  %v6553 = vld [vmem:[#allocation2 + $0x68] sm:$0xff]
  %v6554 = vld [vmem:[#allocation2 + $0x70] sm:$0xff]
  %v6555 = vld [vmem:[#allocation2 + $0x78] sm:$0xff]
  %v6556 = vld [vmem:[#allocation2 + $0x80] sm:$0xff]
  %v6557 = vld [vmem:[#allocation2 + $0x88] sm:$0xff]
  %v6558 = vld [vmem:[#allocation2 + $0x90] sm:$0xff]
  %v6559 = vld [vmem:[#allocation2 + $0x98] sm:$0xff]
  %v6560 = vld [vmem:[#allocation2 + $0xa0] sm:$0xff]
  %v6561 = vld [vmem:[#allocation2 + $0xa8] sm:$0xff]
  %v6562 = vld [vmem:[#allocation2 + $0xb0] sm:$0xff]
  %v6563 = vld [vmem:[#allocation2 + $0xb8] sm:$0xff]
  %v6564 = vld [vmem:[#allocation2 + $0xc0] sm:$0xff]
  %v6565 = vld [vmem:[#allocation2 + $0xc8] sm:$0xff]
  %v6566 = vld [vmem:[#allocation2 + $0xd0] sm:$0xff]
  %v6567 = vld [vmem:[#allocation2 + $0xd8] sm:$0xff]
  %v6568 = vld [vmem:[#allocation2 + $0xe0] sm:$0xff]
  %v6569 = vld [vmem:[#allocation2 + $0xe8] sm:$0xff]
  %v6570 = vld [vmem:[#allocation2 + $0xf0] sm:$0xff]
  %v6571 = vld [vmem:[#allocation2 + $0xf8] sm:$0xff]
  %v6572 = vld [vmem:[#allocation2 + $0x100] sm:$0xff]
  %v6573 = vld [vmem:[#allocation2 + $0x108] sm:$0xff]
  %v6574 = vld [vmem:[#allocation2 + $0x110] sm:$0xff]
  %v6575 = vld [vmem:[#allocation2 + $0x118] sm:$0xff]
  %v6576 = vld [vmem:[#allocation2 + $0x120] sm:$0xff]
  %v6577 = vld [vmem:[#allocation2 + $0x128] sm:$0xff]
  %v6578 = vld [vmem:[#allocation2 + $0x130] sm:$0xff]
  %v6579 = vld [vmem:[#allocation2 + $0x138] sm:$0xff]
  %v6580 = vld [vmem:[#allocation2 + $0x140] sm:$0xff]
  %v6581 = vld [vmem:[#allocation2 + $0x148] sm:$0xff]
  %v6582 = vld [vmem:[#allocation2 + $0x150] sm:$0xff]
  %v6583 = vld [vmem:[#allocation2 + $0x158] sm:$0xff]
  %v6584 = vld [vmem:[#allocation2 + $0x160] sm:$0xff]
  %v6585 = vld [vmem:[#allocation2 + $0x168] sm:$0xff]
  %v6586 = vld [vmem:[#allocation2 + $0x170] sm:$0xff]
  %v6587 = vld [vmem:[#allocation2 + $0x178] sm:$0xff]
  %v6588 = vld [vmem:[#allocation2 + $0x180] sm:$0xff]
  %v6589 = vld [vmem:[#allocation2 + $0x188] sm:$0xff]
  %v6590 = vld [vmem:[#allocation2 + $0x190] sm:$0xff]
  %v6591 = vld [vmem:[#allocation2 + $0x198] sm:$0xff]
  %v6592 = vld [vmem:[#allocation2 + $0x1a0] sm:$0xff]
  %v6593 = vld [vmem:[#allocation2 + $0x1a8] sm:$0xff]
  %v6594 = vld [vmem:[#allocation2 + $0x1b0] sm:$0xff]
  %v6595 = vld [vmem:[#allocation2 + $0x1b8] sm:$0xff]
  %v6596 = vld [vmem:[#allocation2 + $0x1c0] sm:$0xff]
  %v6597 = vld [vmem:[#allocation2 + $0x1c8] sm:$0xff]
  %v6598 = vld [vmem:[#allocation2 + $0x1d0] sm:$0xff]
  %v6599 = vld [vmem:[#allocation2 + $0x1d8] sm:$0xff]
  %v6600 = vld [vmem:[#allocation2 + $0x1e0] sm:$0xff]
  %v6601 = vld [vmem:[#allocation2 + $0x1e8] sm:$0xff]
  %v6602 = vld [vmem:[#allocation2 + $0x1f0] sm:$0xff]
  %v6603 = vld [vmem:[#allocation2 + $0x1f8] sm:$0xff]
  %v6604 = vld [vmem:[#allocation2 + $0x200] sm:$0xff]
  %v6605 = vld [vmem:[#allocation2 + $0x208] sm:$0xff]
  %v6606 = vld [vmem:[#allocation2 + $0x210] sm:$0xff]
  %v6607 = vld [vmem:[#allocation2 + $0x218] sm:$0xff]
  %v6608 = vld [vmem:[#allocation2 + $0x220] sm:$0xff]
  %v6609 = vld [vmem:[#allocation2 + $0x228] sm:$0xff]
  %v6610 = vld [vmem:[#allocation2 + $0x230] sm:$0xff]
  %v6611 = vld [vmem:[#allocation2 + $0x238] sm:$0xff]
  %v6612 = vld [vmem:[#allocation2 + $0x240] sm:$0xff]
  %v6613 = vld [vmem:[#allocation2 + $0x248] sm:$0xff]
  %v6614 = vld [vmem:[#allocation2 + $0x250] sm:$0xff]
  %v6615 = vld [vmem:[#allocation2 + $0x258] sm:$0xff]
  %v6616 = vld [vmem:[#allocation2 + $0x260] sm:$0xff]
  %v6617 = vld [vmem:[#allocation2 + $0x268] sm:$0xff]
  %v6618 = vld [vmem:[#allocation2 + $0x270] sm:$0xff]
  %v6619 = vld [vmem:[#allocation2 + $0x278] sm:$0xff]
  %v6620 = vld [vmem:[#allocation2 + $0x280] sm:$0xff]
  %v6621 = vld [vmem:[#allocation2 + $0x288] sm:$0xff]
  %v6622 = vld [vmem:[#allocation2 + $0x290] sm:$0xff]
  %v6623 = vld [vmem:[#allocation2 + $0x298] sm:$0xff]
  %v6624 = vld [vmem:[#allocation2 + $0x2a0] sm:$0xff]
  %v6625 = vld [vmem:[#allocation2 + $0x2a8] sm:$0xff]
  %v6626 = vld [vmem:[#allocation2 + $0x2b0] sm:$0xff]
  %v6627 = vld [vmem:[#allocation2 + $0x2b8] sm:$0xff]
  %v6628 = vld [vmem:[#allocation2 + $0x2c0] sm:$0xff]
  %v6629 = vld [vmem:[#allocation2 + $0x2c8] sm:$0xff]
  %v6630 = vld [vmem:[#allocation2 + $0x2d0] sm:$0xff]
  %v6631 = vld [vmem:[#allocation2 + $0x2d8] sm:$0xff]
  %v6632 = vld [vmem:[#allocation2 + $0x2e0] sm:$0xff]
  %v6633 = vld [vmem:[#allocation2 + $0x2e8] sm:$0xff]
  %v6634 = vld [vmem:[#allocation2 + $0x2f0] sm:$0xff]
  %v6635 = vld [vmem:[#allocation2 + $0x2f8] sm:$0xff]
  %v6636 = vld [vmem:[#allocation2 + $0x300] sm:$0xff]
  %v6637 = vld [vmem:[#allocation2 + $0x308] sm:$0xff]
  %v6638 = vld [vmem:[#allocation2 + $0x310] sm:$0xff]
  %v6639 = vld [vmem:[#allocation2 + $0x318] sm:$0xff]
  %v6640 = vld [vmem:[#allocation2 + $0x320] sm:$0xff]
  %v6641 = vld [vmem:[#allocation2 + $0x328] sm:$0xff]
  %v6642 = vld [vmem:[#allocation2 + $0x330] sm:$0xff]
  %v6643 = vld [vmem:[#allocation2 + $0x338] sm:$0xff]
  %v6644 = vld [vmem:[#allocation2 + $0x340] sm:$0xff]
  %v6645 = vld [vmem:[#allocation2 + $0x348] sm:$0xff]
  %v6646 = vld [vmem:[#allocation2 + $0x350] sm:$0xff]
  %v6647 = vld [vmem:[#allocation2 + $0x358] sm:$0xff]
  %v6648 = vld [vmem:[#allocation2 + $0x360] sm:$0xff]
  %v6649 = vld [vmem:[#allocation2 + $0x368] sm:$0xff]
  %v6650 = vld [vmem:[#allocation2 + $0x370] sm:$0xff]
  %v6651 = vld [vmem:[#allocation2 + $0x378] sm:$0xff]
  %v6652 = vld [vmem:[#allocation2 + $0x380] sm:$0xff]
  %v6653 = vld [vmem:[#allocation2 + $0x388] sm:$0xff]
  %v6654 = vld [vmem:[#allocation2 + $0x390] sm:$0xff]
  %v6655 = vld [vmem:[#allocation2 + $0x398] sm:$0xff]
  %v6656 = vld [vmem:[#allocation2 + $0x3a0] sm:$0xff]
  %v6657 = vld [vmem:[#allocation2 + $0x3a8] sm:$0xff]
  %v6658 = vld [vmem:[#allocation2 + $0x3b0] sm:$0xff]
  %v6659 = vld [vmem:[#allocation2 + $0x3b8] sm:$0xff]
  %v6660 = vld [vmem:[#allocation2 + $0x3c0] sm:$0xff]
  %v6661 = vld [vmem:[#allocation2 + $0x3c8] sm:$0xff]
  %v6662 = vld [vmem:[#allocation2 + $0x3d0] sm:$0xff]
  %v6663 = vld [vmem:[#allocation2 + $0x3d8] sm:$0xff]
  %v6664 = vld [vmem:[#allocation2 + $0x3e0] sm:$0xff]
  %v6665 = vld [vmem:[#allocation2 + $0x3e8] sm:$0xff]
  %v6666 = vld [vmem:[#allocation2 + $0x3f0] sm:$0xff]
  %v6667 = vld [vmem:[#allocation2 + $0x3f8] sm:$0xff]
  %v6668 = vld [vmem:[#allocation2 + $0x400] sm:$0xff]
  %v6669 = vld [vmem:[#allocation2 + $0x408] sm:$0xff]
  %v6670 = vld [vmem:[#allocation2 + $0x410] sm:$0xff]
  %v6671 = vld [vmem:[#allocation2 + $0x418] sm:$0xff]
  %v6672 = vld [vmem:[#allocation2 + $0x420] sm:$0xff]
  %v6673 = vld [vmem:[#allocation2 + $0x428] sm:$0xff]
  %v6674 = vld [vmem:[#allocation2 + $0x430] sm:$0xff]
  %v6675 = vld [vmem:[#allocation2 + $0x438] sm:$0xff]
  %v6676 = vld [vmem:[#allocation2 + $0x440] sm:$0xff]
  %v6677 = vld [vmem:[#allocation2 + $0x448] sm:$0xff]
  %v6678 = vld [vmem:[#allocation2 + $0x450] sm:$0xff]
  %v6679 = vld [vmem:[#allocation2 + $0x458] sm:$0xff]
  %v6680 = vld [vmem:[#allocation2 + $0x460] sm:$0xff]
  %v6681 = vld [vmem:[#allocation2 + $0x468] sm:$0xff]
  %v6682 = vld [vmem:[#allocation2 + $0x470] sm:$0xff]
  %v6683 = vld [vmem:[#allocation2 + $0x478] sm:$0xff]
  %v6684 = vld [vmem:[#allocation2 + $0x480] sm:$0xff]
  %v6685 = vld [vmem:[#allocation2 + $0x488] sm:$0xff]
  %v6686 = vld [vmem:[#allocation2 + $0x490] sm:$0xff]
  %v6687 = vld [vmem:[#allocation2 + $0x498] sm:$0xff]
  %v6688 = vld [vmem:[#allocation2 + $0x4a0] sm:$0xff]
  %v6689 = vld [vmem:[#allocation2 + $0x4a8] sm:$0xff]
  %v6690 = vld [vmem:[#allocation2 + $0x4b0] sm:$0xff]
  %v6691 = vld [vmem:[#allocation2 + $0x4b8] sm:$0xff]
  %v6692 = vld [vmem:[#allocation2 + $0x4c0] sm:$0xff]
  %v6693 = vld [vmem:[#allocation2 + $0x4c8] sm:$0xff]
  %v6694 = vld [vmem:[#allocation2 + $0x4d0] sm:$0xff]
  %v6695 = vld [vmem:[#allocation2 + $0x4d8] sm:$0xff]
  %v6696 = vld [vmem:[#allocation2 + $0x4e0] sm:$0xff]
  %v6697 = vld [vmem:[#allocation2 + $0x4e8] sm:$0xff]
  %v6698 = vld [vmem:[#allocation2 + $0x4f0] sm:$0xff]
  %v6699 = vld [vmem:[#allocation2 + $0x4f8] sm:$0xff]
  %v6700 = vld [vmem:[%s3] sm:$0xf]
  %v6701 = vld [vmem:[%s3 + $0x4] sm:$0xf]
  %v6702 = vld [vmem:[%s3 + $0x8] sm:$0xf]
  %v6703 = vld [vmem:[%s3 + $0xc] sm:$0xf]
  %v6704 = vld [vmem:[%s3 + $0x10] sm:$0xf]
  %v6705 = vld [vmem:[%s3 + $0x14] sm:$0xf]
  %v6706 = vld [vmem:[%s3 + $0x18] sm:$0xf]
  %v6707 = vld [vmem:[%s3 + $0x1c] sm:$0xf]
  %v6708 = vld [vmem:[%s3 + $0x20] sm:$0xf]
  %v6709 = vld [vmem:[%s3 + $0x24] sm:$0xf]
  %v6710 = vld [vmem:[%s3 + $0x28] sm:$0xf]
  %v6711 = vld [vmem:[%s3 + $0x2c] sm:$0xf]
  %v6712 = vld [vmem:[%s3 + $0x30] sm:$0xf]
  %v6713 = vld [vmem:[%s3 + $0x34] sm:$0xf]
  %v6714 = vld [vmem:[%s3 + $0x38] sm:$0xf]
  %v6715 = vld [vmem:[%s3 + $0x3c] sm:$0xf]
  %v6716 = vld [vmem:[%s3 + $0x40] sm:$0xf]
  %v6717 = vld [vmem:[%s3 + $0x44] sm:$0xf]
  %v6718 = vld [vmem:[%s3 + $0x48] sm:$0xf]
  %v6719 = vld [vmem:[%s3 + $0x4c] sm:$0xf]
  %v6720 = vld [vmem:[%s3 + $0x50] sm:$0xf]
  %v6721 = vld [vmem:[%s3 + $0x54] sm:$0xf]
  %v6722 = vld [vmem:[%s3 + $0x58] sm:$0xf]
  %v6723 = vld [vmem:[%s3 + $0x5c] sm:$0xf]
  %v6724 = vld [vmem:[%s3 + $0x60] sm:$0xf]
  %v6725 = vld [vmem:[%s3 + $0x64] sm:$0xf]
  %v6726 = vld [vmem:[%s3 + $0x68] sm:$0xf]
  %v6727 = vld [vmem:[%s3 + $0x6c] sm:$0xf]
  %v6728 = vld [vmem:[%s3 + $0x70] sm:$0xf]
  %v6729 = vld [vmem:[%s3 + $0x74] sm:$0xf]
  %v6730 = vld [vmem:[%s3 + $0x78] sm:$0xf]
  %v6731 = vld [vmem:[%s3 + $0x7c] sm:$0xf]
  %v6732 = vld [vmem:[%s3 + $0x80] sm:$0xf]
  %v6733 = vld [vmem:[%s3 + $0x84] sm:$0xf]
  %v6734 = vld [vmem:[%s3 + $0x88] sm:$0xf]
  %v6735 = vld [vmem:[%s3 + $0x8c] sm:$0xf]
  %v6736 = vld [vmem:[%s3 + $0x90] sm:$0xf]
  %v6737 = vld [vmem:[%s3 + $0x94] sm:$0xf]
  %v6738 = vld [vmem:[%s3 + $0x98] sm:$0xf]
  %v6739 = vld [vmem:[%s3 + $0x9c] sm:$0xf]
  %v6740 = vld [vmem:[%s3 + $0xa0] sm:$0xf]
  %v6741 = vld [vmem:[%s3 + $0xa4] sm:$0xf]
  %v6742 = vld [vmem:[%s3 + $0xa8] sm:$0xf]
  %v6743 = vld [vmem:[%s3 + $0xac] sm:$0xf]
  %v6744 = vld [vmem:[%s3 + $0xb0] sm:$0xf]
  %v6745 = vld [vmem:[%s3 + $0xb4] sm:$0xf]
  %v6746 = vld [vmem:[%s3 + $0xb8] sm:$0xf]
  %v6747 = vld [vmem:[%s3 + $0xbc] sm:$0xf]
  %v6748 = vld [vmem:[%s3 + $0xc0] sm:$0xf]
  %v6749 = vld [vmem:[%s3 + $0xc4] sm:$0xf]
  %v6750 = vld [vmem:[%s3 + $0xc8] sm:$0xf]
  %v6751 = vld [vmem:[%s3 + $0xcc] sm:$0xf]
  %v6752 = vld [vmem:[%s3 + $0xd0] sm:$0xf]
  %v6753 = vld [vmem:[%s3 + $0xd4] sm:$0xf]
  %v6754 = vld [vmem:[%s3 + $0xd8] sm:$0xf]
  %v6755 = vld [vmem:[%s3 + $0xdc] sm:$0xf]
  %v6756 = vld [vmem:[%s3 + $0xe0] sm:$0xf]
  %v6757 = vld [vmem:[%s3 + $0xe4] sm:$0xf]
  %v6758 = vld [vmem:[%s3 + $0xe8] sm:$0xf]
  %v6759 = vld [vmem:[%s3 + $0xec] sm:$0xf]
  %v6760 = vld [vmem:[%s3 + $0xf0] sm:$0xf]
  %v6761 = vld [vmem:[%s3 + $0xf4] sm:$0xf]
  %v6762 = vld [vmem:[%s3 + $0xf8] sm:$0xf]
  %v6763 = vld [vmem:[%s3 + $0xfc] sm:$0xf]
  %v6764 = vld [vmem:[%s3 + $0x100] sm:$0xf]
  %v6765 = vld [vmem:[%s3 + $0x104] sm:$0xf]
  %v6766 = vld [vmem:[%s3 + $0x108] sm:$0xf]
  %v6767 = vld [vmem:[%s3 + $0x10c] sm:$0xf]
  %v6768 = vld [vmem:[%s3 + $0x110] sm:$0xf]
  %v6769 = vld [vmem:[%s3 + $0x114] sm:$0xf]
  %v6770 = vld [vmem:[%s3 + $0x118] sm:$0xf]
  %v6771 = vld [vmem:[%s3 + $0x11c] sm:$0xf]
  %v6844 = vunpack.c.l.b16 %v6700
  %v6845 = vunpack.c.l.b16 %v6701
  %v6846 = vunpack.c.l.b16 %v6702
  %v6847 = vunpack.c.l.b16 %v6703
  %v6848 = vunpack.c.l.b16 %v6704
  %v6849 = vunpack.c.l.b16 %v6705
  %v6850 = vunpack.c.l.b16 %v6706
  %v6851 = vunpack.c.l.b16 %v6707
  %v6852 = vunpack.c.l.b16 %v6708
  %v6853 = vunpack.c.l.b16 %v6709
  %v6854 = vunpack.c.l.b16 %v6710
  %v6855 = vunpack.c.l.b16 %v6711
  %v6856 = vunpack.c.l.b16 %v6712
  %v6857 = vunpack.c.l.b16 %v6713
  %v6858 = vunpack.c.l.b16 %v6714
  %v6859 = vunpack.c.l.b16 %v6715
  %v6860 = vunpack.c.l.b16 %v6716
  %v6861 = vunpack.c.l.b16 %v6717
  %v6862 = vunpack.c.l.b16 %v6718
  %v6863 = vunpack.c.l.b16 %v6719
  %v6864 = vunpack.c.l.b16 %v6720
  %v6865 = vunpack.c.l.b16 %v6721
  %v6866 = vunpack.c.l.b16 %v6722
  %v6867 = vunpack.c.l.b16 %v6723
  %v6868 = vunpack.c.l.b16 %v6724
  %v6869 = vunpack.c.l.b16 %v6725
  %v6870 = vunpack.c.l.b16 %v6726
  %v6871 = vunpack.c.l.b16 %v6727
  %v6872 = vunpack.c.l.b16 %v6728
  %v6873 = vunpack.c.l.b16 %v6729
  %v6874 = vunpack.c.l.b16 %v6730
  %v6875 = vunpack.c.l.b16 %v6731
  %v6876 = vunpack.c.l.b16 %v6732
  %v6877 = vunpack.c.l.b16 %v6733
  %v6878 = vunpack.c.l.b16 %v6734
  %v6879 = vunpack.c.l.b16 %v6735
  %v6880 = vunpack.c.l.b16 %v6736
  %v6881 = vunpack.c.l.b16 %v6737
  %v6882 = vunpack.c.l.b16 %v6738
  %v6883 = vunpack.c.l.b16 %v6739
  %v6884 = vunpack.c.l.b16 %v6740
  %v6885 = vunpack.c.l.b16 %v6741
  %v6886 = vunpack.c.l.b16 %v6742
  %v6887 = vunpack.c.l.b16 %v6743
  %v6888 = vunpack.c.l.b16 %v6744
  %v6889 = vunpack.c.l.b16 %v6745
  %v6890 = vunpack.c.l.b16 %v6746
  %v6891 = vunpack.c.l.b16 %v6747
  %v6892 = vunpack.c.l.b16 %v6748
  %v6893 = vunpack.c.l.b16 %v6749
  %v6894 = vunpack.c.l.b16 %v6750
  %v6895 = vunpack.c.l.b16 %v6751
  %v6896 = vunpack.c.l.b16 %v6752
  %v6897 = vunpack.c.l.b16 %v6753
  %v6898 = vunpack.c.l.b16 %v6754
  %v6899 = vunpack.c.l.b16 %v6755
  %v6900 = vunpack.c.l.b16 %v6756
  %v6901 = vunpack.c.l.b16 %v6757
  %v6902 = vunpack.c.l.b16 %v6758
  %v6903 = vunpack.c.l.b16 %v6759
  %v6904 = vunpack.c.l.b16 %v6760
  %v6905 = vunpack.c.l.b16 %v6761
  %v6906 = vunpack.c.l.b16 %v6762
  %v6907 = vunpack.c.l.b16 %v6763
  %v6908 = vunpack.c.l.b16 %v6764
  %v6909 = vunpack.c.l.b16 %v6765
  %v6910 = vunpack.c.l.b16 %v6766
  %v6911 = vunpack.c.l.b16 %v6767
  %v6912 = vunpack.c.l.b16 %v6768
  %v6913 = vunpack.c.l.b16 %v6769
  %v6914 = vunpack.c.l.b16 %v6770
  %v6915 = vunpack.c.l.b16 %v6771
  %v6916 = vpack.c.b16 %v6845, %v6844
  %v6917 = vpack.c.b16 %v6847, %v6846
  %v6918 = vpack.c.b16 %v6849, %v6848
  %v6919 = vpack.c.b16 %v6851, %v6850
  %v6920 = vpack.c.b16 %v6853, %v6852
  %v6921 = vpack.c.b16 %v6855, %v6854
  %v6922 = vpack.c.b16 %v6857, %v6856
  %v6923 = vpack.c.b16 %v6859, %v6858
  %v6924 = vpack.c.b16 %v6861, %v6860
  %v6925 = vpack.c.b16 %v6863, %v6862
  %v6926 = vpack.c.b16 %v6865, %v6864
  %v6927 = vpack.c.b16 %v6867, %v6866
  %v6928 = vpack.c.b16 %v6869, %v6868
  %v6929 = vpack.c.b16 %v6871, %v6870
  %v6930 = vpack.c.b16 %v6873, %v6872
  %v6931 = vpack.c.b16 %v6875, %v6874
  %v6932 = vpack.c.b16 %v6877, %v6876
  %v6933 = vpack.c.b16 %v6879, %v6878
  %v6934 = vpack.c.b16 %v6881, %v6880
  %v6935 = vpack.c.b16 %v6883, %v6882
  %v6936 = vpack.c.b16 %v6885, %v6884
  %v6937 = vpack.c.b16 %v6887, %v6886
  %v6938 = vpack.c.b16 %v6889, %v6888
  %v6939 = vpack.c.b16 %v6891, %v6890
  %v6940 = vpack.c.b16 %v6893, %v6892
  %v6941 = vpack.c.b16 %v6895, %v6894
  %v6942 = vpack.c.b16 %v6897, %v6896
  %v6943 = vpack.c.b16 %v6899, %v6898
  %v6944 = vpack.c.b16 %v6901, %v6900
  %v6945 = vpack.c.b16 %v6903, %v6902
  %v6946 = vpack.c.b16 %v6905, %v6904
  %v6947 = vpack.c.b16 %v6907, %v6906
  %v6948 = vpack.c.b16 %v6909, %v6908
  %v6949 = vpack.c.b16 %v6911, %v6910
  %v6950 = vpack.c.b16 %v6913, %v6912
  %v6951 = vpack.c.b16 %v6915, %v6914
  %v6989 = vsel %vm1535, %v6544, 0
  %v6992 = vsel %vm1535, %v6549, 0
  %v6995 = vsel %vm1535, %v6554, 0
  %v6998 = vsel %vm1535, %v6559, 0
  %v7001 = vsel %vm1535, %v6564, 0
  %v7004 = vsel %vm1535, %v6569, 0
  %v7007 = vsel %vm1535, %v6574, 0
  %v7010 = vsel %vm1535, %v6579, 0
  %v7013 = vsel %vm1535, %v6584, 0
  %v7016 = vsel %vm1535, %v6589, 0
  %v7019 = vsel %vm1535, %v6594, 0
  %v7022 = vsel %vm1535, %v6599, 0
  %v7025 = vsel %vm1535, %v6604, 0
  %v7028 = vsel %vm1535, %v6609, 0
  %v7031 = vsel %vm1535, %v6614, 0
  %v7034 = vsel %vm1535, %v6619, 0
  %v7037 = vsel %vm1535, %v6624, 0
  %v7040 = vsel %vm1535, %v6629, 0
  %v7043 = vsel %vm1535, %v6634, 0
  %v7046 = vsel %vm1535, %v6639, 0
  %v7049 = vsel %vm1535, %v6644, 0
  %v7052 = vsel %vm1535, %v6649, 0
  %v7055 = vsel %vm1535, %v6654, 0
  %v7058 = vsel %vm1535, %v6659, 0
  %v7061 = vsel %vm1535, %v6664, 0
  %v7064 = vsel %vm1535, %v6669, 0
  %v7067 = vsel %vm1535, %v6674, 0
  %v7070 = vsel %vm1535, %v6679, 0
  %v7073 = vsel %vm1535, %v6684, 0
  %v7076 = vsel %vm1535, %v6689, 0
  %v7079 = vsel %vm1535, %v6694, 0
  %v7082 = vsel %vm1535, %v6699, 0
  %7084 = vmatprep.subr.bf16.mxu0 0
  %7085 = vmatpush1.bf16.msra.mxu0 %v6916
  %7086 = vmatprep.subr.bf16.mxu0 0
  %7087 = vmatpush1.bf16.msra.mxu0 %v6917
  %7088 = vmatprep.subr.bf16.mxu0 0
  %7089 = vmatpush1.bf16.msra.mxu0 %v6918
  %7090 = vmatprep.subr.bf16.mxu0 0
  %7091 = vmatpush1.bf16.msra.mxu0 %v6919
  %7092 = vmatprep.subr.bf16.mxu0 0
  %7093 = vmatpush1.bf16.msra.mxu0 %v6920
  %7094 = vmatprep.subr.bf16.mxu0 0
  %7095 = vmatpush1.bf16.msra.mxu0 %v6921
  %7096 = vmatprep.subr.bf16.mxu0 0
  %7097 = vmatpush1.bf16.msra.mxu0 %v6922
  %7098 = vmatprep.subr.bf16.mxu0 0
  %7099 = vmatpush1.bf16.msra.mxu0 %v6923
  %7100 = vmatprep.subr.bf16.mxu0 0
  %7101 = vmatpush1.bf16.msra.mxu0 %v6924
  %7102 = vmatprep.subr.bf16.mxu0 0
  %7103 = vmatpush1.bf16.msra.mxu0 %v6925
  %7104 = vmatprep.subr.bf16.mxu0 0
  %7105 = vmatpush1.bf16.msra.mxu0 %v6926
  %7106 = vmatprep.subr.bf16.mxu0 0
  %7107 = vmatpush1.bf16.msra.mxu0 %v6927
  %7108 = vmatprep.subr.bf16.mxu0 0
  %7109 = vmatpush1.bf16.msra.mxu0 %v6928
  %7110 = vmatprep.subr.bf16.mxu0 0
  %7111 = vmatpush1.bf16.msra.mxu0 %v6929
  %7112 = vmatprep.subr.bf16.mxu0 0
  %7113 = vmatpush1.bf16.msra.mxu0 %v6930
  %7114 = vmatprep.subr.bf16.mxu0 0
  %7115 = vmatpush1.bf16.msra.mxu0 %v6931
  %7116 = vmatprep.mubr.bf16.mxu0 %v6541
  %7117 = vmatmul.mubr.bf16.gmra.mrb[0].mxu0 %v6540
  %v7118 = vpop.f32.mrb[0].mxu0
  %v7119 = vadd.f32 0.0, %v7118
  %v7120 = vpop.f32.mrb[0].mxu0
  %v7121 = vpop.f32.mrb[0].mxu0
  %v7122 = vadd.f32 0.0, %v7121
  %v7123 = vpop.f32.mrb[0].mxu0
  %7124 = vmatprep.mubr.bf16.mxu0 %v6546
  %7125 = vmatmul.mubr.bf16.gmra.mrb[0].mxu0 %v6545
  %v7126 = vpop.f32.mrb[0].mxu0
  %v7127 = vadd.f32 0.0, %v7126
  %v7128 = vpop.f32.mrb[0].mxu0
  %v7129 = vpop.f32.mrb[0].mxu0
  %v7130 = vadd.f32 0.0, %v7129
  %v7131 = vpop.f32.mrb[0].mxu0
  %7132 = vmatprep.mubr.bf16.mxu0 %v6551
  %7133 = vmatmul.mubr.bf16.gmra.mrb[0].mxu0 %v6550
  %v7134 = vpop.f32.mrb[0].mxu0
  %v7135 = vadd.f32 0.0, %v7134
  %v7136 = vpop.f32.mrb[0].mxu0
  %v7137 = vpop.f32.mrb[0].mxu0
  %v7138 = vadd.f32 0.0, %v7137
  %v7139 = vpop.f32.mrb[0].mxu0
  %7140 = vmatprep.mubr.bf16.mxu0 %v6556
  %7141 = vmatmul.mubr.bf16.gmra.mrb[0].mxu0 %v6555
  %v7142 = vpop.f32.mrb[0].mxu0
  %v7143 = vadd.f32 0.0, %v7142
  %v7144 = vpop.f32.mrb[0].mxu0
  %v7145 = vpop.f32.mrb[0].mxu0
  %v7146 = vadd.f32 0.0, %v7145
  %v7147 = vpop.f32.mrb[0].mxu0
  %7148 = vmatprep.mubr.bf16.mxu0 %v6561
  %7149 = vmatmul.mubr.bf16.gmra.mrb[0].mxu0 %v6560
  %v7150 = vpop.f32.mrb[0].mxu0
  %v7151 = vadd.f32 0.0, %v7150
  %v7152 = vpop.f32.mrb[0].mxu0
  %v7153 = vpop.f32.mrb[0].mxu0
  %v7154 = vadd.f32 0.0, %v7153
  %v7155 = vpop.f32.mrb[0].mxu0
  %7156 = vmatprep.mubr.bf16.mxu0 %v6566
  %7157 = vmatmul.mubr.bf16.gmra.mrb[0].mxu0 %v6565
  %v7158 = vpop.f32.mrb[0].mxu0
  %v7159 = vadd.f32 0.0, %v7158
  %v7160 = vpop.f32.mrb[0].mxu0
  %v7161 = vpop.f32.mrb[0].mxu0
  %v7162 = vadd.f32 0.0, %v7161
  %v7163 = vpop.f32.mrb[0].mxu0
  %7164 = vmatprep.mubr.bf16.mxu0 %v6571
  %7165 = vmatmul.mubr.bf16.gmra.mrb[0].mxu0 %v6570
  %v7166 = vpop.f32.mrb[0].mxu0
  %v7167 = vadd.f32 0.0, %v7166
  %v7168 = vpop.f32.mrb[0].mxu0
  %v7169 = vpop.f32.mrb[0].mxu0
  %v7170 = vadd.f32 0.0, %v7169
  %v7171 = vpop.f32.mrb[0].mxu0
  %7172 = vmatprep.mubr.bf16.mxu0 %v6576
  %7173 = vmatmul.mubr.bf16.gmra.mrb[0].mxu0 %v6575
  %v7174 = vpop.f32.mrb[0].mxu0
  %v7175 = vadd.f32 0.0, %v7174
  %v7176 = vpop.f32.mrb[0].mxu0
  %v7177 = vpop.f32.mrb[0].mxu0
  %v7178 = vadd.f32 0.0, %v7177
  %v7179 = vpop.f32.mrb[0].mxu0
  %7180 = vmatprep.mubr.bf16.mxu0 %v6581
  %7181 = vmatmul.mubr.bf16.gmra.mrb[0].mxu0 %v6580
  %v7182 = vpop.f32.mrb[0].mxu0
  %v7183 = vadd.f32 0.0, %v7182
  %v7184 = vpop.f32.mrb[0].mxu0
  %v7185 = vpop.f32.mrb[0].mxu0
  %v7186 = vadd.f32 0.0, %v7185
  %v7187 = vpop.f32.mrb[0].mxu0
  %7188 = vmatprep.mubr.bf16.mxu0 %v6586
  %7189 = vmatmul.mubr.bf16.gmra.mrb[0].mxu0 %v6585
  %v7190 = vpop.f32.mrb[0].mxu0
  %v7191 = vadd.f32 0.0, %v7190
  %v7192 = vpop.f32.mrb[0].mxu0
  %v7193 = vpop.f32.mrb[0].mxu0
  %v7194 = vadd.f32 0.0, %v7193
  %v7195 = vpop.f32.mrb[0].mxu0
  %7196 = vmatprep.mubr.bf16.mxu0 %v6591
  %7197 = vmatmul.mubr.bf16.gmra.mrb[0].mxu0 %v6590
  %v7198 = vpop.f32.mrb[0].mxu0
  %v7199 = vadd.f32 0.0, %v7198
  %v7200 = vpop.f32.mrb[0].mxu0
  %v7201 = vpop.f32.mrb[0].mxu0
  %v7202 = vadd.f32 0.0, %v7201
  %v7203 = vpop.f32.mrb[0].mxu0
  %7204 = vmatprep.mubr.bf16.mxu0 %v6596
  %7205 = vmatmul.mubr.bf16.gmra.mrb[0].mxu0 %v6595
  %v7206 = vpop.f32.mrb[0].mxu0
  %v7207 = vadd.f32 0.0, %v7206
  %v7208 = vpop.f32.mrb[0].mxu0
  %v7209 = vpop.f32.mrb[0].mxu0
  %v7210 = vadd.f32 0.0, %v7209
  %v7211 = vpop.f32.mrb[0].mxu0
  %7212 = vmatprep.mubr.bf16.mxu0 %v6601
  %7213 = vmatmul.mubr.bf16.gmra.mrb[0].mxu0 %v6600
  %v7214 = vpop.f32.mrb[0].mxu0
  %v7215 = vadd.f32 0.0, %v7214
  %v7216 = vpop.f32.mrb[0].mxu0
  %v7217 = vpop.f32.mrb[0].mxu0
  %v7218 = vadd.f32 0.0, %v7217
  %v7219 = vpop.f32.mrb[0].mxu0
  %7220 = vmatprep.mubr.bf16.mxu0 %v6606
  %7221 = vmatmul.mubr.bf16.gmra.mrb[0].mxu0 %v6605
  %v7222 = vpop.f32.mrb[0].mxu0
  %v7223 = vadd.f32 0.0, %v7222
  %v7224 = vpop.f32.mrb[0].mxu0
  %v7225 = vpop.f32.mrb[0].mxu0
  %v7226 = vadd.f32 0.0, %v7225
  %v7227 = vpop.f32.mrb[0].mxu0
  %7228 = vmatprep.mubr.bf16.mxu0 %v6611
  %7229 = vmatmul.mubr.bf16.gmra.mrb[0].mxu0 %v6610
  %v7230 = vpop.f32.mrb[0].mxu0
  %v7231 = vadd.f32 0.0, %v7230
  %v7232 = vpop.f32.mrb[0].mxu0
  %v7233 = vpop.f32.mrb[0].mxu0
  %v7234 = vadd.f32 0.0, %v7233
  %v7235 = vpop.f32.mrb[0].mxu0
  %7236 = vmatprep.mubr.bf16.mxu0 %v6616
  %7237 = vmatmul.mubr.bf16.gmra.mrb[0].mxu0 %v6615
  %v7238 = vpop.f32.mrb[0].mxu0
  %v7239 = vadd.f32 0.0, %v7238
  %v7240 = vpop.f32.mrb[0].mxu0
  %v7241 = vpop.f32.mrb[0].mxu0
  %v7242 = vadd.f32 0.0, %v7241
  %v7243 = vpop.f32.mrb[0].mxu0
  %7244 = vmatprep.mubr.bf16.mxu0 %v6621
  %7245 = vmatmul.mubr.bf16.gmra.mrb[0].mxu0 %v6620
  %v7246 = vpop.f32.mrb[0].mxu0
  %v7247 = vadd.f32 0.0, %v7246
  %v7248 = vpop.f32.mrb[0].mxu0
  %v7249 = vpop.f32.mrb[0].mxu0
  %v7250 = vadd.f32 0.0, %v7249
  %v7251 = vpop.f32.mrb[0].mxu0
  %7252 = vmatprep.mubr.bf16.mxu0 %v6626
  %7253 = vmatmul.mubr.bf16.gmra.mrb[0].mxu0 %v6625
  %v7254 = vpop.f32.mrb[0].mxu0
  %v7255 = vadd.f32 0.0, %v7254
  %v7256 = vpop.f32.mrb[0].mxu0
  %v7257 = vpop.f32.mrb[0].mxu0
  %v7258 = vadd.f32 0.0, %v7257
  %v7259 = vpop.f32.mrb[0].mxu0
  %7260 = vmatprep.mubr.bf16.mxu0 %v6631
  %7261 = vmatmul.mubr.bf16.gmra.mrb[0].mxu0 %v6630
  %v7262 = vpop.f32.mrb[0].mxu0
  %v7263 = vadd.f32 0.0, %v7262
  %v7264 = vpop.f32.mrb[0].mxu0
  %v7265 = vpop.f32.mrb[0].mxu0
  %v7266 = vadd.f32 0.0, %v7265
  %v7267 = vpop.f32.mrb[0].mxu0
  %7268 = vmatprep.mubr.bf16.mxu0 %v6636
  %7269 = vmatmul.mubr.bf16.gmra.mrb[0].mxu0 %v6635
  %v7270 = vpop.f32.mrb[0].mxu0
  %v7271 = vadd.f32 0.0, %v7270
  %v7272 = vpop.f32.mrb[0].mxu0
  %v7273 = vpop.f32.mrb[0].mxu0
  %v7274 = vadd.f32 0.0, %v7273
  %v7275 = vpop.f32.mrb[0].mxu0
  %7276 = vmatprep.mubr.bf16.mxu0 %v6641
  %7277 = vmatmul.mubr.bf16.gmra.mrb[0].mxu0 %v6640
  %v7278 = vpop.f32.mrb[0].mxu0
  %v7279 = vadd.f32 0.0, %v7278
  %v7280 = vpop.f32.mrb[0].mxu0
  %v7281 = vpop.f32.mrb[0].mxu0
  %v7282 = vadd.f32 0.0, %v7281
  %v7283 = vpop.f32.mrb[0].mxu0
  %7284 = vmatprep.mubr.bf16.mxu0 %v6646
  %7285 = vmatmul.mubr.bf16.gmra.mrb[0].mxu0 %v6645
  %v7286 = vpop.f32.mrb[0].mxu0
  %v7287 = vadd.f32 0.0, %v7286
  %v7288 = vpop.f32.mrb[0].mxu0
  %v7289 = vpop.f32.mrb[0].mxu0
  %v7290 = vadd.f32 0.0, %v7289
  %v7291 = vpop.f32.mrb[0].mxu0
  %7292 = vmatprep.mubr.bf16.mxu0 %v6651
  %7293 = vmatmul.mubr.bf16.gmra.mrb[0].mxu0 %v6650
  %v7294 = vpop.f32.mrb[0].mxu0
  %v7295 = vadd.f32 0.0, %v7294
  %v7296 = vpop.f32.mrb[0].mxu0
  %v7297 = vpop.f32.mrb[0].mxu0
  %v7298 = vadd.f32 0.0, %v7297
  %v7299 = vpop.f32.mrb[0].mxu0
  %7300 = vmatprep.mubr.bf16.mxu0 %v6656
  %7301 = vmatmul.mubr.bf16.gmra.mrb[0].mxu0 %v6655
  %v7302 = vpop.f32.mrb[0].mxu0
  %v7303 = vadd.f32 0.0, %v7302
  %v7304 = vpop.f32.mrb[0].mxu0
  %v7305 = vpop.f32.mrb[0].mxu0
  %v7306 = vadd.f32 0.0, %v7305
  %v7307 = vpop.f32.mrb[0].mxu0
  %7308 = vmatprep.mubr.bf16.mxu0 %v6661
  %7309 = vmatmul.mubr.bf16.gmra.mrb[0].mxu0 %v6660
  %v7310 = vpop.f32.mrb[0].mxu0
  %v7311 = vadd.f32 0.0, %v7310
  %v7312 = vpop.f32.mrb[0].mxu0
  %v7313 = vpop.f32.mrb[0].mxu0
  %v7314 = vadd.f32 0.0, %v7313
  %v7315 = vpop.f32.mrb[0].mxu0
  %7316 = vmatprep.mubr.bf16.mxu0 %v6666
  %7317 = vmatmul.mubr.bf16.gmra.mrb[0].mxu0 %v6665
  %v7318 = vpop.f32.mrb[0].mxu0
  %v7319 = vadd.f32 0.0, %v7318
  %v7320 = vpop.f32.mrb[0].mxu0
  %v7321 = vpop.f32.mrb[0].mxu0
  %v7322 = vadd.f32 0.0, %v7321
  %v7323 = vpop.f32.mrb[0].mxu0
  %7324 = vmatprep.mubr.bf16.mxu0 %v6671
  %7325 = vmatmul.mubr.bf16.gmra.mrb[0].mxu0 %v6670
  %v7326 = vpop.f32.mrb[0].mxu0
  %v7327 = vadd.f32 0.0, %v7326
  %v7328 = vpop.f32.mrb[0].mxu0
  %v7329 = vpop.f32.mrb[0].mxu0
  %v7330 = vadd.f32 0.0, %v7329
  %v7331 = vpop.f32.mrb[0].mxu0
  %7332 = vmatprep.mubr.bf16.mxu0 %v6676
  %7333 = vmatmul.mubr.bf16.gmra.mrb[0].mxu0 %v6675
  %v7334 = vpop.f32.mrb[0].mxu0
  %v7335 = vadd.f32 0.0, %v7334
  %v7336 = vpop.f32.mrb[0].mxu0
  %v7337 = vpop.f32.mrb[0].mxu0
  %v7338 = vadd.f32 0.0, %v7337
  %v7339 = vpop.f32.mrb[0].mxu0
  %7340 = vmatprep.mubr.bf16.mxu0 %v6681
  %7341 = vmatmul.mubr.bf16.gmra.mrb[0].mxu0 %v6680
  %v7342 = vpop.f32.mrb[0].mxu0
  %v7343 = vadd.f32 0.0, %v7342
  %v7344 = vpop.f32.mrb[0].mxu0
  %v7345 = vpop.f32.mrb[0].mxu0
  %v7346 = vadd.f32 0.0, %v7345
  %v7347 = vpop.f32.mrb[0].mxu0
  %7348 = vmatprep.mubr.bf16.mxu0 %v6686
  %7349 = vmatmul.mubr.bf16.gmra.mrb[0].mxu0 %v6685
  %v7350 = vpop.f32.mrb[0].mxu0
  %v7351 = vadd.f32 0.0, %v7350
  %v7352 = vpop.f32.mrb[0].mxu0
  %v7353 = vpop.f32.mrb[0].mxu0
  %v7354 = vadd.f32 0.0, %v7353
  %v7355 = vpop.f32.mrb[0].mxu0
  %7356 = vmatprep.mubr.bf16.mxu0 %v6691
  %7357 = vmatmul.mubr.bf16.gmra.mrb[0].mxu0 %v6690
  %v7358 = vpop.f32.mrb[0].mxu0
  %v7359 = vadd.f32 0.0, %v7358
  %v7360 = vpop.f32.mrb[0].mxu0
  %v7361 = vpop.f32.mrb[0].mxu0
  %v7362 = vadd.f32 0.0, %v7361
  %v7363 = vpop.f32.mrb[0].mxu0
  %7364 = vmatprep.mubr.bf16.mxu0 %v6696
  %7365 = vmatmul.mubr.bf16.gmra.mrb[0].mxu0 %v6695
  %v7366 = vpop.f32.mrb[0].mxu0
  %v7367 = vadd.f32 0.0, %v7366
  %v7368 = vpop.f32.mrb[0].mxu0
  %v7369 = vpop.f32.mrb[0].mxu0
  %v7370 = vadd.f32 0.0, %v7369
  %v7371 = vpop.f32.mrb[0].mxu0
  %7372 = vdwg.mxu0
  %7373 = vmatprep.subr.bf16.mxu0 0
  %7374 = vmatpush1.bf16.msra.mxu0 %v6932
  %7375 = vmatprep.subr.bf16.mxu0 0
  %7376 = vmatpush1.bf16.msra.mxu0 %v6933
  %7377 = vmatprep.subr.bf16.mxu0 0
  %7378 = vmatpush1.bf16.msra.mxu0 %v6934
  %7379 = vmatprep.subr.bf16.mxu0 0
  %7380 = vmatpush1.bf16.msra.mxu0 %v6935
  %7381 = vmatprep.subr.bf16.mxu0 0
  %7382 = vmatpush1.bf16.msra.mxu0 %v6936
  %7383 = vmatprep.subr.bf16.mxu0 0
  %7384 = vmatpush1.bf16.msra.mxu0 %v6937
  %7385 = vmatprep.subr.bf16.mxu0 0
  %7386 = vmatpush1.bf16.msra.mxu0 %v6938
  %7387 = vmatprep.subr.bf16.mxu0 0
  %7388 = vmatpush1.bf16.msra.mxu0 %v6939
  %7389 = vmatprep.subr.bf16.mxu0 0
  %7390 = vmatpush1.bf16.msra.mxu0 %v6940
  %7391 = vmatprep.subr.bf16.mxu0 0
  %7392 = vmatpush1.bf16.msra.mxu0 %v6941
  %7393 = vmatprep.subr.bf16.mxu0 0
  %7394 = vmatpush1.bf16.msra.mxu0 %v6942
  %7395 = vmatprep.subr.bf16.mxu0 0
  %7396 = vmatpush1.bf16.msra.mxu0 %v6943
  %7397 = vmatprep.subr.bf16.mxu0 0
  %7398 = vmatpush1.bf16.msra.mxu0 %v6944
  %7399 = vmatprep.subr.bf16.mxu0 0
  %7400 = vmatpush1.bf16.msra.mxu0 %v6945
  %7401 = vmatprep.subr.bf16.mxu0 0
  %7402 = vmatpush1.bf16.msra.mxu0 %v6946
  %7403 = vmatprep.subr.bf16.mxu0 0
  %7404 = vmatpush1.bf16.msra.mxu0 %v6947
  %7405 = vmatprep.mubr.bf16.mxu0 %v6543
  %7406 = vmatmul.mubr.bf16.gmra.mrb[0].mxu0 %v6542
  %v7407 = vpop.f32.mrb[0].mxu0
  %v7408 = vadd.f32 %v7119, %v7407
  %v7409 = vpop.f32.mrb[0].mxu0
  %v7410 = vpop.f32.mrb[0].mxu0
  %v7411 = vadd.f32 %v7122, %v7410
  %v7412 = vpop.f32.mrb[0].mxu0
  %7413 = vmatprep.mubr.bf16.mxu0 %v6548
  %7414 = vmatmul.mubr.bf16.gmra.mrb[0].mxu0 %v6547
  %v7415 = vpop.f32.mrb[0].mxu0
  %v7416 = vadd.f32 %v7127, %v7415
  %v7417 = vpop.f32.mrb[0].mxu0
  %v7418 = vpop.f32.mrb[0].mxu0
  %v7419 = vadd.f32 %v7130, %v7418
  %v7420 = vpop.f32.mrb[0].mxu0
  %7421 = vmatprep.mubr.bf16.mxu0 %v6553
  %7422 = vmatmul.mubr.bf16.gmra.mrb[0].mxu0 %v6552
  %v7423 = vpop.f32.mrb[0].mxu0
  %v7424 = vadd.f32 %v7135, %v7423
  %v7425 = vpop.f32.mrb[0].mxu0
  %v7426 = vpop.f32.mrb[0].mxu0
  %v7427 = vadd.f32 %v7138, %v7426
  %v7428 = vpop.f32.mrb[0].mxu0
  %7429 = vmatprep.mubr.bf16.mxu0 %v6558
  %7430 = vmatmul.mubr.bf16.gmra.mrb[0].mxu0 %v6557
  %v7431 = vpop.f32.mrb[0].mxu0
  %v7432 = vadd.f32 %v7143, %v7431
  %v7433 = vpop.f32.mrb[0].mxu0
  %v7434 = vpop.f32.mrb[0].mxu0
  %v7435 = vadd.f32 %v7146, %v7434
  %v7436 = vpop.f32.mrb[0].mxu0
  %7437 = vmatprep.mubr.bf16.mxu0 %v6563
  %7438 = vmatmul.mubr.bf16.gmra.mrb[0].mxu0 %v6562
  %v7439 = vpop.f32.mrb[0].mxu0
  %v7440 = vadd.f32 %v7151, %v7439
  %v7441 = vpop.f32.mrb[0].mxu0
  %v7442 = vpop.f32.mrb[0].mxu0
  %v7443 = vadd.f32 %v7154, %v7442
  %v7444 = vpop.f32.mrb[0].mxu0
  %7445 = vmatprep.mubr.bf16.mxu0 %v6568
  %7446 = vmatmul.mubr.bf16.gmra.mrb[0].mxu0 %v6567
  %v7447 = vpop.f32.mrb[0].mxu0
  %v7448 = vadd.f32 %v7159, %v7447
  %v7449 = vpop.f32.mrb[0].mxu0
  %v7450 = vpop.f32.mrb[0].mxu0
  %v7451 = vadd.f32 %v7162, %v7450
  %v7452 = vpop.f32.mrb[0].mxu0
  %7453 = vmatprep.mubr.bf16.mxu0 %v6573
  %7454 = vmatmul.mubr.bf16.gmra.mrb[0].mxu0 %v6572
  %v7455 = vpop.f32.mrb[0].mxu0
  %v7456 = vadd.f32 %v7167, %v7455
  %v7457 = vpop.f32.mrb[0].mxu0
  %v7458 = vpop.f32.mrb[0].mxu0
  %v7459 = vadd.f32 %v7170, %v7458
  %v7460 = vpop.f32.mrb[0].mxu0
  %7461 = vmatprep.mubr.bf16.mxu0 %v6578
  %7462 = vmatmul.mubr.bf16.gmra.mrb[0].mxu0 %v6577
  %v7463 = vpop.f32.mrb[0].mxu0
  %v7464 = vadd.f32 %v7175, %v7463
  %v7465 = vpop.f32.mrb[0].mxu0
  %v7466 = vpop.f32.mrb[0].mxu0
  %v7467 = vadd.f32 %v7178, %v7466
  %v7468 = vpop.f32.mrb[0].mxu0
  %7469 = vmatprep.mubr.bf16.mxu0 %v6583
  %7470 = vmatmul.mubr.bf16.gmra.mrb[0].mxu0 %v6582
  %v7471 = vpop.f32.mrb[0].mxu0
  %v7472 = vadd.f32 %v7183, %v7471
  %v7473 = vpop.f32.mrb[0].mxu0
  %v7474 = vpop.f32.mrb[0].mxu0
  %v7475 = vadd.f32 %v7186, %v7474
  %v7476 = vpop.f32.mrb[0].mxu0
  %7477 = vmatprep.mubr.bf16.mxu0 %v6588
  %7478 = vmatmul.mubr.bf16.gmra.mrb[0].mxu0 %v6587
  %v7479 = vpop.f32.mrb[0].mxu0
  %v7480 = vadd.f32 %v7191, %v7479
  %v7481 = vpop.f32.mrb[0].mxu0
  %v7482 = vpop.f32.mrb[0].mxu0
  %v7483 = vadd.f32 %v7194, %v7482
  %v7484 = vpop.f32.mrb[0].mxu0
  %7485 = vmatprep.mubr.bf16.mxu0 %v6593
  %7486 = vmatmul.mubr.bf16.gmra.mrb[0].mxu0 %v6592
  %v7487 = vpop.f32.mrb[0].mxu0
  %v7488 = vadd.f32 %v7199, %v7487
  %v7489 = vpop.f32.mrb[0].mxu0
  %v7490 = vpop.f32.mrb[0].mxu0
  %v7491 = vadd.f32 %v7202, %v7490
  %v7492 = vpop.f32.mrb[0].mxu0
  %7493 = vmatprep.mubr.bf16.mxu0 %v6598
  %7494 = vmatmul.mubr.bf16.gmra.mrb[0].mxu0 %v6597
  %v7495 = vpop.f32.mrb[0].mxu0
  %v7496 = vadd.f32 %v7207, %v7495
  %v7497 = vpop.f32.mrb[0].mxu0
  %v7498 = vpop.f32.mrb[0].mxu0
  %v7499 = vadd.f32 %v7210, %v7498
  %v7500 = vpop.f32.mrb[0].mxu0
  %7501 = vmatprep.mubr.bf16.mxu0 %v6603
  %7502 = vmatmul.mubr.bf16.gmra.mrb[0].mxu0 %v6602
  %v7503 = vpop.f32.mrb[0].mxu0
  %v7504 = vadd.f32 %v7215, %v7503
  %v7505 = vpop.f32.mrb[0].mxu0
  %v7506 = vpop.f32.mrb[0].mxu0
  %v7507 = vadd.f32 %v7218, %v7506
  %v7508 = vpop.f32.mrb[0].mxu0
  %7509 = vmatprep.mubr.bf16.mxu0 %v6608
  %7510 = vmatmul.mubr.bf16.gmra.mrb[0].mxu0 %v6607
  %v7511 = vpop.f32.mrb[0].mxu0
  %v7512 = vadd.f32 %v7223, %v7511
  %v7513 = vpop.f32.mrb[0].mxu0
  %v7514 = vpop.f32.mrb[0].mxu0
  %v7515 = vadd.f32 %v7226, %v7514
  %v7516 = vpop.f32.mrb[0].mxu0
  %7517 = vmatprep.mubr.bf16.mxu0 %v6613
  %7518 = vmatmul.mubr.bf16.gmra.mrb[0].mxu0 %v6612
  %v7519 = vpop.f32.mrb[0].mxu0
  %v7520 = vadd.f32 %v7231, %v7519
  %v7521 = vpop.f32.mrb[0].mxu0
  %v7522 = vpop.f32.mrb[0].mxu0
  %v7523 = vadd.f32 %v7234, %v7522
  %v7524 = vpop.f32.mrb[0].mxu0
  %7525 = vmatprep.mubr.bf16.mxu0 %v6618
  %7526 = vmatmul.mubr.bf16.gmra.mrb[0].mxu0 %v6617
  %v7527 = vpop.f32.mrb[0].mxu0
  %v7528 = vadd.f32 %v7239, %v7527
  %v7529 = vpop.f32.mrb[0].mxu0
  %v7530 = vpop.f32.mrb[0].mxu0
  %v7531 = vadd.f32 %v7242, %v7530
  %v7532 = vpop.f32.mrb[0].mxu0
  %7533 = vmatprep.mubr.bf16.mxu0 %v6623
  %7534 = vmatmul.mubr.bf16.gmra.mrb[0].mxu0 %v6622
  %v7535 = vpop.f32.mrb[0].mxu0
  %v7536 = vadd.f32 %v7247, %v7535
  %v7537 = vpop.f32.mrb[0].mxu0
  %v7538 = vpop.f32.mrb[0].mxu0
  %v7539 = vadd.f32 %v7250, %v7538
  %v7540 = vpop.f32.mrb[0].mxu0
  %7541 = vmatprep.mubr.bf16.mxu0 %v6628
  %7542 = vmatmul.mubr.bf16.gmra.mrb[0].mxu0 %v6627
  %v7543 = vpop.f32.mrb[0].mxu0
  %v7544 = vadd.f32 %v7255, %v7543
  %v7545 = vpop.f32.mrb[0].mxu0
  %v7546 = vpop.f32.mrb[0].mxu0
  %v7547 = vadd.f32 %v7258, %v7546
  %v7548 = vpop.f32.mrb[0].mxu0
  %7549 = vmatprep.mubr.bf16.mxu0 %v6633
  %7550 = vmatmul.mubr.bf16.gmra.mrb[0].mxu0 %v6632
  %v7551 = vpop.f32.mrb[0].mxu0
  %v7552 = vadd.f32 %v7263, %v7551
  %v7553 = vpop.f32.mrb[0].mxu0
  %v7554 = vpop.f32.mrb[0].mxu0
  %v7555 = vadd.f32 %v7266, %v7554
  %v7556 = vpop.f32.mrb[0].mxu0
  %7557 = vmatprep.mubr.bf16.mxu0 %v6638
  %7558 = vmatmul.mubr.bf16.gmra.mrb[0].mxu0 %v6637
  %v7559 = vpop.f32.mrb[0].mxu0
  %v7560 = vadd.f32 %v7271, %v7559
  %v7561 = vpop.f32.mrb[0].mxu0
  %v7562 = vpop.f32.mrb[0].mxu0
  %v7563 = vadd.f32 %v7274, %v7562
  %v7564 = vpop.f32.mrb[0].mxu0
  %7565 = vmatprep.mubr.bf16.mxu0 %v6643
  %7566 = vmatmul.mubr.bf16.gmra.mrb[0].mxu0 %v6642
  %v7567 = vpop.f32.mrb[0].mxu0
  %v7568 = vadd.f32 %v7279, %v7567
  %v7569 = vpop.f32.mrb[0].mxu0
  %v7570 = vpop.f32.mrb[0].mxu0
  %v7571 = vadd.f32 %v7282, %v7570
  %v7572 = vpop.f32.mrb[0].mxu0
  %7573 = vmatprep.mubr.bf16.mxu0 %v6648
  %7574 = vmatmul.mubr.bf16.gmra.mrb[0].mxu0 %v6647
  %v7575 = vpop.f32.mrb[0].mxu0
  %v7576 = vadd.f32 %v7287, %v7575
  %v7577 = vpop.f32.mrb[0].mxu0
  %v7578 = vpop.f32.mrb[0].mxu0
  %v7579 = vadd.f32 %v7290, %v7578
  %v7580 = vpop.f32.mrb[0].mxu0
  %7581 = vmatprep.mubr.bf16.mxu0 %v6653
  %7582 = vmatmul.mubr.bf16.gmra.mrb[0].mxu0 %v6652
  %v7583 = vpop.f32.mrb[0].mxu0
  %v7584 = vadd.f32 %v7295, %v7583
  %v7585 = vpop.f32.mrb[0].mxu0
  %v7586 = vpop.f32.mrb[0].mxu0
  %v7587 = vadd.f32 %v7298, %v7586
  %v7588 = vpop.f32.mrb[0].mxu0
  %7589 = vmatprep.mubr.bf16.mxu0 %v6658
  %7590 = vmatmul.mubr.bf16.gmra.mrb[0].mxu0 %v6657
  %v7591 = vpop.f32.mrb[0].mxu0
  %v7592 = vadd.f32 %v7303, %v7591
  %v7593 = vpop.f32.mrb[0].mxu0
  %v7594 = vpop.f32.mrb[0].mxu0
  %v7595 = vadd.f32 %v7306, %v7594
  %v7596 = vpop.f32.mrb[0].mxu0
  %7597 = vmatprep.mubr.bf16.mxu0 %v6663
  %7598 = vmatmul.mubr.bf16.gmra.mrb[0].mxu0 %v6662
  %v7599 = vpop.f32.mrb[0].mxu0
  %v7600 = vadd.f32 %v7311, %v7599
  %v7601 = vpop.f32.mrb[0].mxu0
  %v7602 = vpop.f32.mrb[0].mxu0
  %v7603 = vadd.f32 %v7314, %v7602
  %v7604 = vpop.f32.mrb[0].mxu0
  %7605 = vmatprep.mubr.bf16.mxu0 %v6668
  %7606 = vmatmul.mubr.bf16.gmra.mrb[0].mxu0 %v6667
  %v7607 = vpop.f32.mrb[0].mxu0
  %v7608 = vadd.f32 %v7319, %v7607
  %v7609 = vpop.f32.mrb[0].mxu0
  %v7610 = vpop.f32.mrb[0].mxu0
  %v7611 = vadd.f32 %v7322, %v7610
  %v7612 = vpop.f32.mrb[0].mxu0
  %7613 = vmatprep.mubr.bf16.mxu0 %v6673
  %7614 = vmatmul.mubr.bf16.gmra.mrb[0].mxu0 %v6672
  %v7615 = vpop.f32.mrb[0].mxu0
  %v7616 = vadd.f32 %v7327, %v7615
  %v7617 = vpop.f32.mrb[0].mxu0
  %v7618 = vpop.f32.mrb[0].mxu0
  %v7619 = vadd.f32 %v7330, %v7618
  %v7620 = vpop.f32.mrb[0].mxu0
  %7621 = vmatprep.mubr.bf16.mxu0 %v6678
  %7622 = vmatmul.mubr.bf16.gmra.mrb[0].mxu0 %v6677
  %v7623 = vpop.f32.mrb[0].mxu0
  %v7624 = vadd.f32 %v7335, %v7623
  %v7625 = vpop.f32.mrb[0].mxu0
  %v7626 = vpop.f32.mrb[0].mxu0
  %v7627 = vadd.f32 %v7338, %v7626
  %v7628 = vpop.f32.mrb[0].mxu0
  %7629 = vmatprep.mubr.bf16.mxu0 %v6683
  %7630 = vmatmul.mubr.bf16.gmra.mrb[0].mxu0 %v6682
  %v7631 = vpop.f32.mrb[0].mxu0
  %v7632 = vadd.f32 %v7343, %v7631
  %v7633 = vpop.f32.mrb[0].mxu0
  %v7634 = vpop.f32.mrb[0].mxu0
  %v7635 = vadd.f32 %v7346, %v7634
  %v7636 = vpop.f32.mrb[0].mxu0
  %7637 = vmatprep.mubr.bf16.mxu0 %v6688
  %7638 = vmatmul.mubr.bf16.gmra.mrb[0].mxu0 %v6687
  %v7639 = vpop.f32.mrb[0].mxu0
  %v7640 = vadd.f32 %v7351, %v7639
  %v7641 = vpop.f32.mrb[0].mxu0
  %v7642 = vpop.f32.mrb[0].mxu0
  %v7643 = vadd.f32 %v7354, %v7642
  %v7644 = vpop.f32.mrb[0].mxu0
  %7645 = vmatprep.mubr.bf16.mxu0 %v6693
  %7646 = vmatmul.mubr.bf16.gmra.mrb[0].mxu0 %v6692
  %v7647 = vpop.f32.mrb[0].mxu0
  %v7648 = vadd.f32 %v7359, %v7647
  %v7649 = vpop.f32.mrb[0].mxu0
  %v7650 = vpop.f32.mrb[0].mxu0
  %v7651 = vadd.f32 %v7362, %v7650
  %v7652 = vpop.f32.mrb[0].mxu0
  %7653 = vmatprep.mubr.bf16.mxu0 %v6698
  %7654 = vmatmul.mubr.bf16.gmra.mrb[0].mxu0 %v6697
  %v7655 = vpop.f32.mrb[0].mxu0
  %v7656 = vadd.f32 %v7367, %v7655
  %v7657 = vpop.f32.mrb[0].mxu0
  %v7658 = vpop.f32.mrb[0].mxu0
  %v7659 = vadd.f32 %v7370, %v7658
  %v7660 = vpop.f32.mrb[0].mxu0
  %7661 = vdwg.mxu0
  %7662 = vmatprep.subr.bf16.mxu0 0
  %7663 = vmatpush1.bf16.msra.mxu0 %v6948
  %7664 = vmatprep.subr.bf16.mxu0 0
  %7665 = vmatpush1.bf16.msra.mxu0 %v6949
  %7666 = vmatprep.subr.bf16.mxu0 0
  %7667 = vmatpush1.bf16.msra.mxu0 %v6950
  %7668 = vmatprep.subr.bf16.mxu0 0
  %7669 = vmatpush1.bf16.msra.mxu0 %v6951
  %7670 = vmatprep.subr.bf16.mxu0 0
  %7671 = vmatpush1.bf16.msra.mxu0 0
  %7672 = vmatprep.subr.bf16.mxu0 0
  %7673 = vmatpush1.bf16.msra.mxu0 0
  %7674 = vmatprep.subr.bf16.mxu0 0
  %7675 = vmatpush1.bf16.msra.mxu0 0
  %7676 = vmatprep.subr.bf16.mxu0 0
  %7677 = vmatpush1.bf16.msra.mxu0 0
  %7678 = vmatprep.subr.bf16.mxu0 0
  %7679 = vmatpush1.bf16.msra.mxu0 0
  %7680 = vmatprep.subr.bf16.mxu0 0
  %7681 = vmatpush1.bf16.msra.mxu0 0
  %7682 = vmatprep.subr.bf16.mxu0 0
  %7683 = vmatpush1.bf16.msra.mxu0 0
  %7684 = vmatprep.subr.bf16.mxu0 0
  %7685 = vmatpush1.bf16.msra.mxu0 0
  %7686 = vmatprep.subr.bf16.mxu0 0
  %7687 = vmatpush1.bf16.msra.mxu0 0
  %7688 = vmatprep.subr.bf16.mxu0 0
  %7689 = vmatpush1.bf16.msra.mxu0 0
  %7690 = vmatprep.subr.bf16.mxu0 0
  %7691 = vmatpush1.bf16.msra.mxu0 0
  %7692 = vmatprep.subr.bf16.mxu0 0
  %7693 = vmatpush1.bf16.msra.mxu0 0
  %7694 = vmatprep.mubr.bf16.mxu0 0
  %7695 = vmatmul.mubr.bf16.gmra.mrb[0].mxu0 %v6989
  %v7696 = vpop.f32.mrb[0].mxu0
  %v7697 = vadd.f32 %v7408, %v7696
  %v7698 = vpop.f32.mrb[0].mxu0
  %v7699 = vpop.f32.mrb[0].mxu0
  %v7700 = vadd.f32 %v7411, %v7699
  %v7701 = vpop.f32.mrb[0].mxu0
  %7702 = vmatprep.mubr.bf16.mxu0 0
  %7703 = vmatmul.mubr.bf16.gmra.mrb[0].mxu0 %v6992
  %v7704 = vpop.f32.mrb[0].mxu0
  %v7705 = vadd.f32 %v7416, %v7704
  %v7706 = vpop.f32.mrb[0].mxu0
  %v7707 = vpop.f32.mrb[0].mxu0
  %v7708 = vadd.f32 %v7419, %v7707
  %v7709 = vpop.f32.mrb[0].mxu0
  %7710 = vmatprep.mubr.bf16.mxu0 0
  %7711 = vmatmul.mubr.bf16.gmra.mrb[0].mxu0 %v6995
  %v7712 = vpop.f32.mrb[0].mxu0
  %v7713 = vadd.f32 %v7424, %v7712
  %v7714 = vpop.f32.mrb[0].mxu0
  %v7715 = vpop.f32.mrb[0].mxu0
  %v7716 = vadd.f32 %v7427, %v7715
  %v7717 = vpop.f32.mrb[0].mxu0
  %7718 = vmatprep.mubr.bf16.mxu0 0
  %7719 = vmatmul.mubr.bf16.gmra.mrb[0].mxu0 %v6998
  %v7720 = vpop.f32.mrb[0].mxu0
  %v7721 = vadd.f32 %v7432, %v7720
  %v7722 = vpop.f32.mrb[0].mxu0
  %v7723 = vpop.f32.mrb[0].mxu0
  %v7724 = vadd.f32 %v7435, %v7723
  %v7725 = vpop.f32.mrb[0].mxu0
  %7726 = vmatprep.mubr.bf16.mxu0 0
  %7727 = vmatmul.mubr.bf16.gmra.mrb[0].mxu0 %v7001
  %v7728 = vpop.f32.mrb[0].mxu0
  %v7729 = vadd.f32 %v7440, %v7728
  %v7730 = vpop.f32.mrb[0].mxu0
  %v7731 = vpop.f32.mrb[0].mxu0
  %v7732 = vadd.f32 %v7443, %v7731
  %v7733 = vpop.f32.mrb[0].mxu0
  %7734 = vmatprep.mubr.bf16.mxu0 0
  %7735 = vmatmul.mubr.bf16.gmra.mrb[0].mxu0 %v7004
  %v7736 = vpop.f32.mrb[0].mxu0
  %v7737 = vadd.f32 %v7448, %v7736
  %v7738 = vpop.f32.mrb[0].mxu0
  %v7739 = vpop.f32.mrb[0].mxu0
  %v7740 = vadd.f32 %v7451, %v7739
  %v7741 = vpop.f32.mrb[0].mxu0
  %7742 = vmatprep.mubr.bf16.mxu0 0
  %7743 = vmatmul.mubr.bf16.gmra.mrb[0].mxu0 %v7007
  %v7744 = vpop.f32.mrb[0].mxu0
  %v7745 = vadd.f32 %v7456, %v7744
  %v7746 = vpop.f32.mrb[0].mxu0
  %v7747 = vpop.f32.mrb[0].mxu0
  %v7748 = vadd.f32 %v7459, %v7747
  %v7749 = vpop.f32.mrb[0].mxu0
  %7750 = vmatprep.mubr.bf16.mxu0 0
  %7751 = vmatmul.mubr.bf16.gmra.mrb[0].mxu0 %v7010
  %v7752 = vpop.f32.mrb[0].mxu0
  %v7753 = vadd.f32 %v7464, %v7752
  %v7754 = vpop.f32.mrb[0].mxu0
  %v7755 = vpop.f32.mrb[0].mxu0
  %v7756 = vadd.f32 %v7467, %v7755
  %v7757 = vpop.f32.mrb[0].mxu0
  %7758 = vmatprep.mubr.bf16.mxu0 0
  %7759 = vmatmul.mubr.bf16.gmra.mrb[0].mxu0 %v7013
  %v7760 = vpop.f32.mrb[0].mxu0
  %v7761 = vadd.f32 %v7472, %v7760
  %v7762 = vpop.f32.mrb[0].mxu0
  %v7763 = vpop.f32.mrb[0].mxu0
  %v7764 = vadd.f32 %v7475, %v7763
  %v7765 = vpop.f32.mrb[0].mxu0
  %7766 = vmatprep.mubr.bf16.mxu0 0
  %7767 = vmatmul.mubr.bf16.gmra.mrb[0].mxu0 %v7016
  %v7768 = vpop.f32.mrb[0].mxu0
  %v7769 = vadd.f32 %v7480, %v7768
  %v7770 = vpop.f32.mrb[0].mxu0
  %v7771 = vpop.f32.mrb[0].mxu0
  %v7772 = vadd.f32 %v7483, %v7771
  %v7773 = vpop.f32.mrb[0].mxu0
  %7774 = vmatprep.mubr.bf16.mxu0 0
  %7775 = vmatmul.mubr.bf16.gmra.mrb[0].mxu0 %v7019
  %v7776 = vpop.f32.mrb[0].mxu0
  %v7777 = vadd.f32 %v7488, %v7776
  %v7778 = vpop.f32.mrb[0].mxu0
  %v7779 = vpop.f32.mrb[0].mxu0
  %v7780 = vadd.f32 %v7491, %v7779
  %v7781 = vpop.f32.mrb[0].mxu0
  %7782 = vmatprep.mubr.bf16.mxu0 0
  %7783 = vmatmul.mubr.bf16.gmra.mrb[0].mxu0 %v7022
  %v7784 = vpop.f32.mrb[0].mxu0
  %v7785 = vadd.f32 %v7496, %v7784
  %v7786 = vpop.f32.mrb[0].mxu0
  %v7787 = vpop.f32.mrb[0].mxu0
  %v7788 = vadd.f32 %v7499, %v7787
  %v7789 = vpop.f32.mrb[0].mxu0
  %7790 = vmatprep.mubr.bf16.mxu0 0
  %7791 = vmatmul.mubr.bf16.gmra.mrb[0].mxu0 %v7025
  %v7792 = vpop.f32.mrb[0].mxu0
  %v7793 = vadd.f32 %v7504, %v7792
  %v7794 = vpop.f32.mrb[0].mxu0
  %v7795 = vpop.f32.mrb[0].mxu0
  %v7796 = vadd.f32 %v7507, %v7795
  %v7797 = vpop.f32.mrb[0].mxu0
  %7798 = vmatprep.mubr.bf16.mxu0 0
  %7799 = vmatmul.mubr.bf16.gmra.mrb[0].mxu0 %v7028
  %v7800 = vpop.f32.mrb[0].mxu0
  %v7801 = vadd.f32 %v7512, %v7800
  %v7802 = vpop.f32.mrb[0].mxu0
  %v7803 = vpop.f32.mrb[0].mxu0
  %v7804 = vadd.f32 %v7515, %v7803
  %v7805 = vpop.f32.mrb[0].mxu0
  %7806 = vmatprep.mubr.bf16.mxu0 0
  %7807 = vmatmul.mubr.bf16.gmra.mrb[0].mxu0 %v7031
  %v7808 = vpop.f32.mrb[0].mxu0
  %v7809 = vadd.f32 %v7520, %v7808
  %v7810 = vpop.f32.mrb[0].mxu0
  %v7811 = vpop.f32.mrb[0].mxu0
  %v7812 = vadd.f32 %v7523, %v7811
  %v7813 = vpop.f32.mrb[0].mxu0
  %7814 = vmatprep.mubr.bf16.mxu0 0
  %7815 = vmatmul.mubr.bf16.gmra.mrb[0].mxu0 %v7034
  %v7816 = vpop.f32.mrb[0].mxu0
  %v7817 = vadd.f32 %v7528, %v7816
  %v7818 = vpop.f32.mrb[0].mxu0
  %v7819 = vpop.f32.mrb[0].mxu0
  %v7820 = vadd.f32 %v7531, %v7819
  %v7821 = vpop.f32.mrb[0].mxu0
  %7822 = vmatprep.mubr.bf16.mxu0 0
  %7823 = vmatmul.mubr.bf16.gmra.mrb[0].mxu0 %v7037
  %v7824 = vpop.f32.mrb[0].mxu0
  %v7825 = vadd.f32 %v7536, %v7824
  %v7826 = vpop.f32.mrb[0].mxu0
  %v7827 = vpop.f32.mrb[0].mxu0
  %v7828 = vadd.f32 %v7539, %v7827
  %v7829 = vpop.f32.mrb[0].mxu0
  %7830 = vmatprep.mubr.bf16.mxu0 0
  %7831 = vmatmul.mubr.bf16.gmra.mrb[0].mxu0 %v7040
  %v7832 = vpop.f32.mrb[0].mxu0
  %v7833 = vadd.f32 %v7544, %v7832
  %v7834 = vpop.f32.mrb[0].mxu0
  %v7835 = vpop.f32.mrb[0].mxu0
  %v7836 = vadd.f32 %v7547, %v7835
  %v7837 = vpop.f32.mrb[0].mxu0
  %7838 = vmatprep.mubr.bf16.mxu0 0
  %7839 = vmatmul.mubr.bf16.gmra.mrb[0].mxu0 %v7043
  %v7840 = vpop.f32.mrb[0].mxu0
  %v7841 = vadd.f32 %v7552, %v7840
  %v7842 = vpop.f32.mrb[0].mxu0
  %v7843 = vpop.f32.mrb[0].mxu0
  %v7844 = vadd.f32 %v7555, %v7843
  %v7845 = vpop.f32.mrb[0].mxu0
  %7846 = vmatprep.mubr.bf16.mxu0 0
  %7847 = vmatmul.mubr.bf16.gmra.mrb[0].mxu0 %v7046
  %v7848 = vpop.f32.mrb[0].mxu0
  %v7849 = vadd.f32 %v7560, %v7848
  %v7850 = vpop.f32.mrb[0].mxu0
  %v7851 = vpop.f32.mrb[0].mxu0
  %v7852 = vadd.f32 %v7563, %v7851
  %v7853 = vpop.f32.mrb[0].mxu0
  %7854 = vmatprep.mubr.bf16.mxu0 0
  %7855 = vmatmul.mubr.bf16.gmra.mrb[0].mxu0 %v7049
  %v7856 = vpop.f32.mrb[0].mxu0
  %v7857 = vadd.f32 %v7568, %v7856
  %v7858 = vpop.f32.mrb[0].mxu0
  %v7859 = vpop.f32.mrb[0].mxu0
  %v7860 = vadd.f32 %v7571, %v7859
  %v7861 = vpop.f32.mrb[0].mxu0
  %7862 = vmatprep.mubr.bf16.mxu0 0
  %7863 = vmatmul.mubr.bf16.gmra.mrb[0].mxu0 %v7052
  %v7864 = vpop.f32.mrb[0].mxu0
  %v7865 = vadd.f32 %v7576, %v7864
  %v7866 = vpop.f32.mrb[0].mxu0
  %v7867 = vpop.f32.mrb[0].mxu0
  %v7868 = vadd.f32 %v7579, %v7867
  %v7869 = vpop.f32.mrb[0].mxu0
  %7870 = vmatprep.mubr.bf16.mxu0 0
  %7871 = vmatmul.mubr.bf16.gmra.mrb[0].mxu0 %v7055
  %v7872 = vpop.f32.mrb[0].mxu0
  %v7873 = vadd.f32 %v7584, %v7872
  %v7874 = vpop.f32.mrb[0].mxu0
  %v7875 = vpop.f32.mrb[0].mxu0
  %v7876 = vadd.f32 %v7587, %v7875
  %v7877 = vpop.f32.mrb[0].mxu0
  %7878 = vmatprep.mubr.bf16.mxu0 0
  %7879 = vmatmul.mubr.bf16.gmra.mrb[0].mxu0 %v7058
  %v7880 = vpop.f32.mrb[0].mxu0
  %v7881 = vadd.f32 %v7592, %v7880
  %v7882 = vpop.f32.mrb[0].mxu0
  %v7883 = vpop.f32.mrb[0].mxu0
  %v7884 = vadd.f32 %v7595, %v7883
  %v7885 = vpop.f32.mrb[0].mxu0
  %7886 = vmatprep.mubr.bf16.mxu0 0
  %7887 = vmatmul.mubr.bf16.gmra.mrb[0].mxu0 %v7061
  %v7888 = vpop.f32.mrb[0].mxu0
  %v7889 = vadd.f32 %v7600, %v7888
  %v7890 = vpop.f32.mrb[0].mxu0
  %v7891 = vpop.f32.mrb[0].mxu0
  %v7892 = vadd.f32 %v7603, %v7891
  %v7893 = vpop.f32.mrb[0].mxu0
  %7894 = vmatprep.mubr.bf16.mxu0 0
  %7895 = vmatmul.mubr.bf16.gmra.mrb[0].mxu0 %v7064
  %v7896 = vpop.f32.mrb[0].mxu0
  %v7897 = vadd.f32 %v7608, %v7896
  %v7898 = vpop.f32.mrb[0].mxu0
  %v7899 = vpop.f32.mrb[0].mxu0
  %v7900 = vadd.f32 %v7611, %v7899
  %v7901 = vpop.f32.mrb[0].mxu0
  %7902 = vmatprep.mubr.bf16.mxu0 0
  %7903 = vmatmul.mubr.bf16.gmra.mrb[0].mxu0 %v7067
  %v7904 = vpop.f32.mrb[0].mxu0
  %v7905 = vadd.f32 %v7616, %v7904
  %v7906 = vpop.f32.mrb[0].mxu0
  %v7907 = vpop.f32.mrb[0].mxu0
  %v7908 = vadd.f32 %v7619, %v7907
  %v7909 = vpop.f32.mrb[0].mxu0
  %7910 = vmatprep.mubr.bf16.mxu0 0
  %7911 = vmatmul.mubr.bf16.gmra.mrb[0].mxu0 %v7070
  %v7912 = vpop.f32.mrb[0].mxu0
  %v7913 = vadd.f32 %v7624, %v7912
  %v7914 = vpop.f32.mrb[0].mxu0
  %v7915 = vpop.f32.mrb[0].mxu0
  %v7916 = vadd.f32 %v7627, %v7915
  %v7917 = vpop.f32.mrb[0].mxu0
  %7918 = vmatprep.mubr.bf16.mxu0 0
  %7919 = vmatmul.mubr.bf16.gmra.mrb[0].mxu0 %v7073
  %v7920 = vpop.f32.mrb[0].mxu0
  %v7921 = vadd.f32 %v7632, %v7920
  %v7922 = vpop.f32.mrb[0].mxu0
  %v7923 = vpop.f32.mrb[0].mxu0
  %v7924 = vadd.f32 %v7635, %v7923
  %v7925 = vpop.f32.mrb[0].mxu0
  %7926 = vmatprep.mubr.bf16.mxu0 0
  %7927 = vmatmul.mubr.bf16.gmra.mrb[0].mxu0 %v7076
  %v7928 = vpop.f32.mrb[0].mxu0
  %v7929 = vadd.f32 %v7640, %v7928
  %v7930 = vpop.f32.mrb[0].mxu0
  %v7931 = vpop.f32.mrb[0].mxu0
  %v7932 = vadd.f32 %v7643, %v7931
  %v7933 = vpop.f32.mrb[0].mxu0
  %7934 = vmatprep.mubr.bf16.mxu0 0
  %7935 = vmatmul.mubr.bf16.gmra.mrb[0].mxu0 %v7079
  %v7936 = vpop.f32.mrb[0].mxu0
  %v7937 = vadd.f32 %v7648, %v7936
  %v7938 = vpop.f32.mrb[0].mxu0
  %v7939 = vpop.f32.mrb[0].mxu0
  %v7940 = vadd.f32 %v7651, %v7939
  %v7941 = vpop.f32.mrb[0].mxu0
  %7942 = vmatprep.mubr.bf16.mxu0 0
  %7943 = vmatmul.mubr.bf16.gmra.mrb[0].mxu0 %v7082
  %v7944 = vpop.f32.mrb[0].mxu0
  %v7945 = vadd.f32 %v7656, %v7944
  %v7946 = vpop.f32.mrb[0].mxu0
  %v7947 = vpop.f32.mrb[0].mxu0
  %v7948 = vadd.f32 %v7659, %v7947
  %v7949 = vpop.f32.mrb[0].mxu0
  %7950 = vdwg.mxu0
  %v7951 = vld [vmem:[%s4] sm:$0x1]
  %v7953 = vlaneseq
  %v7954 = vshrl.u32 %v7953, 7
  %v7955 = vsub.s32 0, %v7954
  %v7956 = vrot.slane %v7951, %v7955
  %v7958 = vmul.f32 %v7697, %v7956
  %v7959 = vmul.f32 %v7700, %v7956
  %v7960 = vmul.f32 %v7705, %v7956
  %v7961 = vmul.f32 %v7708, %v7956
  %v7962 = vmul.f32 %v7713, %v7956
  %v7963 = vmul.f32 %v7716, %v7956
  %v7964 = vmul.f32 %v7721, %v7956
  %v7965 = vmul.f32 %v7724, %v7956
  %v7966 = vmul.f32 %v7729, %v7956
  %v7967 = vmul.f32 %v7732, %v7956
  %v7968 = vmul.f32 %v7737, %v7956
  %v7969 = vmul.f32 %v7740, %v7956
  %v7970 = vmul.f32 %v7745, %v7956
  %v7971 = vmul.f32 %v7748, %v7956
  %v7972 = vmul.f32 %v7753, %v7956
  %v7973 = vmul.f32 %v7756, %v7956
  %v7974 = vmul.f32 %v7761, %v7956
  %v7975 = vmul.f32 %v7764, %v7956
  %v7976 = vmul.f32 %v7769, %v7956
  %v7977 = vmul.f32 %v7772, %v7956
  %v7978 = vmul.f32 %v7777, %v7956
  %v7979 = vmul.f32 %v7780, %v7956
  %v7980 = vmul.f32 %v7785, %v7956
  %v7981 = vmul.f32 %v7788, %v7956
  %v7982 = vmul.f32 %v7793, %v7956
  %v7983 = vmul.f32 %v7796, %v7956
  %v7984 = vmul.f32 %v7801, %v7956
  %v7985 = vmul.f32 %v7804, %v7956
  %v7986 = vmul.f32 %v7809, %v7956
  %v7987 = vmul.f32 %v7812, %v7956
  %v7988 = vmul.f32 %v7817, %v7956
  %v7989 = vmul.f32 %v7820, %v7956
  %v7990 = vmul.f32 %v7825, %v7956
  %v7991 = vmul.f32 %v7828, %v7956
  %v7992 = vmul.f32 %v7833, %v7956
  %v7993 = vmul.f32 %v7836, %v7956
  %v7994 = vmul.f32 %v7841, %v7956
  %v7995 = vmul.f32 %v7844, %v7956
  %v7996 = vmul.f32 %v7849, %v7956
  %v7997 = vmul.f32 %v7852, %v7956
  %v7998 = vmul.f32 %v7857, %v7956
  %v7999 = vmul.f32 %v7860, %v7956
  %v8000 = vmul.f32 %v7865, %v7956
  %v8001 = vmul.f32 %v7868, %v7956
  %v8002 = vmul.f32 %v7873, %v7956
  %v8003 = vmul.f32 %v7876, %v7956
  %v8004 = vmul.f32 %v7881, %v7956
  %v8005 = vmul.f32 %v7884, %v7956
  %v8006 = vmul.f32 %v7889, %v7956
  %v8007 = vmul.f32 %v7892, %v7956
  %v8008 = vmul.f32 %v7897, %v7956
  %v8009 = vmul.f32 %v7900, %v7956
  %v8010 = vmul.f32 %v7905, %v7956
  %v8011 = vmul.f32 %v7908, %v7956
  %v8012 = vmul.f32 %v7913, %v7956
  %v8013 = vmul.f32 %v7916, %v7956
  %v8014 = vmul.f32 %v7921, %v7956
  %v8015 = vmul.f32 %v7924, %v7956
  %v8016 = vmul.f32 %v7929, %v7956
  %v8017 = vmul.f32 %v7932, %v7956
  %v8018 = vmul.f32 %v7937, %v7956
  %v8019 = vmul.f32 %v7940, %v7956
  %v8020 = vmul.f32 %v7945, %v7956
  %v8021 = vmul.f32 %v7948, %v7956
  %v8022 = vld [vmem:[%s5] sm:$0x1]
  %v8024 = vlaneseq
  %v8025 = vshrl.u32 %v8024, 7
  %v8026 = vsub.s32 0, %v8025
  %v8027 = vrot.slane %v8022, %v8026
  %v8029 = vadd.f32 %v7958, %v8027
  %v8030 = vadd.f32 %v7959, %v8027
  %v8031 = vadd.f32 %v7960, %v8027
  %v8032 = vadd.f32 %v7961, %v8027
  %v8033 = vadd.f32 %v7962, %v8027
  %v8034 = vadd.f32 %v7963, %v8027
  %v8035 = vadd.f32 %v7964, %v8027
  %v8036 = vadd.f32 %v7965, %v8027
  %v8037 = vadd.f32 %v7966, %v8027
  %v8038 = vadd.f32 %v7967, %v8027
  %v8039 = vadd.f32 %v7968, %v8027
  %v8040 = vadd.f32 %v7969, %v8027
  %v8041 = vadd.f32 %v7970, %v8027
  %v8042 = vadd.f32 %v7971, %v8027
  %v8043 = vadd.f32 %v7972, %v8027
  %v8044 = vadd.f32 %v7973, %v8027
  %v8045 = vadd.f32 %v7974, %v8027
  %v8046 = vadd.f32 %v7975, %v8027
  %v8047 = vadd.f32 %v7976, %v8027
  %v8048 = vadd.f32 %v7977, %v8027
  %v8049 = vadd.f32 %v7978, %v8027
  %v8050 = vadd.f32 %v7979, %v8027
  %v8051 = vadd.f32 %v7980, %v8027
  %v8052 = vadd.f32 %v7981, %v8027
  %v8053 = vadd.f32 %v7982, %v8027
  %v8054 = vadd.f32 %v7983, %v8027
  %v8055 = vadd.f32 %v7984, %v8027
  %v8056 = vadd.f32 %v7985, %v8027
  %v8057 = vadd.f32 %v7986, %v8027
  %v8058 = vadd.f32 %v7987, %v8027
  %v8059 = vadd.f32 %v7988, %v8027
  %v8060 = vadd.f32 %v7989, %v8027
  %v8061 = vadd.f32 %v7990, %v8027
  %v8062 = vadd.f32 %v7991, %v8027
  %v8063 = vadd.f32 %v7992, %v8027
  %v8064 = vadd.f32 %v7993, %v8027
  %v8065 = vadd.f32 %v7994, %v8027
  %v8066 = vadd.f32 %v7995, %v8027
  %v8067 = vadd.f32 %v7996, %v8027
  %v8068 = vadd.f32 %v7997, %v8027
  %v8069 = vadd.f32 %v7998, %v8027
  %v8070 = vadd.f32 %v7999, %v8027
  %v8071 = vadd.f32 %v8000, %v8027
  %v8072 = vadd.f32 %v8001, %v8027
  %v8073 = vadd.f32 %v8002, %v8027
  %v8074 = vadd.f32 %v8003, %v8027
  %v8075 = vadd.f32 %v8004, %v8027
  %v8076 = vadd.f32 %v8005, %v8027
  %v8077 = vadd.f32 %v8006, %v8027
  %v8078 = vadd.f32 %v8007, %v8027
  %v8079 = vadd.f32 %v8008, %v8027
  %v8080 = vadd.f32 %v8009, %v8027
  %v8081 = vadd.f32 %v8010, %v8027
  %v8082 = vadd.f32 %v8011, %v8027
  %v8083 = vadd.f32 %v8012, %v8027
  %v8084 = vadd.f32 %v8013, %v8027
  %v8085 = vadd.f32 %v8014, %v8027
  %v8086 = vadd.f32 %v8015, %v8027
  %v8087 = vadd.f32 %v8016, %v8027
  %v8088 = vadd.f32 %v8017, %v8027
  %v8089 = vadd.f32 %v8018, %v8027
  %v8090 = vadd.f32 %v8019, %v8027
  %v8091 = vadd.f32 %v8020, %v8027
  %v8092 = vadd.f32 %v8021, %v8027
  %v8093 = vmax.f32 %v8029, 0.0
  %v8094 = vmax.f32 %v8030, 0.0
  %v8095 = vmax.f32 %v8031, 0.0
  %v8096 = vmax.f32 %v8032, 0.0
  %v8097 = vmax.f32 %v8033, 0.0
  %v8098 = vmax.f32 %v8034, 0.0
  %v8099 = vmax.f32 %v8035, 0.0
  %v8100 = vmax.f32 %v8036, 0.0
  %v8101 = vmax.f32 %v8037, 0.0
  %v8102 = vmax.f32 %v8038, 0.0
  %v8103 = vmax.f32 %v8039, 0.0
  %v8104 = vmax.f32 %v8040, 0.0
  %v8105 = vmax.f32 %v8041, 0.0
  %v8106 = vmax.f32 %v8042, 0.0
  %v8107 = vmax.f32 %v8043, 0.0
  %v8108 = vmax.f32 %v8044, 0.0
  %v8109 = vmax.f32 %v8045, 0.0
  %v8110 = vmax.f32 %v8046, 0.0
  %v8111 = vmax.f32 %v8047, 0.0
  %v8112 = vmax.f32 %v8048, 0.0
  %v8113 = vmax.f32 %v8049, 0.0
  %v8114 = vmax.f32 %v8050, 0.0
  %v8115 = vmax.f32 %v8051, 0.0
  %v8116 = vmax.f32 %v8052, 0.0
  %v8117 = vmax.f32 %v8053, 0.0
  %v8118 = vmax.f32 %v8054, 0.0
  %v8119 = vmax.f32 %v8055, 0.0
  %v8120 = vmax.f32 %v8056, 0.0
  %v8121 = vmax.f32 %v8057, 0.0
  %v8122 = vmax.f32 %v8058, 0.0
  %v8123 = vmax.f32 %v8059, 0.0
  %v8124 = vmax.f32 %v8060, 0.0
  %v8125 = vmax.f32 %v8061, 0.0
  %v8126 = vmax.f32 %v8062, 0.0
  %v8127 = vmax.f32 %v8063, 0.0
  %v8128 = vmax.f32 %v8064, 0.0
  %v8129 = vmax.f32 %v8065, 0.0
  %v8130 = vmax.f32 %v8066, 0.0
  %v8131 = vmax.f32 %v8067, 0.0
  %v8132 = vmax.f32 %v8068, 0.0
  %v8133 = vmax.f32 %v8069, 0.0
  %v8134 = vmax.f32 %v8070, 0.0
  %v8135 = vmax.f32 %v8071, 0.0
  %v8136 = vmax.f32 %v8072, 0.0
  %v8137 = vmax.f32 %v8073, 0.0
  %v8138 = vmax.f32 %v8074, 0.0
  %v8139 = vmax.f32 %v8075, 0.0
  %v8140 = vmax.f32 %v8076, 0.0
  %v8141 = vmax.f32 %v8077, 0.0
  %v8142 = vmax.f32 %v8078, 0.0
  %v8143 = vmax.f32 %v8079, 0.0
  %v8144 = vmax.f32 %v8080, 0.0
  %v8145 = vmax.f32 %v8081, 0.0
  %v8146 = vmax.f32 %v8082, 0.0
  %v8147 = vmax.f32 %v8083, 0.0
  %v8148 = vmax.f32 %v8084, 0.0
  %v8149 = vmax.f32 %v8085, 0.0
  %v8150 = vmax.f32 %v8086, 0.0
  %v8151 = vmax.f32 %v8087, 0.0
  %v8152 = vmax.f32 %v8088, 0.0
  %v8153 = vmax.f32 %v8089, 0.0
  %v8154 = vmax.f32 %v8090, 0.0
  %v8155 = vmax.f32 %v8091, 0.0
  %v8156 = vmax.f32 %v8092, 0.0
  %v8157 = vpack.c.bf16 %v8094, %v8093
  %v8158 = vpack.c.bf16 %v8096, %v8095
  %v8159 = vpack.c.bf16 %v8098, %v8097
  %v8160 = vpack.c.bf16 %v8100, %v8099
  %v8161 = vpack.c.bf16 %v8102, %v8101
  %v8162 = vpack.c.bf16 %v8104, %v8103
  %v8163 = vpack.c.bf16 %v8106, %v8105
  %v8164 = vpack.c.bf16 %v8108, %v8107
  %v8165 = vpack.c.bf16 %v8110, %v8109
  %v8166 = vpack.c.bf16 %v8112, %v8111
  %v8167 = vpack.c.bf16 %v8114, %v8113
  %v8168 = vpack.c.bf16 %v8116, %v8115
  %v8169 = vpack.c.bf16 %v8118, %v8117
  %v8170 = vpack.c.bf16 %v8120, %v8119
  %v8171 = vpack.c.bf16 %v8122, %v8121
  %v8172 = vpack.c.bf16 %v8124, %v8123
  %v8173 = vpack.c.bf16 %v8126, %v8125
  %v8174 = vpack.c.bf16 %v8128, %v8127
  %v8175 = vpack.c.bf16 %v8130, %v8129
  %v8176 = vpack.c.bf16 %v8132, %v8131
  %v8177 = vpack.c.bf16 %v8134, %v8133
  %v8178 = vpack.c.bf16 %v8136, %v8135
  %v8179 = vpack.c.bf16 %v8138, %v8137
  %v8180 = vpack.c.bf16 %v8140, %v8139
  %v8181 = vpack.c.bf16 %v8142, %v8141
  %v8182 = vpack.c.bf16 %v8144, %v8143
  %v8183 = vpack.c.bf16 %v8146, %v8145
  %v8184 = vpack.c.bf16 %v8148, %v8147
  %v8185 = vpack.c.bf16 %v8150, %v8149
  %v8186 = vpack.c.bf16 %v8152, %v8151
  %v8187 = vpack.c.bf16 %v8154, %v8153
  %v8188 = vpack.c.bf16 %v8156, %v8155
  %vm8189 = vcmask 261120
  %8190 = vst.msk [vmem:[#allocation3] sm:$0xff] %vm8189, 0
  %vm8191 = vcmask 257024
  %8192 = vst.msk [vmem:[#allocation3 + $0x8] sm:$0xf] %vm8191, 0
  %vm8193 = vcmask 261124
  %8194 = vst.msk [vmem:[#allocation3 + $0x88] sm:$0xf0] %vm8193, 0
  %8195 = vst.msk [vmem:[#allocation3 + $0x90] sm:$0xff] %vm8189, 0
  %vm8212 = vcmask 1043456
  %v8213 = vrot.slane %v8157, 4
  %v8214 = vrot.slane %v8158, 4
  %v8215 = vsel %vm8212, %v8213, %v8214
  %v8216 = vrot.slane %v8159, 4
  %v8217 = vsel %vm8212, %v8214, %v8216
  %v8218 = vrot.slane %v8160, 4
  %v8219 = vsel %vm8212, %v8216, %v8218
  %v8220 = vrot.slane %v8161, 4
  %v8221 = vsel %vm8212, %v8218, %v8220
  %v8222 = vrot.slane %v8162, 4
  %v8223 = vsel %vm8212, %v8220, %v8222
  %v8224 = vrot.slane %v8163, 4
  %v8225 = vsel %vm8212, %v8222, %v8224
  %v8226 = vrot.slane %v8164, 4
  %v8227 = vsel %vm8212, %v8224, %v8226
  %v8228 = vrot.slane %v8165, 4
  %v8229 = vsel %vm8212, %v8226, %v8228
  %v8230 = vrot.slane %v8166, 4
  %v8231 = vsel %vm8212, %v8228, %v8230
  %v8232 = vrot.slane %v8167, 4
  %v8233 = vsel %vm8212, %v8230, %v8232
  %v8234 = vrot.slane %v8168, 4
  %v8235 = vsel %vm8212, %v8232, %v8234
  %v8236 = vrot.slane %v8169, 4
  %v8237 = vsel %vm8212, %v8234, %v8236
  %v8238 = vrot.slane %v8170, 4
  %v8239 = vsel %vm8212, %v8236, %v8238
  %v8240 = vrot.slane %v8171, 4
  %v8241 = vsel %vm8212, %v8238, %v8240
  %v8242 = vrot.slane %v8172, 4
  %v8243 = vsel %vm8212, %v8240, %v8242
  %8261 = vst.msk [vmem:[#allocation3 + $0x8] sm:$0xf0] %vm8193, %v8213
  %8262 = vst.msk [vmem:[#allocation3 + $0x10] sm:$0xff] %vm8189, %v8215
  %8263 = vst.msk [vmem:[#allocation3 + $0x18] sm:$0xff] %vm8189, %v8217
  %8264 = vst.msk [vmem:[#allocation3 + $0x20] sm:$0xff] %vm8189, %v8219
  %8265 = vst.msk [vmem:[#allocation3 + $0x28] sm:$0xff] %vm8189, %v8221
  %8266 = vst.msk [vmem:[#allocation3 + $0x30] sm:$0xff] %vm8189, %v8223
  %8267 = vst.msk [vmem:[#allocation3 + $0x38] sm:$0xff] %vm8189, %v8225
  %8268 = vst.msk [vmem:[#allocation3 + $0x40] sm:$0xff] %vm8189, %v8227
  %8269 = vst.msk [vmem:[#allocation3 + $0x48] sm:$0xff] %vm8189, %v8229
  %8270 = vst.msk [vmem:[#allocation3 + $0x50] sm:$0xff] %vm8189, %v8231
  %8271 = vst.msk [vmem:[#allocation3 + $0x58] sm:$0xff] %vm8189, %v8233
  %8272 = vst.msk [vmem:[#allocation3 + $0x60] sm:$0xff] %vm8189, %v8235
  %8273 = vst.msk [vmem:[#allocation3 + $0x68] sm:$0xff] %vm8189, %v8237
  %8274 = vst.msk [vmem:[#allocation3 + $0x70] sm:$0xff] %vm8189, %v8239
  %8275 = vst.msk [vmem:[#allocation3 + $0x78] sm:$0xff] %vm8189, %v8241
  %8276 = vst.msk [vmem:[#allocation3 + $0x80] sm:$0xff] %vm8189, %v8243
  %8277 = vst.msk [vmem:[#allocation3 + $0x88] sm:$0xf] %vm8191, %v8242
  %8278 = vst.msk [vmem:[#allocation3 + $0x98] sm:$0xff] %vm8189, 0
  %8279 = vst.msk [vmem:[#allocation3 + $0xa0] sm:$0xf] %vm8191, 0
  %8280 = vst.msk [vmem:[#allocation3 + $0x120] sm:$0xf0] %vm8193, 0
  %8281 = vst.msk [vmem:[#allocation3 + $0x128] sm:$0xff] %vm8189, 0
  %v8298 = vrot.slane %v8173, 4
  %v8299 = vrot.slane %v8174, 4
  %v8300 = vsel %vm8212, %v8298, %v8299
  %v8301 = vrot.slane %v8175, 4
  %v8302 = vsel %vm8212, %v8299, %v8301
  %v8303 = vrot.slane %v8176, 4
  %v8304 = vsel %vm8212, %v8301, %v8303
  %v8305 = vrot.slane %v8177, 4
  %v8306 = vsel %vm8212, %v8303, %v8305
  %v8307 = vrot.slane %v8178, 4
  %v8308 = vsel %vm8212, %v8305, %v8307
  %v8309 = vrot.slane %v8179, 4
  %v8310 = vsel %vm8212, %v8307, %v8309
  %v8311 = vrot.slane %v8180, 4
  %v8312 = vsel %vm8212, %v8309, %v8311
  %v8313 = vrot.slane %v8181, 4
  %v8314 = vsel %vm8212, %v8311, %v8313
  %v8315 = vrot.slane %v8182, 4
  %v8316 = vsel %vm8212, %v8313, %v8315
  %v8317 = vrot.slane %v8183, 4
  %v8318 = vsel %vm8212, %v8315, %v8317
  %v8319 = vrot.slane %v8184, 4
  %v8320 = vsel %vm8212, %v8317, %v8319
  %v8321 = vrot.slane %v8185, 4
  %v8322 = vsel %vm8212, %v8319, %v8321
  %v8323 = vrot.slane %v8186, 4
  %v8324 = vsel %vm8212, %v8321, %v8323
  %v8325 = vrot.slane %v8187, 4
  %v8326 = vsel %vm8212, %v8323, %v8325
  %v8327 = vrot.slane %v8188, 4
  %v8328 = vsel %vm8212, %v8325, %v8327
  %8346 = vst.msk [vmem:[#allocation3 + $0xa0] sm:$0xf0] %vm8193, %v8298
  %8347 = vst.msk [vmem:[#allocation3 + $0xa8] sm:$0xff] %vm8189, %v8300
  %8348 = vst.msk [vmem:[#allocation3 + $0xb0] sm:$0xff] %vm8189, %v8302
  %8349 = vst.msk [vmem:[#allocation3 + $0xb8] sm:$0xff] %vm8189, %v8304
  %8350 = vst.msk [vmem:[#allocation3 + $0xc0] sm:$0xff] %vm8189, %v8306
  %8351 = vst.msk [vmem:[#allocation3 + $0xc8] sm:$0xff] %vm8189, %v8308
  %8352 = vst.msk [vmem:[#allocation3 + $0xd0] sm:$0xff] %vm8189, %v8310
  %8353 = vst.msk [vmem:[#allocation3 + $0xd8] sm:$0xff] %vm8189, %v8312
  %8354 = vst.msk [vmem:[#allocation3 + $0xe0] sm:$0xff] %vm8189, %v8314
  %8355 = vst.msk [vmem:[#allocation3 + $0xe8] sm:$0xff] %vm8189, %v8316
  %8356 = vst.msk [vmem:[#allocation3 + $0xf0] sm:$0xff] %vm8189, %v8318
  %8357 = vst.msk [vmem:[#allocation3 + $0xf8] sm:$0xff] %vm8189, %v8320
  %8358 = vst.msk [vmem:[#allocation3 + $0x100] sm:$0xff] %vm8189, %v8322
  %8359 = vst.msk [vmem:[#allocation3 + $0x108] sm:$0xff] %vm8189, %v8324
  %8360 = vst.msk [vmem:[#allocation3 + $0x110] sm:$0xff] %vm8189, %v8326
  %8361 = vst.msk [vmem:[#allocation3 + $0x118] sm:$0xff] %vm8189, %v8328
  %8362 = vst.msk [vmem:[#allocation3 + $0x120] sm:$0xf] %vm8191, %v8327
  %v8363 = vld [vmem:[#allocation3] sm:$0xf8]
  %v8364 = vld [vmem:[#allocation3 + $0x8] sm:$0xff]
  %v8365 = vld [vmem:[#allocation3 + $0x10] sm:$0xff]
  %v8366 = vld [vmem:[#allocation3 + $0x18] sm:$0xff]
  %v8367 = vld [vmem:[#allocation3 + $0x20] sm:$0xff]
  %v8368 = vld [vmem:[#allocation3 + $0x28] sm:$0xff]
  %v8369 = vld [vmem:[#allocation3 + $0x30] sm:$0xff]
  %v8370 = vld [vmem:[#allocation3 + $0x38] sm:$0xff]
  %v8371 = vld [vmem:[#allocation3 + $0x40] sm:$0xff]
  %v8372 = vld [vmem:[#allocation3 + $0x48] sm:$0xff]
  %v8373 = vld [vmem:[#allocation3 + $0x50] sm:$0xff]
  %v8374 = vld [vmem:[#allocation3 + $0x58] sm:$0xff]
  %v8375 = vld [vmem:[#allocation3 + $0x60] sm:$0xff]
  %v8376 = vld [vmem:[#allocation3 + $0x68] sm:$0xff]
  %v8377 = vld [vmem:[#allocation3 + $0x70] sm:$0xff]
  %v8378 = vld [vmem:[#allocation3 + $0x78] sm:$0xff]
  %v8379 = vld [vmem:[#allocation3 + $0x80] sm:$0xf]
  %v8412 = vunpack.c.l.b16 %v73
  %v8413 = vunpack.c.l.b16 %v85
  %v8414 = vunpack.c.l.b16 %v97
  %v8415 = vunpack.c.l.b16 %v109
  %v8416 = vunpack.c.l.b16 %v121
  %v8417 = vunpack.c.l.b16 %v133
  %v8418 = vunpack.c.l.b16 %v145
  %v8419 = vunpack.c.l.b16 %v157
  %v8420 = vunpack.c.l.b16 %v169
  %v8421 = vunpack.c.l.b16 %v181
  %v8422 = vunpack.c.l.b16 %v193
  %v8423 = vunpack.c.l.b16 %v205
  %v8424 = vunpack.c.l.b16 %v217
  %v8425 = vunpack.c.l.b16 %v229
  %v8426 = vunpack.c.l.b16 %v241
  %v8427 = vunpack.c.l.b16 %v253
  %v8428 = vunpack.c.l.b16 %v265
  %v8429 = vunpack.c.l.b16 %v277
  %v8430 = vunpack.c.l.b16 %v289
  %v8431 = vunpack.c.l.b16 %v301
  %v8432 = vunpack.c.l.b16 %v313
  %v8433 = vunpack.c.l.b16 %v325
  %v8434 = vunpack.c.l.b16 %v337
  %v8435 = vunpack.c.l.b16 %v349
  %v8436 = vunpack.c.l.b16 %v361
  %v8437 = vunpack.c.l.b16 %v373
  %v8438 = vunpack.c.l.b16 %v385
  %v8439 = vunpack.c.l.b16 %v397
  %v8440 = vunpack.c.l.b16 %v409
  %v8441 = vunpack.c.l.b16 %v421
  %v8442 = vunpack.c.l.b16 %v433
  %v8443 = vunpack.c.l.b16 %v445
  %v8444 = vpack.c.b16 %v8413, %v8412
  %v8445 = vpack.c.b16 %v8415, %v8414
  %v8446 = vpack.c.b16 %v8417, %v8416
  %v8447 = vpack.c.b16 %v8419, %v8418
  %v8448 = vpack.c.b16 %v8421, %v8420
  %v8449 = vpack.c.b16 %v8423, %v8422
  %v8450 = vpack.c.b16 %v8425, %v8424
  %v8451 = vpack.c.b16 %v8427, %v8426
  %v8452 = vpack.c.b16 %v8429, %v8428
  %v8453 = vpack.c.b16 %v8431, %v8430
  %v8454 = vpack.c.b16 %v8433, %v8432
  %v8455 = vpack.c.b16 %v8435, %v8434
  %v8456 = vpack.c.b16 %v8437, %v8436
  %v8457 = vpack.c.b16 %v8439, %v8438
  %v8458 = vpack.c.b16 %v8441, %v8440
  %v8459 = vpack.c.b16 %v8443, %v8442
  %v8461 = vshrl.u32 %v8444, 16
  %v8463 = vrot.slane %v8461, 4
  %v8464 = vshll.u32 %v8444, 16
  %v8466 = vrot.slane %v8464, 5
  %v8467 = vor.u32 %v8463, %v8466
  %v8469 = vshrl.u32 %v8445, 16
  %v8471 = vrot.slane %v8469, 4
  %v8472 = vshll.u32 %v8445, 16
  %v8474 = vrot.slane %v8472, 5
  %v8475 = vor.u32 %v8471, %v8474
  %v8476 = vsel %vm895, %v8467, %v8475
  %v8478 = vshrl.u32 %v8446, 16
  %v8480 = vrot.slane %v8478, 4
  %v8481 = vshll.u32 %v8446, 16
  %v8483 = vrot.slane %v8481, 5
  %v8484 = vor.u32 %v8480, %v8483
  %v8485 = vsel %vm895, %v8475, %v8484
  %v8487 = vshrl.u32 %v8447, 16
  %v8489 = vrot.slane %v8487, 4
  %v8490 = vshll.u32 %v8447, 16
  %v8492 = vrot.slane %v8490, 5
  %v8493 = vor.u32 %v8489, %v8492
  %v8494 = vsel %vm895, %v8484, %v8493
  %v8496 = vshrl.u32 %v8448, 16
  %v8498 = vrot.slane %v8496, 4
  %v8499 = vshll.u32 %v8448, 16
  %v8501 = vrot.slane %v8499, 5
  %v8502 = vor.u32 %v8498, %v8501
  %v8503 = vsel %vm895, %v8493, %v8502
  %v8505 = vshrl.u32 %v8449, 16
  %v8507 = vrot.slane %v8505, 4
  %v8508 = vshll.u32 %v8449, 16
  %v8510 = vrot.slane %v8508, 5
  %v8511 = vor.u32 %v8507, %v8510
  %v8512 = vsel %vm895, %v8502, %v8511
  %v8514 = vshrl.u32 %v8450, 16
  %v8516 = vrot.slane %v8514, 4
  %v8517 = vshll.u32 %v8450, 16
  %v8519 = vrot.slane %v8517, 5
  %v8520 = vor.u32 %v8516, %v8519
  %v8521 = vsel %vm895, %v8511, %v8520
  %v8523 = vshrl.u32 %v8451, 16
  %v8525 = vrot.slane %v8523, 4
  %v8526 = vshll.u32 %v8451, 16
  %v8528 = vrot.slane %v8526, 5
  %v8529 = vor.u32 %v8525, %v8528
  %v8530 = vsel %vm895, %v8520, %v8529
  %v8532 = vshrl.u32 %v8452, 16
  %v8534 = vrot.slane %v8532, 4
  %v8535 = vshll.u32 %v8452, 16
  %v8537 = vrot.slane %v8535, 5
  %v8538 = vor.u32 %v8534, %v8537
  %v8539 = vsel %vm895, %v8529, %v8538
  %v8541 = vshrl.u32 %v8453, 16
  %v8543 = vrot.slane %v8541, 4
  %v8544 = vshll.u32 %v8453, 16
  %v8546 = vrot.slane %v8544, 5
  %v8547 = vor.u32 %v8543, %v8546
  %v8548 = vsel %vm895, %v8538, %v8547
  %v8550 = vshrl.u32 %v8454, 16
  %v8552 = vrot.slane %v8550, 4
  %v8553 = vshll.u32 %v8454, 16
  %v8555 = vrot.slane %v8553, 5
  %v8556 = vor.u32 %v8552, %v8555
  %v8557 = vsel %vm895, %v8547, %v8556
  %v8559 = vshrl.u32 %v8455, 16
  %v8561 = vrot.slane %v8559, 4
  %v8562 = vshll.u32 %v8455, 16
  %v8564 = vrot.slane %v8562, 5
  %v8565 = vor.u32 %v8561, %v8564
  %v8566 = vsel %vm895, %v8556, %v8565
  %v8568 = vshrl.u32 %v8456, 16
  %v8570 = vrot.slane %v8568, 4
  %v8571 = vshll.u32 %v8456, 16
  %v8573 = vrot.slane %v8571, 5
  %v8574 = vor.u32 %v8570, %v8573
  %v8575 = vsel %vm895, %v8565, %v8574
  %v8577 = vshrl.u32 %v8457, 16
  %v8579 = vrot.slane %v8577, 4
  %v8580 = vshll.u32 %v8457, 16
  %v8582 = vrot.slane %v8580, 5
  %v8583 = vor.u32 %v8579, %v8582
  %v8584 = vsel %vm895, %v8574, %v8583
  %v8586 = vshrl.u32 %v8458, 16
  %v8588 = vrot.slane %v8586, 4
  %v8589 = vshll.u32 %v8458, 16
  %v8591 = vrot.slane %v8589, 5
  %v8592 = vor.u32 %v8588, %v8591
  %v8593 = vsel %vm895, %v8583, %v8592
  %v8595 = vshrl.u32 %v8459, 16
  %v8597 = vrot.slane %v8595, 4
  %v8598 = vshll.u32 %v8459, 16
  %v8600 = vrot.slane %v8598, 5
  %v8601 = vor.u32 %v8597, %v8600
  %v8602 = vsel %vm895, %v8592, %v8601
  %v8620 = vmul.bf16 %v8363, %v8467
  %v8621 = vmul.bf16 %v8364, %v8476
  %v8622 = vmul.bf16 %v8365, %v8485
  %v8623 = vmul.bf16 %v8366, %v8494
  %v8624 = vmul.bf16 %v8367, %v8503
  %v8625 = vmul.bf16 %v8368, %v8512
  %v8626 = vmul.bf16 %v8369, %v8521
  %v8627 = vmul.bf16 %v8370, %v8530
  %v8628 = vmul.bf16 %v8371, %v8539
  %v8629 = vmul.bf16 %v8372, %v8548
  %v8630 = vmul.bf16 %v8373, %v8557
  %v8631 = vmul.bf16 %v8374, %v8566
  %v8632 = vmul.bf16 %v8375, %v8575
  %v8633 = vmul.bf16 %v8376, %v8584
  %v8634 = vmul.bf16 %v8377, %v8593
  %v8635 = vmul.bf16 %v8378, %v8602
  %v8636 = vmul.bf16 %v8379, %v8601
  %v8638 = vshrl.u32 %v8620, 16
  %v8640 = vrot.slane %v8638, 3
  %v8641 = vshll.u32 %v8620, 16
  %v8643 = vrot.slane %v8641, 4
  %v8644 = vor.u32 %v8640, %v8643
  %v8646 = vshrl.u32 %v8621, 16
  %v8648 = vrot.slane %v8646, 3
  %v8649 = vshll.u32 %v8621, 16
  %v8651 = vrot.slane %v8649, 4
  %v8652 = vor.u32 %v8648, %v8651
  %v8653 = vsel %vm1366, %v8644, %v8652
  %v8655 = vshrl.u32 %v8622, 16
  %v8657 = vrot.slane %v8655, 3
  %v8658 = vshll.u32 %v8622, 16
  %v8660 = vrot.slane %v8658, 4
  %v8661 = vor.u32 %v8657, %v8660
  %v8662 = vsel %vm1366, %v8652, %v8661
  %v8664 = vshrl.u32 %v8623, 16
  %v8666 = vrot.slane %v8664, 3
  %v8667 = vshll.u32 %v8623, 16
  %v8669 = vrot.slane %v8667, 4
  %v8670 = vor.u32 %v8666, %v8669
  %v8671 = vsel %vm1366, %v8661, %v8670
  %v8673 = vshrl.u32 %v8624, 16
  %v8675 = vrot.slane %v8673, 3
  %v8676 = vshll.u32 %v8624, 16
  %v8678 = vrot.slane %v8676, 4
  %v8679 = vor.u32 %v8675, %v8678
  %v8680 = vsel %vm1366, %v8670, %v8679
  %v8682 = vshrl.u32 %v8625, 16
  %v8684 = vrot.slane %v8682, 3
  %v8685 = vshll.u32 %v8625, 16
  %v8687 = vrot.slane %v8685, 4
  %v8688 = vor.u32 %v8684, %v8687
  %v8689 = vsel %vm1366, %v8679, %v8688
  %v8691 = vshrl.u32 %v8626, 16
  %v8693 = vrot.slane %v8691, 3
  %v8694 = vshll.u32 %v8626, 16
  %v8696 = vrot.slane %v8694, 4
  %v8697 = vor.u32 %v8693, %v8696
  %v8698 = vsel %vm1366, %v8688, %v8697
  %v8700 = vshrl.u32 %v8627, 16
  %v8702 = vrot.slane %v8700, 3
  %v8703 = vshll.u32 %v8627, 16
  %v8705 = vrot.slane %v8703, 4
  %v8706 = vor.u32 %v8702, %v8705
  %v8707 = vsel %vm1366, %v8697, %v8706
  %v8709 = vshrl.u32 %v8628, 16
  %v8711 = vrot.slane %v8709, 3
  %v8712 = vshll.u32 %v8628, 16
  %v8714 = vrot.slane %v8712, 4
  %v8715 = vor.u32 %v8711, %v8714
  %v8716 = vsel %vm1366, %v8706, %v8715
  %v8718 = vshrl.u32 %v8629, 16
  %v8720 = vrot.slane %v8718, 3
  %v8721 = vshll.u32 %v8629, 16
  %v8723 = vrot.slane %v8721, 4
  %v8724 = vor.u32 %v8720, %v8723
  %v8725 = vsel %vm1366, %v8715, %v8724
  %v8727 = vshrl.u32 %v8630, 16
  %v8729 = vrot.slane %v8727, 3
  %v8730 = vshll.u32 %v8630, 16
  %v8732 = vrot.slane %v8730, 4
  %v8733 = vor.u32 %v8729, %v8732
  %v8734 = vsel %vm1366, %v8724, %v8733
  %v8736 = vshrl.u32 %v8631, 16
  %v8738 = vrot.slane %v8736, 3
  %v8739 = vshll.u32 %v8631, 16
  %v8741 = vrot.slane %v8739, 4
  %v8742 = vor.u32 %v8738, %v8741
  %v8743 = vsel %vm1366, %v8733, %v8742
  %v8745 = vshrl.u32 %v8632, 16
  %v8747 = vrot.slane %v8745, 3
  %v8748 = vshll.u32 %v8632, 16
  %v8750 = vrot.slane %v8748, 4
  %v8751 = vor.u32 %v8747, %v8750
  %v8752 = vsel %vm1366, %v8742, %v8751
  %v8754 = vshrl.u32 %v8633, 16
  %v8756 = vrot.slane %v8754, 3
  %v8757 = vshll.u32 %v8633, 16
  %v8759 = vrot.slane %v8757, 4
  %v8760 = vor.u32 %v8756, %v8759
  %v8761 = vsel %vm1366, %v8751, %v8760
  %v8763 = vshrl.u32 %v8634, 16
  %v8765 = vrot.slane %v8763, 3
  %v8766 = vshll.u32 %v8634, 16
  %v8768 = vrot.slane %v8766, 4
  %v8769 = vor.u32 %v8765, %v8768
  %v8770 = vsel %vm1366, %v8760, %v8769
  %v8772 = vshrl.u32 %v8635, 16
  %v8774 = vrot.slane %v8772, 3
  %v8775 = vshll.u32 %v8635, 16
  %v8777 = vrot.slane %v8775, 4
  %v8778 = vor.u32 %v8774, %v8777
  %v8779 = vsel %vm1366, %v8769, %v8778
  %v8781 = vshrl.u32 %v8636, 16
  %v8783 = vrot.slane %v8781, 3
  %v8784 = vshll.u32 %v8636, 16
  %v8786 = vrot.slane %v8784, 4
  %v8787 = vor.u32 %v8783, %v8786
  %v8788 = vsel %vm1366, %v8778, %v8787
  %8805 = vst.msk [vmem:[#allocation4] sm:$0xff] %vm8189, %v8653
  %8806 = vst.msk [vmem:[#allocation4 + $0x18] sm:$0xff] %vm8189, %v8662
  %8807 = vst.msk [vmem:[#allocation4 + $0x30] sm:$0xff] %vm8189, %v8671
  %8808 = vst.msk [vmem:[#allocation4 + $0x48] sm:$0xff] %vm8189, %v8680
  %8809 = vst.msk [vmem:[#allocation4 + $0x60] sm:$0xff] %vm8189, %v8689
  %8810 = vst.msk [vmem:[#allocation4 + $0x78] sm:$0xff] %vm8189, %v8698
  %8811 = vst.msk [vmem:[#allocation4 + $0x90] sm:$0xff] %vm8189, %v8707
  %8812 = vst.msk [vmem:[#allocation4 + $0xa8] sm:$0xff] %vm8189, %v8716
  %8813 = vst.msk [vmem:[#allocation4 + $0xc0] sm:$0xff] %vm8189, %v8725
  %8814 = vst.msk [vmem:[#allocation4 + $0xd8] sm:$0xff] %vm8189, %v8734
  %8815 = vst.msk [vmem:[#allocation4 + $0xf0] sm:$0xff] %vm8189, %v8743
  %8816 = vst.msk [vmem:[#allocation4 + $0x108] sm:$0xff] %vm8189, %v8752
  %8817 = vst.msk [vmem:[#allocation4 + $0x120] sm:$0xff] %vm8189, %v8761
  %8818 = vst.msk [vmem:[#allocation4 + $0x138] sm:$0xff] %vm8189, %v8770
  %8819 = vst.msk [vmem:[#allocation4 + $0x150] sm:$0xff] %vm8189, %v8779
  %8820 = vst.msk [vmem:[#allocation4 + $0x168] sm:$0xff] %vm8189, %v8788
  %v8821 = vld [vmem:[#allocation3] sm:$0xf0]
  %v8822 = vld [vmem:[#allocation3 + $0x8] sm:$0xff]
  %v8823 = vld [vmem:[#allocation3 + $0x10] sm:$0xff]
  %v8824 = vld [vmem:[#allocation3 + $0x18] sm:$0xff]
  %v8825 = vld [vmem:[#allocation3 + $0x20] sm:$0xff]
  %v8826 = vld [vmem:[#allocation3 + $0x28] sm:$0xff]
  %v8827 = vld [vmem:[#allocation3 + $0x30] sm:$0xff]
  %v8828 = vld [vmem:[#allocation3 + $0x38] sm:$0xff]
  %v8829 = vld [vmem:[#allocation3 + $0x40] sm:$0xff]
  %v8830 = vld [vmem:[#allocation3 + $0x48] sm:$0xff]
  %v8831 = vld [vmem:[#allocation3 + $0x50] sm:$0xff]
  %v8832 = vld [vmem:[#allocation3 + $0x58] sm:$0xff]
  %v8833 = vld [vmem:[#allocation3 + $0x60] sm:$0xff]
  %v8834 = vld [vmem:[#allocation3 + $0x68] sm:$0xff]
  %v8835 = vld [vmem:[#allocation3 + $0x70] sm:$0xff]
  %v8836 = vld [vmem:[#allocation3 + $0x78] sm:$0xff]
  %v8837 = vld [vmem:[#allocation3 + $0x80] sm:$0xf]
  %v8855 = vrot.slane %v8821, 4
  %v8856 = vrot.slane %v8822, 4
  %v8857 = vsel %vm8212, %v8855, %v8856
  %v8858 = vrot.slane %v8823, 4
  %v8859 = vsel %vm8212, %v8856, %v8858
  %v8860 = vrot.slane %v8824, 4
  %v8861 = vsel %vm8212, %v8858, %v8860
  %v8862 = vrot.slane %v8825, 4
  %v8863 = vsel %vm8212, %v8860, %v8862
  %v8864 = vrot.slane %v8826, 4
  %v8865 = vsel %vm8212, %v8862, %v8864
  %v8866 = vrot.slane %v8827, 4
  %v8867 = vsel %vm8212, %v8864, %v8866
  %v8868 = vrot.slane %v8828, 4
  %v8869 = vsel %vm8212, %v8866, %v8868
  %v8870 = vrot.slane %v8829, 4
  %v8871 = vsel %vm8212, %v8868, %v8870
  %v8872 = vrot.slane %v8830, 4
  %v8873 = vsel %vm8212, %v8870, %v8872
  %v8874 = vrot.slane %v8831, 4
  %v8875 = vsel %vm8212, %v8872, %v8874
  %v8876 = vrot.slane %v8832, 4
  %v8877 = vsel %vm8212, %v8874, %v8876
  %v8878 = vrot.slane %v8833, 4
  %v8879 = vsel %vm8212, %v8876, %v8878
  %v8880 = vrot.slane %v8834, 4
  %v8881 = vsel %vm8212, %v8878, %v8880
  %v8882 = vrot.slane %v8835, 4
  %v8883 = vsel %vm8212, %v8880, %v8882
  %v8884 = vrot.slane %v8836, 4
  %v8885 = vsel %vm8212, %v8882, %v8884
  %v8886 = vrot.slane %v8837, 4
  %v8887 = vsel %vm8212, %v8884, %v8886
  %8888 = vrot.lane.b32.xlu0 %v8857, 32
  %v8889 = vpop.permute.xlu0 %8888
  %8890 = vrot.lane.b32.xlu0 %v8859, 32
  %v8891 = vpop.permute.xlu0 %8890
  %8892 = vrot.lane.b32.xlu0 %v8861, 32
  %v8893 = vpop.permute.xlu0 %8892
  %8894 = vrot.lane.b32.xlu0 %v8863, 32
  %v8895 = vpop.permute.xlu0 %8894
  %8896 = vrot.lane.b32.xlu0 %v8865, 32
  %v8897 = vpop.permute.xlu0 %8896
  %8898 = vrot.lane.b32.xlu0 %v8867, 32
  %v8899 = vpop.permute.xlu0 %8898
  %8900 = vrot.lane.b32.xlu0 %v8869, 32
  %v8901 = vpop.permute.xlu0 %8900
  %8902 = vrot.lane.b32.xlu0 %v8871, 32
  %v8903 = vpop.permute.xlu0 %8902
  %8904 = vrot.lane.b32.xlu0 %v8873, 32
  %v8905 = vpop.permute.xlu0 %8904
  %8906 = vrot.lane.b32.xlu0 %v8875, 32
  %v8907 = vpop.permute.xlu0 %8906
  %8908 = vrot.lane.b32.xlu0 %v8877, 32
  %v8909 = vpop.permute.xlu0 %8908
  %8910 = vrot.lane.b32.xlu0 %v8879, 32
  %v8911 = vpop.permute.xlu0 %8910
  %8912 = vrot.lane.b32.xlu0 %v8881, 32
  %v8913 = vpop.permute.xlu0 %8912
  %8914 = vrot.lane.b32.xlu0 %v8883, 32
  %v8915 = vpop.permute.xlu0 %8914
  %8916 = vrot.lane.b32.xlu0 %v8885, 32
  %v8917 = vpop.permute.xlu0 %8916
  %8918 = vrot.lane.b32.xlu0 %v8887, 32
  %v8919 = vpop.permute.xlu0 %8918
  %vm8936 = vcmask 523520
  %8937 = vst.msk [vmem:[#allocation4] sm:$0xff] %vm8936, %v8889
  %8938 = vst.msk [vmem:[#allocation4 + $0x18] sm:$0xff] %vm8936, %v8891
  %8939 = vst.msk [vmem:[#allocation4 + $0x30] sm:$0xff] %vm8936, %v8893
  %8940 = vst.msk [vmem:[#allocation4 + $0x48] sm:$0xff] %vm8936, %v8895
  %8941 = vst.msk [vmem:[#allocation4 + $0x60] sm:$0xff] %vm8936, %v8897
  %8942 = vst.msk [vmem:[#allocation4 + $0x78] sm:$0xff] %vm8936, %v8899
  %8943 = vst.msk [vmem:[#allocation4 + $0x90] sm:$0xff] %vm8936, %v8901
  %8944 = vst.msk [vmem:[#allocation4 + $0xa8] sm:$0xff] %vm8936, %v8903
  %8945 = vst.msk [vmem:[#allocation4 + $0xc0] sm:$0xff] %vm8936, %v8905
  %8946 = vst.msk [vmem:[#allocation4 + $0xd8] sm:$0xff] %vm8936, %v8907
  %8947 = vst.msk [vmem:[#allocation4 + $0xf0] sm:$0xff] %vm8936, %v8909
  %8948 = vst.msk [vmem:[#allocation4 + $0x108] sm:$0xff] %vm8936, %v8911
  %8949 = vst.msk [vmem:[#allocation4 + $0x120] sm:$0xff] %vm8936, %v8913
  %8950 = vst.msk [vmem:[#allocation4 + $0x138] sm:$0xff] %vm8936, %v8915
  %8951 = vst.msk [vmem:[#allocation4 + $0x150] sm:$0xff] %vm8936, %v8917
  %8952 = vst.msk [vmem:[#allocation4 + $0x168] sm:$0xff] %vm8936, %v8919
  %v8953 = vld [vmem:[#allocation3] sm:$0xf0]
  %v8954 = vld [vmem:[#allocation3 + $0x8] sm:$0xff]
  %v8955 = vld [vmem:[#allocation3 + $0x10] sm:$0xff]
  %v8956 = vld [vmem:[#allocation3 + $0x18] sm:$0xff]
  %v8957 = vld [vmem:[#allocation3 + $0x20] sm:$0xff]
  %v8958 = vld [vmem:[#allocation3 + $0x28] sm:$0xff]
  %v8959 = vld [vmem:[#allocation3 + $0x30] sm:$0xff]
  %v8960 = vld [vmem:[#allocation3 + $0x38] sm:$0xff]
  %v8961 = vld [vmem:[#allocation3 + $0x40] sm:$0xff]
  %v8962 = vld [vmem:[#allocation3 + $0x48] sm:$0xff]
  %v8963 = vld [vmem:[#allocation3 + $0x50] sm:$0xff]
  %v8964 = vld [vmem:[#allocation3 + $0x58] sm:$0xff]
  %v8965 = vld [vmem:[#allocation3 + $0x60] sm:$0xff]
  %v8966 = vld [vmem:[#allocation3 + $0x68] sm:$0xff]
  %v8967 = vld [vmem:[#allocation3 + $0x70] sm:$0xff]
  %v8968 = vld [vmem:[#allocation3 + $0x78] sm:$0xff]
  %v8969 = vld [vmem:[#allocation3 + $0x80] sm:$0x1f]
  %v9002 = vunpack.c.l.b16 %v489
  %v9003 = vunpack.c.l.b16 %v501
  %v9004 = vunpack.c.l.b16 %v513
  %v9005 = vunpack.c.l.b16 %v525
  %v9006 = vunpack.c.l.b16 %v537
  %v9007 = vunpack.c.l.b16 %v549
  %v9008 = vunpack.c.l.b16 %v561
  %v9009 = vunpack.c.l.b16 %v573
  %v9010 = vunpack.c.l.b16 %v585
  %v9011 = vunpack.c.l.b16 %v597
  %v9012 = vunpack.c.l.b16 %v609
  %v9013 = vunpack.c.l.b16 %v621
  %v9014 = vunpack.c.l.b16 %v633
  %v9015 = vunpack.c.l.b16 %v645
  %v9016 = vunpack.c.l.b16 %v657
  %v9017 = vunpack.c.l.b16 %v669
  %v9018 = vunpack.c.l.b16 %v681
  %v9019 = vunpack.c.l.b16 %v693
  %v9020 = vunpack.c.l.b16 %v705
  %v9021 = vunpack.c.l.b16 %v717
  %v9022 = vunpack.c.l.b16 %v729
  %v9023 = vunpack.c.l.b16 %v741
  %v9024 = vunpack.c.l.b16 %v753
  %v9025 = vunpack.c.l.b16 %v765
  %v9026 = vunpack.c.l.b16 %v777
  %v9027 = vunpack.c.l.b16 %v789
  %v9028 = vunpack.c.l.b16 %v801
  %v9029 = vunpack.c.l.b16 %v813
  %v9030 = vunpack.c.l.b16 %v825
  %v9031 = vunpack.c.l.b16 %v837
  %v9032 = vunpack.c.l.b16 %v849
  %v9033 = vunpack.c.l.b16 %v861
  %v9034 = vpack.c.b16 %v9003, %v9002
  %v9035 = vpack.c.b16 %v9005, %v9004
  %v9036 = vpack.c.b16 %v9007, %v9006
  %v9037 = vpack.c.b16 %v9009, %v9008
  %v9038 = vpack.c.b16 %v9011, %v9010
  %v9039 = vpack.c.b16 %v9013, %v9012
  %v9040 = vpack.c.b16 %v9015, %v9014
  %v9041 = vpack.c.b16 %v9017, %v9016
  %v9042 = vpack.c.b16 %v9019, %v9018
  %v9043 = vpack.c.b16 %v9021, %v9020
  %v9044 = vpack.c.b16 %v9023, %v9022
  %v9045 = vpack.c.b16 %v9025, %v9024
  %v9046 = vpack.c.b16 %v9027, %v9026
  %v9047 = vpack.c.b16 %v9029, %v9028
  %v9048 = vpack.c.b16 %v9031, %v9030
  %v9049 = vpack.c.b16 %v9033, %v9032
  %v9051 = vshrl.u32 %v9034, 16
  %v9053 = vrot.slane %v9051, 3
  %v9054 = vshll.u32 %v9034, 16
  %v9056 = vrot.slane %v9054, 4
  %v9057 = vor.u32 %v9053, %v9056
  %v9059 = vshrl.u32 %v9035, 16
  %v9061 = vrot.slane %v9059, 3
  %v9062 = vshll.u32 %v9035, 16
  %v9064 = vrot.slane %v9062, 4
  %v9065 = vor.u32 %v9061, %v9064
  %v9066 = vsel %vm1366, %v9057, %v9065
  %v9068 = vshrl.u32 %v9036, 16
  %v9070 = vrot.slane %v9068, 3
  %v9071 = vshll.u32 %v9036, 16
  %v9073 = vrot.slane %v9071, 4
  %v9074 = vor.u32 %v9070, %v9073
  %v9075 = vsel %vm1366, %v9065, %v9074
  %v9077 = vshrl.u32 %v9037, 16
  %v9079 = vrot.slane %v9077, 3
  %v9080 = vshll.u32 %v9037, 16
  %v9082 = vrot.slane %v9080, 4
  %v9083 = vor.u32 %v9079, %v9082
  %v9084 = vsel %vm1366, %v9074, %v9083
  %v9086 = vshrl.u32 %v9038, 16
  %v9088 = vrot.slane %v9086, 3
  %v9089 = vshll.u32 %v9038, 16
  %v9091 = vrot.slane %v9089, 4
  %v9092 = vor.u32 %v9088, %v9091
  %v9093 = vsel %vm1366, %v9083, %v9092
  %v9095 = vshrl.u32 %v9039, 16
  %v9097 = vrot.slane %v9095, 3
  %v9098 = vshll.u32 %v9039, 16
  %v9100 = vrot.slane %v9098, 4
  %v9101 = vor.u32 %v9097, %v9100
  %v9102 = vsel %vm1366, %v9092, %v9101
  %v9104 = vshrl.u32 %v9040, 16
  %v9106 = vrot.slane %v9104, 3
  %v9107 = vshll.u32 %v9040, 16
  %v9109 = vrot.slane %v9107, 4
  %v9110 = vor.u32 %v9106, %v9109
  %v9111 = vsel %vm1366, %v9101, %v9110
  %v9113 = vshrl.u32 %v9041, 16
  %v9115 = vrot.slane %v9113, 3
  %v9116 = vshll.u32 %v9041, 16
  %v9118 = vrot.slane %v9116, 4
  %v9119 = vor.u32 %v9115, %v9118
  %v9120 = vsel %vm1366, %v9110, %v9119
  %v9122 = vshrl.u32 %v9042, 16
  %v9124 = vrot.slane %v9122, 3
  %v9125 = vshll.u32 %v9042, 16
  %v9127 = vrot.slane %v9125, 4
  %v9128 = vor.u32 %v9124, %v9127
  %v9129 = vsel %vm1366, %v9119, %v9128
  %v9131 = vshrl.u32 %v9043, 16
  %v9133 = vrot.slane %v9131, 3
  %v9134 = vshll.u32 %v9043, 16
  %v9136 = vrot.slane %v9134, 4
  %v9137 = vor.u32 %v9133, %v9136
  %v9138 = vsel %vm1366, %v9128, %v9137
  %v9140 = vshrl.u32 %v9044, 16
  %v9142 = vrot.slane %v9140, 3
  %v9143 = vshll.u32 %v9044, 16
  %v9145 = vrot.slane %v9143, 4
  %v9146 = vor.u32 %v9142, %v9145
  %v9147 = vsel %vm1366, %v9137, %v9146
  %v9149 = vshrl.u32 %v9045, 16
  %v9151 = vrot.slane %v9149, 3
  %v9152 = vshll.u32 %v9045, 16
  %v9154 = vrot.slane %v9152, 4
  %v9155 = vor.u32 %v9151, %v9154
  %v9156 = vsel %vm1366, %v9146, %v9155
  %v9158 = vshrl.u32 %v9046, 16
  %v9160 = vrot.slane %v9158, 3
  %v9161 = vshll.u32 %v9046, 16
  %v9163 = vrot.slane %v9161, 4
  %v9164 = vor.u32 %v9160, %v9163
  %v9165 = vsel %vm1366, %v9155, %v9164
  %v9167 = vshrl.u32 %v9047, 16
  %v9169 = vrot.slane %v9167, 3
  %v9170 = vshll.u32 %v9047, 16
  %v9172 = vrot.slane %v9170, 4
  %v9173 = vor.u32 %v9169, %v9172
  %v9174 = vsel %vm1366, %v9164, %v9173
  %v9176 = vshrl.u32 %v9048, 16
  %v9178 = vrot.slane %v9176, 3
  %v9179 = vshll.u32 %v9048, 16
  %v9181 = vrot.slane %v9179, 4
  %v9182 = vor.u32 %v9178, %v9181
  %v9183 = vsel %vm1366, %v9173, %v9182
  %v9185 = vshrl.u32 %v9049, 16
  %v9187 = vrot.slane %v9185, 3
  %v9188 = vshll.u32 %v9049, 16
  %v9190 = vrot.slane %v9188, 4
  %v9191 = vor.u32 %v9187, %v9190
  %v9192 = vsel %vm1366, %v9182, %v9191
  %v9210 = vmul.bf16 %v8953, %v9057
  %v9211 = vmul.bf16 %v8954, %v9066
  %v9212 = vmul.bf16 %v8955, %v9075
  %v9213 = vmul.bf16 %v8956, %v9084
  %v9214 = vmul.bf16 %v8957, %v9093
  %v9215 = vmul.bf16 %v8958, %v9102
  %v9216 = vmul.bf16 %v8959, %v9111
  %v9217 = vmul.bf16 %v8960, %v9120
  %v9218 = vmul.bf16 %v8961, %v9129
  %v9219 = vmul.bf16 %v8962, %v9138
  %v9220 = vmul.bf16 %v8963, %v9147
  %v9221 = vmul.bf16 %v8964, %v9156
  %v9222 = vmul.bf16 %v8965, %v9165
  %v9223 = vmul.bf16 %v8966, %v9174
  %v9224 = vmul.bf16 %v8967, %v9183
  %v9225 = vmul.bf16 %v8968, %v9192
  %v9226 = vmul.bf16 %v8969, %v9191
  %v9228 = vshrl.u32 %v9210, 16
  %v9230 = vrot.slane %v9228, 4
  %v9231 = vshll.u32 %v9210, 16
  %v9233 = vrot.slane %v9231, 5
  %v9234 = vor.u32 %v9230, %v9233
  %v9236 = vshrl.u32 %v9211, 16
  %v9238 = vrot.slane %v9236, 4
  %v9239 = vshll.u32 %v9211, 16
  %v9241 = vrot.slane %v9239, 5
  %v9242 = vor.u32 %v9238, %v9241
  %v9243 = vsel %vm895, %v9234, %v9242
  %v9245 = vshrl.u32 %v9212, 16
  %v9247 = vrot.slane %v9245, 4
  %v9248 = vshll.u32 %v9212, 16
  %v9250 = vrot.slane %v9248, 5
  %v9251 = vor.u32 %v9247, %v9250
  %v9252 = vsel %vm895, %v9242, %v9251
  %v9254 = vshrl.u32 %v9213, 16
  %v9256 = vrot.slane %v9254, 4
  %v9257 = vshll.u32 %v9213, 16
  %v9259 = vrot.slane %v9257, 5
  %v9260 = vor.u32 %v9256, %v9259
  %v9261 = vsel %vm895, %v9251, %v9260
  %v9263 = vshrl.u32 %v9214, 16
  %v9265 = vrot.slane %v9263, 4
  %v9266 = vshll.u32 %v9214, 16
  %v9268 = vrot.slane %v9266, 5
  %v9269 = vor.u32 %v9265, %v9268
  %v9270 = vsel %vm895, %v9260, %v9269
  %v9272 = vshrl.u32 %v9215, 16
  %v9274 = vrot.slane %v9272, 4
  %v9275 = vshll.u32 %v9215, 16
  %v9277 = vrot.slane %v9275, 5
  %v9278 = vor.u32 %v9274, %v9277
  %v9279 = vsel %vm895, %v9269, %v9278
  %v9281 = vshrl.u32 %v9216, 16
  %v9283 = vrot.slane %v9281, 4
  %v9284 = vshll.u32 %v9216, 16
  %v9286 = vrot.slane %v9284, 5
  %v9287 = vor.u32 %v9283, %v9286
  %v9288 = vsel %vm895, %v9278, %v9287
  %v9290 = vshrl.u32 %v9217, 16
  %v9292 = vrot.slane %v9290, 4
  %v9293 = vshll.u32 %v9217, 16
  %v9295 = vrot.slane %v9293, 5
  %v9296 = vor.u32 %v9292, %v9295
  %v9297 = vsel %vm895, %v9287, %v9296
  %v9299 = vshrl.u32 %v9218, 16
  %v9301 = vrot.slane %v9299, 4
  %v9302 = vshll.u32 %v9218, 16
  %v9304 = vrot.slane %v9302, 5
  %v9305 = vor.u32 %v9301, %v9304
  %v9306 = vsel %vm895, %v9296, %v9305
  %v9308 = vshrl.u32 %v9219, 16
  %v9310 = vrot.slane %v9308, 4
  %v9311 = vshll.u32 %v9219, 16
  %v9313 = vrot.slane %v9311, 5
  %v9314 = vor.u32 %v9310, %v9313
  %v9315 = vsel %vm895, %v9305, %v9314
  %v9317 = vshrl.u32 %v9220, 16
  %v9319 = vrot.slane %v9317, 4
  %v9320 = vshll.u32 %v9220, 16
  %v9322 = vrot.slane %v9320, 5
  %v9323 = vor.u32 %v9319, %v9322
  %v9324 = vsel %vm895, %v9314, %v9323
  %v9326 = vshrl.u32 %v9221, 16
  %v9328 = vrot.slane %v9326, 4
  %v9329 = vshll.u32 %v9221, 16
  %v9331 = vrot.slane %v9329, 5
  %v9332 = vor.u32 %v9328, %v9331
  %v9333 = vsel %vm895, %v9323, %v9332
  %v9335 = vshrl.u32 %v9222, 16
  %v9337 = vrot.slane %v9335, 4
  %v9338 = vshll.u32 %v9222, 16
  %v9340 = vrot.slane %v9338, 5
  %v9341 = vor.u32 %v9337, %v9340
  %v9342 = vsel %vm895, %v9332, %v9341
  %v9344 = vshrl.u32 %v9223, 16
  %v9346 = vrot.slane %v9344, 4
  %v9347 = vshll.u32 %v9223, 16
  %v9349 = vrot.slane %v9347, 5
  %v9350 = vor.u32 %v9346, %v9349
  %v9351 = vsel %vm895, %v9341, %v9350
  %v9353 = vshrl.u32 %v9224, 16
  %v9355 = vrot.slane %v9353, 4
  %v9356 = vshll.u32 %v9224, 16
  %v9358 = vrot.slane %v9356, 5
  %v9359 = vor.u32 %v9355, %v9358
  %v9360 = vsel %vm895, %v9350, %v9359
  %v9362 = vshrl.u32 %v9225, 16
  %v9364 = vrot.slane %v9362, 4
  %v9365 = vshll.u32 %v9225, 16
  %v9367 = vrot.slane %v9365, 5
  %v9368 = vor.u32 %v9364, %v9367
  %v9369 = vsel %vm895, %v9359, %v9368
  %v9371 = vshrl.u32 %v9226, 16
  %v9373 = vrot.slane %v9371, 4
  %v9374 = vshll.u32 %v9226, 16
  %v9376 = vrot.slane %v9374, 5
  %v9377 = vor.u32 %v9373, %v9376
  %v9378 = vsel %vm895, %v9368, %v9377
  %9379 = vrot.lane.b32.xlu0 %v9243, 64
  %v9380 = vpop.permute.xlu0 %9379
  %9381 = vrot.lane.b32.xlu0 %v9252, 64
  %v9382 = vpop.permute.xlu0 %9381
  %9383 = vrot.lane.b32.xlu0 %v9261, 64
  %v9384 = vpop.permute.xlu0 %9383
  %9385 = vrot.lane.b32.xlu0 %v9270, 64
  %v9386 = vpop.permute.xlu0 %9385
  %9387 = vrot.lane.b32.xlu0 %v9279, 64
  %v9388 = vpop.permute.xlu0 %9387
  %9389 = vrot.lane.b32.xlu0 %v9288, 64
  %v9390 = vpop.permute.xlu0 %9389
  %9391 = vrot.lane.b32.xlu0 %v9297, 64
  %v9392 = vpop.permute.xlu0 %9391
  %9393 = vrot.lane.b32.xlu0 %v9306, 64
  %v9394 = vpop.permute.xlu0 %9393
  %9395 = vrot.lane.b32.xlu0 %v9315, 64
  %v9396 = vpop.permute.xlu0 %9395
  %9397 = vrot.lane.b32.xlu0 %v9324, 64
  %v9398 = vpop.permute.xlu0 %9397
  %9399 = vrot.lane.b32.xlu0 %v9333, 64
  %v9400 = vpop.permute.xlu0 %9399
  %9401 = vrot.lane.b32.xlu0 %v9342, 64
  %v9402 = vpop.permute.xlu0 %9401
  %9403 = vrot.lane.b32.xlu0 %v9351, 64
  %v9404 = vpop.permute.xlu0 %9403
  %9405 = vrot.lane.b32.xlu0 %v9360, 64
  %v9406 = vpop.permute.xlu0 %9405
  %9407 = vrot.lane.b32.xlu0 %v9369, 64
  %v9408 = vpop.permute.xlu0 %9407
  %9409 = vrot.lane.b32.xlu0 %v9378, 64
  %v9410 = vpop.permute.xlu0 %9409
  %vm9427 = vcmask 785920
  %9428 = vst.msk [vmem:[#allocation4] sm:$0xff] %vm9427, %v9380
  %9429 = vst.msk [vmem:[#allocation4 + $0x18] sm:$0xff] %vm9427, %v9382
  %9430 = vst.msk [vmem:[#allocation4 + $0x30] sm:$0xff] %vm9427, %v9384
  %9431 = vst.msk [vmem:[#allocation4 + $0x48] sm:$0xff] %vm9427, %v9386
  %9432 = vst.msk [vmem:[#allocation4 + $0x60] sm:$0xff] %vm9427, %v9388
  %9433 = vst.msk [vmem:[#allocation4 + $0x78] sm:$0xff] %vm9427, %v9390
  %9434 = vst.msk [vmem:[#allocation4 + $0x90] sm:$0xff] %vm9427, %v9392
  %9435 = vst.msk [vmem:[#allocation4 + $0xa8] sm:$0xff] %vm9427, %v9394
  %9436 = vst.msk [vmem:[#allocation4 + $0xc0] sm:$0xff] %vm9427, %v9396
  %9437 = vst.msk [vmem:[#allocation4 + $0xd8] sm:$0xff] %vm9427, %v9398
  %9438 = vst.msk [vmem:[#allocation4 + $0xf0] sm:$0xff] %vm9427, %v9400
  %9439 = vst.msk [vmem:[#allocation4 + $0x108] sm:$0xff] %vm9427, %v9402
  %9440 = vst.msk [vmem:[#allocation4 + $0x120] sm:$0xff] %vm9427, %v9404
  %9441 = vst.msk [vmem:[#allocation4 + $0x138] sm:$0xff] %vm9427, %v9406
  %9442 = vst.msk [vmem:[#allocation4 + $0x150] sm:$0xff] %vm9427, %v9408
  %9443 = vst.msk [vmem:[#allocation4 + $0x168] sm:$0xff] %vm9427, %v9410
  %v9444 = vld [vmem:[#allocation3 + $0x8] sm:$0xf8]
  %v9445 = vld [vmem:[#allocation3 + $0x10] sm:$0xff]
  %v9446 = vld [vmem:[#allocation3 + $0x18] sm:$0xff]
  %v9447 = vld [vmem:[#allocation3 + $0x20] sm:$0xff]
  %v9448 = vld [vmem:[#allocation3 + $0x28] sm:$0xff]
  %v9449 = vld [vmem:[#allocation3 + $0x30] sm:$0xff]
  %v9450 = vld [vmem:[#allocation3 + $0x38] sm:$0xff]
  %v9451 = vld [vmem:[#allocation3 + $0x40] sm:$0xff]
  %v9452 = vld [vmem:[#allocation3 + $0x48] sm:$0xff]
  %v9453 = vld [vmem:[#allocation3 + $0x50] sm:$0xff]
  %v9454 = vld [vmem:[#allocation3 + $0x58] sm:$0xff]
  %v9455 = vld [vmem:[#allocation3 + $0x60] sm:$0xff]
  %v9456 = vld [vmem:[#allocation3 + $0x68] sm:$0xff]
  %v9457 = vld [vmem:[#allocation3 + $0x70] sm:$0xff]
  %v9458 = vld [vmem:[#allocation3 + $0x78] sm:$0xff]
  %v9459 = vld [vmem:[#allocation3 + $0x80] sm:$0xff]
  %v9460 = vld [vmem:[#allocation3 + $0x88] sm:$0xf]
  %v9461 = vmul.bf16 %v9444, %v8467
  %v9462 = vmul.bf16 %v9445, %v8476
  %v9463 = vmul.bf16 %v9446, %v8485
  %v9464 = vmul.bf16 %v9447, %v8494
  %v9465 = vmul.bf16 %v9448, %v8503
  %v9466 = vmul.bf16 %v9449, %v8512
  %v9467 = vmul.bf16 %v9450, %v8521
  %v9468 = vmul.bf16 %v9451, %v8530
  %v9469 = vmul.bf16 %v9452, %v8539
  %v9470 = vmul.bf16 %v9453, %v8548
  %v9471 = vmul.bf16 %v9454, %v8557
  %v9472 = vmul.bf16 %v9455, %v8566
  %v9473 = vmul.bf16 %v9456, %v8575
  %v9474 = vmul.bf16 %v9457, %v8584
  %v9475 = vmul.bf16 %v9458, %v8593
  %v9476 = vmul.bf16 %v9459, %v8602
  %v9477 = vmul.bf16 %v9460, %v8601
  %v9479 = vshrl.u32 %v9461, 16
  %v9481 = vrot.slane %v9479, 3
  %v9482 = vshll.u32 %v9461, 16
  %v9484 = vrot.slane %v9482, 4
  %v9485 = vor.u32 %v9481, %v9484
  %v9487 = vshrl.u32 %v9462, 16
  %v9489 = vrot.slane %v9487, 3
  %v9490 = vshll.u32 %v9462, 16
  %v9492 = vrot.slane %v9490, 4
  %v9493 = vor.u32 %v9489, %v9492
  %v9494 = vsel %vm1366, %v9485, %v9493
  %v9496 = vshrl.u32 %v9463, 16
  %v9498 = vrot.slane %v9496, 3
  %v9499 = vshll.u32 %v9463, 16
  %v9501 = vrot.slane %v9499, 4
  %v9502 = vor.u32 %v9498, %v9501
  %v9503 = vsel %vm1366, %v9493, %v9502
  %v9505 = vshrl.u32 %v9464, 16
  %v9507 = vrot.slane %v9505, 3
  %v9508 = vshll.u32 %v9464, 16
  %v9510 = vrot.slane %v9508, 4
  %v9511 = vor.u32 %v9507, %v9510
  %v9512 = vsel %vm1366, %v9502, %v9511
  %v9514 = vshrl.u32 %v9465, 16
  %v9516 = vrot.slane %v9514, 3
  %v9517 = vshll.u32 %v9465, 16
  %v9519 = vrot.slane %v9517, 4
  %v9520 = vor.u32 %v9516, %v9519
  %v9521 = vsel %vm1366, %v9511, %v9520
  %v9523 = vshrl.u32 %v9466, 16
  %v9525 = vrot.slane %v9523, 3
  %v9526 = vshll.u32 %v9466, 16
  %v9528 = vrot.slane %v9526, 4
  %v9529 = vor.u32 %v9525, %v9528
  %v9530 = vsel %vm1366, %v9520, %v9529
  %v9532 = vshrl.u32 %v9467, 16
  %v9534 = vrot.slane %v9532, 3
  %v9535 = vshll.u32 %v9467, 16
  %v9537 = vrot.slane %v9535, 4
  %v9538 = vor.u32 %v9534, %v9537
  %v9539 = vsel %vm1366, %v9529, %v9538
  %v9541 = vshrl.u32 %v9468, 16
  %v9543 = vrot.slane %v9541, 3
  %v9544 = vshll.u32 %v9468, 16
  %v9546 = vrot.slane %v9544, 4
  %v9547 = vor.u32 %v9543, %v9546
  %v9548 = vsel %vm1366, %v9538, %v9547
  %v9550 = vshrl.u32 %v9469, 16
  %v9552 = vrot.slane %v9550, 3
  %v9553 = vshll.u32 %v9469, 16
  %v9555 = vrot.slane %v9553, 4
  %v9556 = vor.u32 %v9552, %v9555
  %v9557 = vsel %vm1366, %v9547, %v9556
  %v9559 = vshrl.u32 %v9470, 16
  %v9561 = vrot.slane %v9559, 3
  %v9562 = vshll.u32 %v9470, 16
  %v9564 = vrot.slane %v9562, 4
  %v9565 = vor.u32 %v9561, %v9564
  %v9566 = vsel %vm1366, %v9556, %v9565
  %v9568 = vshrl.u32 %v9471, 16
  %v9570 = vrot.slane %v9568, 3
  %v9571 = vshll.u32 %v9471, 16
  %v9573 = vrot.slane %v9571, 4
  %v9574 = vor.u32 %v9570, %v9573
  %v9575 = vsel %vm1366, %v9565, %v9574
  %v9577 = vshrl.u32 %v9472, 16
  %v9579 = vrot.slane %v9577, 3
  %v9580 = vshll.u32 %v9472, 16
  %v9582 = vrot.slane %v9580, 4
  %v9583 = vor.u32 %v9579, %v9582
  %v9584 = vsel %vm1366, %v9574, %v9583
  %v9586 = vshrl.u32 %v9473, 16
  %v9588 = vrot.slane %v9586, 3
  %v9589 = vshll.u32 %v9473, 16
  %v9591 = vrot.slane %v9589, 4
  %v9592 = vor.u32 %v9588, %v9591
  %v9593 = vsel %vm1366, %v9583, %v9592
  %v9595 = vshrl.u32 %v9474, 16
  %v9597 = vrot.slane %v9595, 3
  %v9598 = vshll.u32 %v9474, 16
  %v9600 = vrot.slane %v9598, 4
  %v9601 = vor.u32 %v9597, %v9600
  %v9602 = vsel %vm1366, %v9592, %v9601
  %v9604 = vshrl.u32 %v9475, 16
  %v9606 = vrot.slane %v9604, 3
  %v9607 = vshll.u32 %v9475, 16
  %v9609 = vrot.slane %v9607, 4
  %v9610 = vor.u32 %v9606, %v9609
  %v9611 = vsel %vm1366, %v9601, %v9610
  %v9613 = vshrl.u32 %v9476, 16
  %v9615 = vrot.slane %v9613, 3
  %v9616 = vshll.u32 %v9476, 16
  %v9618 = vrot.slane %v9616, 4
  %v9619 = vor.u32 %v9615, %v9618
  %v9620 = vsel %vm1366, %v9610, %v9619
  %v9622 = vshrl.u32 %v9477, 16
  %v9624 = vrot.slane %v9622, 3
  %v9625 = vshll.u32 %v9477, 16
  %v9627 = vrot.slane %v9625, 4
  %v9628 = vor.u32 %v9624, %v9627
  %v9629 = vsel %vm1366, %v9619, %v9628
  %9630 = vrot.lane.b32.xlu0 %v9494, 96
  %v9631 = vpop.permute.xlu0 %9630
  %9632 = vrot.lane.b32.xlu0 %v9503, 96
  %v9633 = vpop.permute.xlu0 %9632
  %9634 = vrot.lane.b32.xlu0 %v9512, 96
  %v9635 = vpop.permute.xlu0 %9634
  %9636 = vrot.lane.b32.xlu0 %v9521, 96
  %v9637 = vpop.permute.xlu0 %9636
  %9638 = vrot.lane.b32.xlu0 %v9530, 96
  %v9639 = vpop.permute.xlu0 %9638
  %9640 = vrot.lane.b32.xlu0 %v9539, 96
  %v9641 = vpop.permute.xlu0 %9640
  %9642 = vrot.lane.b32.xlu0 %v9548, 96
  %v9643 = vpop.permute.xlu0 %9642
  %9644 = vrot.lane.b32.xlu0 %v9557, 96
  %v9645 = vpop.permute.xlu0 %9644
  %9646 = vrot.lane.b32.xlu0 %v9566, 96
  %v9647 = vpop.permute.xlu0 %9646
  %9648 = vrot.lane.b32.xlu0 %v9575, 96
  %v9649 = vpop.permute.xlu0 %9648
  %9650 = vrot.lane.b32.xlu0 %v9584, 96
  %v9651 = vpop.permute.xlu0 %9650
  %9652 = vrot.lane.b32.xlu0 %v9593, 96
  %v9653 = vpop.permute.xlu0 %9652
  %9654 = vrot.lane.b32.xlu0 %v9602, 96
  %v9655 = vpop.permute.xlu0 %9654
  %9656 = vrot.lane.b32.xlu0 %v9611, 96
  %v9657 = vpop.permute.xlu0 %9656
  %9658 = vrot.lane.b32.xlu0 %v9620, 96
  %v9659 = vpop.permute.xlu0 %9658
  %9660 = vrot.lane.b32.xlu0 %v9629, 96
  %v9661 = vpop.permute.xlu0 %9660
  %vm9678 = vcmask 1048320
  %9679 = vst.msk [vmem:[#allocation4] sm:$0xff] %vm9678, %v9631
  %9680 = vst.msk [vmem:[#allocation4 + $0x18] sm:$0xff] %vm9678, %v9633
  %9681 = vst.msk [vmem:[#allocation4 + $0x30] sm:$0xff] %vm9678, %v9635
  %9682 = vst.msk [vmem:[#allocation4 + $0x48] sm:$0xff] %vm9678, %v9637
  %9683 = vst.msk [vmem:[#allocation4 + $0x60] sm:$0xff] %vm9678, %v9639
  %9684 = vst.msk [vmem:[#allocation4 + $0x78] sm:$0xff] %vm9678, %v9641
  %9685 = vst.msk [vmem:[#allocation4 + $0x90] sm:$0xff] %vm9678, %v9643
  %9686 = vst.msk [vmem:[#allocation4 + $0xa8] sm:$0xff] %vm9678, %v9645
  %9687 = vst.msk [vmem:[#allocation4 + $0xc0] sm:$0xff] %vm9678, %v9647
  %9688 = vst.msk [vmem:[#allocation4 + $0xd8] sm:$0xff] %vm9678, %v9649
  %9689 = vst.msk [vmem:[#allocation4 + $0xf0] sm:$0xff] %vm9678, %v9651
  %9690 = vst.msk [vmem:[#allocation4 + $0x108] sm:$0xff] %vm9678, %v9653
  %9691 = vst.msk [vmem:[#allocation4 + $0x120] sm:$0xff] %vm9678, %v9655
  %9692 = vst.msk [vmem:[#allocation4 + $0x138] sm:$0xff] %vm9678, %v9657
  %9693 = vst.msk [vmem:[#allocation4 + $0x150] sm:$0xff] %vm9678, %v9659
  %9694 = vst.msk [vmem:[#allocation4 + $0x168] sm:$0xff] %vm9678, %v9661
  %v9695 = vld [vmem:[#allocation3 + $0x8] sm:$0xf0]
  %v9696 = vld [vmem:[#allocation3 + $0x10] sm:$0xff]
  %v9697 = vld [vmem:[#allocation3 + $0x18] sm:$0xff]
  %v9698 = vld [vmem:[#allocation3 + $0x20] sm:$0xff]
  %v9699 = vld [vmem:[#allocation3 + $0x28] sm:$0xff]
  %v9700 = vld [vmem:[#allocation3 + $0x30] sm:$0xff]
  %v9701 = vld [vmem:[#allocation3 + $0x38] sm:$0xff]
  %v9702 = vld [vmem:[#allocation3 + $0x40] sm:$0xff]
  %v9703 = vld [vmem:[#allocation3 + $0x48] sm:$0xff]
  %v9704 = vld [vmem:[#allocation3 + $0x50] sm:$0xff]
  %v9705 = vld [vmem:[#allocation3 + $0x58] sm:$0xff]
  %v9706 = vld [vmem:[#allocation3 + $0x60] sm:$0xff]
  %v9707 = vld [vmem:[#allocation3 + $0x68] sm:$0xff]
  %v9708 = vld [vmem:[#allocation3 + $0x70] sm:$0xff]
  %v9709 = vld [vmem:[#allocation3 + $0x78] sm:$0xff]
  %v9710 = vld [vmem:[#allocation3 + $0x80] sm:$0xff]
  %v9711 = vld [vmem:[#allocation3 + $0x88] sm:$0xf]
  %v9729 = vrot.slane %v9695, 4
  %v9730 = vrot.slane %v9696, 4
  %v9731 = vsel %vm8212, %v9729, %v9730
  %v9732 = vrot.slane %v9697, 4
  %v9733 = vsel %vm8212, %v9730, %v9732
  %v9734 = vrot.slane %v9698, 4
  %v9735 = vsel %vm8212, %v9732, %v9734
  %v9736 = vrot.slane %v9699, 4
  %v9737 = vsel %vm8212, %v9734, %v9736
  %v9738 = vrot.slane %v9700, 4
  %v9739 = vsel %vm8212, %v9736, %v9738
  %v9740 = vrot.slane %v9701, 4
  %v9741 = vsel %vm8212, %v9738, %v9740
  %v9742 = vrot.slane %v9702, 4
  %v9743 = vsel %vm8212, %v9740, %v9742
  %v9744 = vrot.slane %v9703, 4
  %v9745 = vsel %vm8212, %v9742, %v9744
  %v9746 = vrot.slane %v9704, 4
  %v9747 = vsel %vm8212, %v9744, %v9746
  %v9748 = vrot.slane %v9705, 4
  %v9749 = vsel %vm8212, %v9746, %v9748
  %v9750 = vrot.slane %v9706, 4
  %v9751 = vsel %vm8212, %v9748, %v9750
  %v9752 = vrot.slane %v9707, 4
  %v9753 = vsel %vm8212, %v9750, %v9752
  %v9754 = vrot.slane %v9708, 4
  %v9755 = vsel %vm8212, %v9752, %v9754
  %v9756 = vrot.slane %v9709, 4
  %v9757 = vsel %vm8212, %v9754, %v9756
  %v9758 = vrot.slane %v9710, 4
  %v9759 = vsel %vm8212, %v9756, %v9758
  %v9760 = vrot.slane %v9711, 4
  %v9761 = vsel %vm8212, %v9758, %v9760
  %9778 = vst.msk [vmem:[#allocation4 + $0x8] sm:$0xff] %vm8189, %v9731
  %9779 = vst.msk [vmem:[#allocation4 + $0x20] sm:$0xff] %vm8189, %v9733
  %9780 = vst.msk [vmem:[#allocation4 + $0x38] sm:$0xff] %vm8189, %v9735
  %9781 = vst.msk [vmem:[#allocation4 + $0x50] sm:$0xff] %vm8189, %v9737
  %9782 = vst.msk [vmem:[#allocation4 + $0x68] sm:$0xff] %vm8189, %v9739
  %9783 = vst.msk [vmem:[#allocation4 + $0x80] sm:$0xff] %vm8189, %v9741
  %9784 = vst.msk [vmem:[#allocation4 + $0x98] sm:$0xff] %vm8189, %v9743
  %9785 = vst.msk [vmem:[#allocation4 + $0xb0] sm:$0xff] %vm8189, %v9745
  %9786 = vst.msk [vmem:[#allocation4 + $0xc8] sm:$0xff] %vm8189, %v9747
  %9787 = vst.msk [vmem:[#allocation4 + $0xe0] sm:$0xff] %vm8189, %v9749
  %9788 = vst.msk [vmem:[#allocation4 + $0xf8] sm:$0xff] %vm8189, %v9751
  %9789 = vst.msk [vmem:[#allocation4 + $0x110] sm:$0xff] %vm8189, %v9753
  %9790 = vst.msk [vmem:[#allocation4 + $0x128] sm:$0xff] %vm8189, %v9755
  %9791 = vst.msk [vmem:[#allocation4 + $0x140] sm:$0xff] %vm8189, %v9757
  %9792 = vst.msk [vmem:[#allocation4 + $0x158] sm:$0xff] %vm8189, %v9759
  %9793 = vst.msk [vmem:[#allocation4 + $0x170] sm:$0xff] %vm8189, %v9761
  %v9794 = vld [vmem:[#allocation3 + $0x8] sm:$0xf0]
  %v9795 = vld [vmem:[#allocation3 + $0x10] sm:$0xff]
  %v9796 = vld [vmem:[#allocation3 + $0x18] sm:$0xff]
  %v9797 = vld [vmem:[#allocation3 + $0x20] sm:$0xff]
  %v9798 = vld [vmem:[#allocation3 + $0x28] sm:$0xff]
  %v9799 = vld [vmem:[#allocation3 + $0x30] sm:$0xff]
  %v9800 = vld [vmem:[#allocation3 + $0x38] sm:$0xff]
  %v9801 = vld [vmem:[#allocation3 + $0x40] sm:$0xff]
  %v9802 = vld [vmem:[#allocation3 + $0x48] sm:$0xff]
  %v9803 = vld [vmem:[#allocation3 + $0x50] sm:$0xff]
  %v9804 = vld [vmem:[#allocation3 + $0x58] sm:$0xff]
  %v9805 = vld [vmem:[#allocation3 + $0x60] sm:$0xff]
  %v9806 = vld [vmem:[#allocation3 + $0x68] sm:$0xff]
  %v9807 = vld [vmem:[#allocation3 + $0x70] sm:$0xff]
  %v9808 = vld [vmem:[#allocation3 + $0x78] sm:$0xff]
  %v9809 = vld [vmem:[#allocation3 + $0x80] sm:$0xff]
  %v9810 = vld [vmem:[#allocation3 + $0x88] sm:$0x1f]
  %v9811 = vmul.bf16 %v9794, %v9057
  %v9812 = vmul.bf16 %v9795, %v9066
  %v9813 = vmul.bf16 %v9796, %v9075
  %v9814 = vmul.bf16 %v9797, %v9084
  %v9815 = vmul.bf16 %v9798, %v9093
  %v9816 = vmul.bf16 %v9799, %v9102
  %v9817 = vmul.bf16 %v9800, %v9111
  %v9818 = vmul.bf16 %v9801, %v9120
  %v9819 = vmul.bf16 %v9802, %v9129
  %v9820 = vmul.bf16 %v9803, %v9138
  %v9821 = vmul.bf16 %v9804, %v9147
  %v9822 = vmul.bf16 %v9805, %v9156
  %v9823 = vmul.bf16 %v9806, %v9165
  %v9824 = vmul.bf16 %v9807, %v9174
  %v9825 = vmul.bf16 %v9808, %v9183
  %v9826 = vmul.bf16 %v9809, %v9192
  %v9827 = vmul.bf16 %v9810, %v9191
  %v9829 = vshrl.u32 %v9811, 16
  %v9831 = vrot.slane %v9829, 4
  %v9832 = vshll.u32 %v9811, 16
  %v9834 = vrot.slane %v9832, 5
  %v9835 = vor.u32 %v9831, %v9834
  %v9837 = vshrl.u32 %v9812, 16
  %v9839 = vrot.slane %v9837, 4
  %v9840 = vshll.u32 %v9812, 16
  %v9842 = vrot.slane %v9840, 5
  %v9843 = vor.u32 %v9839, %v9842
  %v9844 = vsel %vm895, %v9835, %v9843
  %v9846 = vshrl.u32 %v9813, 16
  %v9848 = vrot.slane %v9846, 4
  %v9849 = vshll.u32 %v9813, 16
  %v9851 = vrot.slane %v9849, 5
  %v9852 = vor.u32 %v9848, %v9851
  %v9853 = vsel %vm895, %v9843, %v9852
  %v9855 = vshrl.u32 %v9814, 16
  %v9857 = vrot.slane %v9855, 4
  %v9858 = vshll.u32 %v9814, 16
  %v9860 = vrot.slane %v9858, 5
  %v9861 = vor.u32 %v9857, %v9860
  %v9862 = vsel %vm895, %v9852, %v9861
  %v9864 = vshrl.u32 %v9815, 16
  %v9866 = vrot.slane %v9864, 4
  %v9867 = vshll.u32 %v9815, 16
  %v9869 = vrot.slane %v9867, 5
  %v9870 = vor.u32 %v9866, %v9869
  %v9871 = vsel %vm895, %v9861, %v9870
  %v9873 = vshrl.u32 %v9816, 16
  %v9875 = vrot.slane %v9873, 4
  %v9876 = vshll.u32 %v9816, 16
  %v9878 = vrot.slane %v9876, 5
  %v9879 = vor.u32 %v9875, %v9878
  %v9880 = vsel %vm895, %v9870, %v9879
  %v9882 = vshrl.u32 %v9817, 16
  %v9884 = vrot.slane %v9882, 4
  %v9885 = vshll.u32 %v9817, 16
  %v9887 = vrot.slane %v9885, 5
  %v9888 = vor.u32 %v9884, %v9887
  %v9889 = vsel %vm895, %v9879, %v9888
  %v9891 = vshrl.u32 %v9818, 16
  %v9893 = vrot.slane %v9891, 4
  %v9894 = vshll.u32 %v9818, 16
  %v9896 = vrot.slane %v9894, 5
  %v9897 = vor.u32 %v9893, %v9896
  %v9898 = vsel %vm895, %v9888, %v9897
  %v9900 = vshrl.u32 %v9819, 16
  %v9902 = vrot.slane %v9900, 4
  %v9903 = vshll.u32 %v9819, 16
  %v9905 = vrot.slane %v9903, 5
  %v9906 = vor.u32 %v9902, %v9905
  %v9907 = vsel %vm895, %v9897, %v9906
  %v9909 = vshrl.u32 %v9820, 16
  %v9911 = vrot.slane %v9909, 4
  %v9912 = vshll.u32 %v9820, 16
  %v9914 = vrot.slane %v9912, 5
  %v9915 = vor.u32 %v9911, %v9914
  %v9916 = vsel %vm895, %v9906, %v9915
  %v9918 = vshrl.u32 %v9821, 16
  %v9920 = vrot.slane %v9918, 4
  %v9921 = vshll.u32 %v9821, 16
  %v9923 = vrot.slane %v9921, 5
  %v9924 = vor.u32 %v9920, %v9923
  %v9925 = vsel %vm895, %v9915, %v9924
  %v9927 = vshrl.u32 %v9822, 16
  %v9929 = vrot.slane %v9927, 4
  %v9930 = vshll.u32 %v9822, 16
  %v9932 = vrot.slane %v9930, 5
  %v9933 = vor.u32 %v9929, %v9932
  %v9934 = vsel %vm895, %v9924, %v9933
  %v9936 = vshrl.u32 %v9823, 16
  %v9938 = vrot.slane %v9936, 4
  %v9939 = vshll.u32 %v9823, 16
  %v9941 = vrot.slane %v9939, 5
  %v9942 = vor.u32 %v9938, %v9941
  %v9943 = vsel %vm895, %v9933, %v9942
  %v9945 = vshrl.u32 %v9824, 16
  %v9947 = vrot.slane %v9945, 4
  %v9948 = vshll.u32 %v9824, 16
  %v9950 = vrot.slane %v9948, 5
  %v9951 = vor.u32 %v9947, %v9950
  %v9952 = vsel %vm895, %v9942, %v9951
  %v9954 = vshrl.u32 %v9825, 16
  %v9956 = vrot.slane %v9954, 4
  %v9957 = vshll.u32 %v9825, 16
  %v9959 = vrot.slane %v9957, 5
  %v9960 = vor.u32 %v9956, %v9959
  %v9961 = vsel %vm895, %v9951, %v9960
  %v9963 = vshrl.u32 %v9826, 16
  %v9965 = vrot.slane %v9963, 4
  %v9966 = vshll.u32 %v9826, 16
  %v9968 = vrot.slane %v9966, 5
  %v9969 = vor.u32 %v9965, %v9968
  %v9970 = vsel %vm895, %v9960, %v9969
  %v9972 = vshrl.u32 %v9827, 16
  %v9974 = vrot.slane %v9972, 4
  %v9975 = vshll.u32 %v9827, 16
  %v9977 = vrot.slane %v9975, 5
  %v9978 = vor.u32 %v9974, %v9977
  %v9979 = vsel %vm895, %v9969, %v9978
  %9980 = vrot.lane.b32.xlu0 %v9844, 32
  %v9981 = vpop.permute.xlu0 %9980
  %9982 = vrot.lane.b32.xlu0 %v9853, 32
  %v9983 = vpop.permute.xlu0 %9982
  %9984 = vrot.lane.b32.xlu0 %v9862, 32
  %v9985 = vpop.permute.xlu0 %9984
  %9986 = vrot.lane.b32.xlu0 %v9871, 32
  %v9987 = vpop.permute.xlu0 %9986
  %9988 = vrot.lane.b32.xlu0 %v9880, 32
  %v9989 = vpop.permute.xlu0 %9988
  %9990 = vrot.lane.b32.xlu0 %v9889, 32
  %v9991 = vpop.permute.xlu0 %9990
  %9992 = vrot.lane.b32.xlu0 %v9898, 32
  %v9993 = vpop.permute.xlu0 %9992
  %9994 = vrot.lane.b32.xlu0 %v9907, 32
  %v9995 = vpop.permute.xlu0 %9994
  %9996 = vrot.lane.b32.xlu0 %v9916, 32
  %v9997 = vpop.permute.xlu0 %9996
  %9998 = vrot.lane.b32.xlu0 %v9925, 32
  %v9999 = vpop.permute.xlu0 %9998
  %10000 = vrot.lane.b32.xlu0 %v9934, 32
  %v10001 = vpop.permute.xlu0 %10000
  %10002 = vrot.lane.b32.xlu0 %v9943, 32
  %v10003 = vpop.permute.xlu0 %10002
  %10004 = vrot.lane.b32.xlu0 %v9952, 32
  %v10005 = vpop.permute.xlu0 %10004
  %10006 = vrot.lane.b32.xlu0 %v9961, 32
  %v10007 = vpop.permute.xlu0 %10006
  %10008 = vrot.lane.b32.xlu0 %v9970, 32
  %v10009 = vpop.permute.xlu0 %10008
  %10010 = vrot.lane.b32.xlu0 %v9979, 32
  %v10011 = vpop.permute.xlu0 %10010
  %10028 = vst.msk [vmem:[#allocation4 + $0x8] sm:$0xff] %vm8936, %v9981
  %10029 = vst.msk [vmem:[#allocation4 + $0x20] sm:$0xff] %vm8936, %v9983
  %10030 = vst.msk [vmem:[#allocation4 + $0x38] sm:$0xff] %vm8936, %v9985
  %10031 = vst.msk [vmem:[#allocation4 + $0x50] sm:$0xff] %vm8936, %v9987
  %10032 = vst.msk [vmem:[#allocation4 + $0x68] sm:$0xff] %vm8936, %v9989
  %10033 = vst.msk [vmem:[#allocation4 + $0x80] sm:$0xff] %vm8936, %v9991
  %10034 = vst.msk [vmem:[#allocation4 + $0x98] sm:$0xff] %vm8936, %v9993
  %10035 = vst.msk [vmem:[#allocation4 + $0xb0] sm:$0xff] %vm8936, %v9995
  %10036 = vst.msk [vmem:[#allocation4 + $0xc8] sm:$0xff] %vm8936, %v9997
  %10037 = vst.msk [vmem:[#allocation4 + $0xe0] sm:$0xff] %vm8936, %v9999
  %10038 = vst.msk [vmem:[#allocation4 + $0xf8] sm:$0xff] %vm8936, %v10001
  %10039 = vst.msk [vmem:[#allocation4 + $0x110] sm:$0xff] %vm8936, %v10003
  %10040 = vst.msk [vmem:[#allocation4 + $0x128] sm:$0xff] %vm8936, %v10005
  %10041 = vst.msk [vmem:[#allocation4 + $0x140] sm:$0xff] %vm8936, %v10007
  %10042 = vst.msk [vmem:[#allocation4 + $0x158] sm:$0xff] %vm8936, %v10009
  %10043 = vst.msk [vmem:[#allocation4 + $0x170] sm:$0xff] %vm8936, %v10011
  %v10044 = vld [vmem:[#allocation3 + $0x10] sm:$0xf8]
  %v10045 = vld [vmem:[#allocation3 + $0x18] sm:$0xff]
  %v10046 = vld [vmem:[#allocation3 + $0x20] sm:$0xff]
  %v10047 = vld [vmem:[#allocation3 + $0x28] sm:$0xff]
  %v10048 = vld [vmem:[#allocation3 + $0x30] sm:$0xff]
  %v10049 = vld [vmem:[#allocation3 + $0x38] sm:$0xff]
  %v10050 = vld [vmem:[#allocation3 + $0x40] sm:$0xff]
  %v10051 = vld [vmem:[#allocation3 + $0x48] sm:$0xff]
  %v10052 = vld [vmem:[#allocation3 + $0x50] sm:$0xff]
  %v10053 = vld [vmem:[#allocation3 + $0x58] sm:$0xff]
  %v10054 = vld [vmem:[#allocation3 + $0x60] sm:$0xff]
  %v10055 = vld [vmem:[#allocation3 + $0x68] sm:$0xff]
  %v10056 = vld [vmem:[#allocation3 + $0x70] sm:$0xff]
  %v10057 = vld [vmem:[#allocation3 + $0x78] sm:$0xff]
  %v10058 = vld [vmem:[#allocation3 + $0x80] sm:$0xff]
  %v10059 = vld [vmem:[#allocation3 + $0x88] sm:$0xff]
  %v10060 = vld [vmem:[#allocation3 + $0x90] sm:$0xf]
  %v10061 = vmul.bf16 %v10044, %v8467
  %v10062 = vmul.bf16 %v10045, %v8476
  %v10063 = vmul.bf16 %v10046, %v8485
  %v10064 = vmul.bf16 %v10047, %v8494
  %v10065 = vmul.bf16 %v10048, %v8503
  %v10066 = vmul.bf16 %v10049, %v8512
  %v10067 = vmul.bf16 %v10050, %v8521
  %v10068 = vmul.bf16 %v10051, %v8530
  %v10069 = vmul.bf16 %v10052, %v8539
  %v10070 = vmul.bf16 %v10053, %v8548
  %v10071 = vmul.bf16 %v10054, %v8557
  %v10072 = vmul.bf16 %v10055, %v8566
  %v10073 = vmul.bf16 %v10056, %v8575
  %v10074 = vmul.bf16 %v10057, %v8584
  %v10075 = vmul.bf16 %v10058, %v8593
  %v10076 = vmul.bf16 %v10059, %v8602
  %v10077 = vmul.bf16 %v10060, %v8601
  %v10079 = vshrl.u32 %v10061, 16
  %v10081 = vrot.slane %v10079, 3
  %v10082 = vshll.u32 %v10061, 16
  %v10084 = vrot.slane %v10082, 4
  %v10085 = vor.u32 %v10081, %v10084
  %v10087 = vshrl.u32 %v10062, 16
  %v10089 = vrot.slane %v10087, 3
  %v10090 = vshll.u32 %v10062, 16
  %v10092 = vrot.slane %v10090, 4
  %v10093 = vor.u32 %v10089, %v10092
  %v10094 = vsel %vm1366, %v10085, %v10093
  %v10096 = vshrl.u32 %v10063, 16
  %v10098 = vrot.slane %v10096, 3
  %v10099 = vshll.u32 %v10063, 16
  %v10101 = vrot.slane %v10099, 4
  %v10102 = vor.u32 %v10098, %v10101
  %v10103 = vsel %vm1366, %v10093, %v10102
  %v10105 = vshrl.u32 %v10064, 16
  %v10107 = vrot.slane %v10105, 3
  %v10108 = vshll.u32 %v10064, 16
  %v10110 = vrot.slane %v10108, 4
  %v10111 = vor.u32 %v10107, %v10110
  %v10112 = vsel %vm1366, %v10102, %v10111
  %v10114 = vshrl.u32 %v10065, 16
  %v10116 = vrot.slane %v10114, 3
  %v10117 = vshll.u32 %v10065, 16
  %v10119 = vrot.slane %v10117, 4
  %v10120 = vor.u32 %v10116, %v10119
  %v10121 = vsel %vm1366, %v10111, %v10120
  %v10123 = vshrl.u32 %v10066, 16
  %v10125 = vrot.slane %v10123, 3
  %v10126 = vshll.u32 %v10066, 16
  %v10128 = vrot.slane %v10126, 4
  %v10129 = vor.u32 %v10125, %v10128
  %v10130 = vsel %vm1366, %v10120, %v10129
  %v10132 = vshrl.u32 %v10067, 16
  %v10134 = vrot.slane %v10132, 3
  %v10135 = vshll.u32 %v10067, 16
  %v10137 = vrot.slane %v10135, 4
  %v10138 = vor.u32 %v10134, %v10137
  %v10139 = vsel %vm1366, %v10129, %v10138
  %v10141 = vshrl.u32 %v10068, 16
  %v10143 = vrot.slane %v10141, 3
  %v10144 = vshll.u32 %v10068, 16
  %v10146 = vrot.slane %v10144, 4
  %v10147 = vor.u32 %v10143, %v10146
  %v10148 = vsel %vm1366, %v10138, %v10147
  %v10150 = vshrl.u32 %v10069, 16
  %v10152 = vrot.slane %v10150, 3
  %v10153 = vshll.u32 %v10069, 16
  %v10155 = vrot.slane %v10153, 4
  %v10156 = vor.u32 %v10152, %v10155
  %v10157 = vsel %vm1366, %v10147, %v10156
  %v10159 = vshrl.u32 %v10070, 16
  %v10161 = vrot.slane %v10159, 3
  %v10162 = vshll.u32 %v10070, 16
  %v10164 = vrot.slane %v10162, 4
  %v10165 = vor.u32 %v10161, %v10164
  %v10166 = vsel %vm1366, %v10156, %v10165
  %v10168 = vshrl.u32 %v10071, 16
  %v10170 = vrot.slane %v10168, 3
  %v10171 = vshll.u32 %v10071, 16
  %v10173 = vrot.slane %v10171, 4
  %v10174 = vor.u32 %v10170, %v10173
  %v10175 = vsel %vm1366, %v10165, %v10174
  %v10177 = vshrl.u32 %v10072, 16
  %v10179 = vrot.slane %v10177, 3
  %v10180 = vshll.u32 %v10072, 16
  %v10182 = vrot.slane %v10180, 4
  %v10183 = vor.u32 %v10179, %v10182
  %v10184 = vsel %vm1366, %v10174, %v10183
  %v10186 = vshrl.u32 %v10073, 16
  %v10188 = vrot.slane %v10186, 3
  %v10189 = vshll.u32 %v10073, 16
  %v10191 = vrot.slane %v10189, 4
  %v10192 = vor.u32 %v10188, %v10191
  %v10193 = vsel %vm1366, %v10183, %v10192
  %v10195 = vshrl.u32 %v10074, 16
  %v10197 = vrot.slane %v10195, 3
  %v10198 = vshll.u32 %v10074, 16
  %v10200 = vrot.slane %v10198, 4
  %v10201 = vor.u32 %v10197, %v10200
  %v10202 = vsel %vm1366, %v10192, %v10201
  %v10204 = vshrl.u32 %v10075, 16
  %v10206 = vrot.slane %v10204, 3
  %v10207 = vshll.u32 %v10075, 16
  %v10209 = vrot.slane %v10207, 4
  %v10210 = vor.u32 %v10206, %v10209
  %v10211 = vsel %vm1366, %v10201, %v10210
  %v10213 = vshrl.u32 %v10076, 16
  %v10215 = vrot.slane %v10213, 3
  %v10216 = vshll.u32 %v10076, 16
  %v10218 = vrot.slane %v10216, 4
  %v10219 = vor.u32 %v10215, %v10218
  %v10220 = vsel %vm1366, %v10210, %v10219
  %v10222 = vshrl.u32 %v10077, 16
  %v10224 = vrot.slane %v10222, 3
  %v10225 = vshll.u32 %v10077, 16
  %v10227 = vrot.slane %v10225, 4
  %v10228 = vor.u32 %v10224, %v10227
  %v10229 = vsel %vm1366, %v10219, %v10228
  %10230 = vrot.lane.b32.xlu0 %v10094, 64
  %v10231 = vpop.permute.xlu0 %10230
  %10232 = vrot.lane.b32.xlu0 %v10103, 64
  %v10233 = vpop.permute.xlu0 %10232
  %10234 = vrot.lane.b32.xlu0 %v10112, 64
  %v10235 = vpop.permute.xlu0 %10234
  %10236 = vrot.lane.b32.xlu0 %v10121, 64
  %v10237 = vpop.permute.xlu0 %10236
  %10238 = vrot.lane.b32.xlu0 %v10130, 64
  %v10239 = vpop.permute.xlu0 %10238
  %10240 = vrot.lane.b32.xlu0 %v10139, 64
  %v10241 = vpop.permute.xlu0 %10240
  %10242 = vrot.lane.b32.xlu0 %v10148, 64
  %v10243 = vpop.permute.xlu0 %10242
  %10244 = vrot.lane.b32.xlu0 %v10157, 64
  %v10245 = vpop.permute.xlu0 %10244
  %10246 = vrot.lane.b32.xlu0 %v10166, 64
  %v10247 = vpop.permute.xlu0 %10246
  %10248 = vrot.lane.b32.xlu0 %v10175, 64
  %v10249 = vpop.permute.xlu0 %10248
  %10250 = vrot.lane.b32.xlu0 %v10184, 64
  %v10251 = vpop.permute.xlu0 %10250
  %10252 = vrot.lane.b32.xlu0 %v10193, 64
  %v10253 = vpop.permute.xlu0 %10252
  %10254 = vrot.lane.b32.xlu0 %v10202, 64
  %v10255 = vpop.permute.xlu0 %10254
  %10256 = vrot.lane.b32.xlu0 %v10211, 64
  %v10257 = vpop.permute.xlu0 %10256
  %10258 = vrot.lane.b32.xlu0 %v10220, 64
  %v10259 = vpop.permute.xlu0 %10258
  %10260 = vrot.lane.b32.xlu0 %v10229, 64
  %v10261 = vpop.permute.xlu0 %10260
  %10278 = vst.msk [vmem:[#allocation4 + $0x8] sm:$0xff] %vm9427, %v10231
  %10279 = vst.msk [vmem:[#allocation4 + $0x20] sm:$0xff] %vm9427, %v10233
  %10280 = vst.msk [vmem:[#allocation4 + $0x38] sm:$0xff] %vm9427, %v10235
  %10281 = vst.msk [vmem:[#allocation4 + $0x50] sm:$0xff] %vm9427, %v10237
  %10282 = vst.msk [vmem:[#allocation4 + $0x68] sm:$0xff] %vm9427, %v10239
  %10283 = vst.msk [vmem:[#allocation4 + $0x80] sm:$0xff] %vm9427, %v10241
  %10284 = vst.msk [vmem:[#allocation4 + $0x98] sm:$0xff] %vm9427, %v10243
  %10285 = vst.msk [vmem:[#allocation4 + $0xb0] sm:$0xff] %vm9427, %v10245
  %10286 = vst.msk [vmem:[#allocation4 + $0xc8] sm:$0xff] %vm9427, %v10247
  %10287 = vst.msk [vmem:[#allocation4 + $0xe0] sm:$0xff] %vm9427, %v10249
  %10288 = vst.msk [vmem:[#allocation4 + $0xf8] sm:$0xff] %vm9427, %v10251
  %10289 = vst.msk [vmem:[#allocation4 + $0x110] sm:$0xff] %vm9427, %v10253
  %10290 = vst.msk [vmem:[#allocation4 + $0x128] sm:$0xff] %vm9427, %v10255
  %10291 = vst.msk [vmem:[#allocation4 + $0x140] sm:$0xff] %vm9427, %v10257
  %10292 = vst.msk [vmem:[#allocation4 + $0x158] sm:$0xff] %vm9427, %v10259
  %10293 = vst.msk [vmem:[#allocation4 + $0x170] sm:$0xff] %vm9427, %v10261
  %v10294 = vld [vmem:[#allocation3 + $0x10] sm:$0xf0]
  %v10295 = vld [vmem:[#allocation3 + $0x18] sm:$0xff]
  %v10296 = vld [vmem:[#allocation3 + $0x20] sm:$0xff]
  %v10297 = vld [vmem:[#allocation3 + $0x28] sm:$0xff]
  %v10298 = vld [vmem:[#allocation3 + $0x30] sm:$0xff]
  %v10299 = vld [vmem:[#allocation3 + $0x38] sm:$0xff]
  %v10300 = vld [vmem:[#allocation3 + $0x40] sm:$0xff]
  %v10301 = vld [vmem:[#allocation3 + $0x48] sm:$0xff]
  %v10302 = vld [vmem:[#allocation3 + $0x50] sm:$0xff]
  %v10303 = vld [vmem:[#allocation3 + $0x58] sm:$0xff]
  %v10304 = vld [vmem:[#allocation3 + $0x60] sm:$0xff]
  %v10305 = vld [vmem:[#allocation3 + $0x68] sm:$0xff]
  %v10306 = vld [vmem:[#allocation3 + $0x70] sm:$0xff]
  %v10307 = vld [vmem:[#allocation3 + $0x78] sm:$0xff]
  %v10308 = vld [vmem:[#allocation3 + $0x80] sm:$0xff]
  %v10309 = vld [vmem:[#allocation3 + $0x88] sm:$0xff]
  %v10310 = vld [vmem:[#allocation3 + $0x90] sm:$0xf]
  %v10328 = vrot.slane %v10294, 4
  %v10329 = vrot.slane %v10295, 4
  %v10330 = vsel %vm8212, %v10328, %v10329
  %v10331 = vrot.slane %v10296, 4
  %v10332 = vsel %vm8212, %v10329, %v10331
  %v10333 = vrot.slane %v10297, 4
  %v10334 = vsel %vm8212, %v10331, %v10333
  %v10335 = vrot.slane %v10298, 4
  %v10336 = vsel %vm8212, %v10333, %v10335
  %v10337 = vrot.slane %v10299, 4
  %v10338 = vsel %vm8212, %v10335, %v10337
  %v10339 = vrot.slane %v10300, 4
  %v10340 = vsel %vm8212, %v10337, %v10339
  %v10341 = vrot.slane %v10301, 4
  %v10342 = vsel %vm8212, %v10339, %v10341
  %v10343 = vrot.slane %v10302, 4
  %v10344 = vsel %vm8212, %v10341, %v10343
  %v10345 = vrot.slane %v10303, 4
  %v10346 = vsel %vm8212, %v10343, %v10345
  %v10347 = vrot.slane %v10304, 4
  %v10348 = vsel %vm8212, %v10345, %v10347
  %v10349 = vrot.slane %v10305, 4
  %v10350 = vsel %vm8212, %v10347, %v10349
  %v10351 = vrot.slane %v10306, 4
  %v10352 = vsel %vm8212, %v10349, %v10351
  %v10353 = vrot.slane %v10307, 4
  %v10354 = vsel %vm8212, %v10351, %v10353
  %v10355 = vrot.slane %v10308, 4
  %v10356 = vsel %vm8212, %v10353, %v10355
  %v10357 = vrot.slane %v10309, 4
  %v10358 = vsel %vm8212, %v10355, %v10357
  %v10359 = vrot.slane %v10310, 4
  %v10360 = vsel %vm8212, %v10357, %v10359
  %10361 = vrot.lane.b32.xlu0 %v10330, 96
  %v10362 = vpop.permute.xlu0 %10361
  %10363 = vrot.lane.b32.xlu0 %v10332, 96
  %v10364 = vpop.permute.xlu0 %10363
  %10365 = vrot.lane.b32.xlu0 %v10334, 96
  %v10366 = vpop.permute.xlu0 %10365
  %10367 = vrot.lane.b32.xlu0 %v10336, 96
  %v10368 = vpop.permute.xlu0 %10367
  %10369 = vrot.lane.b32.xlu0 %v10338, 96
  %v10370 = vpop.permute.xlu0 %10369
  %10371 = vrot.lane.b32.xlu0 %v10340, 96
  %v10372 = vpop.permute.xlu0 %10371
  %10373 = vrot.lane.b32.xlu0 %v10342, 96
  %v10374 = vpop.permute.xlu0 %10373
  %10375 = vrot.lane.b32.xlu0 %v10344, 96
  %v10376 = vpop.permute.xlu0 %10375
  %10377 = vrot.lane.b32.xlu0 %v10346, 96
  %v10378 = vpop.permute.xlu0 %10377
  %10379 = vrot.lane.b32.xlu0 %v10348, 96
  %v10380 = vpop.permute.xlu0 %10379
  %10381 = vrot.lane.b32.xlu0 %v10350, 96
  %v10382 = vpop.permute.xlu0 %10381
  %10383 = vrot.lane.b32.xlu0 %v10352, 96
  %v10384 = vpop.permute.xlu0 %10383
  %10385 = vrot.lane.b32.xlu0 %v10354, 96
  %v10386 = vpop.permute.xlu0 %10385
  %10387 = vrot.lane.b32.xlu0 %v10356, 96
  %v10388 = vpop.permute.xlu0 %10387
  %10389 = vrot.lane.b32.xlu0 %v10358, 96
  %v10390 = vpop.permute.xlu0 %10389
  %10391 = vrot.lane.b32.xlu0 %v10360, 96
  %v10392 = vpop.permute.xlu0 %10391
  %10409 = vst.msk [vmem:[#allocation4 + $0x8] sm:$0xff] %vm9678, %v10362
  %10410 = vst.msk [vmem:[#allocation4 + $0x20] sm:$0xff] %vm9678, %v10364
  %10411 = vst.msk [vmem:[#allocation4 + $0x38] sm:$0xff] %vm9678, %v10366
  %10412 = vst.msk [vmem:[#allocation4 + $0x50] sm:$0xff] %vm9678, %v10368
  %10413 = vst.msk [vmem:[#allocation4 + $0x68] sm:$0xff] %vm9678, %v10370
  %10414 = vst.msk [vmem:[#allocation4 + $0x80] sm:$0xff] %vm9678, %v10372
  %10415 = vst.msk [vmem:[#allocation4 + $0x98] sm:$0xff] %vm9678, %v10374
  %10416 = vst.msk [vmem:[#allocation4 + $0xb0] sm:$0xff] %vm9678, %v10376
  %10417 = vst.msk [vmem:[#allocation4 + $0xc8] sm:$0xff] %vm9678, %v10378
  %10418 = vst.msk [vmem:[#allocation4 + $0xe0] sm:$0xff] %vm9678, %v10380
  %10419 = vst.msk [vmem:[#allocation4 + $0xf8] sm:$0xff] %vm9678, %v10382
  %10420 = vst.msk [vmem:[#allocation4 + $0x110] sm:$0xff] %vm9678, %v10384
  %10421 = vst.msk [vmem:[#allocation4 + $0x128] sm:$0xff] %vm9678, %v10386
  %10422 = vst.msk [vmem:[#allocation4 + $0x140] sm:$0xff] %vm9678, %v10388
  %10423 = vst.msk [vmem:[#allocation4 + $0x158] sm:$0xff] %vm9678, %v10390
  %10424 = vst.msk [vmem:[#allocation4 + $0x170] sm:$0xff] %vm9678, %v10392
  %v10425 = vld [vmem:[#allocation3 + $0x10] sm:$0xf0]
  %v10426 = vld [vmem:[#allocation3 + $0x18] sm:$0xff]
  %v10427 = vld [vmem:[#allocation3 + $0x20] sm:$0xff]
  %v10428 = vld [vmem:[#allocation3 + $0x28] sm:$0xff]
  %v10429 = vld [vmem:[#allocation3 + $0x30] sm:$0xff]
  %v10430 = vld [vmem:[#allocation3 + $0x38] sm:$0xff]
  %v10431 = vld [vmem:[#allocation3 + $0x40] sm:$0xff]
  %v10432 = vld [vmem:[#allocation3 + $0x48] sm:$0xff]
  %v10433 = vld [vmem:[#allocation3 + $0x50] sm:$0xff]
  %v10434 = vld [vmem:[#allocation3 + $0x58] sm:$0xff]
  %v10435 = vld [vmem:[#allocation3 + $0x60] sm:$0xff]
  %v10436 = vld [vmem:[#allocation3 + $0x68] sm:$0xff]
  %v10437 = vld [vmem:[#allocation3 + $0x70] sm:$0xff]
  %v10438 = vld [vmem:[#allocation3 + $0x78] sm:$0xff]
  %v10439 = vld [vmem:[#allocation3 + $0x80] sm:$0xff]
  %v10440 = vld [vmem:[#allocation3 + $0x88] sm:$0xff]
  %v10441 = vld [vmem:[#allocation3 + $0x90] sm:$0x1f]
  %v10442 = vmul.bf16 %v10425, %v9057
  %v10443 = vmul.bf16 %v10426, %v9066
  %v10444 = vmul.bf16 %v10427, %v9075
  %v10445 = vmul.bf16 %v10428, %v9084
  %v10446 = vmul.bf16 %v10429, %v9093
  %v10447 = vmul.bf16 %v10430, %v9102
  %v10448 = vmul.bf16 %v10431, %v9111
  %v10449 = vmul.bf16 %v10432, %v9120
  %v10450 = vmul.bf16 %v10433, %v9129
  %v10451 = vmul.bf16 %v10434, %v9138
  %v10452 = vmul.bf16 %v10435, %v9147
  %v10453 = vmul.bf16 %v10436, %v9156
  %v10454 = vmul.bf16 %v10437, %v9165
  %v10455 = vmul.bf16 %v10438, %v9174
  %v10456 = vmul.bf16 %v10439, %v9183
  %v10457 = vmul.bf16 %v10440, %v9192
  %v10458 = vmul.bf16 %v10441, %v9191
  %v10460 = vshrl.u32 %v10442, 16
  %v10462 = vrot.slane %v10460, 4
  %v10463 = vshll.u32 %v10442, 16
  %v10465 = vrot.slane %v10463, 5
  %v10466 = vor.u32 %v10462, %v10465
  %v10468 = vshrl.u32 %v10443, 16
  %v10470 = vrot.slane %v10468, 4
  %v10471 = vshll.u32 %v10443, 16
  %v10473 = vrot.slane %v10471, 5
  %v10474 = vor.u32 %v10470, %v10473
  %v10475 = vsel %vm895, %v10466, %v10474
  %v10477 = vshrl.u32 %v10444, 16
  %v10479 = vrot.slane %v10477, 4
  %v10480 = vshll.u32 %v10444, 16
  %v10482 = vrot.slane %v10480, 5
  %v10483 = vor.u32 %v10479, %v10482
  %v10484 = vsel %vm895, %v10474, %v10483
  %v10486 = vshrl.u32 %v10445, 16
  %v10488 = vrot.slane %v10486, 4
  %v10489 = vshll.u32 %v10445, 16
  %v10491 = vrot.slane %v10489, 5
  %v10492 = vor.u32 %v10488, %v10491
  %v10493 = vsel %vm895, %v10483, %v10492
  %v10495 = vshrl.u32 %v10446, 16
  %v10497 = vrot.slane %v10495, 4
  %v10498 = vshll.u32 %v10446, 16
  %v10500 = vrot.slane %v10498, 5
  %v10501 = vor.u32 %v10497, %v10500
  %v10502 = vsel %vm895, %v10492, %v10501
  %v10504 = vshrl.u32 %v10447, 16
  %v10506 = vrot.slane %v10504, 4
  %v10507 = vshll.u32 %v10447, 16
  %v10509 = vrot.slane %v10507, 5
  %v10510 = vor.u32 %v10506, %v10509
  %v10511 = vsel %vm895, %v10501, %v10510
  %v10513 = vshrl.u32 %v10448, 16
  %v10515 = vrot.slane %v10513, 4
  %v10516 = vshll.u32 %v10448, 16
  %v10518 = vrot.slane %v10516, 5
  %v10519 = vor.u32 %v10515, %v10518
  %v10520 = vsel %vm895, %v10510, %v10519
  %v10522 = vshrl.u32 %v10449, 16
  %v10524 = vrot.slane %v10522, 4
  %v10525 = vshll.u32 %v10449, 16
  %v10527 = vrot.slane %v10525, 5
  %v10528 = vor.u32 %v10524, %v10527
  %v10529 = vsel %vm895, %v10519, %v10528
  %v10531 = vshrl.u32 %v10450, 16
  %v10533 = vrot.slane %v10531, 4
  %v10534 = vshll.u32 %v10450, 16
  %v10536 = vrot.slane %v10534, 5
  %v10537 = vor.u32 %v10533, %v10536
  %v10538 = vsel %vm895, %v10528, %v10537
  %v10540 = vshrl.u32 %v10451, 16
  %v10542 = vrot.slane %v10540, 4
  %v10543 = vshll.u32 %v10451, 16
  %v10545 = vrot.slane %v10543, 5
  %v10546 = vor.u32 %v10542, %v10545
  %v10547 = vsel %vm895, %v10537, %v10546
  %v10549 = vshrl.u32 %v10452, 16
  %v10551 = vrot.slane %v10549, 4
  %v10552 = vshll.u32 %v10452, 16
  %v10554 = vrot.slane %v10552, 5
  %v10555 = vor.u32 %v10551, %v10554
  %v10556 = vsel %vm895, %v10546, %v10555
  %v10558 = vshrl.u32 %v10453, 16
  %v10560 = vrot.slane %v10558, 4
  %v10561 = vshll.u32 %v10453, 16
  %v10563 = vrot.slane %v10561, 5
  %v10564 = vor.u32 %v10560, %v10563
  %v10565 = vsel %vm895, %v10555, %v10564
  %v10567 = vshrl.u32 %v10454, 16
  %v10569 = vrot.slane %v10567, 4
  %v10570 = vshll.u32 %v10454, 16
  %v10572 = vrot.slane %v10570, 5
  %v10573 = vor.u32 %v10569, %v10572
  %v10574 = vsel %vm895, %v10564, %v10573
  %v10576 = vshrl.u32 %v10455, 16
  %v10578 = vrot.slane %v10576, 4
  %v10579 = vshll.u32 %v10455, 16
  %v10581 = vrot.slane %v10579, 5
  %v10582 = vor.u32 %v10578, %v10581
  %v10583 = vsel %vm895, %v10573, %v10582
  %v10585 = vshrl.u32 %v10456, 16
  %v10587 = vrot.slane %v10585, 4
  %v10588 = vshll.u32 %v10456, 16
  %v10590 = vrot.slane %v10588, 5
  %v10591 = vor.u32 %v10587, %v10590
  %v10592 = vsel %vm895, %v10582, %v10591
  %v10594 = vshrl.u32 %v10457, 16
  %v10596 = vrot.slane %v10594, 4
  %v10597 = vshll.u32 %v10457, 16
  %v10599 = vrot.slane %v10597, 5
  %v10600 = vor.u32 %v10596, %v10599
  %v10601 = vsel %vm895, %v10591, %v10600
  %v10603 = vshrl.u32 %v10458, 16
  %v10605 = vrot.slane %v10603, 4
  %v10606 = vshll.u32 %v10458, 16
  %v10608 = vrot.slane %v10606, 5
  %v10609 = vor.u32 %v10605, %v10608
  %v10610 = vsel %vm895, %v10600, %v10609
  %10627 = vst.msk [vmem:[#allocation4 + $0x10] sm:$0xff] %vm8189, %v10475
  %10628 = vst.msk [vmem:[#allocation4 + $0x28] sm:$0xff] %vm8189, %v10484
  %10629 = vst.msk [vmem:[#allocation4 + $0x40] sm:$0xff] %vm8189, %v10493
  %10630 = vst.msk [vmem:[#allocation4 + $0x58] sm:$0xff] %vm8189, %v10502
  %10631 = vst.msk [vmem:[#allocation4 + $0x70] sm:$0xff] %vm8189, %v10511
  %10632 = vst.msk [vmem:[#allocation4 + $0x88] sm:$0xff] %vm8189, %v10520
  %10633 = vst.msk [vmem:[#allocation4 + $0xa0] sm:$0xff] %vm8189, %v10529
  %10634 = vst.msk [vmem:[#allocation4 + $0xb8] sm:$0xff] %vm8189, %v10538
  %10635 = vst.msk [vmem:[#allocation4 + $0xd0] sm:$0xff] %vm8189, %v10547
  %10636 = vst.msk [vmem:[#allocation4 + $0xe8] sm:$0xff] %vm8189, %v10556
  %10637 = vst.msk [vmem:[#allocation4 + $0x100] sm:$0xff] %vm8189, %v10565
  %10638 = vst.msk [vmem:[#allocation4 + $0x118] sm:$0xff] %vm8189, %v10574
  %10639 = vst.msk [vmem:[#allocation4 + $0x130] sm:$0xff] %vm8189, %v10583
  %10640 = vst.msk [vmem:[#allocation4 + $0x148] sm:$0xff] %vm8189, %v10592
  %10641 = vst.msk [vmem:[#allocation4 + $0x160] sm:$0xff] %vm8189, %v10601
  %10642 = vst.msk [vmem:[#allocation4 + $0x178] sm:$0xff] %vm8189, %v10610
  %v10643 = vld [vmem:[#allocation3 + $0x98] sm:$0xf8]
  %v10644 = vld [vmem:[#allocation3 + $0xa0] sm:$0xff]
  %v10645 = vld [vmem:[#allocation3 + $0xa8] sm:$0xff]
  %v10646 = vld [vmem:[#allocation3 + $0xb0] sm:$0xff]
  %v10647 = vld [vmem:[#allocation3 + $0xb8] sm:$0xff]
  %v10648 = vld [vmem:[#allocation3 + $0xc0] sm:$0xff]
  %v10649 = vld [vmem:[#allocation3 + $0xc8] sm:$0xff]
  %v10650 = vld [vmem:[#allocation3 + $0xd0] sm:$0xff]
  %v10651 = vld [vmem:[#allocation3 + $0xd8] sm:$0xff]
  %v10652 = vld [vmem:[#allocation3 + $0xe0] sm:$0xff]
  %v10653 = vld [vmem:[#allocation3 + $0xe8] sm:$0xff]
  %v10654 = vld [vmem:[#allocation3 + $0xf0] sm:$0xff]
  %v10655 = vld [vmem:[#allocation3 + $0xf8] sm:$0xff]
  %v10656 = vld [vmem:[#allocation3 + $0x100] sm:$0xff]
  %v10657 = vld [vmem:[#allocation3 + $0x108] sm:$0xff]
  %v10658 = vld [vmem:[#allocation3 + $0x110] sm:$0xff]
  %v10659 = vld [vmem:[#allocation3 + $0x118] sm:$0xf]
  %v10660 = vmul.bf16 %v10643, %v8467
  %v10661 = vmul.bf16 %v10644, %v8476
  %v10662 = vmul.bf16 %v10645, %v8485
  %v10663 = vmul.bf16 %v10646, %v8494
  %v10664 = vmul.bf16 %v10647, %v8503
  %v10665 = vmul.bf16 %v10648, %v8512
  %v10666 = vmul.bf16 %v10649, %v8521
  %v10667 = vmul.bf16 %v10650, %v8530
  %v10668 = vmul.bf16 %v10651, %v8539
  %v10669 = vmul.bf16 %v10652, %v8548
  %v10670 = vmul.bf16 %v10653, %v8557
  %v10671 = vmul.bf16 %v10654, %v8566
  %v10672 = vmul.bf16 %v10655, %v8575
  %v10673 = vmul.bf16 %v10656, %v8584
  %v10674 = vmul.bf16 %v10657, %v8593
  %v10675 = vmul.bf16 %v10658, %v8602
  %v10676 = vmul.bf16 %v10659, %v8601
  %v10678 = vshrl.u32 %v10660, 16
  %v10680 = vrot.slane %v10678, 3
  %v10681 = vshll.u32 %v10660, 16
  %v10683 = vrot.slane %v10681, 4
  %v10684 = vor.u32 %v10680, %v10683
  %v10686 = vshrl.u32 %v10661, 16
  %v10688 = vrot.slane %v10686, 3
  %v10689 = vshll.u32 %v10661, 16
  %v10691 = vrot.slane %v10689, 4
  %v10692 = vor.u32 %v10688, %v10691
  %v10693 = vsel %vm1366, %v10684, %v10692
  %v10695 = vshrl.u32 %v10662, 16
  %v10697 = vrot.slane %v10695, 3
  %v10698 = vshll.u32 %v10662, 16
  %v10700 = vrot.slane %v10698, 4
  %v10701 = vor.u32 %v10697, %v10700
  %v10702 = vsel %vm1366, %v10692, %v10701
  %v10704 = vshrl.u32 %v10663, 16
  %v10706 = vrot.slane %v10704, 3
  %v10707 = vshll.u32 %v10663, 16
  %v10709 = vrot.slane %v10707, 4
  %v10710 = vor.u32 %v10706, %v10709
  %v10711 = vsel %vm1366, %v10701, %v10710
  %v10713 = vshrl.u32 %v10664, 16
  %v10715 = vrot.slane %v10713, 3
  %v10716 = vshll.u32 %v10664, 16
  %v10718 = vrot.slane %v10716, 4
  %v10719 = vor.u32 %v10715, %v10718
  %v10720 = vsel %vm1366, %v10710, %v10719
  %v10722 = vshrl.u32 %v10665, 16
  %v10724 = vrot.slane %v10722, 3
  %v10725 = vshll.u32 %v10665, 16
  %v10727 = vrot.slane %v10725, 4
  %v10728 = vor.u32 %v10724, %v10727
  %v10729 = vsel %vm1366, %v10719, %v10728
  %v10731 = vshrl.u32 %v10666, 16
  %v10733 = vrot.slane %v10731, 3
  %v10734 = vshll.u32 %v10666, 16
  %v10736 = vrot.slane %v10734, 4
  %v10737 = vor.u32 %v10733, %v10736
  %v10738 = vsel %vm1366, %v10728, %v10737
  %v10740 = vshrl.u32 %v10667, 16
  %v10742 = vrot.slane %v10740, 3
  %v10743 = vshll.u32 %v10667, 16
  %v10745 = vrot.slane %v10743, 4
  %v10746 = vor.u32 %v10742, %v10745
  %v10747 = vsel %vm1366, %v10737, %v10746
  %v10749 = vshrl.u32 %v10668, 16
  %v10751 = vrot.slane %v10749, 3
  %v10752 = vshll.u32 %v10668, 16
  %v10754 = vrot.slane %v10752, 4
  %v10755 = vor.u32 %v10751, %v10754
  %v10756 = vsel %vm1366, %v10746, %v10755
  %v10758 = vshrl.u32 %v10669, 16
  %v10760 = vrot.slane %v10758, 3
  %v10761 = vshll.u32 %v10669, 16
  %v10763 = vrot.slane %v10761, 4
  %v10764 = vor.u32 %v10760, %v10763
  %v10765 = vsel %vm1366, %v10755, %v10764
  %v10767 = vshrl.u32 %v10670, 16
  %v10769 = vrot.slane %v10767, 3
  %v10770 = vshll.u32 %v10670, 16
  %v10772 = vrot.slane %v10770, 4
  %v10773 = vor.u32 %v10769, %v10772
  %v10774 = vsel %vm1366, %v10764, %v10773
  %v10776 = vshrl.u32 %v10671, 16
  %v10778 = vrot.slane %v10776, 3
  %v10779 = vshll.u32 %v10671, 16
  %v10781 = vrot.slane %v10779, 4
  %v10782 = vor.u32 %v10778, %v10781
  %v10783 = vsel %vm1366, %v10773, %v10782
  %v10785 = vshrl.u32 %v10672, 16
  %v10787 = vrot.slane %v10785, 3
  %v10788 = vshll.u32 %v10672, 16
  %v10790 = vrot.slane %v10788, 4
  %v10791 = vor.u32 %v10787, %v10790
  %v10792 = vsel %vm1366, %v10782, %v10791
  %v10794 = vshrl.u32 %v10673, 16
  %v10796 = vrot.slane %v10794, 3
  %v10797 = vshll.u32 %v10673, 16
  %v10799 = vrot.slane %v10797, 4
  %v10800 = vor.u32 %v10796, %v10799
  %v10801 = vsel %vm1366, %v10791, %v10800
  %v10803 = vshrl.u32 %v10674, 16
  %v10805 = vrot.slane %v10803, 3
  %v10806 = vshll.u32 %v10674, 16
  %v10808 = vrot.slane %v10806, 4
  %v10809 = vor.u32 %v10805, %v10808
  %v10810 = vsel %vm1366, %v10800, %v10809
  %v10812 = vshrl.u32 %v10675, 16
  %v10814 = vrot.slane %v10812, 3
  %v10815 = vshll.u32 %v10675, 16
  %v10817 = vrot.slane %v10815, 4
  %v10818 = vor.u32 %v10814, %v10817
  %v10819 = vsel %vm1366, %v10809, %v10818
  %v10821 = vshrl.u32 %v10676, 16
  %v10823 = vrot.slane %v10821, 3
  %v10824 = vshll.u32 %v10676, 16
  %v10826 = vrot.slane %v10824, 4
  %v10827 = vor.u32 %v10823, %v10826
  %v10828 = vsel %vm1366, %v10818, %v10827
  %10845 = vst.msk [vmem:[#allocation4 + $0x180] sm:$0xff] %vm8189, %v10693
  %10846 = vst.msk [vmem:[#allocation4 + $0x198] sm:$0xff] %vm8189, %v10702
  %10847 = vst.msk [vmem:[#allocation4 + $0x1b0] sm:$0xff] %vm8189, %v10711
  %10848 = vst.msk [vmem:[#allocation4 + $0x1c8] sm:$0xff] %vm8189, %v10720
  %10849 = vst.msk [vmem:[#allocation4 + $0x1e0] sm:$0xff] %vm8189, %v10729
  %10850 = vst.msk [vmem:[#allocation4 + $0x1f8] sm:$0xff] %vm8189, %v10738
  %10851 = vst.msk [vmem:[#allocation4 + $0x210] sm:$0xff] %vm8189, %v10747
  %10852 = vst.msk [vmem:[#allocation4 + $0x228] sm:$0xff] %vm8189, %v10756
  %10853 = vst.msk [vmem:[#allocation4 + $0x240] sm:$0xff] %vm8189, %v10765
  %10854 = vst.msk [vmem:[#allocation4 + $0x258] sm:$0xff] %vm8189, %v10774
  %10855 = vst.msk [vmem:[#allocation4 + $0x270] sm:$0xff] %vm8189, %v10783
  %10856 = vst.msk [vmem:[#allocation4 + $0x288] sm:$0xff] %vm8189, %v10792
  %10857 = vst.msk [vmem:[#allocation4 + $0x2a0] sm:$0xff] %vm8189, %v10801
  %10858 = vst.msk [vmem:[#allocation4 + $0x2b8] sm:$0xff] %vm8189, %v10810
  %10859 = vst.msk [vmem:[#allocation4 + $0x2d0] sm:$0xff] %vm8189, %v10819
  %10860 = vst.msk [vmem:[#allocation4 + $0x2e8] sm:$0xff] %vm8189, %v10828
  %v10861 = vld [vmem:[#allocation3 + $0x98] sm:$0xf0]
  %v10862 = vld [vmem:[#allocation3 + $0xa0] sm:$0xff]
  %v10863 = vld [vmem:[#allocation3 + $0xa8] sm:$0xff]
  %v10864 = vld [vmem:[#allocation3 + $0xb0] sm:$0xff]
  %v10865 = vld [vmem:[#allocation3 + $0xb8] sm:$0xff]
  %v10866 = vld [vmem:[#allocation3 + $0xc0] sm:$0xff]
  %v10867 = vld [vmem:[#allocation3 + $0xc8] sm:$0xff]
  %v10868 = vld [vmem:[#allocation3 + $0xd0] sm:$0xff]
  %v10869 = vld [vmem:[#allocation3 + $0xd8] sm:$0xff]
  %v10870 = vld [vmem:[#allocation3 + $0xe0] sm:$0xff]
  %v10871 = vld [vmem:[#allocation3 + $0xe8] sm:$0xff]
  %v10872 = vld [vmem:[#allocation3 + $0xf0] sm:$0xff]
  %v10873 = vld [vmem:[#allocation3 + $0xf8] sm:$0xff]
  %v10874 = vld [vmem:[#allocation3 + $0x100] sm:$0xff]
  %v10875 = vld [vmem:[#allocation3 + $0x108] sm:$0xff]
  %v10876 = vld [vmem:[#allocation3 + $0x110] sm:$0xff]
  %v10877 = vld [vmem:[#allocation3 + $0x118] sm:$0xf]
  %v10895 = vrot.slane %v10861, 4
  %v10896 = vrot.slane %v10862, 4
  %v10897 = vsel %vm8212, %v10895, %v10896
  %v10898 = vrot.slane %v10863, 4
  %v10899 = vsel %vm8212, %v10896, %v10898
  %v10900 = vrot.slane %v10864, 4
  %v10901 = vsel %vm8212, %v10898, %v10900
  %v10902 = vrot.slane %v10865, 4
  %v10903 = vsel %vm8212, %v10900, %v10902
  %v10904 = vrot.slane %v10866, 4
  %v10905 = vsel %vm8212, %v10902, %v10904
  %v10906 = vrot.slane %v10867, 4
  %v10907 = vsel %vm8212, %v10904, %v10906
  %v10908 = vrot.slane %v10868, 4
  %v10909 = vsel %vm8212, %v10906, %v10908
  %v10910 = vrot.slane %v10869, 4
  %v10911 = vsel %vm8212, %v10908, %v10910
  %v10912 = vrot.slane %v10870, 4
  %v10913 = vsel %vm8212, %v10910, %v10912
  %v10914 = vrot.slane %v10871, 4
  %v10915 = vsel %vm8212, %v10912, %v10914
  %v10916 = vrot.slane %v10872, 4
  %v10917 = vsel %vm8212, %v10914, %v10916
  %v10918 = vrot.slane %v10873, 4
  %v10919 = vsel %vm8212, %v10916, %v10918
  %v10920 = vrot.slane %v10874, 4
  %v10921 = vsel %vm8212, %v10918, %v10920
  %v10922 = vrot.slane %v10875, 4
  %v10923 = vsel %vm8212, %v10920, %v10922
  %v10924 = vrot.slane %v10876, 4
  %v10925 = vsel %vm8212, %v10922, %v10924
  %v10926 = vrot.slane %v10877, 4
  %v10927 = vsel %vm8212, %v10924, %v10926
  %10928 = vrot.lane.b32.xlu0 %v10897, 32
  %v10929 = vpop.permute.xlu0 %10928
  %10930 = vrot.lane.b32.xlu0 %v10899, 32
  %v10931 = vpop.permute.xlu0 %10930
  %10932 = vrot.lane.b32.xlu0 %v10901, 32
  %v10933 = vpop.permute.xlu0 %10932
  %10934 = vrot.lane.b32.xlu0 %v10903, 32
  %v10935 = vpop.permute.xlu0 %10934
  %10936 = vrot.lane.b32.xlu0 %v10905, 32
  %v10937 = vpop.permute.xlu0 %10936
  %10938 = vrot.lane.b32.xlu0 %v10907, 32
  %v10939 = vpop.permute.xlu0 %10938
  %10940 = vrot.lane.b32.xlu0 %v10909, 32
  %v10941 = vpop.permute.xlu0 %10940
  %10942 = vrot.lane.b32.xlu0 %v10911, 32
  %v10943 = vpop.permute.xlu0 %10942
  %10944 = vrot.lane.b32.xlu0 %v10913, 32
  %v10945 = vpop.permute.xlu0 %10944
  %10946 = vrot.lane.b32.xlu0 %v10915, 32
  %v10947 = vpop.permute.xlu0 %10946
  %10948 = vrot.lane.b32.xlu0 %v10917, 32
  %v10949 = vpop.permute.xlu0 %10948
  %10950 = vrot.lane.b32.xlu0 %v10919, 32
  %v10951 = vpop.permute.xlu0 %10950
  %10952 = vrot.lane.b32.xlu0 %v10921, 32
  %v10953 = vpop.permute.xlu0 %10952
  %10954 = vrot.lane.b32.xlu0 %v10923, 32
  %v10955 = vpop.permute.xlu0 %10954
  %10956 = vrot.lane.b32.xlu0 %v10925, 32
  %v10957 = vpop.permute.xlu0 %10956
  %10958 = vrot.lane.b32.xlu0 %v10927, 32
  %v10959 = vpop.permute.xlu0 %10958
  %10976 = vst.msk [vmem:[#allocation4 + $0x180] sm:$0xff] %vm8936, %v10929
  %10977 = vst.msk [vmem:[#allocation4 + $0x198] sm:$0xff] %vm8936, %v10931
  %10978 = vst.msk [vmem:[#allocation4 + $0x1b0] sm:$0xff] %vm8936, %v10933
  %10979 = vst.msk [vmem:[#allocation4 + $0x1c8] sm:$0xff] %vm8936, %v10935
  %10980 = vst.msk [vmem:[#allocation4 + $0x1e0] sm:$0xff] %vm8936, %v10937
  %10981 = vst.msk [vmem:[#allocation4 + $0x1f8] sm:$0xff] %vm8936, %v10939
  %10982 = vst.msk [vmem:[#allocation4 + $0x210] sm:$0xff] %vm8936, %v10941
  %10983 = vst.msk [vmem:[#allocation4 + $0x228] sm:$0xff] %vm8936, %v10943
  %10984 = vst.msk [vmem:[#allocation4 + $0x240] sm:$0xff] %vm8936, %v10945
  %10985 = vst.msk [vmem:[#allocation4 + $0x258] sm:$0xff] %vm8936, %v10947
  %10986 = vst.msk [vmem:[#allocation4 + $0x270] sm:$0xff] %vm8936, %v10949
  %10987 = vst.msk [vmem:[#allocation4 + $0x288] sm:$0xff] %vm8936, %v10951
  %10988 = vst.msk [vmem:[#allocation4 + $0x2a0] sm:$0xff] %vm8936, %v10953
  %10989 = vst.msk [vmem:[#allocation4 + $0x2b8] sm:$0xff] %vm8936, %v10955
  %10990 = vst.msk [vmem:[#allocation4 + $0x2d0] sm:$0xff] %vm8936, %v10957
  %10991 = vst.msk [vmem:[#allocation4 + $0x2e8] sm:$0xff] %vm8936, %v10959
  %v10992 = vld [vmem:[#allocation3 + $0x98] sm:$0xf0]
  %v10993 = vld [vmem:[#allocation3 + $0xa0] sm:$0xff]
  %v10994 = vld [vmem:[#allocation3 + $0xa8] sm:$0xff]
  %v10995 = vld [vmem:[#allocation3 + $0xb0] sm:$0xff]
  %v10996 = vld [vmem:[#allocation3 + $0xb8] sm:$0xff]
  %v10997 = vld [vmem:[#allocation3 + $0xc0] sm:$0xff]
  %v10998 = vld [vmem:[#allocation3 + $0xc8] sm:$0xff]
  %v10999 = vld [vmem:[#allocation3 + $0xd0] sm:$0xff]
  %v11000 = vld [vmem:[#allocation3 + $0xd8] sm:$0xff]
  %v11001 = vld [vmem:[#allocation3 + $0xe0] sm:$0xff]
  %v11002 = vld [vmem:[#allocation3 + $0xe8] sm:$0xff]
  %v11003 = vld [vmem:[#allocation3 + $0xf0] sm:$0xff]
  %v11004 = vld [vmem:[#allocation3 + $0xf8] sm:$0xff]
  %v11005 = vld [vmem:[#allocation3 + $0x100] sm:$0xff]
  %v11006 = vld [vmem:[#allocation3 + $0x108] sm:$0xff]
  %v11007 = vld [vmem:[#allocation3 + $0x110] sm:$0xff]
  %v11008 = vld [vmem:[#allocation3 + $0x118] sm:$0x1f]
  %v11009 = vmul.bf16 %v10992, %v9057
  %v11010 = vmul.bf16 %v10993, %v9066
  %v11011 = vmul.bf16 %v10994, %v9075
  %v11012 = vmul.bf16 %v10995, %v9084
  %v11013 = vmul.bf16 %v10996, %v9093
  %v11014 = vmul.bf16 %v10997, %v9102
  %v11015 = vmul.bf16 %v10998, %v9111
  %v11016 = vmul.bf16 %v10999, %v9120
  %v11017 = vmul.bf16 %v11000, %v9129
  %v11018 = vmul.bf16 %v11001, %v9138
  %v11019 = vmul.bf16 %v11002, %v9147
  %v11020 = vmul.bf16 %v11003, %v9156
  %v11021 = vmul.bf16 %v11004, %v9165
  %v11022 = vmul.bf16 %v11005, %v9174
  %v11023 = vmul.bf16 %v11006, %v9183
  %v11024 = vmul.bf16 %v11007, %v9192
  %v11025 = vmul.bf16 %v11008, %v9191
  %v11027 = vshrl.u32 %v11009, 16
  %v11029 = vrot.slane %v11027, 4
  %v11030 = vshll.u32 %v11009, 16
  %v11032 = vrot.slane %v11030, 5
  %v11033 = vor.u32 %v11029, %v11032
  %v11035 = vshrl.u32 %v11010, 16
  %v11037 = vrot.slane %v11035, 4
  %v11038 = vshll.u32 %v11010, 16
  %v11040 = vrot.slane %v11038, 5
  %v11041 = vor.u32 %v11037, %v11040
  %v11042 = vsel %vm895, %v11033, %v11041
  %v11044 = vshrl.u32 %v11011, 16
  %v11046 = vrot.slane %v11044, 4
  %v11047 = vshll.u32 %v11011, 16
  %v11049 = vrot.slane %v11047, 5
  %v11050 = vor.u32 %v11046, %v11049
  %v11051 = vsel %vm895, %v11041, %v11050
  %v11053 = vshrl.u32 %v11012, 16
  %v11055 = vrot.slane %v11053, 4
  %v11056 = vshll.u32 %v11012, 16
  %v11058 = vrot.slane %v11056, 5
  %v11059 = vor.u32 %v11055, %v11058
  %v11060 = vsel %vm895, %v11050, %v11059
  %v11062 = vshrl.u32 %v11013, 16
  %v11064 = vrot.slane %v11062, 4
  %v11065 = vshll.u32 %v11013, 16
  %v11067 = vrot.slane %v11065, 5
  %v11068 = vor.u32 %v11064, %v11067
  %v11069 = vsel %vm895, %v11059, %v11068
  %v11071 = vshrl.u32 %v11014, 16
  %v11073 = vrot.slane %v11071, 4
  %v11074 = vshll.u32 %v11014, 16
  %v11076 = vrot.slane %v11074, 5
  %v11077 = vor.u32 %v11073, %v11076
  %v11078 = vsel %vm895, %v11068, %v11077
  %v11080 = vshrl.u32 %v11015, 16
  %v11082 = vrot.slane %v11080, 4
  %v11083 = vshll.u32 %v11015, 16
  %v11085 = vrot.slane %v11083, 5
  %v11086 = vor.u32 %v11082, %v11085
  %v11087 = vsel %vm895, %v11077, %v11086
  %v11089 = vshrl.u32 %v11016, 16
  %v11091 = vrot.slane %v11089, 4
  %v11092 = vshll.u32 %v11016, 16
  %v11094 = vrot.slane %v11092, 5
  %v11095 = vor.u32 %v11091, %v11094
  %v11096 = vsel %vm895, %v11086, %v11095
  %v11098 = vshrl.u32 %v11017, 16
  %v11100 = vrot.slane %v11098, 4
  %v11101 = vshll.u32 %v11017, 16
  %v11103 = vrot.slane %v11101, 5
  %v11104 = vor.u32 %v11100, %v11103
  %v11105 = vsel %vm895, %v11095, %v11104
  %v11107 = vshrl.u32 %v11018, 16
  %v11109 = vrot.slane %v11107, 4
  %v11110 = vshll.u32 %v11018, 16
  %v11112 = vrot.slane %v11110, 5
  %v11113 = vor.u32 %v11109, %v11112
  %v11114 = vsel %vm895, %v11104, %v11113
  %v11116 = vshrl.u32 %v11019, 16
  %v11118 = vrot.slane %v11116, 4
  %v11119 = vshll.u32 %v11019, 16
  %v11121 = vrot.slane %v11119, 5
  %v11122 = vor.u32 %v11118, %v11121
  %v11123 = vsel %vm895, %v11113, %v11122
  %v11125 = vshrl.u32 %v11020, 16
  %v11127 = vrot.slane %v11125, 4
  %v11128 = vshll.u32 %v11020, 16
  %v11130 = vrot.slane %v11128, 5
  %v11131 = vor.u32 %v11127, %v11130
  %v11132 = vsel %vm895, %v11122, %v11131
  %v11134 = vshrl.u32 %v11021, 16
  %v11136 = vrot.slane %v11134, 4
  %v11137 = vshll.u32 %v11021, 16
  %v11139 = vrot.slane %v11137, 5
  %v11140 = vor.u32 %v11136, %v11139
  %v11141 = vsel %vm895, %v11131, %v11140
  %v11143 = vshrl.u32 %v11022, 16
  %v11145 = vrot.slane %v11143, 4
  %v11146 = vshll.u32 %v11022, 16
  %v11148 = vrot.slane %v11146, 5
  %v11149 = vor.u32 %v11145, %v11148
  %v11150 = vsel %vm895, %v11140, %v11149
  %v11152 = vshrl.u32 %v11023, 16
  %v11154 = vrot.slane %v11152, 4
  %v11155 = vshll.u32 %v11023, 16
  %v11157 = vrot.slane %v11155, 5
  %v11158 = vor.u32 %v11154, %v11157
  %v11159 = vsel %vm895, %v11149, %v11158
  %v11161 = vshrl.u32 %v11024, 16
  %v11163 = vrot.slane %v11161, 4
  %v11164 = vshll.u32 %v11024, 16
  %v11166 = vrot.slane %v11164, 5
  %v11167 = vor.u32 %v11163, %v11166
  %v11168 = vsel %vm895, %v11158, %v11167
  %v11170 = vshrl.u32 %v11025, 16
  %v11172 = vrot.slane %v11170, 4
  %v11173 = vshll.u32 %v11025, 16
  %v11175 = vrot.slane %v11173, 5
  %v11176 = vor.u32 %v11172, %v11175
  %v11177 = vsel %vm895, %v11167, %v11176
  %11178 = vrot.lane.b32.xlu0 %v11042, 64
  %v11179 = vpop.permute.xlu0 %11178
  %11180 = vrot.lane.b32.xlu0 %v11051, 64
  %v11181 = vpop.permute.xlu0 %11180
  %11182 = vrot.lane.b32.xlu0 %v11060, 64
  %v11183 = vpop.permute.xlu0 %11182
  %11184 = vrot.lane.b32.xlu0 %v11069, 64
  %v11185 = vpop.permute.xlu0 %11184
  %11186 = vrot.lane.b32.xlu0 %v11078, 64
  %v11187 = vpop.permute.xlu0 %11186
  %11188 = vrot.lane.b32.xlu0 %v11087, 64
  %v11189 = vpop.permute.xlu0 %11188
  %11190 = vrot.lane.b32.xlu0 %v11096, 64
  %v11191 = vpop.permute.xlu0 %11190
  %11192 = vrot.lane.b32.xlu0 %v11105, 64
  %v11193 = vpop.permute.xlu0 %11192
  %11194 = vrot.lane.b32.xlu0 %v11114, 64
  %v11195 = vpop.permute.xlu0 %11194
  %11196 = vrot.lane.b32.xlu0 %v11123, 64
  %v11197 = vpop.permute.xlu0 %11196
  %11198 = vrot.lane.b32.xlu0 %v11132, 64
  %v11199 = vpop.permute.xlu0 %11198
  %11200 = vrot.lane.b32.xlu0 %v11141, 64
  %v11201 = vpop.permute.xlu0 %11200
  %11202 = vrot.lane.b32.xlu0 %v11150, 64
  %v11203 = vpop.permute.xlu0 %11202
  %11204 = vrot.lane.b32.xlu0 %v11159, 64
  %v11205 = vpop.permute.xlu0 %11204
  %11206 = vrot.lane.b32.xlu0 %v11168, 64
  %v11207 = vpop.permute.xlu0 %11206
  %11208 = vrot.lane.b32.xlu0 %v11177, 64
  %v11209 = vpop.permute.xlu0 %11208
  %11226 = vst.msk [vmem:[#allocation4 + $0x180] sm:$0xff] %vm9427, %v11179
  %11227 = vst.msk [vmem:[#allocation4 + $0x198] sm:$0xff] %vm9427, %v11181
  %11228 = vst.msk [vmem:[#allocation4 + $0x1b0] sm:$0xff] %vm9427, %v11183
  %11229 = vst.msk [vmem:[#allocation4 + $0x1c8] sm:$0xff] %vm9427, %v11185
  %11230 = vst.msk [vmem:[#allocation4 + $0x1e0] sm:$0xff] %vm9427, %v11187
  %11231 = vst.msk [vmem:[#allocation4 + $0x1f8] sm:$0xff] %vm9427, %v11189
  %11232 = vst.msk [vmem:[#allocation4 + $0x210] sm:$0xff] %vm9427, %v11191
  %11233 = vst.msk [vmem:[#allocation4 + $0x228] sm:$0xff] %vm9427, %v11193
  %11234 = vst.msk [vmem:[#allocation4 + $0x240] sm:$0xff] %vm9427, %v11195
  %11235 = vst.msk [vmem:[#allocation4 + $0x258] sm:$0xff] %vm9427, %v11197
  %11236 = vst.msk [vmem:[#allocation4 + $0x270] sm:$0xff] %vm9427, %v11199
  %11237 = vst.msk [vmem:[#allocation4 + $0x288] sm:$0xff] %vm9427, %v11201
  %11238 = vst.msk [vmem:[#allocation4 + $0x2a0] sm:$0xff] %vm9427, %v11203
  %11239 = vst.msk [vmem:[#allocation4 + $0x2b8] sm:$0xff] %vm9427, %v11205
  %11240 = vst.msk [vmem:[#allocation4 + $0x2d0] sm:$0xff] %vm9427, %v11207
  %11241 = vst.msk [vmem:[#allocation4 + $0x2e8] sm:$0xff] %vm9427, %v11209
  %v11242 = vld [vmem:[#allocation3 + $0xa0] sm:$0xf8]
  %v11243 = vld [vmem:[#allocation3 + $0xa8] sm:$0xff]
  %v11244 = vld [vmem:[#allocation3 + $0xb0] sm:$0xff]
  %v11245 = vld [vmem:[#allocation3 + $0xb8] sm:$0xff]
  %v11246 = vld [vmem:[#allocation3 + $0xc0] sm:$0xff]
  %v11247 = vld [vmem:[#allocation3 + $0xc8] sm:$0xff]
  %v11248 = vld [vmem:[#allocation3 + $0xd0] sm:$0xff]
  %v11249 = vld [vmem:[#allocation3 + $0xd8] sm:$0xff]
  %v11250 = vld [vmem:[#allocation3 + $0xe0] sm:$0xff]
  %v11251 = vld [vmem:[#allocation3 + $0xe8] sm:$0xff]
  %v11252 = vld [vmem:[#allocation3 + $0xf0] sm:$0xff]
  %v11253 = vld [vmem:[#allocation3 + $0xf8] sm:$0xff]
  %v11254 = vld [vmem:[#allocation3 + $0x100] sm:$0xff]
  %v11255 = vld [vmem:[#allocation3 + $0x108] sm:$0xff]
  %v11256 = vld [vmem:[#allocation3 + $0x110] sm:$0xff]
  %v11257 = vld [vmem:[#allocation3 + $0x118] sm:$0xff]
  %v11258 = vld [vmem:[#allocation3 + $0x120] sm:$0xf]
  %v11259 = vmul.bf16 %v11242, %v8467
  %v11260 = vmul.bf16 %v11243, %v8476
  %v11261 = vmul.bf16 %v11244, %v8485
  %v11262 = vmul.bf16 %v11245, %v8494
  %v11263 = vmul.bf16 %v11246, %v8503
  %v11264 = vmul.bf16 %v11247, %v8512
  %v11265 = vmul.bf16 %v11248, %v8521
  %v11266 = vmul.bf16 %v11249, %v8530
  %v11267 = vmul.bf16 %v11250, %v8539
  %v11268 = vmul.bf16 %v11251, %v8548
  %v11269 = vmul.bf16 %v11252, %v8557
  %v11270 = vmul.bf16 %v11253, %v8566
  %v11271 = vmul.bf16 %v11254, %v8575
  %v11272 = vmul.bf16 %v11255, %v8584
  %v11273 = vmul.bf16 %v11256, %v8593
  %v11274 = vmul.bf16 %v11257, %v8602
  %v11275 = vmul.bf16 %v11258, %v8601
  %v11277 = vshrl.u32 %v11259, 16
  %v11279 = vrot.slane %v11277, 3
  %v11280 = vshll.u32 %v11259, 16
  %v11282 = vrot.slane %v11280, 4
  %v11283 = vor.u32 %v11279, %v11282
  %v11285 = vshrl.u32 %v11260, 16
  %v11287 = vrot.slane %v11285, 3
  %v11288 = vshll.u32 %v11260, 16
  %v11290 = vrot.slane %v11288, 4
  %v11291 = vor.u32 %v11287, %v11290
  %v11292 = vsel %vm1366, %v11283, %v11291
  %v11294 = vshrl.u32 %v11261, 16
  %v11296 = vrot.slane %v11294, 3
  %v11297 = vshll.u32 %v11261, 16
  %v11299 = vrot.slane %v11297, 4
  %v11300 = vor.u32 %v11296, %v11299
  %v11301 = vsel %vm1366, %v11291, %v11300
  %v11303 = vshrl.u32 %v11262, 16
  %v11305 = vrot.slane %v11303, 3
  %v11306 = vshll.u32 %v11262, 16
  %v11308 = vrot.slane %v11306, 4
  %v11309 = vor.u32 %v11305, %v11308
  %v11310 = vsel %vm1366, %v11300, %v11309
  %v11312 = vshrl.u32 %v11263, 16
  %v11314 = vrot.slane %v11312, 3
  %v11315 = vshll.u32 %v11263, 16
  %v11317 = vrot.slane %v11315, 4
  %v11318 = vor.u32 %v11314, %v11317
  %v11319 = vsel %vm1366, %v11309, %v11318
  %v11321 = vshrl.u32 %v11264, 16
  %v11323 = vrot.slane %v11321, 3
  %v11324 = vshll.u32 %v11264, 16
  %v11326 = vrot.slane %v11324, 4
  %v11327 = vor.u32 %v11323, %v11326
  %v11328 = vsel %vm1366, %v11318, %v11327
  %v11330 = vshrl.u32 %v11265, 16
  %v11332 = vrot.slane %v11330, 3
  %v11333 = vshll.u32 %v11265, 16
  %v11335 = vrot.slane %v11333, 4
  %v11336 = vor.u32 %v11332, %v11335
  %v11337 = vsel %vm1366, %v11327, %v11336
  %v11339 = vshrl.u32 %v11266, 16
  %v11341 = vrot.slane %v11339, 3
  %v11342 = vshll.u32 %v11266, 16
  %v11344 = vrot.slane %v11342, 4
  %v11345 = vor.u32 %v11341, %v11344
  %v11346 = vsel %vm1366, %v11336, %v11345
  %v11348 = vshrl.u32 %v11267, 16
  %v11350 = vrot.slane %v11348, 3
  %v11351 = vshll.u32 %v11267, 16
  %v11353 = vrot.slane %v11351, 4
  %v11354 = vor.u32 %v11350, %v11353
  %v11355 = vsel %vm1366, %v11345, %v11354
  %v11357 = vshrl.u32 %v11268, 16
  %v11359 = vrot.slane %v11357, 3
  %v11360 = vshll.u32 %v11268, 16
  %v11362 = vrot.slane %v11360, 4
  %v11363 = vor.u32 %v11359, %v11362
  %v11364 = vsel %vm1366, %v11354, %v11363
  %v11366 = vshrl.u32 %v11269, 16
  %v11368 = vrot.slane %v11366, 3
  %v11369 = vshll.u32 %v11269, 16
  %v11371 = vrot.slane %v11369, 4
  %v11372 = vor.u32 %v11368, %v11371
  %v11373 = vsel %vm1366, %v11363, %v11372
  %v11375 = vshrl.u32 %v11270, 16
  %v11377 = vrot.slane %v11375, 3
  %v11378 = vshll.u32 %v11270, 16
  %v11380 = vrot.slane %v11378, 4
  %v11381 = vor.u32 %v11377, %v11380
  %v11382 = vsel %vm1366, %v11372, %v11381
  %v11384 = vshrl.u32 %v11271, 16
  %v11386 = vrot.slane %v11384, 3
  %v11387 = vshll.u32 %v11271, 16
  %v11389 = vrot.slane %v11387, 4
  %v11390 = vor.u32 %v11386, %v11389
  %v11391 = vsel %vm1366, %v11381, %v11390
  %v11393 = vshrl.u32 %v11272, 16
  %v11395 = vrot.slane %v11393, 3
  %v11396 = vshll.u32 %v11272, 16
  %v11398 = vrot.slane %v11396, 4
  %v11399 = vor.u32 %v11395, %v11398
  %v11400 = vsel %vm1366, %v11390, %v11399
  %v11402 = vshrl.u32 %v11273, 16
  %v11404 = vrot.slane %v11402, 3
  %v11405 = vshll.u32 %v11273, 16
  %v11407 = vrot.slane %v11405, 4
  %v11408 = vor.u32 %v11404, %v11407
  %v11409 = vsel %vm1366, %v11399, %v11408
  %v11411 = vshrl.u32 %v11274, 16
  %v11413 = vrot.slane %v11411, 3
  %v11414 = vshll.u32 %v11274, 16
  %v11416 = vrot.slane %v11414, 4
  %v11417 = vor.u32 %v11413, %v11416
  %v11418 = vsel %vm1366, %v11408, %v11417
  %v11420 = vshrl.u32 %v11275, 16
  %v11422 = vrot.slane %v11420, 3
  %v11423 = vshll.u32 %v11275, 16
  %v11425 = vrot.slane %v11423, 4
  %v11426 = vor.u32 %v11422, %v11425
  %v11427 = vsel %vm1366, %v11417, %v11426
  %11428 = vrot.lane.b32.xlu0 %v11292, 96
  %v11429 = vpop.permute.xlu0 %11428
  %11430 = vrot.lane.b32.xlu0 %v11301, 96
  %v11431 = vpop.permute.xlu0 %11430
  %11432 = vrot.lane.b32.xlu0 %v11310, 96
  %v11433 = vpop.permute.xlu0 %11432
  %11434 = vrot.lane.b32.xlu0 %v11319, 96
  %v11435 = vpop.permute.xlu0 %11434
  %11436 = vrot.lane.b32.xlu0 %v11328, 96
  %v11437 = vpop.permute.xlu0 %11436
  %11438 = vrot.lane.b32.xlu0 %v11337, 96
  %v11439 = vpop.permute.xlu0 %11438
  %11440 = vrot.lane.b32.xlu0 %v11346, 96
  %v11441 = vpop.permute.xlu0 %11440
  %11442 = vrot.lane.b32.xlu0 %v11355, 96
  %v11443 = vpop.permute.xlu0 %11442
  %11444 = vrot.lane.b32.xlu0 %v11364, 96
  %v11445 = vpop.permute.xlu0 %11444
  %11446 = vrot.lane.b32.xlu0 %v11373, 96
  %v11447 = vpop.permute.xlu0 %11446
  %11448 = vrot.lane.b32.xlu0 %v11382, 96
  %v11449 = vpop.permute.xlu0 %11448
  %11450 = vrot.lane.b32.xlu0 %v11391, 96
  %v11451 = vpop.permute.xlu0 %11450
  %11452 = vrot.lane.b32.xlu0 %v11400, 96
  %v11453 = vpop.permute.xlu0 %11452
  %11454 = vrot.lane.b32.xlu0 %v11409, 96
  %v11455 = vpop.permute.xlu0 %11454
  %11456 = vrot.lane.b32.xlu0 %v11418, 96
  %v11457 = vpop.permute.xlu0 %11456
  %11458 = vrot.lane.b32.xlu0 %v11427, 96
  %v11459 = vpop.permute.xlu0 %11458
  %11476 = vst.msk [vmem:[#allocation4 + $0x180] sm:$0xff] %vm9678, %v11429
  %11477 = vst.msk [vmem:[#allocation4 + $0x198] sm:$0xff] %vm9678, %v11431
  %11478 = vst.msk [vmem:[#allocation4 + $0x1b0] sm:$0xff] %vm9678, %v11433
  %11479 = vst.msk [vmem:[#allocation4 + $0x1c8] sm:$0xff] %vm9678, %v11435
  %11480 = vst.msk [vmem:[#allocation4 + $0x1e0] sm:$0xff] %vm9678, %v11437
  %11481 = vst.msk [vmem:[#allocation4 + $0x1f8] sm:$0xff] %vm9678, %v11439
  %11482 = vst.msk [vmem:[#allocation4 + $0x210] sm:$0xff] %vm9678, %v11441
  %11483 = vst.msk [vmem:[#allocation4 + $0x228] sm:$0xff] %vm9678, %v11443
  %11484 = vst.msk [vmem:[#allocation4 + $0x240] sm:$0xff] %vm9678, %v11445
  %11485 = vst.msk [vmem:[#allocation4 + $0x258] sm:$0xff] %vm9678, %v11447
  %11486 = vst.msk [vmem:[#allocation4 + $0x270] sm:$0xff] %vm9678, %v11449
  %11487 = vst.msk [vmem:[#allocation4 + $0x288] sm:$0xff] %vm9678, %v11451
  %11488 = vst.msk [vmem:[#allocation4 + $0x2a0] sm:$0xff] %vm9678, %v11453
  %11489 = vst.msk [vmem:[#allocation4 + $0x2b8] sm:$0xff] %vm9678, %v11455
  %11490 = vst.msk [vmem:[#allocation4 + $0x2d0] sm:$0xff] %vm9678, %v11457
  %11491 = vst.msk [vmem:[#allocation4 + $0x2e8] sm:$0xff] %vm9678, %v11459
  %v11492 = vld [vmem:[#allocation3 + $0xa0] sm:$0xf0]
  %v11493 = vld [vmem:[#allocation3 + $0xa8] sm:$0xff]
  %v11494 = vld [vmem:[#allocation3 + $0xb0] sm:$0xff]
  %v11495 = vld [vmem:[#allocation3 + $0xb8] sm:$0xff]
  %v11496 = vld [vmem:[#allocation3 + $0xc0] sm:$0xff]
  %v11497 = vld [vmem:[#allocation3 + $0xc8] sm:$0xff]
  %v11498 = vld [vmem:[#allocation3 + $0xd0] sm:$0xff]
  %v11499 = vld [vmem:[#allocation3 + $0xd8] sm:$0xff]
  %v11500 = vld [vmem:[#allocation3 + $0xe0] sm:$0xff]
  %v11501 = vld [vmem:[#allocation3 + $0xe8] sm:$0xff]
  %v11502 = vld [vmem:[#allocation3 + $0xf0] sm:$0xff]
  %v11503 = vld [vmem:[#allocation3 + $0xf8] sm:$0xff]
  %v11504 = vld [vmem:[#allocation3 + $0x100] sm:$0xff]
  %v11505 = vld [vmem:[#allocation3 + $0x108] sm:$0xff]
  %v11506 = vld [vmem:[#allocation3 + $0x110] sm:$0xff]
  %v11507 = vld [vmem:[#allocation3 + $0x118] sm:$0xff]
  %v11508 = vld [vmem:[#allocation3 + $0x120] sm:$0xf]
  %v11526 = vrot.slane %v11492, 4
  %v11527 = vrot.slane %v11493, 4
  %v11528 = vsel %vm8212, %v11526, %v11527
  %v11529 = vrot.slane %v11494, 4
  %v11530 = vsel %vm8212, %v11527, %v11529
  %v11531 = vrot.slane %v11495, 4
  %v11532 = vsel %vm8212, %v11529, %v11531
  %v11533 = vrot.slane %v11496, 4
  %v11534 = vsel %vm8212, %v11531, %v11533
  %v11535 = vrot.slane %v11497, 4
  %v11536 = vsel %vm8212, %v11533, %v11535
  %v11537 = vrot.slane %v11498, 4
  %v11538 = vsel %vm8212, %v11535, %v11537
  %v11539 = vrot.slane %v11499, 4
  %v11540 = vsel %vm8212, %v11537, %v11539
  %v11541 = vrot.slane %v11500, 4
  %v11542 = vsel %vm8212, %v11539, %v11541
  %v11543 = vrot.slane %v11501, 4
  %v11544 = vsel %vm8212, %v11541, %v11543
  %v11545 = vrot.slane %v11502, 4
  %v11546 = vsel %vm8212, %v11543, %v11545
  %v11547 = vrot.slane %v11503, 4
  %v11548 = vsel %vm8212, %v11545, %v11547
  %v11549 = vrot.slane %v11504, 4
  %v11550 = vsel %vm8212, %v11547, %v11549
  %v11551 = vrot.slane %v11505, 4
  %v11552 = vsel %vm8212, %v11549, %v11551
  %v11553 = vrot.slane %v11506, 4
  %v11554 = vsel %vm8212, %v11551, %v11553
  %v11555 = vrot.slane %v11507, 4
  %v11556 = vsel %vm8212, %v11553, %v11555
  %v11557 = vrot.slane %v11508, 4
  %v11558 = vsel %vm8212, %v11555, %v11557
  %11575 = vst.msk [vmem:[#allocation4 + $0x188] sm:$0xff] %vm8189, %v11528
  %11576 = vst.msk [vmem:[#allocation4 + $0x1a0] sm:$0xff] %vm8189, %v11530
  %11577 = vst.msk [vmem:[#allocation4 + $0x1b8] sm:$0xff] %vm8189, %v11532
  %11578 = vst.msk [vmem:[#allocation4 + $0x1d0] sm:$0xff] %vm8189, %v11534
  %11579 = vst.msk [vmem:[#allocation4 + $0x1e8] sm:$0xff] %vm8189, %v11536
  %11580 = vst.msk [vmem:[#allocation4 + $0x200] sm:$0xff] %vm8189, %v11538
  %11581 = vst.msk [vmem:[#allocation4 + $0x218] sm:$0xff] %vm8189, %v11540
  %11582 = vst.msk [vmem:[#allocation4 + $0x230] sm:$0xff] %vm8189, %v11542
  %11583 = vst.msk [vmem:[#allocation4 + $0x248] sm:$0xff] %vm8189, %v11544
  %11584 = vst.msk [vmem:[#allocation4 + $0x260] sm:$0xff] %vm8189, %v11546
  %11585 = vst.msk [vmem:[#allocation4 + $0x278] sm:$0xff] %vm8189, %v11548
  %11586 = vst.msk [vmem:[#allocation4 + $0x290] sm:$0xff] %vm8189, %v11550
  %11587 = vst.msk [vmem:[#allocation4 + $0x2a8] sm:$0xff] %vm8189, %v11552
  %11588 = vst.msk [vmem:[#allocation4 + $0x2c0] sm:$0xff] %vm8189, %v11554
  %11589 = vst.msk [vmem:[#allocation4 + $0x2d8] sm:$0xff] %vm8189, %v11556
  %11590 = vst.msk [vmem:[#allocation4 + $0x2f0] sm:$0xff] %vm8189, %v11558
  %v11591 = vld [vmem:[#allocation3 + $0xa0] sm:$0xf0]
  %v11592 = vld [vmem:[#allocation3 + $0xa8] sm:$0xff]
  %v11593 = vld [vmem:[#allocation3 + $0xb0] sm:$0xff]
  %v11594 = vld [vmem:[#allocation3 + $0xb8] sm:$0xff]
  %v11595 = vld [vmem:[#allocation3 + $0xc0] sm:$0xff]
  %v11596 = vld [vmem:[#allocation3 + $0xc8] sm:$0xff]
  %v11597 = vld [vmem:[#allocation3 + $0xd0] sm:$0xff]
  %v11598 = vld [vmem:[#allocation3 + $0xd8] sm:$0xff]
  %v11599 = vld [vmem:[#allocation3 + $0xe0] sm:$0xff]
  %v11600 = vld [vmem:[#allocation3 + $0xe8] sm:$0xff]
  %v11601 = vld [vmem:[#allocation3 + $0xf0] sm:$0xff]
  %v11602 = vld [vmem:[#allocation3 + $0xf8] sm:$0xff]
  %v11603 = vld [vmem:[#allocation3 + $0x100] sm:$0xff]
  %v11604 = vld [vmem:[#allocation3 + $0x108] sm:$0xff]
  %v11605 = vld [vmem:[#allocation3 + $0x110] sm:$0xff]
  %v11606 = vld [vmem:[#allocation3 + $0x118] sm:$0xff]
  %v11607 = vld [vmem:[#allocation3 + $0x120] sm:$0x1f]
  %v11608 = vmul.bf16 %v11591, %v9057
  %v11609 = vmul.bf16 %v11592, %v9066
  %v11610 = vmul.bf16 %v11593, %v9075
  %v11611 = vmul.bf16 %v11594, %v9084
  %v11612 = vmul.bf16 %v11595, %v9093
  %v11613 = vmul.bf16 %v11596, %v9102
  %v11614 = vmul.bf16 %v11597, %v9111
  %v11615 = vmul.bf16 %v11598, %v9120
  %v11616 = vmul.bf16 %v11599, %v9129
  %v11617 = vmul.bf16 %v11600, %v9138
  %v11618 = vmul.bf16 %v11601, %v9147
  %v11619 = vmul.bf16 %v11602, %v9156
  %v11620 = vmul.bf16 %v11603, %v9165
  %v11621 = vmul.bf16 %v11604, %v9174
  %v11622 = vmul.bf16 %v11605, %v9183
  %v11623 = vmul.bf16 %v11606, %v9192
  %v11624 = vmul.bf16 %v11607, %v9191
  %v11626 = vshrl.u32 %v11608, 16
  %v11628 = vrot.slane %v11626, 4
  %v11629 = vshll.u32 %v11608, 16
  %v11631 = vrot.slane %v11629, 5
  %v11632 = vor.u32 %v11628, %v11631
  %v11634 = vshrl.u32 %v11609, 16
  %v11636 = vrot.slane %v11634, 4
  %v11637 = vshll.u32 %v11609, 16
  %v11639 = vrot.slane %v11637, 5
  %v11640 = vor.u32 %v11636, %v11639
  %v11641 = vsel %vm895, %v11632, %v11640
  %v11643 = vshrl.u32 %v11610, 16
  %v11645 = vrot.slane %v11643, 4
  %v11646 = vshll.u32 %v11610, 16
  %v11648 = vrot.slane %v11646, 5
  %v11649 = vor.u32 %v11645, %v11648
  %v11650 = vsel %vm895, %v11640, %v11649
  %v11652 = vshrl.u32 %v11611, 16
  %v11654 = vrot.slane %v11652, 4
  %v11655 = vshll.u32 %v11611, 16
  %v11657 = vrot.slane %v11655, 5
  %v11658 = vor.u32 %v11654, %v11657
  %v11659 = vsel %vm895, %v11649, %v11658
  %v11661 = vshrl.u32 %v11612, 16
  %v11663 = vrot.slane %v11661, 4
  %v11664 = vshll.u32 %v11612, 16
  %v11666 = vrot.slane %v11664, 5
  %v11667 = vor.u32 %v11663, %v11666
  %v11668 = vsel %vm895, %v11658, %v11667
  %v11670 = vshrl.u32 %v11613, 16
  %v11672 = vrot.slane %v11670, 4
  %v11673 = vshll.u32 %v11613, 16
  %v11675 = vrot.slane %v11673, 5
  %v11676 = vor.u32 %v11672, %v11675
  %v11677 = vsel %vm895, %v11667, %v11676
  %v11679 = vshrl.u32 %v11614, 16
  %v11681 = vrot.slane %v11679, 4
  %v11682 = vshll.u32 %v11614, 16
  %v11684 = vrot.slane %v11682, 5
  %v11685 = vor.u32 %v11681, %v11684
  %v11686 = vsel %vm895, %v11676, %v11685
  %v11688 = vshrl.u32 %v11615, 16
  %v11690 = vrot.slane %v11688, 4
  %v11691 = vshll.u32 %v11615, 16
  %v11693 = vrot.slane %v11691, 5
  %v11694 = vor.u32 %v11690, %v11693
  %v11695 = vsel %vm895, %v11685, %v11694
  %v11697 = vshrl.u32 %v11616, 16
  %v11699 = vrot.slane %v11697, 4
  %v11700 = vshll.u32 %v11616, 16
  %v11702 = vrot.slane %v11700, 5
  %v11703 = vor.u32 %v11699, %v11702
  %v11704 = vsel %vm895, %v11694, %v11703
  %v11706 = vshrl.u32 %v11617, 16
  %v11708 = vrot.slane %v11706, 4
  %v11709 = vshll.u32 %v11617, 16
  %v11711 = vrot.slane %v11709, 5
  %v11712 = vor.u32 %v11708, %v11711
  %v11713 = vsel %vm895, %v11703, %v11712
  %v11715 = vshrl.u32 %v11618, 16
  %v11717 = vrot.slane %v11715, 4
  %v11718 = vshll.u32 %v11618, 16
  %v11720 = vrot.slane %v11718, 5
  %v11721 = vor.u32 %v11717, %v11720
  %v11722 = vsel %vm895, %v11712, %v11721
  %v11724 = vshrl.u32 %v11619, 16
  %v11726 = vrot.slane %v11724, 4
  %v11727 = vshll.u32 %v11619, 16
  %v11729 = vrot.slane %v11727, 5
  %v11730 = vor.u32 %v11726, %v11729
  %v11731 = vsel %vm895, %v11721, %v11730
  %v11733 = vshrl.u32 %v11620, 16
  %v11735 = vrot.slane %v11733, 4
  %v11736 = vshll.u32 %v11620, 16
  %v11738 = vrot.slane %v11736, 5
  %v11739 = vor.u32 %v11735, %v11738
  %v11740 = vsel %vm895, %v11730, %v11739
  %v11742 = vshrl.u32 %v11621, 16
  %v11744 = vrot.slane %v11742, 4
  %v11745 = vshll.u32 %v11621, 16
  %v11747 = vrot.slane %v11745, 5
  %v11748 = vor.u32 %v11744, %v11747
  %v11749 = vsel %vm895, %v11739, %v11748
  %v11751 = vshrl.u32 %v11622, 16
  %v11753 = vrot.slane %v11751, 4
  %v11754 = vshll.u32 %v11622, 16
  %v11756 = vrot.slane %v11754, 5
  %v11757 = vor.u32 %v11753, %v11756
  %v11758 = vsel %vm895, %v11748, %v11757
  %v11760 = vshrl.u32 %v11623, 16
  %v11762 = vrot.slane %v11760, 4
  %v11763 = vshll.u32 %v11623, 16
  %v11765 = vrot.slane %v11763, 5
  %v11766 = vor.u32 %v11762, %v11765
  %v11767 = vsel %vm895, %v11757, %v11766
  %v11769 = vshrl.u32 %v11624, 16
  %v11771 = vrot.slane %v11769, 4
  %v11772 = vshll.u32 %v11624, 16
  %v11774 = vrot.slane %v11772, 5
  %v11775 = vor.u32 %v11771, %v11774
  %v11776 = vsel %vm895, %v11766, %v11775
  %11777 = vrot.lane.b32.xlu0 %v11641, 32
  %v11778 = vpop.permute.xlu0 %11777
  %11779 = vrot.lane.b32.xlu0 %v11650, 32
  %v11780 = vpop.permute.xlu0 %11779
  %11781 = vrot.lane.b32.xlu0 %v11659, 32
  %v11782 = vpop.permute.xlu0 %11781
  %11783 = vrot.lane.b32.xlu0 %v11668, 32
  %v11784 = vpop.permute.xlu0 %11783
  %11785 = vrot.lane.b32.xlu0 %v11677, 32
  %v11786 = vpop.permute.xlu0 %11785
  %11787 = vrot.lane.b32.xlu0 %v11686, 32
  %v11788 = vpop.permute.xlu0 %11787
  %11789 = vrot.lane.b32.xlu0 %v11695, 32
  %v11790 = vpop.permute.xlu0 %11789
  %11791 = vrot.lane.b32.xlu0 %v11704, 32
  %v11792 = vpop.permute.xlu0 %11791
  %11793 = vrot.lane.b32.xlu0 %v11713, 32
  %v11794 = vpop.permute.xlu0 %11793
  %11795 = vrot.lane.b32.xlu0 %v11722, 32
  %v11796 = vpop.permute.xlu0 %11795
  %11797 = vrot.lane.b32.xlu0 %v11731, 32
  %v11798 = vpop.permute.xlu0 %11797
  %11799 = vrot.lane.b32.xlu0 %v11740, 32
  %v11800 = vpop.permute.xlu0 %11799
  %11801 = vrot.lane.b32.xlu0 %v11749, 32
  %v11802 = vpop.permute.xlu0 %11801
  %11803 = vrot.lane.b32.xlu0 %v11758, 32
  %v11804 = vpop.permute.xlu0 %11803
  %11805 = vrot.lane.b32.xlu0 %v11767, 32
  %v11806 = vpop.permute.xlu0 %11805
  %11807 = vrot.lane.b32.xlu0 %v11776, 32
  %v11808 = vpop.permute.xlu0 %11807
  %11825 = vst.msk [vmem:[#allocation4 + $0x188] sm:$0xff] %vm8936, %v11778
  %11826 = vst.msk [vmem:[#allocation4 + $0x1a0] sm:$0xff] %vm8936, %v11780
  %11827 = vst.msk [vmem:[#allocation4 + $0x1b8] sm:$0xff] %vm8936, %v11782
  %11828 = vst.msk [vmem:[#allocation4 + $0x1d0] sm:$0xff] %vm8936, %v11784
  %11829 = vst.msk [vmem:[#allocation4 + $0x1e8] sm:$0xff] %vm8936, %v11786
  %11830 = vst.msk [vmem:[#allocation4 + $0x200] sm:$0xff] %vm8936, %v11788
  %11831 = vst.msk [vmem:[#allocation4 + $0x218] sm:$0xff] %vm8936, %v11790
  %11832 = vst.msk [vmem:[#allocation4 + $0x230] sm:$0xff] %vm8936, %v11792
  %11833 = vst.msk [vmem:[#allocation4 + $0x248] sm:$0xff] %vm8936, %v11794
  %11834 = vst.msk [vmem:[#allocation4 + $0x260] sm:$0xff] %vm8936, %v11796
  %11835 = vst.msk [vmem:[#allocation4 + $0x278] sm:$0xff] %vm8936, %v11798
  %11836 = vst.msk [vmem:[#allocation4 + $0x290] sm:$0xff] %vm8936, %v11800
  %11837 = vst.msk [vmem:[#allocation4 + $0x2a8] sm:$0xff] %vm8936, %v11802
  %11838 = vst.msk [vmem:[#allocation4 + $0x2c0] sm:$0xff] %vm8936, %v11804
  %11839 = vst.msk [vmem:[#allocation4 + $0x2d8] sm:$0xff] %vm8936, %v11806
  %11840 = vst.msk [vmem:[#allocation4 + $0x2f0] sm:$0xff] %vm8936, %v11808
  %v11841 = vld [vmem:[#allocation3 + $0xa8] sm:$0xf8]
  %v11842 = vld [vmem:[#allocation3 + $0xb0] sm:$0xff]
  %v11843 = vld [vmem:[#allocation3 + $0xb8] sm:$0xff]
  %v11844 = vld [vmem:[#allocation3 + $0xc0] sm:$0xff]
  %v11845 = vld [vmem:[#allocation3 + $0xc8] sm:$0xff]
  %v11846 = vld [vmem:[#allocation3 + $0xd0] sm:$0xff]
  %v11847 = vld [vmem:[#allocation3 + $0xd8] sm:$0xff]
  %v11848 = vld [vmem:[#allocation3 + $0xe0] sm:$0xff]
  %v11849 = vld [vmem:[#allocation3 + $0xe8] sm:$0xff]
  %v11850 = vld [vmem:[#allocation3 + $0xf0] sm:$0xff]
  %v11851 = vld [vmem:[#allocation3 + $0xf8] sm:$0xff]
  %v11852 = vld [vmem:[#allocation3 + $0x100] sm:$0xff]
  %v11853 = vld [vmem:[#allocation3 + $0x108] sm:$0xff]
  %v11854 = vld [vmem:[#allocation3 + $0x110] sm:$0xff]
  %v11855 = vld [vmem:[#allocation3 + $0x118] sm:$0xff]
  %v11856 = vld [vmem:[#allocation3 + $0x120] sm:$0xff]
  %v11857 = vld [vmem:[#allocation3 + $0x128] sm:$0xf]
  %v11858 = vmul.bf16 %v11841, %v8467
  %v11859 = vmul.bf16 %v11842, %v8476
  %v11860 = vmul.bf16 %v11843, %v8485
  %v11861 = vmul.bf16 %v11844, %v8494
  %v11862 = vmul.bf16 %v11845, %v8503
  %v11863 = vmul.bf16 %v11846, %v8512
  %v11864 = vmul.bf16 %v11847, %v8521
  %v11865 = vmul.bf16 %v11848, %v8530
  %v11866 = vmul.bf16 %v11849, %v8539
  %v11867 = vmul.bf16 %v11850, %v8548
  %v11868 = vmul.bf16 %v11851, %v8557
  %v11869 = vmul.bf16 %v11852, %v8566
  %v11870 = vmul.bf16 %v11853, %v8575
  %v11871 = vmul.bf16 %v11854, %v8584
  %v11872 = vmul.bf16 %v11855, %v8593
  %v11873 = vmul.bf16 %v11856, %v8602
  %v11874 = vmul.bf16 %v11857, %v8601
  %v11876 = vshrl.u32 %v11858, 16
  %v11878 = vrot.slane %v11876, 3
  %v11879 = vshll.u32 %v11858, 16
  %v11881 = vrot.slane %v11879, 4
  %v11882 = vor.u32 %v11878, %v11881
  %v11884 = vshrl.u32 %v11859, 16
  %v11886 = vrot.slane %v11884, 3
  %v11887 = vshll.u32 %v11859, 16
  %v11889 = vrot.slane %v11887, 4
  %v11890 = vor.u32 %v11886, %v11889
  %v11891 = vsel %vm1366, %v11882, %v11890
  %v11893 = vshrl.u32 %v11860, 16
  %v11895 = vrot.slane %v11893, 3
  %v11896 = vshll.u32 %v11860, 16
  %v11898 = vrot.slane %v11896, 4
  %v11899 = vor.u32 %v11895, %v11898
  %v11900 = vsel %vm1366, %v11890, %v11899
  %v11902 = vshrl.u32 %v11861, 16
  %v11904 = vrot.slane %v11902, 3
  %v11905 = vshll.u32 %v11861, 16
  %v11907 = vrot.slane %v11905, 4
  %v11908 = vor.u32 %v11904, %v11907
  %v11909 = vsel %vm1366, %v11899, %v11908
  %v11911 = vshrl.u32 %v11862, 16
  %v11913 = vrot.slane %v11911, 3
  %v11914 = vshll.u32 %v11862, 16
  %v11916 = vrot.slane %v11914, 4
  %v11917 = vor.u32 %v11913, %v11916
  %v11918 = vsel %vm1366, %v11908, %v11917
  %v11920 = vshrl.u32 %v11863, 16
  %v11922 = vrot.slane %v11920, 3
  %v11923 = vshll.u32 %v11863, 16
  %v11925 = vrot.slane %v11923, 4
  %v11926 = vor.u32 %v11922, %v11925
  %v11927 = vsel %vm1366, %v11917, %v11926
  %v11929 = vshrl.u32 %v11864, 16
  %v11931 = vrot.slane %v11929, 3
  %v11932 = vshll.u32 %v11864, 16
  %v11934 = vrot.slane %v11932, 4
  %v11935 = vor.u32 %v11931, %v11934
  %v11936 = vsel %vm1366, %v11926, %v11935
  %v11938 = vshrl.u32 %v11865, 16
  %v11940 = vrot.slane %v11938, 3
  %v11941 = vshll.u32 %v11865, 16
  %v11943 = vrot.slane %v11941, 4
  %v11944 = vor.u32 %v11940, %v11943
  %v11945 = vsel %vm1366, %v11935, %v11944
  %v11947 = vshrl.u32 %v11866, 16
  %v11949 = vrot.slane %v11947, 3
  %v11950 = vshll.u32 %v11866, 16
  %v11952 = vrot.slane %v11950, 4
  %v11953 = vor.u32 %v11949, %v11952
  %v11954 = vsel %vm1366, %v11944, %v11953
  %v11956 = vshrl.u32 %v11867, 16
  %v11958 = vrot.slane %v11956, 3
  %v11959 = vshll.u32 %v11867, 16
  %v11961 = vrot.slane %v11959, 4
  %v11962 = vor.u32 %v11958, %v11961
  %v11963 = vsel %vm1366, %v11953, %v11962
  %v11965 = vshrl.u32 %v11868, 16
  %v11967 = vrot.slane %v11965, 3
  %v11968 = vshll.u32 %v11868, 16
  %v11970 = vrot.slane %v11968, 4
  %v11971 = vor.u32 %v11967, %v11970
  %v11972 = vsel %vm1366, %v11962, %v11971
  %v11974 = vshrl.u32 %v11869, 16
  %v11976 = vrot.slane %v11974, 3
  %v11977 = vshll.u32 %v11869, 16
  %v11979 = vrot.slane %v11977, 4
  %v11980 = vor.u32 %v11976, %v11979
  %v11981 = vsel %vm1366, %v11971, %v11980
  %v11983 = vshrl.u32 %v11870, 16
  %v11985 = vrot.slane %v11983, 3
  %v11986 = vshll.u32 %v11870, 16
  %v11988 = vrot.slane %v11986, 4
  %v11989 = vor.u32 %v11985, %v11988
  %v11990 = vsel %vm1366, %v11980, %v11989
  %v11992 = vshrl.u32 %v11871, 16
  %v11994 = vrot.slane %v11992, 3
  %v11995 = vshll.u32 %v11871, 16
  %v11997 = vrot.slane %v11995, 4
  %v11998 = vor.u32 %v11994, %v11997
  %v11999 = vsel %vm1366, %v11989, %v11998
  %v12001 = vshrl.u32 %v11872, 16
  %v12003 = vrot.slane %v12001, 3
  %v12004 = vshll.u32 %v11872, 16
  %v12006 = vrot.slane %v12004, 4
  %v12007 = vor.u32 %v12003, %v12006
  %v12008 = vsel %vm1366, %v11998, %v12007
  %v12010 = vshrl.u32 %v11873, 16
  %v12012 = vrot.slane %v12010, 3
  %v12013 = vshll.u32 %v11873, 16
  %v12015 = vrot.slane %v12013, 4
  %v12016 = vor.u32 %v12012, %v12015
  %v12017 = vsel %vm1366, %v12007, %v12016
  %v12019 = vshrl.u32 %v11874, 16
  %v12021 = vrot.slane %v12019, 3
  %v12022 = vshll.u32 %v11874, 16
  %v12024 = vrot.slane %v12022, 4
  %v12025 = vor.u32 %v12021, %v12024
  %v12026 = vsel %vm1366, %v12016, %v12025
  %12027 = vrot.lane.b32.xlu0 %v11891, 64
  %v12028 = vpop.permute.xlu0 %12027
  %12029 = vrot.lane.b32.xlu0 %v11900, 64
  %v12030 = vpop.permute.xlu0 %12029
  %12031 = vrot.lane.b32.xlu0 %v11909, 64
  %v12032 = vpop.permute.xlu0 %12031
  %12033 = vrot.lane.b32.xlu0 %v11918, 64
  %v12034 = vpop.permute.xlu0 %12033
  %12035 = vrot.lane.b32.xlu0 %v11927, 64
  %v12036 = vpop.permute.xlu0 %12035
  %12037 = vrot.lane.b32.xlu0 %v11936, 64
  %v12038 = vpop.permute.xlu0 %12037
  %12039 = vrot.lane.b32.xlu0 %v11945, 64
  %v12040 = vpop.permute.xlu0 %12039
  %12041 = vrot.lane.b32.xlu0 %v11954, 64
  %v12042 = vpop.permute.xlu0 %12041
  %12043 = vrot.lane.b32.xlu0 %v11963, 64
  %v12044 = vpop.permute.xlu0 %12043
  %12045 = vrot.lane.b32.xlu0 %v11972, 64
  %v12046 = vpop.permute.xlu0 %12045
  %12047 = vrot.lane.b32.xlu0 %v11981, 64
  %v12048 = vpop.permute.xlu0 %12047
  %12049 = vrot.lane.b32.xlu0 %v11990, 64
  %v12050 = vpop.permute.xlu0 %12049
  %12051 = vrot.lane.b32.xlu0 %v11999, 64
  %v12052 = vpop.permute.xlu0 %12051
  %12053 = vrot.lane.b32.xlu0 %v12008, 64
  %v12054 = vpop.permute.xlu0 %12053
  %12055 = vrot.lane.b32.xlu0 %v12017, 64
  %v12056 = vpop.permute.xlu0 %12055
  %12057 = vrot.lane.b32.xlu0 %v12026, 64
  %v12058 = vpop.permute.xlu0 %12057
  %12075 = vst.msk [vmem:[#allocation4 + $0x188] sm:$0xff] %vm9427, %v12028
  %12076 = vst.msk [vmem:[#allocation4 + $0x1a0] sm:$0xff] %vm9427, %v12030
  %12077 = vst.msk [vmem:[#allocation4 + $0x1b8] sm:$0xff] %vm9427, %v12032
  %12078 = vst.msk [vmem:[#allocation4 + $0x1d0] sm:$0xff] %vm9427, %v12034
  %12079 = vst.msk [vmem:[#allocation4 + $0x1e8] sm:$0xff] %vm9427, %v12036
  %12080 = vst.msk [vmem:[#allocation4 + $0x200] sm:$0xff] %vm9427, %v12038
  %12081 = vst.msk [vmem:[#allocation4 + $0x218] sm:$0xff] %vm9427, %v12040
  %12082 = vst.msk [vmem:[#allocation4 + $0x230] sm:$0xff] %vm9427, %v12042
  %12083 = vst.msk [vmem:[#allocation4 + $0x248] sm:$0xff] %vm9427, %v12044
  %12084 = vst.msk [vmem:[#allocation4 + $0x260] sm:$0xff] %vm9427, %v12046
  %12085 = vst.msk [vmem:[#allocation4 + $0x278] sm:$0xff] %vm9427, %v12048
  %12086 = vst.msk [vmem:[#allocation4 + $0x290] sm:$0xff] %vm9427, %v12050
  %12087 = vst.msk [vmem:[#allocation4 + $0x2a8] sm:$0xff] %vm9427, %v12052
  %12088 = vst.msk [vmem:[#allocation4 + $0x2c0] sm:$0xff] %vm9427, %v12054
  %12089 = vst.msk [vmem:[#allocation4 + $0x2d8] sm:$0xff] %vm9427, %v12056
  %12090 = vst.msk [vmem:[#allocation4 + $0x2f0] sm:$0xff] %vm9427, %v12058
  %v12091 = vld [vmem:[#allocation3 + $0xa8] sm:$0xf0]
  %v12092 = vld [vmem:[#allocation3 + $0xb0] sm:$0xff]
  %v12093 = vld [vmem:[#allocation3 + $0xb8] sm:$0xff]
  %v12094 = vld [vmem:[#allocation3 + $0xc0] sm:$0xff]
  %v12095 = vld [vmem:[#allocation3 + $0xc8] sm:$0xff]
  %v12096 = vld [vmem:[#allocation3 + $0xd0] sm:$0xff]
  %v12097 = vld [vmem:[#allocation3 + $0xd8] sm:$0xff]
  %v12098 = vld [vmem:[#allocation3 + $0xe0] sm:$0xff]
  %v12099 = vld [vmem:[#allocation3 + $0xe8] sm:$0xff]
  %v12100 = vld [vmem:[#allocation3 + $0xf0] sm:$0xff]
  %v12101 = vld [vmem:[#allocation3 + $0xf8] sm:$0xff]
  %v12102 = vld [vmem:[#allocation3 + $0x100] sm:$0xff]
  %v12103 = vld [vmem:[#allocation3 + $0x108] sm:$0xff]
  %v12104 = vld [vmem:[#allocation3 + $0x110] sm:$0xff]
  %v12105 = vld [vmem:[#allocation3 + $0x118] sm:$0xff]
  %v12106 = vld [vmem:[#allocation3 + $0x120] sm:$0xff]
  %v12107 = vld [vmem:[#allocation3 + $0x128] sm:$0xf]
  %v12125 = vrot.slane %v12091, 4
  %v12126 = vrot.slane %v12092, 4
  %v12127 = vsel %vm8212, %v12125, %v12126
  %v12128 = vrot.slane %v12093, 4
  %v12129 = vsel %vm8212, %v12126, %v12128
  %v12130 = vrot.slane %v12094, 4
  %v12131 = vsel %vm8212, %v12128, %v12130
  %v12132 = vrot.slane %v12095, 4
  %v12133 = vsel %vm8212, %v12130, %v12132
  %v12134 = vrot.slane %v12096, 4
  %v12135 = vsel %vm8212, %v12132, %v12134
  %v12136 = vrot.slane %v12097, 4
  %v12137 = vsel %vm8212, %v12134, %v12136
  %v12138 = vrot.slane %v12098, 4
  %v12139 = vsel %vm8212, %v12136, %v12138
  %v12140 = vrot.slane %v12099, 4
  %v12141 = vsel %vm8212, %v12138, %v12140
  %v12142 = vrot.slane %v12100, 4
  %v12143 = vsel %vm8212, %v12140, %v12142
  %v12144 = vrot.slane %v12101, 4
  %v12145 = vsel %vm8212, %v12142, %v12144
  %v12146 = vrot.slane %v12102, 4
  %v12147 = vsel %vm8212, %v12144, %v12146
  %v12148 = vrot.slane %v12103, 4
  %v12149 = vsel %vm8212, %v12146, %v12148
  %v12150 = vrot.slane %v12104, 4
  %v12151 = vsel %vm8212, %v12148, %v12150
  %v12152 = vrot.slane %v12105, 4
  %v12153 = vsel %vm8212, %v12150, %v12152
  %v12154 = vrot.slane %v12106, 4
  %v12155 = vsel %vm8212, %v12152, %v12154
  %v12156 = vrot.slane %v12107, 4
  %v12157 = vsel %vm8212, %v12154, %v12156
  %12158 = vrot.lane.b32.xlu0 %v12127, 96
  %v12159 = vpop.permute.xlu0 %12158
  %12160 = vrot.lane.b32.xlu0 %v12129, 96
  %v12161 = vpop.permute.xlu0 %12160
  %12162 = vrot.lane.b32.xlu0 %v12131, 96
  %v12163 = vpop.permute.xlu0 %12162
  %12164 = vrot.lane.b32.xlu0 %v12133, 96
  %v12165 = vpop.permute.xlu0 %12164
  %12166 = vrot.lane.b32.xlu0 %v12135, 96
  %v12167 = vpop.permute.xlu0 %12166
  %12168 = vrot.lane.b32.xlu0 %v12137, 96
  %v12169 = vpop.permute.xlu0 %12168
  %12170 = vrot.lane.b32.xlu0 %v12139, 96
  %v12171 = vpop.permute.xlu0 %12170
  %12172 = vrot.lane.b32.xlu0 %v12141, 96
  %v12173 = vpop.permute.xlu0 %12172
  %12174 = vrot.lane.b32.xlu0 %v12143, 96
  %v12175 = vpop.permute.xlu0 %12174
  %12176 = vrot.lane.b32.xlu0 %v12145, 96
  %v12177 = vpop.permute.xlu0 %12176
  %12178 = vrot.lane.b32.xlu0 %v12147, 96
  %v12179 = vpop.permute.xlu0 %12178
  %12180 = vrot.lane.b32.xlu0 %v12149, 96
  %v12181 = vpop.permute.xlu0 %12180
  %12182 = vrot.lane.b32.xlu0 %v12151, 96
  %v12183 = vpop.permute.xlu0 %12182
  %12184 = vrot.lane.b32.xlu0 %v12153, 96
  %v12185 = vpop.permute.xlu0 %12184
  %12186 = vrot.lane.b32.xlu0 %v12155, 96
  %v12187 = vpop.permute.xlu0 %12186
  %12188 = vrot.lane.b32.xlu0 %v12157, 96
  %v12189 = vpop.permute.xlu0 %12188
  %12206 = vst.msk [vmem:[#allocation4 + $0x188] sm:$0xff] %vm9678, %v12159
  %12207 = vst.msk [vmem:[#allocation4 + $0x1a0] sm:$0xff] %vm9678, %v12161
  %12208 = vst.msk [vmem:[#allocation4 + $0x1b8] sm:$0xff] %vm9678, %v12163
  %12209 = vst.msk [vmem:[#allocation4 + $0x1d0] sm:$0xff] %vm9678, %v12165
  %12210 = vst.msk [vmem:[#allocation4 + $0x1e8] sm:$0xff] %vm9678, %v12167
  %12211 = vst.msk [vmem:[#allocation4 + $0x200] sm:$0xff] %vm9678, %v12169
  %12212 = vst.msk [vmem:[#allocation4 + $0x218] sm:$0xff] %vm9678, %v12171
  %12213 = vst.msk [vmem:[#allocation4 + $0x230] sm:$0xff] %vm9678, %v12173
  %12214 = vst.msk [vmem:[#allocation4 + $0x248] sm:$0xff] %vm9678, %v12175
  %12215 = vst.msk [vmem:[#allocation4 + $0x260] sm:$0xff] %vm9678, %v12177
  %12216 = vst.msk [vmem:[#allocation4 + $0x278] sm:$0xff] %vm9678, %v12179
  %12217 = vst.msk [vmem:[#allocation4 + $0x290] sm:$0xff] %vm9678, %v12181
  %12218 = vst.msk [vmem:[#allocation4 + $0x2a8] sm:$0xff] %vm9678, %v12183
  %12219 = vst.msk [vmem:[#allocation4 + $0x2c0] sm:$0xff] %vm9678, %v12185
  %12220 = vst.msk [vmem:[#allocation4 + $0x2d8] sm:$0xff] %vm9678, %v12187
  %12221 = vst.msk [vmem:[#allocation4 + $0x2f0] sm:$0xff] %vm9678, %v12189
  %v12222 = vld [vmem:[#allocation3 + $0xa8] sm:$0xf0]
  %v12223 = vld [vmem:[#allocation3 + $0xb0] sm:$0xff]
  %v12224 = vld [vmem:[#allocation3 + $0xb8] sm:$0xff]
  %v12225 = vld [vmem:[#allocation3 + $0xc0] sm:$0xff]
  %v12226 = vld [vmem:[#allocation3 + $0xc8] sm:$0xff]
  %v12227 = vld [vmem:[#allocation3 + $0xd0] sm:$0xff]
  %v12228 = vld [vmem:[#allocation3 + $0xd8] sm:$0xff]
  %v12229 = vld [vmem:[#allocation3 + $0xe0] sm:$0xff]
  %v12230 = vld [vmem:[#allocation3 + $0xe8] sm:$0xff]
  %v12231 = vld [vmem:[#allocation3 + $0xf0] sm:$0xff]
  %v12232 = vld [vmem:[#allocation3 + $0xf8] sm:$0xff]
  %v12233 = vld [vmem:[#allocation3 + $0x100] sm:$0xff]
  %v12234 = vld [vmem:[#allocation3 + $0x108] sm:$0xff]
  %v12235 = vld [vmem:[#allocation3 + $0x110] sm:$0xff]
  %v12236 = vld [vmem:[#allocation3 + $0x118] sm:$0xff]
  %v12237 = vld [vmem:[#allocation3 + $0x120] sm:$0xff]
  %v12238 = vld [vmem:[#allocation3 + $0x128] sm:$0x1f]
  %v12239 = vmul.bf16 %v12222, %v9057
  %v12240 = vmul.bf16 %v12223, %v9066
  %v12241 = vmul.bf16 %v12224, %v9075
  %v12242 = vmul.bf16 %v12225, %v9084
  %v12243 = vmul.bf16 %v12226, %v9093
  %v12244 = vmul.bf16 %v12227, %v9102
  %v12245 = vmul.bf16 %v12228, %v9111
  %v12246 = vmul.bf16 %v12229, %v9120
  %v12247 = vmul.bf16 %v12230, %v9129
  %v12248 = vmul.bf16 %v12231, %v9138
  %v12249 = vmul.bf16 %v12232, %v9147
  %v12250 = vmul.bf16 %v12233, %v9156
  %v12251 = vmul.bf16 %v12234, %v9165
  %v12252 = vmul.bf16 %v12235, %v9174
  %v12253 = vmul.bf16 %v12236, %v9183
  %v12254 = vmul.bf16 %v12237, %v9192
  %v12255 = vmul.bf16 %v12238, %v9191
  %v12257 = vshrl.u32 %v12239, 16
  %v12259 = vrot.slane %v12257, 4
  %v12260 = vshll.u32 %v12239, 16
  %v12262 = vrot.slane %v12260, 5
  %v12263 = vor.u32 %v12259, %v12262
  %v12265 = vshrl.u32 %v12240, 16
  %v12267 = vrot.slane %v12265, 4
  %v12268 = vshll.u32 %v12240, 16
  %v12270 = vrot.slane %v12268, 5
  %v12271 = vor.u32 %v12267, %v12270
  %v12272 = vsel %vm895, %v12263, %v12271
  %v12274 = vshrl.u32 %v12241, 16
  %v12276 = vrot.slane %v12274, 4
  %v12277 = vshll.u32 %v12241, 16
  %v12279 = vrot.slane %v12277, 5
  %v12280 = vor.u32 %v12276, %v12279
  %v12281 = vsel %vm895, %v12271, %v12280
  %v12283 = vshrl.u32 %v12242, 16
  %v12285 = vrot.slane %v12283, 4
  %v12286 = vshll.u32 %v12242, 16
  %v12288 = vrot.slane %v12286, 5
  %v12289 = vor.u32 %v12285, %v12288
  %v12290 = vsel %vm895, %v12280, %v12289
  %v12292 = vshrl.u32 %v12243, 16
  %v12294 = vrot.slane %v12292, 4
  %v12295 = vshll.u32 %v12243, 16
  %v12297 = vrot.slane %v12295, 5
  %v12298 = vor.u32 %v12294, %v12297
  %v12299 = vsel %vm895, %v12289, %v12298
  %v12301 = vshrl.u32 %v12244, 16
  %v12303 = vrot.slane %v12301, 4
  %v12304 = vshll.u32 %v12244, 16
  %v12306 = vrot.slane %v12304, 5
  %v12307 = vor.u32 %v12303, %v12306
  %v12308 = vsel %vm895, %v12298, %v12307
  %v12310 = vshrl.u32 %v12245, 16
  %v12312 = vrot.slane %v12310, 4
  %v12313 = vshll.u32 %v12245, 16
  %v12315 = vrot.slane %v12313, 5
  %v12316 = vor.u32 %v12312, %v12315
  %v12317 = vsel %vm895, %v12307, %v12316
  %v12319 = vshrl.u32 %v12246, 16
  %v12321 = vrot.slane %v12319, 4
  %v12322 = vshll.u32 %v12246, 16
  %v12324 = vrot.slane %v12322, 5
  %v12325 = vor.u32 %v12321, %v12324
  %v12326 = vsel %vm895, %v12316, %v12325
  %v12328 = vshrl.u32 %v12247, 16
  %v12330 = vrot.slane %v12328, 4
  %v12331 = vshll.u32 %v12247, 16
  %v12333 = vrot.slane %v12331, 5
  %v12334 = vor.u32 %v12330, %v12333
  %v12335 = vsel %vm895, %v12325, %v12334
  %v12337 = vshrl.u32 %v12248, 16
  %v12339 = vrot.slane %v12337, 4
  %v12340 = vshll.u32 %v12248, 16
  %v12342 = vrot.slane %v12340, 5
  %v12343 = vor.u32 %v12339, %v12342
  %v12344 = vsel %vm895, %v12334, %v12343
  %v12346 = vshrl.u32 %v12249, 16
  %v12348 = vrot.slane %v12346, 4
  %v12349 = vshll.u32 %v12249, 16
  %v12351 = vrot.slane %v12349, 5
  %v12352 = vor.u32 %v12348, %v12351
  %v12353 = vsel %vm895, %v12343, %v12352
  %v12355 = vshrl.u32 %v12250, 16
  %v12357 = vrot.slane %v12355, 4
  %v12358 = vshll.u32 %v12250, 16
  %v12360 = vrot.slane %v12358, 5
  %v12361 = vor.u32 %v12357, %v12360
  %v12362 = vsel %vm895, %v12352, %v12361
  %v12364 = vshrl.u32 %v12251, 16
  %v12366 = vrot.slane %v12364, 4
  %v12367 = vshll.u32 %v12251, 16
  %v12369 = vrot.slane %v12367, 5
  %v12370 = vor.u32 %v12366, %v12369
  %v12371 = vsel %vm895, %v12361, %v12370
  %v12373 = vshrl.u32 %v12252, 16
  %v12375 = vrot.slane %v12373, 4
  %v12376 = vshll.u32 %v12252, 16
  %v12378 = vrot.slane %v12376, 5
  %v12379 = vor.u32 %v12375, %v12378
  %v12380 = vsel %vm895, %v12370, %v12379
  %v12382 = vshrl.u32 %v12253, 16
  %v12384 = vrot.slane %v12382, 4
  %v12385 = vshll.u32 %v12253, 16
  %v12387 = vrot.slane %v12385, 5
  %v12388 = vor.u32 %v12384, %v12387
  %v12389 = vsel %vm895, %v12379, %v12388
  %v12391 = vshrl.u32 %v12254, 16
  %v12393 = vrot.slane %v12391, 4
  %v12394 = vshll.u32 %v12254, 16
  %v12396 = vrot.slane %v12394, 5
  %v12397 = vor.u32 %v12393, %v12396
  %v12398 = vsel %vm895, %v12388, %v12397
  %v12400 = vshrl.u32 %v12255, 16
  %v12402 = vrot.slane %v12400, 4
  %v12403 = vshll.u32 %v12255, 16
  %v12405 = vrot.slane %v12403, 5
  %v12406 = vor.u32 %v12402, %v12405
  %v12407 = vsel %vm895, %v12397, %v12406
  %12424 = vst.msk [vmem:[#allocation4 + $0x190] sm:$0xff] %vm8189, %v12272
  %12425 = vst.msk [vmem:[#allocation4 + $0x1a8] sm:$0xff] %vm8189, %v12281
  %12426 = vst.msk [vmem:[#allocation4 + $0x1c0] sm:$0xff] %vm8189, %v12290
  %12427 = vst.msk [vmem:[#allocation4 + $0x1d8] sm:$0xff] %vm8189, %v12299
  %12428 = vst.msk [vmem:[#allocation4 + $0x1f0] sm:$0xff] %vm8189, %v12308
  %12429 = vst.msk [vmem:[#allocation4 + $0x208] sm:$0xff] %vm8189, %v12317
  %12430 = vst.msk [vmem:[#allocation4 + $0x220] sm:$0xff] %vm8189, %v12326
  %12431 = vst.msk [vmem:[#allocation4 + $0x238] sm:$0xff] %vm8189, %v12335
  %12432 = vst.msk [vmem:[#allocation4 + $0x250] sm:$0xff] %vm8189, %v12344
  %12433 = vst.msk [vmem:[#allocation4 + $0x268] sm:$0xff] %vm8189, %v12353
  %12434 = vst.msk [vmem:[#allocation4 + $0x280] sm:$0xff] %vm8189, %v12362
  %12435 = vst.msk [vmem:[#allocation4 + $0x298] sm:$0xff] %vm8189, %v12371
  %12436 = vst.msk [vmem:[#allocation4 + $0x2b0] sm:$0xff] %vm8189, %v12380
  %12437 = vst.msk [vmem:[#allocation4 + $0x2c8] sm:$0xff] %vm8189, %v12389
  %12438 = vst.msk [vmem:[#allocation4 + $0x2e0] sm:$0xff] %vm8189, %v12398
  %12439 = vst.msk [vmem:[#allocation4 + $0x2f8] sm:$0xff] %vm8189, %v12407
  %v12440 = vld [vmem:[#allocation4] sm:$0xff]
  %v12441 = vld [vmem:[#allocation4 + $0x8] sm:$0xff]
  %v12442 = vld [vmem:[#allocation4 + $0x10] sm:$0xff]
  %v12443 = vld [vmem:[#allocation4 + $0x18] sm:$0xff]
  %v12444 = vld [vmem:[#allocation4 + $0x20] sm:$0xff]
  %v12445 = vld [vmem:[#allocation4 + $0x28] sm:$0xff]
  %v12446 = vld [vmem:[#allocation4 + $0x30] sm:$0xff]
  %v12447 = vld [vmem:[#allocation4 + $0x38] sm:$0xff]
  %v12448 = vld [vmem:[#allocation4 + $0x40] sm:$0xff]
  %v12449 = vld [vmem:[#allocation4 + $0x48] sm:$0xff]
  %v12450 = vld [vmem:[#allocation4 + $0x50] sm:$0xff]
  %v12451 = vld [vmem:[#allocation4 + $0x58] sm:$0xff]
  %v12452 = vld [vmem:[#allocation4 + $0x60] sm:$0xff]
  %v12453 = vld [vmem:[#allocation4 + $0x68] sm:$0xff]
  %v12454 = vld [vmem:[#allocation4 + $0x70] sm:$0xff]
  %v12455 = vld [vmem:[#allocation4 + $0x78] sm:$0xff]
  %v12456 = vld [vmem:[#allocation4 + $0x80] sm:$0xff]
  %v12457 = vld [vmem:[#allocation4 + $0x88] sm:$0xff]
  %v12458 = vld [vmem:[#allocation4 + $0x90] sm:$0xff]
  %v12459 = vld [vmem:[#allocation4 + $0x98] sm:$0xff]
  %v12460 = vld [vmem:[#allocation4 + $0xa0] sm:$0xff]
  %v12461 = vld [vmem:[#allocation4 + $0xa8] sm:$0xff]
  %v12462 = vld [vmem:[#allocation4 + $0xb0] sm:$0xff]
  %v12463 = vld [vmem:[#allocation4 + $0xb8] sm:$0xff]
  %v12464 = vld [vmem:[#allocation4 + $0xc0] sm:$0xff]
  %v12465 = vld [vmem:[#allocation4 + $0xc8] sm:$0xff]
  %v12466 = vld [vmem:[#allocation4 + $0xd0] sm:$0xff]
  %v12467 = vld [vmem:[#allocation4 + $0xd8] sm:$0xff]
  %v12468 = vld [vmem:[#allocation4 + $0xe0] sm:$0xff]
  %v12469 = vld [vmem:[#allocation4 + $0xe8] sm:$0xff]
  %v12470 = vld [vmem:[#allocation4 + $0xf0] sm:$0xff]
  %v12471 = vld [vmem:[#allocation4 + $0xf8] sm:$0xff]
  %v12472 = vld [vmem:[#allocation4 + $0x100] sm:$0xff]
  %v12473 = vld [vmem:[#allocation4 + $0x108] sm:$0xff]
  %v12474 = vld [vmem:[#allocation4 + $0x110] sm:$0xff]
  %v12475 = vld [vmem:[#allocation4 + $0x118] sm:$0xff]
  %v12476 = vld [vmem:[#allocation4 + $0x120] sm:$0xff]
  %v12477 = vld [vmem:[#allocation4 + $0x128] sm:$0xff]
  %v12478 = vld [vmem:[#allocation4 + $0x130] sm:$0xff]
  %v12479 = vld [vmem:[#allocation4 + $0x138] sm:$0xff]
  %v12480 = vld [vmem:[#allocation4 + $0x140] sm:$0xff]
  %v12481 = vld [vmem:[#allocation4 + $0x148] sm:$0xff]
  %v12482 = vld [vmem:[#allocation4 + $0x150] sm:$0xff]
  %v12483 = vld [vmem:[#allocation4 + $0x158] sm:$0xff]
  %v12484 = vld [vmem:[#allocation4 + $0x160] sm:$0xff]
  %v12485 = vld [vmem:[#allocation4 + $0x168] sm:$0xff]
  %v12486 = vld [vmem:[#allocation4 + $0x170] sm:$0xff]
  %v12487 = vld [vmem:[#allocation4 + $0x178] sm:$0xff]
  %v12488 = vld [vmem:[#allocation4 + $0x180] sm:$0xff]
  %v12489 = vld [vmem:[#allocation4 + $0x188] sm:$0xff]
  %v12490 = vld [vmem:[#allocation4 + $0x190] sm:$0xff]
  %v12491 = vld [vmem:[#allocation4 + $0x198] sm:$0xff]
  %v12492 = vld [vmem:[#allocation4 + $0x1a0] sm:$0xff]
  %v12493 = vld [vmem:[#allocation4 + $0x1a8] sm:$0xff]
  %v12494 = vld [vmem:[#allocation4 + $0x1b0] sm:$0xff]
  %v12495 = vld [vmem:[#allocation4 + $0x1b8] sm:$0xff]
  %v12496 = vld [vmem:[#allocation4 + $0x1c0] sm:$0xff]
  %v12497 = vld [vmem:[#allocation4 + $0x1c8] sm:$0xff]
  %v12498 = vld [vmem:[#allocation4 + $0x1d0] sm:$0xff]
  %v12499 = vld [vmem:[#allocation4 + $0x1d8] sm:$0xff]
  %v12500 = vld [vmem:[#allocation4 + $0x1e0] sm:$0xff]
  %v12501 = vld [vmem:[#allocation4 + $0x1e8] sm:$0xff]
  %v12502 = vld [vmem:[#allocation4 + $0x1f0] sm:$0xff]
  %v12503 = vld [vmem:[#allocation4 + $0x1f8] sm:$0xff]
  %v12504 = vld [vmem:[#allocation4 + $0x200] sm:$0xff]
  %v12505 = vld [vmem:[#allocation4 + $0x208] sm:$0xff]
  %v12506 = vld [vmem:[#allocation4 + $0x210] sm:$0xff]
  %v12507 = vld [vmem:[#allocation4 + $0x218] sm:$0xff]
  %v12508 = vld [vmem:[#allocation4 + $0x220] sm:$0xff]
  %v12509 = vld [vmem:[#allocation4 + $0x228] sm:$0xff]
  %v12510 = vld [vmem:[#allocation4 + $0x230] sm:$0xff]
  %v12511 = vld [vmem:[#allocation4 + $0x238] sm:$0xff]
  %v12512 = vld [vmem:[#allocation4 + $0x240] sm:$0xff]
  %v12513 = vld [vmem:[#allocation4 + $0x248] sm:$0xff]
  %v12514 = vld [vmem:[#allocation4 + $0x250] sm:$0xff]
  %v12515 = vld [vmem:[#allocation4 + $0x258] sm:$0xff]
  %v12516 = vld [vmem:[#allocation4 + $0x260] sm:$0xff]
  %v12517 = vld [vmem:[#allocation4 + $0x268] sm:$0xff]
  %v12518 = vld [vmem:[#allocation4 + $0x270] sm:$0xff]
  %v12519 = vld [vmem:[#allocation4 + $0x278] sm:$0xff]
  %v12520 = vld [vmem:[#allocation4 + $0x280] sm:$0xff]
  %v12521 = vld [vmem:[#allocation4 + $0x288] sm:$0xff]
  %v12522 = vld [vmem:[#allocation4 + $0x290] sm:$0xff]
  %v12523 = vld [vmem:[#allocation4 + $0x298] sm:$0xff]
  %v12524 = vld [vmem:[#allocation4 + $0x2a0] sm:$0xff]
  %v12525 = vld [vmem:[#allocation4 + $0x2a8] sm:$0xff]
  %v12526 = vld [vmem:[#allocation4 + $0x2b0] sm:$0xff]
  %v12527 = vld [vmem:[#allocation4 + $0x2b8] sm:$0xff]
  %v12528 = vld [vmem:[#allocation4 + $0x2c0] sm:$0xff]
  %v12529 = vld [vmem:[#allocation4 + $0x2c8] sm:$0xff]
  %v12530 = vld [vmem:[#allocation4 + $0x2d0] sm:$0xff]
  %v12531 = vld [vmem:[#allocation4 + $0x2d8] sm:$0xff]
  %v12532 = vld [vmem:[#allocation4 + $0x2e0] sm:$0xff]
  %v12533 = vld [vmem:[#allocation4 + $0x2e8] sm:$0xff]
  %v12534 = vld [vmem:[#allocation4 + $0x2f0] sm:$0xff]
  %v12535 = vld [vmem:[#allocation4 + $0x2f8] sm:$0xff]
  %v12536 = vld [vmem:[%s6] sm:$0xf]
  %v12537 = vld [vmem:[%s6 + $0x4] sm:$0xf]
  %v12538 = vld [vmem:[%s6 + $0x8] sm:$0xf]
  %v12539 = vld [vmem:[%s6 + $0xc] sm:$0xf]
  %v12540 = vld [vmem:[%s6 + $0x10] sm:$0xf]
  %v12541 = vld [vmem:[%s6 + $0x14] sm:$0xf]
  %v12542 = vld [vmem:[%s6 + $0x18] sm:$0xf]
  %v12543 = vld [vmem:[%s6 + $0x1c] sm:$0xf]
  %v12544 = vld [vmem:[%s6 + $0x20] sm:$0xf]
  %v12545 = vld [vmem:[%s6 + $0x24] sm:$0xf]
  %v12546 = vld [vmem:[%s6 + $0x28] sm:$0xf]
  %v12547 = vld [vmem:[%s6 + $0x2c] sm:$0xf]
  %v12548 = vld [vmem:[%s6 + $0x30] sm:$0xf]
  %v12549 = vld [vmem:[%s6 + $0x34] sm:$0xf]
  %v12550 = vld [vmem:[%s6 + $0x38] sm:$0xf]
  %v12551 = vld [vmem:[%s6 + $0x3c] sm:$0xf]
  %v12552 = vld [vmem:[%s6 + $0x40] sm:$0xf]
  %v12553 = vld [vmem:[%s6 + $0x44] sm:$0xf]
  %v12554 = vld [vmem:[%s6 + $0x48] sm:$0xf]
  %v12555 = vld [vmem:[%s6 + $0x4c] sm:$0xf]
  %v12556 = vld [vmem:[%s6 + $0x50] sm:$0xf]
  %v12557 = vld [vmem:[%s6 + $0x54] sm:$0xf]
  %v12558 = vld [vmem:[%s6 + $0x58] sm:$0xf]
  %v12559 = vld [vmem:[%s6 + $0x5c] sm:$0xf]
  %v12560 = vld [vmem:[%s6 + $0x60] sm:$0xf]
  %v12561 = vld [vmem:[%s6 + $0x64] sm:$0xf]
  %v12562 = vld [vmem:[%s6 + $0x68] sm:$0xf]
  %v12563 = vld [vmem:[%s6 + $0x6c] sm:$0xf]
  %v12564 = vld [vmem:[%s6 + $0x70] sm:$0xf]
  %v12565 = vld [vmem:[%s6 + $0x74] sm:$0xf]
  %v12566 = vld [vmem:[%s6 + $0x78] sm:$0xf]
  %v12567 = vld [vmem:[%s6 + $0x7c] sm:$0xf]
  %v12568 = vld [vmem:[%s6 + $0x80] sm:$0xf]
  %v12569 = vld [vmem:[%s6 + $0x84] sm:$0xf]
  %v12570 = vld [vmem:[%s6 + $0x88] sm:$0xf]
  %v12571 = vld [vmem:[%s6 + $0x8c] sm:$0xf]
  %v12572 = vld [vmem:[%s7] sm:$0x1]
  %v12574 = vlaneseq
  %v12575 = vshrl.u32 %v12574, 7
  %v12576 = vsub.s32 0, %v12575
  %v12577 = vrot.slane %v12572, %v12576
  %v12615 = vunpack.c.l.b16 %v12536
  %v12616 = vunpack.c.l.b16 %v12537
  %v12617 = vunpack.c.l.b16 %v12538
  %v12618 = vunpack.c.l.b16 %v12539
  %v12619 = vunpack.c.l.b16 %v12540
  %v12620 = vunpack.c.l.b16 %v12541
  %v12621 = vunpack.c.l.b16 %v12542
  %v12622 = vunpack.c.l.b16 %v12543
  %v12623 = vunpack.c.l.b16 %v12544
  %v12624 = vunpack.c.l.b16 %v12545
  %v12625 = vunpack.c.l.b16 %v12546
  %v12626 = vunpack.c.l.b16 %v12547
  %v12627 = vunpack.c.l.b16 %v12548
  %v12628 = vunpack.c.l.b16 %v12549
  %v12629 = vunpack.c.l.b16 %v12550
  %v12630 = vunpack.c.l.b16 %v12551
  %v12631 = vunpack.c.l.b16 %v12552
  %v12632 = vunpack.c.l.b16 %v12553
  %v12633 = vunpack.c.l.b16 %v12554
  %v12634 = vunpack.c.l.b16 %v12555
  %v12635 = vunpack.c.l.b16 %v12556
  %v12636 = vunpack.c.l.b16 %v12557
  %v12637 = vunpack.c.l.b16 %v12558
  %v12638 = vunpack.c.l.b16 %v12559
  %v12639 = vunpack.c.l.b16 %v12560
  %v12640 = vunpack.c.l.b16 %v12561
  %v12641 = vunpack.c.l.b16 %v12562
  %v12642 = vunpack.c.l.b16 %v12563
  %v12643 = vunpack.c.l.b16 %v12564
  %v12644 = vunpack.c.l.b16 %v12565
  %v12645 = vunpack.c.l.b16 %v12566
  %v12646 = vunpack.c.l.b16 %v12567
  %v12647 = vunpack.c.l.b16 %v12568
  %v12648 = vunpack.c.l.b16 %v12569
  %v12649 = vunpack.c.l.b16 %v12570
  %v12650 = vunpack.c.l.b16 %v12571
  %v12651 = vpack.c.b16 %v12616, %v12615
  %v12652 = vpack.c.b16 %v12618, %v12617
  %v12653 = vpack.c.b16 %v12620, %v12619
  %v12654 = vpack.c.b16 %v12622, %v12621
  %v12655 = vpack.c.b16 %v12624, %v12623
  %v12656 = vpack.c.b16 %v12626, %v12625
  %v12657 = vpack.c.b16 %v12628, %v12627
  %v12658 = vpack.c.b16 %v12630, %v12629
  %v12659 = vpack.c.b16 %v12632, %v12631
  %v12660 = vpack.c.b16 %v12634, %v12633
  %v12661 = vpack.c.b16 %v12636, %v12635
  %v12662 = vpack.c.b16 %v12638, %v12637
  %v12663 = vpack.c.b16 %v12640, %v12639
  %v12664 = vpack.c.b16 %v12642, %v12641
  %v12665 = vpack.c.b16 %v12644, %v12643
  %v12666 = vpack.c.b16 %v12646, %v12645
  %v12667 = vpack.c.b16 %v12648, %v12647
  %v12668 = vpack.c.b16 %v12650, %v12649
  %v12688 = vsel %vm8189, %v12442, 0
  %v12691 = vsel %vm8189, %v12445, 0
  %v12694 = vsel %vm8189, %v12448, 0
  %v12697 = vsel %vm8189, %v12451, 0
  %v12700 = vsel %vm8189, %v12454, 0
  %v12703 = vsel %vm8189, %v12457, 0
  %v12706 = vsel %vm8189, %v12460, 0
  %v12709 = vsel %vm8189, %v12463, 0
  %v12712 = vsel %vm8189, %v12466, 0
  %v12715 = vsel %vm8189, %v12469, 0
  %v12718 = vsel %vm8189, %v12472, 0
  %v12721 = vsel %vm8189, %v12475, 0
  %v12724 = vsel %vm8189, %v12478, 0
  %v12727 = vsel %vm8189, %v12481, 0
  %v12730 = vsel %vm8189, %v12484, 0
  %v12733 = vsel %vm8189, %v12487, 0
  %v12736 = vsel %vm8189, %v12490, 0
  %v12739 = vsel %vm8189, %v12493, 0
  %v12742 = vsel %vm8189, %v12496, 0
  %v12745 = vsel %vm8189, %v12499, 0
  %v12748 = vsel %vm8189, %v12502, 0
  %v12751 = vsel %vm8189, %v12505, 0
  %v12754 = vsel %vm8189, %v12508, 0
  %v12757 = vsel %vm8189, %v12511, 0
  %v12760 = vsel %vm8189, %v12514, 0
  %v12763 = vsel %vm8189, %v12517, 0
  %v12766 = vsel %vm8189, %v12520, 0
  %v12769 = vsel %vm8189, %v12523, 0
  %v12772 = vsel %vm8189, %v12526, 0
  %v12775 = vsel %vm8189, %v12529, 0
  %v12778 = vsel %vm8189, %v12532, 0
  %v12781 = vsel %vm8189, %v12535, 0
  %12783 = vmatprep.subr.bf16.mxu0 0
  %12784 = vmatpush1.bf16.msra.mxu0 %v12651
  %12785 = vmatprep.subr.bf16.mxu0 0
  %12786 = vmatpush1.bf16.msra.mxu0 %v12652
  %12787 = vmatprep.subr.bf16.mxu0 0
  %12788 = vmatpush1.bf16.msra.mxu0 %v12653
  %12789 = vmatprep.subr.bf16.mxu0 0
  %12790 = vmatpush1.bf16.msra.mxu0 %v12654
  %12791 = vmatprep.subr.bf16.mxu0 0
  %12792 = vmatpush1.bf16.msra.mxu0 %v12655
  %12793 = vmatprep.subr.bf16.mxu0 0
  %12794 = vmatpush1.bf16.msra.mxu0 %v12656
  %12795 = vmatprep.subr.bf16.mxu0 0
  %12796 = vmatpush1.bf16.msra.mxu0 %v12657
  %12797 = vmatprep.subr.bf16.mxu0 0
  %12798 = vmatpush1.bf16.msra.mxu0 %v12658
  %12799 = vmatprep.subr.bf16.mxu0 0
  %12800 = vmatpush1.bf16.msra.mxu0 %v12659
  %12801 = vmatprep.subr.bf16.mxu0 0
  %12802 = vmatpush1.bf16.msra.mxu0 %v12660
  %12803 = vmatprep.subr.bf16.mxu0 0
  %12804 = vmatpush1.bf16.msra.mxu0 %v12661
  %12805 = vmatprep.subr.bf16.mxu0 0
  %12806 = vmatpush1.bf16.msra.mxu0 %v12662
  %12807 = vmatprep.subr.bf16.mxu0 0
  %12808 = vmatpush1.bf16.msra.mxu0 %v12663
  %12809 = vmatprep.subr.bf16.mxu0 0
  %12810 = vmatpush1.bf16.msra.mxu0 %v12664
  %12811 = vmatprep.subr.bf16.mxu0 0
  %12812 = vmatpush1.bf16.msra.mxu0 %v12665
  %12813 = vmatprep.subr.bf16.mxu0 0
  %12814 = vmatpush1.bf16.msra.mxu0 %v12666
  %12815 = vmatprep.mubr.bf16.mxu0 %v12441
  %12816 = vmatmul.mubr.bf16.gmra.mrb[0].mxu0 %v12440
  %v12817 = vpop.f32.mrb[0].mxu0
  %v12818 = vadd.f32 %v12577, %v12817
  %v12819 = vpop.f32.mrb[0].mxu0
  %v12820 = vpop.f32.mrb[0].mxu0
  %v12821 = vadd.f32 %v12577, %v12820
  %v12822 = vpop.f32.mrb[0].mxu0
  %12823 = vmatprep.mubr.bf16.mxu0 %v12444
  %12824 = vmatmul.mubr.bf16.gmra.mrb[0].mxu0 %v12443
  %v12825 = vpop.f32.mrb[0].mxu0
  %v12826 = vadd.f32 %v12577, %v12825
  %v12827 = vpop.f32.mrb[0].mxu0
  %v12828 = vpop.f32.mrb[0].mxu0
  %v12829 = vadd.f32 %v12577, %v12828
  %v12830 = vpop.f32.mrb[0].mxu0
  %12831 = vmatprep.mubr.bf16.mxu0 %v12447
  %12832 = vmatmul.mubr.bf16.gmra.mrb[0].mxu0 %v12446
  %v12833 = vpop.f32.mrb[0].mxu0
  %v12834 = vadd.f32 %v12577, %v12833
  %v12835 = vpop.f32.mrb[0].mxu0
  %v12836 = vpop.f32.mrb[0].mxu0
  %v12837 = vadd.f32 %v12577, %v12836
  %v12838 = vpop.f32.mrb[0].mxu0
  %12839 = vmatprep.mubr.bf16.mxu0 %v12450
  %12840 = vmatmul.mubr.bf16.gmra.mrb[0].mxu0 %v12449
  %v12841 = vpop.f32.mrb[0].mxu0
  %v12842 = vadd.f32 %v12577, %v12841
  %v12843 = vpop.f32.mrb[0].mxu0
  %v12844 = vpop.f32.mrb[0].mxu0
  %v12845 = vadd.f32 %v12577, %v12844
  %v12846 = vpop.f32.mrb[0].mxu0
  %12847 = vmatprep.mubr.bf16.mxu0 %v12453
  %12848 = vmatmul.mubr.bf16.gmra.mrb[0].mxu0 %v12452
  %v12849 = vpop.f32.mrb[0].mxu0
  %v12850 = vadd.f32 %v12577, %v12849
  %v12851 = vpop.f32.mrb[0].mxu0
  %v12852 = vpop.f32.mrb[0].mxu0
  %v12853 = vadd.f32 %v12577, %v12852
  %v12854 = vpop.f32.mrb[0].mxu0
  %12855 = vmatprep.mubr.bf16.mxu0 %v12456
  %12856 = vmatmul.mubr.bf16.gmra.mrb[0].mxu0 %v12455
  %v12857 = vpop.f32.mrb[0].mxu0
  %v12858 = vadd.f32 %v12577, %v12857
  %v12859 = vpop.f32.mrb[0].mxu0
  %v12860 = vpop.f32.mrb[0].mxu0
  %v12861 = vadd.f32 %v12577, %v12860
  %v12862 = vpop.f32.mrb[0].mxu0
  %12863 = vmatprep.mubr.bf16.mxu0 %v12459
  %12864 = vmatmul.mubr.bf16.gmra.mrb[0].mxu0 %v12458
  %v12865 = vpop.f32.mrb[0].mxu0
  %v12866 = vadd.f32 %v12577, %v12865
  %v12867 = vpop.f32.mrb[0].mxu0
  %v12868 = vpop.f32.mrb[0].mxu0
  %v12869 = vadd.f32 %v12577, %v12868
  %v12870 = vpop.f32.mrb[0].mxu0
  %12871 = vmatprep.mubr.bf16.mxu0 %v12462
  %12872 = vmatmul.mubr.bf16.gmra.mrb[0].mxu0 %v12461
  %v12873 = vpop.f32.mrb[0].mxu0
  %v12874 = vadd.f32 %v12577, %v12873
  %v12875 = vpop.f32.mrb[0].mxu0
  %v12876 = vpop.f32.mrb[0].mxu0
  %v12877 = vadd.f32 %v12577, %v12876
  %v12878 = vpop.f32.mrb[0].mxu0
  %12879 = vmatprep.mubr.bf16.mxu0 %v12465
  %12880 = vmatmul.mubr.bf16.gmra.mrb[0].mxu0 %v12464
  %v12881 = vpop.f32.mrb[0].mxu0
  %v12882 = vadd.f32 %v12577, %v12881
  %v12883 = vpop.f32.mrb[0].mxu0
  %v12884 = vpop.f32.mrb[0].mxu0
  %v12885 = vadd.f32 %v12577, %v12884
  %v12886 = vpop.f32.mrb[0].mxu0
  %12887 = vmatprep.mubr.bf16.mxu0 %v12468
  %12888 = vmatmul.mubr.bf16.gmra.mrb[0].mxu0 %v12467
  %v12889 = vpop.f32.mrb[0].mxu0
  %v12890 = vadd.f32 %v12577, %v12889
  %v12891 = vpop.f32.mrb[0].mxu0
  %v12892 = vpop.f32.mrb[0].mxu0
  %v12893 = vadd.f32 %v12577, %v12892
  %v12894 = vpop.f32.mrb[0].mxu0
  %12895 = vmatprep.mubr.bf16.mxu0 %v12471
  %12896 = vmatmul.mubr.bf16.gmra.mrb[0].mxu0 %v12470
  %v12897 = vpop.f32.mrb[0].mxu0
  %v12898 = vadd.f32 %v12577, %v12897
  %v12899 = vpop.f32.mrb[0].mxu0
  %v12900 = vpop.f32.mrb[0].mxu0
  %v12901 = vadd.f32 %v12577, %v12900
  %v12902 = vpop.f32.mrb[0].mxu0
  %12903 = vmatprep.mubr.bf16.mxu0 %v12474
  %12904 = vmatmul.mubr.bf16.gmra.mrb[0].mxu0 %v12473
  %v12905 = vpop.f32.mrb[0].mxu0
  %v12906 = vadd.f32 %v12577, %v12905
  %v12907 = vpop.f32.mrb[0].mxu0
  %v12908 = vpop.f32.mrb[0].mxu0
  %v12909 = vadd.f32 %v12577, %v12908
  %v12910 = vpop.f32.mrb[0].mxu0
  %12911 = vmatprep.mubr.bf16.mxu0 %v12477
  %12912 = vmatmul.mubr.bf16.gmra.mrb[0].mxu0 %v12476
  %v12913 = vpop.f32.mrb[0].mxu0
  %v12914 = vadd.f32 %v12577, %v12913
  %v12915 = vpop.f32.mrb[0].mxu0
  %v12916 = vpop.f32.mrb[0].mxu0
  %v12917 = vadd.f32 %v12577, %v12916
  %v12918 = vpop.f32.mrb[0].mxu0
  %12919 = vmatprep.mubr.bf16.mxu0 %v12480
  %12920 = vmatmul.mubr.bf16.gmra.mrb[0].mxu0 %v12479
  %v12921 = vpop.f32.mrb[0].mxu0
  %v12922 = vadd.f32 %v12577, %v12921
  %v12923 = vpop.f32.mrb[0].mxu0
  %v12924 = vpop.f32.mrb[0].mxu0
  %v12925 = vadd.f32 %v12577, %v12924
  %v12926 = vpop.f32.mrb[0].mxu0
  %12927 = vmatprep.mubr.bf16.mxu0 %v12483
  %12928 = vmatmul.mubr.bf16.gmra.mrb[0].mxu0 %v12482
  %v12929 = vpop.f32.mrb[0].mxu0
  %v12930 = vadd.f32 %v12577, %v12929
  %v12931 = vpop.f32.mrb[0].mxu0
  %v12932 = vpop.f32.mrb[0].mxu0
  %v12933 = vadd.f32 %v12577, %v12932
  %v12934 = vpop.f32.mrb[0].mxu0
  %12935 = vmatprep.mubr.bf16.mxu0 %v12486
  %12936 = vmatmul.mubr.bf16.gmra.mrb[0].mxu0 %v12485
  %v12937 = vpop.f32.mrb[0].mxu0
  %v12938 = vadd.f32 %v12577, %v12937
  %v12939 = vpop.f32.mrb[0].mxu0
  %v12940 = vpop.f32.mrb[0].mxu0
  %v12941 = vadd.f32 %v12577, %v12940
  %v12942 = vpop.f32.mrb[0].mxu0
  %12943 = vmatprep.mubr.bf16.mxu0 %v12489
  %12944 = vmatmul.mubr.bf16.gmra.mrb[0].mxu0 %v12488
  %v12945 = vpop.f32.mrb[0].mxu0
  %v12946 = vadd.f32 %v12577, %v12945
  %v12947 = vpop.f32.mrb[0].mxu0
  %v12948 = vpop.f32.mrb[0].mxu0
  %v12949 = vadd.f32 %v12577, %v12948
  %v12950 = vpop.f32.mrb[0].mxu0
  %12951 = vmatprep.mubr.bf16.mxu0 %v12492
  %12952 = vmatmul.mubr.bf16.gmra.mrb[0].mxu0 %v12491
  %v12953 = vpop.f32.mrb[0].mxu0
  %v12954 = vadd.f32 %v12577, %v12953
  %v12955 = vpop.f32.mrb[0].mxu0
  %v12956 = vpop.f32.mrb[0].mxu0
  %v12957 = vadd.f32 %v12577, %v12956
  %v12958 = vpop.f32.mrb[0].mxu0
  %12959 = vmatprep.mubr.bf16.mxu0 %v12495
  %12960 = vmatmul.mubr.bf16.gmra.mrb[0].mxu0 %v12494
  %v12961 = vpop.f32.mrb[0].mxu0
  %v12962 = vadd.f32 %v12577, %v12961
  %v12963 = vpop.f32.mrb[0].mxu0
  %v12964 = vpop.f32.mrb[0].mxu0
  %v12965 = vadd.f32 %v12577, %v12964
  %v12966 = vpop.f32.mrb[0].mxu0
  %12967 = vmatprep.mubr.bf16.mxu0 %v12498
  %12968 = vmatmul.mubr.bf16.gmra.mrb[0].mxu0 %v12497
  %v12969 = vpop.f32.mrb[0].mxu0
  %v12970 = vadd.f32 %v12577, %v12969
  %v12971 = vpop.f32.mrb[0].mxu0
  %v12972 = vpop.f32.mrb[0].mxu0
  %v12973 = vadd.f32 %v12577, %v12972
  %v12974 = vpop.f32.mrb[0].mxu0
  %12975 = vmatprep.mubr.bf16.mxu0 %v12501
  %12976 = vmatmul.mubr.bf16.gmra.mrb[0].mxu0 %v12500
  %v12977 = vpop.f32.mrb[0].mxu0
  %v12978 = vadd.f32 %v12577, %v12977
  %v12979 = vpop.f32.mrb[0].mxu0
  %v12980 = vpop.f32.mrb[0].mxu0
  %v12981 = vadd.f32 %v12577, %v12980
  %v12982 = vpop.f32.mrb[0].mxu0
  %12983 = vmatprep.mubr.bf16.mxu0 %v12504
  %12984 = vmatmul.mubr.bf16.gmra.mrb[0].mxu0 %v12503
  %v12985 = vpop.f32.mrb[0].mxu0
  %v12986 = vadd.f32 %v12577, %v12985
  %v12987 = vpop.f32.mrb[0].mxu0
  %v12988 = vpop.f32.mrb[0].mxu0
  %v12989 = vadd.f32 %v12577, %v12988
  %v12990 = vpop.f32.mrb[0].mxu0
  %12991 = vmatprep.mubr.bf16.mxu0 %v12507
  %12992 = vmatmul.mubr.bf16.gmra.mrb[0].mxu0 %v12506
  %v12993 = vpop.f32.mrb[0].mxu0
  %v12994 = vadd.f32 %v12577, %v12993
  %v12995 = vpop.f32.mrb[0].mxu0
  %v12996 = vpop.f32.mrb[0].mxu0
  %v12997 = vadd.f32 %v12577, %v12996
  %v12998 = vpop.f32.mrb[0].mxu0
  %12999 = vmatprep.mubr.bf16.mxu0 %v12510
  %13000 = vmatmul.mubr.bf16.gmra.mrb[0].mxu0 %v12509
  %v13001 = vpop.f32.mrb[0].mxu0
  %v13002 = vadd.f32 %v12577, %v13001
  %v13003 = vpop.f32.mrb[0].mxu0
  %v13004 = vpop.f32.mrb[0].mxu0
  %v13005 = vadd.f32 %v12577, %v13004
  %v13006 = vpop.f32.mrb[0].mxu0
  %13007 = vmatprep.mubr.bf16.mxu0 %v12513
  %13008 = vmatmul.mubr.bf16.gmra.mrb[0].mxu0 %v12512
  %v13009 = vpop.f32.mrb[0].mxu0
  %v13010 = vadd.f32 %v12577, %v13009
  %v13011 = vpop.f32.mrb[0].mxu0
  %v13012 = vpop.f32.mrb[0].mxu0
  %v13013 = vadd.f32 %v12577, %v13012
  %v13014 = vpop.f32.mrb[0].mxu0
  %13015 = vmatprep.mubr.bf16.mxu0 %v12516
  %13016 = vmatmul.mubr.bf16.gmra.mrb[0].mxu0 %v12515
  %v13017 = vpop.f32.mrb[0].mxu0
  %v13018 = vadd.f32 %v12577, %v13017
  %v13019 = vpop.f32.mrb[0].mxu0
  %v13020 = vpop.f32.mrb[0].mxu0
  %v13021 = vadd.f32 %v12577, %v13020
  %v13022 = vpop.f32.mrb[0].mxu0
  %13023 = vmatprep.mubr.bf16.mxu0 %v12519
  %13024 = vmatmul.mubr.bf16.gmra.mrb[0].mxu0 %v12518
  %v13025 = vpop.f32.mrb[0].mxu0
  %v13026 = vadd.f32 %v12577, %v13025
  %v13027 = vpop.f32.mrb[0].mxu0
  %v13028 = vpop.f32.mrb[0].mxu0
  %v13029 = vadd.f32 %v12577, %v13028
  %v13030 = vpop.f32.mrb[0].mxu0
  %13031 = vmatprep.mubr.bf16.mxu0 %v12522
  %13032 = vmatmul.mubr.bf16.gmra.mrb[0].mxu0 %v12521
  %v13033 = vpop.f32.mrb[0].mxu0
  %v13034 = vadd.f32 %v12577, %v13033
  %v13035 = vpop.f32.mrb[0].mxu0
  %v13036 = vpop.f32.mrb[0].mxu0
  %v13037 = vadd.f32 %v12577, %v13036
  %v13038 = vpop.f32.mrb[0].mxu0
  %13039 = vmatprep.mubr.bf16.mxu0 %v12525
  %13040 = vmatmul.mubr.bf16.gmra.mrb[0].mxu0 %v12524
  %v13041 = vpop.f32.mrb[0].mxu0
  %v13042 = vadd.f32 %v12577, %v13041
  %v13043 = vpop.f32.mrb[0].mxu0
  %v13044 = vpop.f32.mrb[0].mxu0
  %v13045 = vadd.f32 %v12577, %v13044
  %v13046 = vpop.f32.mrb[0].mxu0
  %13047 = vmatprep.mubr.bf16.mxu0 %v12528
  %13048 = vmatmul.mubr.bf16.gmra.mrb[0].mxu0 %v12527
  %v13049 = vpop.f32.mrb[0].mxu0
  %v13050 = vadd.f32 %v12577, %v13049
  %v13051 = vpop.f32.mrb[0].mxu0
  %v13052 = vpop.f32.mrb[0].mxu0
  %v13053 = vadd.f32 %v12577, %v13052
  %v13054 = vpop.f32.mrb[0].mxu0
  %13055 = vmatprep.mubr.bf16.mxu0 %v12531
  %13056 = vmatmul.mubr.bf16.gmra.mrb[0].mxu0 %v12530
  %v13057 = vpop.f32.mrb[0].mxu0
  %v13058 = vadd.f32 %v12577, %v13057
  %v13059 = vpop.f32.mrb[0].mxu0
  %v13060 = vpop.f32.mrb[0].mxu0
  %v13061 = vadd.f32 %v12577, %v13060
  %v13062 = vpop.f32.mrb[0].mxu0
  %13063 = vmatprep.mubr.bf16.mxu0 %v12534
  %13064 = vmatmul.mubr.bf16.gmra.mrb[0].mxu0 %v12533
  %v13065 = vpop.f32.mrb[0].mxu0
  %v13066 = vadd.f32 %v12577, %v13065
  %v13067 = vpop.f32.mrb[0].mxu0
  %v13068 = vpop.f32.mrb[0].mxu0
  %v13069 = vadd.f32 %v12577, %v13068
  %v13070 = vpop.f32.mrb[0].mxu0
  %13071 = vdwg.mxu0
  %13072 = vmatprep.subr.bf16.mxu0 0
  %13073 = vmatpush1.bf16.msra.mxu0 %v12667
  %13074 = vmatprep.subr.bf16.mxu0 0
  %13075 = vmatpush1.bf16.msra.mxu0 %v12668
  %13076 = vmatprep.subr.bf16.mxu0 0
  %13077 = vmatpush1.bf16.msra.mxu0 0
  %13078 = vmatprep.subr.bf16.mxu0 0
  %13079 = vmatpush1.bf16.msra.mxu0 0
  %13080 = vmatprep.subr.bf16.mxu0 0
  %13081 = vmatpush1.bf16.msra.mxu0 0
  %13082 = vmatprep.subr.bf16.mxu0 0
  %13083 = vmatpush1.bf16.msra.mxu0 0
  %13084 = vmatprep.subr.bf16.mxu0 0
  %13085 = vmatpush1.bf16.msra.mxu0 0
  %13086 = vmatprep.subr.bf16.mxu0 0
  %13087 = vmatpush1.bf16.msra.mxu0 0
  %13088 = vmatprep.subr.bf16.mxu0 0
  %13089 = vmatpush1.bf16.msra.mxu0 0
  %13090 = vmatprep.subr.bf16.mxu0 0
  %13091 = vmatpush1.bf16.msra.mxu0 0
  %13092 = vmatprep.subr.bf16.mxu0 0
  %13093 = vmatpush1.bf16.msra.mxu0 0
  %13094 = vmatprep.subr.bf16.mxu0 0
  %13095 = vmatpush1.bf16.msra.mxu0 0
  %13096 = vmatprep.subr.bf16.mxu0 0
  %13097 = vmatpush1.bf16.msra.mxu0 0
  %13098 = vmatprep.subr.bf16.mxu0 0
  %13099 = vmatpush1.bf16.msra.mxu0 0
  %13100 = vmatprep.subr.bf16.mxu0 0
  %13101 = vmatpush1.bf16.msra.mxu0 0
  %13102 = vmatprep.subr.bf16.mxu0 0
  %13103 = vmatpush1.bf16.msra.mxu0 0
  %13104 = vmatprep.mubr.bf16.mxu0 0
  %13105 = vmatmul.mubr.bf16.gmra.mrb[0].mxu0 %v12688
  %v13106 = vpop.f32.mrb[0].mxu0
  %v13107 = vadd.f32 %v12818, %v13106
  %v13108 = vpop.f32.mrb[0].mxu0
  %v13109 = vpop.f32.mrb[0].mxu0
  %v13110 = vadd.f32 %v12821, %v13109
  %v13111 = vpop.f32.mrb[0].mxu0
  %13112 = vmatprep.mubr.bf16.mxu0 0
  %13113 = vmatmul.mubr.bf16.gmra.mrb[0].mxu0 %v12691
  %v13114 = vpop.f32.mrb[0].mxu0
  %v13115 = vadd.f32 %v12826, %v13114
  %v13116 = vpop.f32.mrb[0].mxu0
  %v13117 = vpop.f32.mrb[0].mxu0
  %v13118 = vadd.f32 %v12829, %v13117
  %v13119 = vpop.f32.mrb[0].mxu0
  %13120 = vmatprep.mubr.bf16.mxu0 0
  %13121 = vmatmul.mubr.bf16.gmra.mrb[0].mxu0 %v12694
  %v13122 = vpop.f32.mrb[0].mxu0
  %v13123 = vadd.f32 %v12834, %v13122
  %v13124 = vpop.f32.mrb[0].mxu0
  %v13125 = vpop.f32.mrb[0].mxu0
  %v13126 = vadd.f32 %v12837, %v13125
  %v13127 = vpop.f32.mrb[0].mxu0
  %13128 = vmatprep.mubr.bf16.mxu0 0
  %13129 = vmatmul.mubr.bf16.gmra.mrb[0].mxu0 %v12697
  %v13130 = vpop.f32.mrb[0].mxu0
  %v13131 = vadd.f32 %v12842, %v13130
  %v13132 = vpop.f32.mrb[0].mxu0
  %v13133 = vpop.f32.mrb[0].mxu0
  %v13134 = vadd.f32 %v12845, %v13133
  %v13135 = vpop.f32.mrb[0].mxu0
  %13136 = vmatprep.mubr.bf16.mxu0 0
  %13137 = vmatmul.mubr.bf16.gmra.mrb[0].mxu0 %v12700
  %v13138 = vpop.f32.mrb[0].mxu0
  %v13139 = vadd.f32 %v12850, %v13138
  %v13140 = vpop.f32.mrb[0].mxu0
  %v13141 = vpop.f32.mrb[0].mxu0
  %v13142 = vadd.f32 %v12853, %v13141
  %v13143 = vpop.f32.mrb[0].mxu0
  %13144 = vmatprep.mubr.bf16.mxu0 0
  %13145 = vmatmul.mubr.bf16.gmra.mrb[0].mxu0 %v12703
  %v13146 = vpop.f32.mrb[0].mxu0
  %v13147 = vadd.f32 %v12858, %v13146
  %v13148 = vpop.f32.mrb[0].mxu0
  %v13149 = vpop.f32.mrb[0].mxu0
  %v13150 = vadd.f32 %v12861, %v13149
  %v13151 = vpop.f32.mrb[0].mxu0
  %13152 = vmatprep.mubr.bf16.mxu0 0
  %13153 = vmatmul.mubr.bf16.gmra.mrb[0].mxu0 %v12706
  %v13154 = vpop.f32.mrb[0].mxu0
  %v13155 = vadd.f32 %v12866, %v13154
  %v13156 = vpop.f32.mrb[0].mxu0
  %v13157 = vpop.f32.mrb[0].mxu0
  %v13158 = vadd.f32 %v12869, %v13157
  %v13159 = vpop.f32.mrb[0].mxu0
  %13160 = vmatprep.mubr.bf16.mxu0 0
  %13161 = vmatmul.mubr.bf16.gmra.mrb[0].mxu0 %v12709
  %v13162 = vpop.f32.mrb[0].mxu0
  %v13163 = vadd.f32 %v12874, %v13162
  %v13164 = vpop.f32.mrb[0].mxu0
  %v13165 = vpop.f32.mrb[0].mxu0
  %v13166 = vadd.f32 %v12877, %v13165
  %v13167 = vpop.f32.mrb[0].mxu0
  %13168 = vmatprep.mubr.bf16.mxu0 0
  %13169 = vmatmul.mubr.bf16.gmra.mrb[0].mxu0 %v12712
  %v13170 = vpop.f32.mrb[0].mxu0
  %v13171 = vadd.f32 %v12882, %v13170
  %v13172 = vpop.f32.mrb[0].mxu0
  %v13173 = vpop.f32.mrb[0].mxu0
  %v13174 = vadd.f32 %v12885, %v13173
  %v13175 = vpop.f32.mrb[0].mxu0
  %13176 = vmatprep.mubr.bf16.mxu0 0
  %13177 = vmatmul.mubr.bf16.gmra.mrb[0].mxu0 %v12715
  %v13178 = vpop.f32.mrb[0].mxu0
  %v13179 = vadd.f32 %v12890, %v13178
  %v13180 = vpop.f32.mrb[0].mxu0
  %v13181 = vpop.f32.mrb[0].mxu0
  %v13182 = vadd.f32 %v12893, %v13181
  %v13183 = vpop.f32.mrb[0].mxu0
  %13184 = vmatprep.mubr.bf16.mxu0 0
  %13185 = vmatmul.mubr.bf16.gmra.mrb[0].mxu0 %v12718
  %v13186 = vpop.f32.mrb[0].mxu0
  %v13187 = vadd.f32 %v12898, %v13186
  %v13188 = vpop.f32.mrb[0].mxu0
  %v13189 = vpop.f32.mrb[0].mxu0
  %v13190 = vadd.f32 %v12901, %v13189
  %v13191 = vpop.f32.mrb[0].mxu0
  %13192 = vmatprep.mubr.bf16.mxu0 0
  %13193 = vmatmul.mubr.bf16.gmra.mrb[0].mxu0 %v12721
  %v13194 = vpop.f32.mrb[0].mxu0
  %v13195 = vadd.f32 %v12906, %v13194
  %v13196 = vpop.f32.mrb[0].mxu0
  %v13197 = vpop.f32.mrb[0].mxu0
  %v13198 = vadd.f32 %v12909, %v13197
  %v13199 = vpop.f32.mrb[0].mxu0
  %13200 = vmatprep.mubr.bf16.mxu0 0
  %13201 = vmatmul.mubr.bf16.gmra.mrb[0].mxu0 %v12724
  %v13202 = vpop.f32.mrb[0].mxu0
  %v13203 = vadd.f32 %v12914, %v13202
  %v13204 = vpop.f32.mrb[0].mxu0
  %v13205 = vpop.f32.mrb[0].mxu0
  %v13206 = vadd.f32 %v12917, %v13205
  %v13207 = vpop.f32.mrb[0].mxu0
  %13208 = vmatprep.mubr.bf16.mxu0 0
  %13209 = vmatmul.mubr.bf16.gmra.mrb[0].mxu0 %v12727
  %v13210 = vpop.f32.mrb[0].mxu0
  %v13211 = vadd.f32 %v12922, %v13210
  %v13212 = vpop.f32.mrb[0].mxu0
  %v13213 = vpop.f32.mrb[0].mxu0
  %v13214 = vadd.f32 %v12925, %v13213
  %v13215 = vpop.f32.mrb[0].mxu0
  %13216 = vmatprep.mubr.bf16.mxu0 0
  %13217 = vmatmul.mubr.bf16.gmra.mrb[0].mxu0 %v12730
  %v13218 = vpop.f32.mrb[0].mxu0
  %v13219 = vadd.f32 %v12930, %v13218
  %v13220 = vpop.f32.mrb[0].mxu0
  %v13221 = vpop.f32.mrb[0].mxu0
  %v13222 = vadd.f32 %v12933, %v13221
  %v13223 = vpop.f32.mrb[0].mxu0
  %13224 = vmatprep.mubr.bf16.mxu0 0
  %13225 = vmatmul.mubr.bf16.gmra.mrb[0].mxu0 %v12733
  %v13226 = vpop.f32.mrb[0].mxu0
  %v13227 = vadd.f32 %v12938, %v13226
  %v13228 = vpop.f32.mrb[0].mxu0
  %v13229 = vpop.f32.mrb[0].mxu0
  %v13230 = vadd.f32 %v12941, %v13229
  %v13231 = vpop.f32.mrb[0].mxu0
  %13232 = vmatprep.mubr.bf16.mxu0 0
  %13233 = vmatmul.mubr.bf16.gmra.mrb[0].mxu0 %v12736
  %v13234 = vpop.f32.mrb[0].mxu0
  %v13235 = vadd.f32 %v12946, %v13234
  %v13236 = vpop.f32.mrb[0].mxu0
  %v13237 = vpop.f32.mrb[0].mxu0
  %v13238 = vadd.f32 %v12949, %v13237
  %v13239 = vpop.f32.mrb[0].mxu0
  %13240 = vmatprep.mubr.bf16.mxu0 0
  %13241 = vmatmul.mubr.bf16.gmra.mrb[0].mxu0 %v12739
  %v13242 = vpop.f32.mrb[0].mxu0
  %v13243 = vadd.f32 %v12954, %v13242
  %v13244 = vpop.f32.mrb[0].mxu0
  %v13245 = vpop.f32.mrb[0].mxu0
  %v13246 = vadd.f32 %v12957, %v13245
  %v13247 = vpop.f32.mrb[0].mxu0
  %13248 = vmatprep.mubr.bf16.mxu0 0
  %13249 = vmatmul.mubr.bf16.gmra.mrb[0].mxu0 %v12742
  %v13250 = vpop.f32.mrb[0].mxu0
  %v13251 = vadd.f32 %v12962, %v13250
  %v13252 = vpop.f32.mrb[0].mxu0
  %v13253 = vpop.f32.mrb[0].mxu0
  %v13254 = vadd.f32 %v12965, %v13253
  %v13255 = vpop.f32.mrb[0].mxu0
  %13256 = vmatprep.mubr.bf16.mxu0 0
  %13257 = vmatmul.mubr.bf16.gmra.mrb[0].mxu0 %v12745
  %v13258 = vpop.f32.mrb[0].mxu0
  %v13259 = vadd.f32 %v12970, %v13258
  %v13260 = vpop.f32.mrb[0].mxu0
  %v13261 = vpop.f32.mrb[0].mxu0
  %v13262 = vadd.f32 %v12973, %v13261
  %v13263 = vpop.f32.mrb[0].mxu0
  %13264 = vmatprep.mubr.bf16.mxu0 0
  %13265 = vmatmul.mubr.bf16.gmra.mrb[0].mxu0 %v12748
  %v13266 = vpop.f32.mrb[0].mxu0
  %v13267 = vadd.f32 %v12978, %v13266
  %v13268 = vpop.f32.mrb[0].mxu0
  %v13269 = vpop.f32.mrb[0].mxu0
  %v13270 = vadd.f32 %v12981, %v13269
  %v13271 = vpop.f32.mrb[0].mxu0
  %13272 = vmatprep.mubr.bf16.mxu0 0
  %13273 = vmatmul.mubr.bf16.gmra.mrb[0].mxu0 %v12751
  %v13274 = vpop.f32.mrb[0].mxu0
  %v13275 = vadd.f32 %v12986, %v13274
  %v13276 = vpop.f32.mrb[0].mxu0
  %v13277 = vpop.f32.mrb[0].mxu0
  %v13278 = vadd.f32 %v12989, %v13277
  %v13279 = vpop.f32.mrb[0].mxu0
  %13280 = vmatprep.mubr.bf16.mxu0 0
  %13281 = vmatmul.mubr.bf16.gmra.mrb[0].mxu0 %v12754
  %v13282 = vpop.f32.mrb[0].mxu0
  %v13283 = vadd.f32 %v12994, %v13282
  %v13284 = vpop.f32.mrb[0].mxu0
  %v13285 = vpop.f32.mrb[0].mxu0
  %v13286 = vadd.f32 %v12997, %v13285
  %v13287 = vpop.f32.mrb[0].mxu0
  %13288 = vmatprep.mubr.bf16.mxu0 0
  %13289 = vmatmul.mubr.bf16.gmra.mrb[0].mxu0 %v12757
  %v13290 = vpop.f32.mrb[0].mxu0
  %v13291 = vadd.f32 %v13002, %v13290
  %v13292 = vpop.f32.mrb[0].mxu0
  %v13293 = vpop.f32.mrb[0].mxu0
  %v13294 = vadd.f32 %v13005, %v13293
  %v13295 = vpop.f32.mrb[0].mxu0
  %13296 = vmatprep.mubr.bf16.mxu0 0
  %13297 = vmatmul.mubr.bf16.gmra.mrb[0].mxu0 %v12760
  %v13298 = vpop.f32.mrb[0].mxu0
  %v13299 = vadd.f32 %v13010, %v13298
  %v13300 = vpop.f32.mrb[0].mxu0
  %v13301 = vpop.f32.mrb[0].mxu0
  %v13302 = vadd.f32 %v13013, %v13301
  %v13303 = vpop.f32.mrb[0].mxu0
  %13304 = vmatprep.mubr.bf16.mxu0 0
  %13305 = vmatmul.mubr.bf16.gmra.mrb[0].mxu0 %v12763
  %v13306 = vpop.f32.mrb[0].mxu0
  %v13307 = vadd.f32 %v13018, %v13306
  %v13308 = vpop.f32.mrb[0].mxu0
  %v13309 = vpop.f32.mrb[0].mxu0
  %v13310 = vadd.f32 %v13021, %v13309
  %v13311 = vpop.f32.mrb[0].mxu0
  %13312 = vmatprep.mubr.bf16.mxu0 0
  %13313 = vmatmul.mubr.bf16.gmra.mrb[0].mxu0 %v12766
  %v13314 = vpop.f32.mrb[0].mxu0
  %v13315 = vadd.f32 %v13026, %v13314
  %v13316 = vpop.f32.mrb[0].mxu0
  %v13317 = vpop.f32.mrb[0].mxu0
  %v13318 = vadd.f32 %v13029, %v13317
  %v13319 = vpop.f32.mrb[0].mxu0
  %13320 = vmatprep.mubr.bf16.mxu0 0
  %13321 = vmatmul.mubr.bf16.gmra.mrb[0].mxu0 %v12769
  %v13322 = vpop.f32.mrb[0].mxu0
  %v13323 = vadd.f32 %v13034, %v13322
  %v13324 = vpop.f32.mrb[0].mxu0
  %v13325 = vpop.f32.mrb[0].mxu0
  %v13326 = vadd.f32 %v13037, %v13325
  %v13327 = vpop.f32.mrb[0].mxu0
  %13328 = vmatprep.mubr.bf16.mxu0 0
  %13329 = vmatmul.mubr.bf16.gmra.mrb[0].mxu0 %v12772
  %v13330 = vpop.f32.mrb[0].mxu0
  %v13331 = vadd.f32 %v13042, %v13330
  %v13332 = vpop.f32.mrb[0].mxu0
  %v13333 = vpop.f32.mrb[0].mxu0
  %v13334 = vadd.f32 %v13045, %v13333
  %v13335 = vpop.f32.mrb[0].mxu0
  %13336 = vmatprep.mubr.bf16.mxu0 0
  %13337 = vmatmul.mubr.bf16.gmra.mrb[0].mxu0 %v12775
  %v13338 = vpop.f32.mrb[0].mxu0
  %v13339 = vadd.f32 %v13050, %v13338
  %v13340 = vpop.f32.mrb[0].mxu0
  %v13341 = vpop.f32.mrb[0].mxu0
  %v13342 = vadd.f32 %v13053, %v13341
  %v13343 = vpop.f32.mrb[0].mxu0
  %13344 = vmatprep.mubr.bf16.mxu0 0
  %13345 = vmatmul.mubr.bf16.gmra.mrb[0].mxu0 %v12778
  %v13346 = vpop.f32.mrb[0].mxu0
  %v13347 = vadd.f32 %v13058, %v13346
  %v13348 = vpop.f32.mrb[0].mxu0
  %v13349 = vpop.f32.mrb[0].mxu0
  %v13350 = vadd.f32 %v13061, %v13349
  %v13351 = vpop.f32.mrb[0].mxu0
  %13352 = vmatprep.mubr.bf16.mxu0 0
  %13353 = vmatmul.mubr.bf16.gmra.mrb[0].mxu0 %v12781
  %v13354 = vpop.f32.mrb[0].mxu0
  %v13355 = vadd.f32 %v13066, %v13354
  %v13356 = vpop.f32.mrb[0].mxu0
  %v13357 = vpop.f32.mrb[0].mxu0
  %v13358 = vadd.f32 %v13069, %v13357
  %v13359 = vpop.f32.mrb[0].mxu0
  %13360 = vdwg.mxu0
  %v13361 = vpack.c.bf16 %v13110, %v13107
  %v13362 = vpack.c.bf16 %v13118, %v13115
  %v13363 = vpack.c.bf16 %v13126, %v13123
  %v13364 = vpack.c.bf16 %v13134, %v13131
  %v13365 = vpack.c.bf16 %v13142, %v13139
  %v13366 = vpack.c.bf16 %v13150, %v13147
  %v13367 = vpack.c.bf16 %v13158, %v13155
  %v13368 = vpack.c.bf16 %v13166, %v13163
  %v13369 = vpack.c.bf16 %v13174, %v13171
  %v13370 = vpack.c.bf16 %v13182, %v13179
  %v13371 = vpack.c.bf16 %v13190, %v13187
  %v13372 = vpack.c.bf16 %v13198, %v13195
  %v13373 = vpack.c.bf16 %v13206, %v13203
  %v13374 = vpack.c.bf16 %v13214, %v13211
  %v13375 = vpack.c.bf16 %v13222, %v13219
  %v13376 = vpack.c.bf16 %v13230, %v13227
  %v13377 = vpack.c.bf16 %v13238, %v13235
  %v13378 = vpack.c.bf16 %v13246, %v13243
  %v13379 = vpack.c.bf16 %v13254, %v13251
  %v13380 = vpack.c.bf16 %v13262, %v13259
  %v13381 = vpack.c.bf16 %v13270, %v13267
  %v13382 = vpack.c.bf16 %v13278, %v13275
  %v13383 = vpack.c.bf16 %v13286, %v13283
  %v13384 = vpack.c.bf16 %v13294, %v13291
  %v13385 = vpack.c.bf16 %v13302, %v13299
  %v13386 = vpack.c.bf16 %v13310, %v13307
  %v13387 = vpack.c.bf16 %v13318, %v13315
  %v13388 = vpack.c.bf16 %v13326, %v13323
  %v13389 = vpack.c.bf16 %v13334, %v13331
  %v13390 = vpack.c.bf16 %v13342, %v13339
  %v13391 = vpack.c.bf16 %v13350, %v13347
  %v13392 = vpack.c.bf16 %v13358, %v13355
  %v13425 = vunpack.c.l.b16 %v13361
  %v13426 = vunpack.c.h.b16 %v13361
  %v13427 = vunpack.c.l.b16 %v13362
  %v13428 = vunpack.c.h.b16 %v13362
  %v13429 = vunpack.c.l.b16 %v13363
  %v13430 = vunpack.c.h.b16 %v13363
  %v13431 = vunpack.c.l.b16 %v13364
  %v13432 = vunpack.c.h.b16 %v13364
  %v13433 = vunpack.c.l.b16 %v13365
  %v13434 = vunpack.c.h.b16 %v13365
  %v13435 = vunpack.c.l.b16 %v13366
  %v13436 = vunpack.c.h.b16 %v13366
  %v13437 = vunpack.c.l.b16 %v13367
  %v13438 = vunpack.c.h.b16 %v13367
  %v13439 = vunpack.c.l.b16 %v13368
  %v13440 = vunpack.c.h.b16 %v13368
  %v13441 = vunpack.c.l.b16 %v13369
  %v13442 = vunpack.c.h.b16 %v13369
  %v13443 = vunpack.c.l.b16 %v13370
  %v13444 = vunpack.c.h.b16 %v13370
  %v13445 = vunpack.c.l.b16 %v13371
  %v13446 = vunpack.c.h.b16 %v13371
  %v13447 = vunpack.c.l.b16 %v13372
  %v13448 = vunpack.c.h.b16 %v13372
  %v13449 = vunpack.c.l.b16 %v13373
  %v13450 = vunpack.c.h.b16 %v13373
  %v13451 = vunpack.c.l.b16 %v13374
  %v13452 = vunpack.c.h.b16 %v13374
  %v13453 = vunpack.c.l.b16 %v13375
  %v13454 = vunpack.c.h.b16 %v13375
  %v13455 = vunpack.c.l.b16 %v13376
  %v13456 = vunpack.c.h.b16 %v13376
  %v13457 = vunpack.c.l.b16 %v13377
  %v13458 = vunpack.c.h.b16 %v13377
  %v13459 = vunpack.c.l.b16 %v13378
  %v13460 = vunpack.c.h.b16 %v13378
  %v13461 = vunpack.c.l.b16 %v13379
  %v13462 = vunpack.c.h.b16 %v13379
  %v13463 = vunpack.c.l.b16 %v13380
  %v13464 = vunpack.c.h.b16 %v13380
  %v13465 = vunpack.c.l.b16 %v13381
  %v13466 = vunpack.c.h.b16 %v13381
  %v13467 = vunpack.c.l.b16 %v13382
  %v13468 = vunpack.c.h.b16 %v13382
  %v13469 = vunpack.c.l.b16 %v13383
  %v13470 = vunpack.c.h.b16 %v13383
  %v13471 = vunpack.c.l.b16 %v13384
  %v13472 = vunpack.c.h.b16 %v13384
  %v13473 = vunpack.c.l.b16 %v13385
  %v13474 = vunpack.c.h.b16 %v13385
  %v13475 = vunpack.c.l.b16 %v13386
  %v13476 = vunpack.c.h.b16 %v13386
  %v13477 = vunpack.c.l.b16 %v13387
  %v13478 = vunpack.c.h.b16 %v13387
  %v13479 = vunpack.c.l.b16 %v13388
  %v13480 = vunpack.c.h.b16 %v13388
  %v13481 = vunpack.c.l.b16 %v13389
  %v13482 = vunpack.c.h.b16 %v13389
  %v13483 = vunpack.c.l.b16 %v13390
  %v13484 = vunpack.c.h.b16 %v13390
  %v13485 = vunpack.c.l.b16 %v13391
  %v13486 = vunpack.c.h.b16 %v13391
  %v13487 = vunpack.c.l.b16 %v13392
  %v13488 = vunpack.c.h.b16 %v13392
  %v13489 = vpack.c.b16 %v13425, %v13425
  %v13490 = vpack.c.b16 %v13426, %v13426
  %v13491 = vpack.c.b16 %v13427, %v13427
  %v13492 = vpack.c.b16 %v13428, %v13428
  %v13493 = vpack.c.b16 %v13429, %v13429
  %v13494 = vpack.c.b16 %v13430, %v13430
  %v13495 = vpack.c.b16 %v13431, %v13431
  %v13496 = vpack.c.b16 %v13432, %v13432
  %v13497 = vpack.c.b16 %v13433, %v13433
  %v13498 = vpack.c.b16 %v13434, %v13434
  %v13499 = vpack.c.b16 %v13435, %v13435
  %v13500 = vpack.c.b16 %v13436, %v13436
  %v13501 = vpack.c.b16 %v13437, %v13437
  %v13502 = vpack.c.b16 %v13438, %v13438
  %v13503 = vpack.c.b16 %v13439, %v13439
  %v13504 = vpack.c.b16 %v13440, %v13440
  %v13505 = vpack.c.b16 %v13441, %v13441
  %v13506 = vpack.c.b16 %v13442, %v13442
  %v13507 = vpack.c.b16 %v13443, %v13443
  %v13508 = vpack.c.b16 %v13444, %v13444
  %v13509 = vpack.c.b16 %v13445, %v13445
  %v13510 = vpack.c.b16 %v13446, %v13446
  %v13511 = vpack.c.b16 %v13447, %v13447
  %v13512 = vpack.c.b16 %v13448, %v13448
  %v13513 = vpack.c.b16 %v13449, %v13449
  %v13514 = vpack.c.b16 %v13450, %v13450
  %v13515 = vpack.c.b16 %v13451, %v13451
  %v13516 = vpack.c.b16 %v13452, %v13452
  %v13517 = vpack.c.b16 %v13453, %v13453
  %v13518 = vpack.c.b16 %v13454, %v13454
  %v13519 = vpack.c.b16 %v13455, %v13455
  %v13520 = vpack.c.b16 %v13456, %v13456
  %v13521 = vpack.c.b16 %v13457, %v13457
  %v13522 = vpack.c.b16 %v13458, %v13458
  %v13523 = vpack.c.b16 %v13459, %v13459
  %v13524 = vpack.c.b16 %v13460, %v13460
  %v13525 = vpack.c.b16 %v13461, %v13461
  %v13526 = vpack.c.b16 %v13462, %v13462
  %v13527 = vpack.c.b16 %v13463, %v13463
  %v13528 = vpack.c.b16 %v13464, %v13464
  %v13529 = vpack.c.b16 %v13465, %v13465
  %v13530 = vpack.c.b16 %v13466, %v13466
  %v13531 = vpack.c.b16 %v13467, %v13467
  %v13532 = vpack.c.b16 %v13468, %v13468
  %v13533 = vpack.c.b16 %v13469, %v13469
  %v13534 = vpack.c.b16 %v13470, %v13470
  %v13535 = vpack.c.b16 %v13471, %v13471
  %v13536 = vpack.c.b16 %v13472, %v13472
  %v13537 = vpack.c.b16 %v13473, %v13473
  %v13538 = vpack.c.b16 %v13474, %v13474
  %v13539 = vpack.c.b16 %v13475, %v13475
  %v13540 = vpack.c.b16 %v13476, %v13476
  %v13541 = vpack.c.b16 %v13477, %v13477
  %v13542 = vpack.c.b16 %v13478, %v13478
  %v13543 = vpack.c.b16 %v13479, %v13479
  %v13544 = vpack.c.b16 %v13480, %v13480
  %v13545 = vpack.c.b16 %v13481, %v13481
  %v13546 = vpack.c.b16 %v13482, %v13482
  %v13547 = vpack.c.b16 %v13483, %v13483
  %v13548 = vpack.c.b16 %v13484, %v13484
  %v13549 = vpack.c.b16 %v13485, %v13485
  %v13550 = vpack.c.b16 %v13486, %v13486
  %v13551 = vpack.c.b16 %v13487, %v13487
  %v13552 = vpack.c.b16 %v13488, %v13488
  %13617 = vst [vmem:[%s8] sm:$0xf] %v13489
  %13618 = vst [vmem:[%s8 + $0x4] sm:$0xf] %v13490
  %13619 = vst [vmem:[%s8 + $0x8] sm:$0xf] %v13491
  %13620 = vst [vmem:[%s8 + $0xc] sm:$0xf] %v13492
  %13621 = vst [vmem:[%s8 + $0x10] sm:$0xf] %v13493
  %13622 = vst [vmem:[%s8 + $0x14] sm:$0xf] %v13494
  %13623 = vst [vmem:[%s8 + $0x18] sm:$0xf] %v13495
  %13624 = vst [vmem:[%s8 + $0x1c] sm:$0xf] %v13496
  %13625 = vst [vmem:[%s8 + $0x20] sm:$0xf] %v13497
  %13626 = vst [vmem:[%s8 + $0x24] sm:$0xf] %v13498
  %13627 = vst [vmem:[%s8 + $0x28] sm:$0xf] %v13499
  %13628 = vst [vmem:[%s8 + $0x2c] sm:$0xf] %v13500
  %13629 = vst [vmem:[%s8 + $0x30] sm:$0xf] %v13501
  %13630 = vst [vmem:[%s8 + $0x34] sm:$0xf] %v13502
  %13631 = vst [vmem:[%s8 + $0x38] sm:$0xf] %v13503
  %13632 = vst [vmem:[%s8 + $0x3c] sm:$0xf] %v13504
  %13633 = vst [vmem:[%s8 + $0x40] sm:$0xf] %v13505
  %13634 = vst [vmem:[%s8 + $0x44] sm:$0xf] %v13506
  %13635 = vst [vmem:[%s8 + $0x48] sm:$0xf] %v13507
  %13636 = vst [vmem:[%s8 + $0x4c] sm:$0xf] %v13508
  %13637 = vst [vmem:[%s8 + $0x50] sm:$0xf] %v13509
  %13638 = vst [vmem:[%s8 + $0x54] sm:$0xf] %v13510
  %13639 = vst [vmem:[%s8 + $0x58] sm:$0xf] %v13511
  %13640 = vst [vmem:[%s8 + $0x5c] sm:$0xf] %v13512
  %13641 = vst [vmem:[%s8 + $0x60] sm:$0xf] %v13513
  %13642 = vst [vmem:[%s8 + $0x64] sm:$0xf] %v13514
  %13643 = vst [vmem:[%s8 + $0x68] sm:$0xf] %v13515
  %13644 = vst [vmem:[%s8 + $0x6c] sm:$0xf] %v13516
  %13645 = vst [vmem:[%s8 + $0x70] sm:$0xf] %v13517
  %13646 = vst [vmem:[%s8 + $0x74] sm:$0xf] %v13518
  %13647 = vst [vmem:[%s8 + $0x78] sm:$0xf] %v13519
  %13648 = vst [vmem:[%s8 + $0x7c] sm:$0xf] %v13520
  %13649 = vst [vmem:[%s8 + $0x80] sm:$0xf] %v13521
  %13650 = vst [vmem:[%s8 + $0x84] sm:$0xf] %v13522
  %13651 = vst [vmem:[%s8 + $0x88] sm:$0xf] %v13523
  %13652 = vst [vmem:[%s8 + $0x8c] sm:$0xf] %v13524
  %13653 = vst [vmem:[%s8 + $0x90] sm:$0xf] %v13525
  %13654 = vst [vmem:[%s8 + $0x94] sm:$0xf] %v13526
  %13655 = vst [vmem:[%s8 + $0x98] sm:$0xf] %v13527
  %13656 = vst [vmem:[%s8 + $0x9c] sm:$0xf] %v13528
  %13657 = vst [vmem:[%s8 + $0xa0] sm:$0xf] %v13529
  %13658 = vst [vmem:[%s8 + $0xa4] sm:$0xf] %v13530
  %13659 = vst [vmem:[%s8 + $0xa8] sm:$0xf] %v13531
  %13660 = vst [vmem:[%s8 + $0xac] sm:$0xf] %v13532
  %13661 = vst [vmem:[%s8 + $0xb0] sm:$0xf] %v13533
  %13662 = vst [vmem:[%s8 + $0xb4] sm:$0xf] %v13534
  %13663 = vst [vmem:[%s8 + $0xb8] sm:$0xf] %v13535
  %13664 = vst [vmem:[%s8 + $0xbc] sm:$0xf] %v13536
  %13665 = vst [vmem:[%s8 + $0xc0] sm:$0xf] %v13537
  %13666 = vst [vmem:[%s8 + $0xc4] sm:$0xf] %v13538
  %13667 = vst [vmem:[%s8 + $0xc8] sm:$0xf] %v13539
  %13668 = vst [vmem:[%s8 + $0xcc] sm:$0xf] %v13540
  %13669 = vst [vmem:[%s8 + $0xd0] sm:$0xf] %v13541
  %13670 = vst [vmem:[%s8 + $0xd4] sm:$0xf] %v13542
  %13671 = vst [vmem:[%s8 + $0xd8] sm:$0xf] %v13543
  %13672 = vst [vmem:[%s8 + $0xdc] sm:$0xf] %v13544
  %13673 = vst [vmem:[%s8 + $0xe0] sm:$0xf] %v13545
  %13674 = vst [vmem:[%s8 + $0xe4] sm:$0xf] %v13546
  %13675 = vst [vmem:[%s8 + $0xe8] sm:$0xf] %v13547
  %13676 = vst [vmem:[%s8 + $0xec] sm:$0xf] %v13548
  %13677 = vst [vmem:[%s8 + $0xf0] sm:$0xf] %v13549
  %13678 = vst [vmem:[%s8 + $0xf4] sm:$0xf] %v13550
  %13679 = vst [vmem:[%s8 + $0xf8] sm:$0xf] %v13551
  %13680 = vst [vmem:[%s8 + $0xfc] sm:$0xf] %v13552
  // Predicated region
  $region34: #{classifier_forward.1} parent=0 // pred_check
    _
  $region35: #{classifier_forward.1} parent=0 // pred_check_branch
    %13682 = sbr.rel (0) target = $region37
  $region36: #{classifier_forward.1} parent=0 // pred_region
    _
  $region37: #{classifier_forward.1} parent=0 // pred_fallthru
    _
  // Predicated region
  $region38: #{classifier_forward.1} parent=0 // pred_check
    _
  $region39: #{classifier_forward.1} parent=0 // pred_check_branch
    %13684 = sbr.rel (0) target = $region41
  $region40: #{classifier_forward.1} parent=0 // pred_region
    _
  $region41: #{classifier_forward.1} parent=0 // pred_fallthru
    _

</llo_original>
